<compile_context>
chip_gen: v6e
topology: v6e:2x2x1
jax: 0.10.0
libtpu: 0.0.40
codegen_flags: <defaults>
</compile_context>

<pallas_src>
import jax
import jax.numpy as jnp
import numpy as np
from jax import lax
from jax.experimental import pallas as pl
from jax.experimental.pallas import tpu as pltpu


# ---------------------------------------------------------------------------
# Kernel A: conv1 + relu + conv2 + relu + 2x2 maxpool, `block` images per step
# ---------------------------------------------------------------------------
def _conv_pool_kernel(x_ref, w1_ref, b1_ref, w2_ref, b2_ref, o_ref):
    blk = x_ref.shape[0]
    x = x_ref[...].reshape(blk * 144, 36)              # bf16; tile-preserving

    # Stage 1: conv1 (+bias,+relu) at all 16 (u,v) offsets of each pool window
    # -> this IS conv2's im2col patch, produced by one K=36 / N=512 matmul.
    p2 = jnp.dot(x, w1_ref[...], preferred_element_type=jnp.float32)
    p2 = jnp.maximum(p2 + b1_ref[...], 0.0)            # (blk*144, 512) f32

    # Stage 2: conv2 for the 4 pool-window members as ONE K=512 matmul; lane
    # group g = dy*2+dx holds the 64 output channels of pool member (dy,dx).
    z = jnp.dot(p2.astype(jnp.bfloat16), w2_ref[...],
                preferred_element_type=jnp.float32)
    z = jnp.maximum(z + b2_ref[...], 0.0)              # (blk*144, 256) f32

    # 2x2 maxpool == max over the 4 aligned 64-lane groups: no gather matmul,
    # no unaligned sublane slices, no relayouts.
    m = jnp.maximum(z[:, 0:128], z[:, 128:256])        # max over dy
    pooled = jnp.maximum(m[:, 0:64], m[:, 64:128])     # max over dx
    o_ref[...] = pooled.reshape(blk, 144, 64).astype(o_ref.dtype)


def conv_pool(p, w1, b1, w2, b2, *, block=None):
    n = p.shape[0]
    if block is None:
        # Biggest block that divides n while keeping >=2 grid steps (so both
        # v7x TensorCores get work); VMEM per step stays well under the 32MiB
        # default scoped limit even at block=16.
        block = 1
        for cand in (16, 8, 4, 2):
            if n % cand == 0 and n // cand >= 2:
                block = cand
                break
    return pl.pallas_call(
        _conv_pool_kernel,
        out_shape=jax.ShapeDtypeStruct((n, 144, 64), jnp.bfloat16),
        grid=(n // block,),
        in_specs=[
            pl.BlockSpec((block, 144, 36), lambda i: (i, 0, 0)),
            pl.BlockSpec((36, 512), lambda i: (0, 0)),
            pl.BlockSpec((1, 512), lambda i: (0, 0)),
            pl.BlockSpec((512, 256), lambda i: (0, 0)),
            pl.BlockSpec((1, 256), lambda i: (0, 0)),
        ],
        out_specs=pl.BlockSpec((block, 144, 64), lambda i: (i, 0, 0)),
        compiler_params=pltpu.CompilerParams(
            dimension_semantics=("parallel",)),
    )(p, w1, b1, w2, b2)


# ---------------------------------------------------------------------------
# Kernel B: fc1 + relu + log_softmax, single K step (weight is one 2.36MB
# bf16 block), no accumulator scratch, M axis 'parallel'.
# ---------------------------------------------------------------------------
def _fc1_relu_logsoftmax_kernel(x_ref, w_ref, b_ref, o_ref):
    h = jnp.dot(x_ref[...], w_ref[...], preferred_element_type=jnp.float32)
    h = jnp.maximum(h + b_ref[...], 0.0)                        # relu(fc1(x))
    mx = jnp.max(h, axis=1, keepdims=True)
    lse = jnp.log(jnp.sum(jnp.exp(h - mx), axis=1, keepdims=True)) + mx
    o_ref[...] = h - lse                                        # log_softmax


def fc1_relu_logsoftmax(x, w, b):
    M, K = x.shape
    N = w.shape[1]
    tm = 256 if (M % 256 == 0) else M          # M-tiling only for big batches
    return pl.pallas_call(
        _fc1_relu_logsoftmax_kernel,
        out_shape=jax.ShapeDtypeStruct((M, N), jnp.float32),
        grid=(M // tm,),
        in_specs=[
            pl.BlockSpec((tm, K), lambda i: (i, 0)),
            pl.BlockSpec((K, N), lambda i: (0, 0)),
            pl.BlockSpec((1, N), lambda i: (0, 0)),
        ],
        out_specs=pl.BlockSpec((tm, N), lambda i: (i, 0)),
        compiler_params=pltpu.CompilerParams(
            dimension_semantics=("parallel",)),
    )(x, w, b)


# ---------------------------------------------------------------------------
# Parameters: PyTorch-shaped init + one-time "pool-window" weight scatter
# ---------------------------------------------------------------------------
def init_params(key):
    """Deterministic init mirroring the PyTorch module's parameter shapes."""
    ks = jax.random.split(key, 8)

    def u(k, shape, fan_in):
        bound = 1.0 / jnp.sqrt(jnp.float32(fan_in))
        return jax.random.uniform(k, shape, jnp.float32, -bound, bound)

    return {
        "conv1_w": u(ks[0], (32, 1, 3, 3), 1 * 9),     # (Cout, Cin, kH, kW)
        "conv1_b": u(ks[1], (32,), 1 * 9),
        "conv2_w": u(ks[2], (64, 32, 3, 3), 32 * 9),
        "conv2_b": u(ks[3], (64,), 32 * 9),
        "fc1_w":   u(ks[4], (128, 9216), 9216),        # (out, in)
        "fc1_b":   u(ks[5], (128,), 9216),
        "fc2_w":   u(ks[6], (10, 128), 128),           # dead in returned value
        "fc2_b":   u(ks[7], (10,), 128),
    }


def prepare_params(params):
    """One-time weight re-layout (hoisted out of the forward).

    Builds the two fused "pool-window" matmul weights:
      w1_big (36, 512): column (u*4+v)*32+ci holds conv1 tap weights scattered
        onto the 6x6 input window of a pool cell, so x36 @ w1_big gives
        conv1(+relu later) at all 16 (u,v) positions of the window.
      w2_big (512, 256): column (dy*2+dx)*64+co holds conv2 tap weights
        scattered onto the 4x4 conv1-position grid, so patch @ w2_big gives the
        4 conv2 outputs of each 2x2 pool window.
    """
    w1 = jnp.transpose(params["conv1_w"], (2, 3, 1, 0)).reshape(9, 32)
    w2 = jnp.transpose(params["conv2_w"], (2, 3, 1, 0)).reshape(9, 32, 64)

    s1 = np.zeros((36, 16, 9), np.float32)
    for u in range(4):
        for v in range(4):
            for ty in range(3):
                for tx in range(3):
                    s1[(u + ty) * 6 + (v + tx), u * 4 + v, ty * 3 + tx] = 1.0
    w1_big = jnp.einsum("rup,pc->ruc", s1, w1).reshape(36, 512)

    s2 = np.zeros((16, 4, 9), np.float32)
    for dy in range(2):
        for dx in range(2):
            for ky in range(3):
                for kx in range(3):
                    s2[(dy + ky) * 4 + (dx + kx), dy * 2 + dx, ky * 3 + kx] = 1.0
    w2_big = jnp.einsum("ugp,pcn->ucgn", s2, w2).reshape(512, 256)

    # fc1: PyTorch flattens (C, H, W); our pooled features are (H, W, C).
    fw = params["fc1_w"].reshape(128, 64, 12, 12)
    fw = jnp.transpose(fw, (2, 3, 1, 0)).reshape(9216, 128)

    return {
        "w1": w1_big.astype(jnp.bfloat16),
        "b1": jnp.tile(params["conv1_b"], 16).reshape(1, 512).astype(jnp.float32),
        "w2": w2_big.astype(jnp.bfloat16),
        "b2": jnp.tile(params["conv2_b"], 4).reshape(1, 256).astype(jnp.float32),
        "fc1_w": fw.astype(jnp.bfloat16),
        "fc1_b": params["fc1_b"].reshape(1, 128).astype(jnp.float32),
    }


# ---------------------------------------------------------------------------
# Forward pass
# ---------------------------------------------------------------------------
def net_forward(prepped, x_nchw):
    """x_nchw: (N, 1, 28, 28) float32 (PyTorch NCHW). Returns (N, 128) f32."""
    n = x_nchw.shape[0]
    img = x_nchw[:, 0].astype(jnp.bfloat16)                  # (N, 28, 28)
    # 6x6 input window of every 2x2 pool cell (36 taps, stride-2 windows);
    # only ~10KB/image, replaces the old 9-column im2col.
    p = jnp.stack([img[:, e:e + 24:2, f:f + 24:2]
                   for e in range(6) for f in range(6)], axis=-1)
    p = p.reshape(n, 144, 36)                                 # (N, 144, 36) bf16

    pooled = conv_pool(p, prepped["w1"], prepped["b1"],
                       prepped["w2"], prepped["b2"])          # (N, 144, 64) bf16
    flat = pooled.reshape(n, 9216)       # free row-major view, (h'',w'',c) order

    # dropout1/dropout2 are identity at inference; fc2's output is discarded
    # by the reference forward, so only fc1 + relu + log_softmax is computed.
    return fc1_relu_logsoftmax(flat, prepped["fc1_w"], prepped["fc1_b"])


# ---------------------------------------------------------------------------
# Pure-JAX f32 reference (for a relaxed-tolerance correctness check)
# ---------------------------------------------------------------------------
def reference_forward(params, x_nchw):
    dn = ("NCHW", "OIHW", "NCHW")
    y = lax.conv_general_dilated(x_nchw, params["conv1_w"], (1, 1), "VALID",
                                 dimension_numbers=dn)
    y = jnp.maximum(y + params["conv1_b"][None, :, None, None], 0.0)
    y = lax.conv_general_dilated(y, params["conv2_w"], (1, 1), "VALID",
                                 dimension_numbers=dn)
    y = jnp.maximum(y + params["conv2_b"][None, :, None, None], 0.0)
    y = lax.reduce_window(y, -jnp.inf, lax.max, (1, 1, 2, 2), (1, 1, 2, 2),
                          "VALID")
    y = y.reshape(y.shape[0], -1)
    h = jnp.maximum(y @ params["fc1_w"].T + params["fc1_b"], 0.0)
    return jax.nn.log_softmax(h, axis=1)


if __name__ == "__main__":
    key = jax.random.PRNGKey(0)
    pkey, xkey = jax.random.split(key)
    params = init_params(pkey)
    prepped = prepare_params(params)

    # fc1 expects 9216 = 64 * 12 * 12 features => the input must be 28x28.
    x = jax.random.normal(xkey, (2, 1, 28, 28), jnp.float32)

    out = jax.jit(net_forward)(prepped, x)
    jax.block_until_ready(out)
    assert out.shape == (2, 128)
    # relaxed tolerance vs f32 reference (bf16 matmul operands, f32 accumulate)
    ref = reference_forward(params, x)
    assert bool(jnp.max(jnp.abs(out - ref)) < 7e-2)
    # rows of a log_softmax exponentiate+sum to ~1
    assert bool(jnp.all(jnp.abs(jnp.sum(jnp.exp(out), axis=1) - 1.0) < 1e-3))
    print("KERNEL_OK")
</pallas_src>

<mosaic_0001>
module attributes {stable_mosaic.version = 11 : i64} {
  func.func @_fc1_relu_logsoftmax_kernel(%arg0: i32, %arg1: memref<2x9216xbf16, #tpu.memory_space<vmem>>, %arg2: memref<9216x128xbf16, #tpu.memory_space<vmem>>, %arg3: memref<1x128xf32, #tpu.memory_space<vmem>>, %arg4: memref<2x128xf32, #tpu.memory_space<vmem>>) attributes {dimension_semantics = [#tpu.dimension_semantics<parallel>], iteration_bounds = array<i64: 1>, scalar_prefetch = 0 : i64, scratch_operands = 0 : i64, tpu.core_type = #tpu.core_type<tc>, window_params = [{transform_indices = @transform_0, window_bounds = array<i64: 2, 9216>}, {pipeline_mode = #tpu.pipeline_mode<synchronous>, transform_indices = @transform_1, window_bounds = array<i64: 9216, 128>}, {pipeline_mode = #tpu.pipeline_mode<synchronous>, transform_indices = @transform_2, window_bounds = array<i64: 1, 128>}, {transform_indices = @transform_3, window_bounds = array<i64: 2, 128>}]} {
    %c0 = arith.constant 0 : index
    %c0_0 = arith.constant 0 : index
    %0 = vector.load %arg1[%c0, %c0_0] : memref<2x9216xbf16, #tpu.memory_space<vmem>>, vector<2x9216xbf16>
    %c0_1 = arith.constant 0 : index
    %c0_2 = arith.constant 0 : index
    %1 = vector.load %arg2[%c0_1, %c0_2] : memref<9216x128xbf16, #tpu.memory_space<vmem>>, vector<9216x128xbf16>
    %cst = arith.constant dense<0.000000e+00> : vector<2x128xf32>
    %2 = tpu.matmul %0, %1, %cst {dimension_numbers = #tpu.dot_dimension_numbers<[1], [0], [0], [1], [0, 0, 1, 1], [], []>} : vector<2x9216xbf16>, vector<9216x128xbf16>, vector<2x128xf32> -> vector<2x128xf32>
    %c0_3 = arith.constant 0 : index
    %c0_4 = arith.constant 0 : index
    %3 = vector.load %arg3[%c0_3, %c0_4] : memref<1x128xf32, #tpu.memory_space<vmem>>, vector<1x128xf32>
    %4 = vector.broadcast %3 : vector<1x128xf32> to vector<2x128xf32>
    %5 = arith.addf %2, %4 : vector<2x128xf32>
    %cst_5 = arith.constant 0.000000e+00 : f32
    %6 = vector.broadcast %cst_5 : f32 to vector<2x128xf32>
    %7 = arith.maximumf %5, %6 : vector<2x128xf32>
    %cst_6 = arith.constant dense<0xFF800000> : vector<2xf32>
    %8 = vector.multi_reduction <maximumf>, %7, %cst_6 [1] : vector<2x128xf32> to vector<2xf32>
    %9 = vector.shape_cast %8 : vector<2xf32> to vector<2x1xf32>
    %10 = vector.broadcast %9 : vector<2x1xf32> to vector<2x128xf32>
    %11 = arith.subf %7, %10 : vector<2x128xf32>
    %12 = math.exp %11 : vector<2x128xf32>
    %cst_7 = arith.constant dense<0.000000e+00> : vector<2xf32>
    %13 = vector.multi_reduction <add>, %12, %cst_7 [1] : vector<2x128xf32> to vector<2xf32>
    %14 = vector.shape_cast %13 : vector<2xf32> to vector<2x1xf32>
    %15 = math.log %14 : vector<2x1xf32>
    %16 = arith.addf %15, %9 : vector<2x1xf32>
    %17 = vector.broadcast %16 : vector<2x1xf32> to vector<2x128xf32>
    %18 = arith.subf %7, %17 : vector<2x128xf32>
    %c0_8 = arith.constant 0 : index
    %c0_9 = arith.constant 0 : index
    %19 = vector.load %arg4[%c0_8, %c0_9] : memref<2x128xf32, #tpu.memory_space<vmem>>, vector<2x128xf32>
    tpu.vector_store %arg4[%c0_8, %c0_9], %18 {strides = array<i32>} : memref<2x128xf32, #tpu.memory_space<vmem>>, vector<2x128xf32>,
    return
  }
  func.func @transform_0(%arg0: i32) -> (i32, i32) {
    %c0_i32 = arith.constant 0 : i32
    %c0_i32_0 = arith.constant 0 : i32
    return %arg0, %c0_i32 : i32, i32
  }
  func.func @transform_1(%arg0: i32) -> (i32, i32) {
    %c0_i32 = arith.constant 0 : i32
    %c0_i32_0 = arith.constant 0 : i32
    %c0_i32_1 = arith.constant 0 : i32
    return %c0_i32, %c0_i32_0 : i32, i32
  }
  func.func @transform_2(%arg0: i32) -> (i32, i32) {
    %c0_i32 = arith.constant 0 : i32
    %c0_i32_0 = arith.constant 0 : i32
    %c0_i32_1 = arith.constant 0 : i32
    return %c0_i32, %c0_i32_0 : i32, i32
  }
  func.func @transform_3(%arg0: i32) -> (i32, i32) {
    %c0_i32 = arith.constant 0 : i32
    %c0_i32_0 = arith.constant 0 : i32
    return %arg0, %c0_i32 : i32, i32
  }
}

module attributes {stable_mosaic.version = 11 : i64} {
  func.func @_conv_pool_kernel(%arg0: i32, %arg1: memref<1x144x36xbf16, #tpu.memory_space<vmem>>, %arg2: memref<36x512xbf16, #tpu.memory_space<vmem>>, %arg3: memref<1x512xf32, #tpu.memory_space<vmem>>, %arg4: memref<512x256xbf16, #tpu.memory_space<vmem>>, %arg5: memref<1x256xf32, #tpu.memory_space<vmem>>, %arg6: memref<1x144x64xbf16, #tpu.memory_space<vmem>>) attributes {dimension_semantics = [#tpu.dimension_semantics<parallel>], iteration_bounds = array<i64: 2>, scalar_prefetch = 0 : i64, scratch_operands = 0 : i64, tpu.core_type = #tpu.core_type<tc>, window_params = [{transform_indices = @transform_0, window_bounds = array<i64: 1, 144, 36>}, {pipeline_mode = #tpu.pipeline_mode<synchronous>, transform_indices = @transform_1, window_bounds = array<i64: 36, 512>}, {pipeline_mode = #tpu.pipeline_mode<synchronous>, transform_indices = @transform_2, window_bounds = array<i64: 1, 512>}, {pipeline_mode = #tpu.pipeline_mode<synchronous>, transform_indices = @transform_3, window_bounds = array<i64: 512, 256>}, {pipeline_mode = #tpu.pipeline_mode<synchronous>, transform_indices = @transform_4, window_bounds = array<i64: 1, 256>}, {transform_indices = @transform_5, window_bounds = array<i64: 1, 144, 64>}]} {
    %c0 = arith.constant 0 : index
    %c0_0 = arith.constant 0 : index
    %c0_1 = arith.constant 0 : index
    %0 = vector.load %arg1[%c0, %c0_0, %c0_1] : memref<1x144x36xbf16, #tpu.memory_space<vmem>>, vector<1x144x36xbf16>
    %1 = vector.shape_cast %0 : vector<1x144x36xbf16> to vector<144x36xbf16>
    %c0_2 = arith.constant 0 : index
    %c0_3 = arith.constant 0 : index
    %2 = vector.load %arg2[%c0_2, %c0_3] : memref<36x512xbf16, #tpu.memory_space<vmem>>, vector<36x512xbf16>
    %cst = arith.constant dense<0.000000e+00> : vector<144x512xf32>
    %3 = tpu.matmul %1, %2, %cst {dimension_numbers = #tpu.dot_dimension_numbers<[1], [0], [0], [1], [0, 0, 1, 1], [], []>} : vector<144x36xbf16>, vector<36x512xbf16>, vector<144x512xf32> -> vector<144x512xf32>
    %c0_4 = arith.constant 0 : index
    %c0_5 = arith.constant 0 : index
    %4 = vector.load %arg3[%c0_4, %c0_5] : memref<1x512xf32, #tpu.memory_space<vmem>>, vector<1x512xf32>
    %5 = vector.broadcast %4 : vector<1x512xf32> to vector<144x512xf32>
    %6 = arith.addf %3, %5 : vector<144x512xf32>
    %cst_6 = arith.constant 0.000000e+00 : f32
    %7 = vector.broadcast %cst_6 : f32 to vector<144x512xf32>
    %8 = arith.maximumf %6, %7 : vector<144x512xf32>
    %9 = arith.truncf %8 : vector<144x512xf32> to vector<144x512xbf16>
    %c0_7 = arith.constant 0 : index
    %c0_8 = arith.constant 0 : index
    %10 = vector.load %arg4[%c0_7, %c0_8] : memref<512x256xbf16, #tpu.memory_space<vmem>>, vector<512x256xbf16>
    %cst_9 = arith.constant dense<0.000000e+00> : vector<144x256xf32>
    %11 = tpu.matmul %9, %10, %cst_9 {dimension_numbers = #tpu.dot_dimension_numbers<[1], [0], [0], [1], [0, 0, 1, 1], [], []>} : vector<144x512xbf16>, vector<512x256xbf16>, vector<144x256xf32> -> vector<144x256xf32>
    %c0_10 = arith.constant 0 : index
    %c0_11 = arith.constant 0 : index
    %12 = vector.load %arg5[%c0_10, %c0_11] : memref<1x256xf32, #tpu.memory_space<vmem>>, vector<1x256xf32>
    %13 = vector.broadcast %12 : vector<1x256xf32> to vector<144x256xf32>
    %14 = arith.addf %11, %13 : vector<144x256xf32>
    %cst_12 = arith.constant 0.000000e+00 : f32
    %15 = vector.broadcast %cst_12 : f32 to vector<144x256xf32>
    %16 = arith.maximumf %14, %15 : vector<144x256xf32>
    %17 = vector.extract_strided_slice %16 {offsets = [0, 0], sizes = [144, 128], strides = [1, 1]} : vector<144x256xf32> to vector<144x128xf32>
    %18 = vector.extract_strided_slice %16 {offsets = [0, 128], sizes = [144, 128], strides = [1, 1]} : vector<144x256xf32> to vector<144x128xf32>
    %19 = arith.maximumf %17, %18 : vector<144x128xf32>
    %20 = vector.extract_strided_slice %19 {offsets = [0, 0], sizes = [144, 64], strides = [1, 1]} : vector<144x128xf32> to vector<144x64xf32>
    %21 = vector.extract_strided_slice %19 {offsets = [0, 64], sizes = [144, 64], strides = [1, 1]} : vector<144x128xf32> to vector<144x64xf32>
    %22 = arith.maximumf %20, %21 : vector<144x64xf32>
    %23 = vector.shape_cast %22 : vector<144x64xf32> to vector<1x144x64xf32>
    %24 = arith.truncf %23 : vector<1x144x64xf32> to vector<1x144x64xbf16>
    %c0_13 = arith.constant 0 : index
    %c0_14 = arith.constant 0 : index
    %c0_15 = arith.constant 0 : index
    %25 = vector.load %arg6[%c0_13, %c0_14, %c0_15] : memref<1x144x64xbf16, #tpu.memory_space<vmem>>, vector<1x144x64xbf16>
    tpu.vector_store %arg6[%c0_13, %c0_14, %c0_15], %24 {strides = array<i32>} : memref<1x144x64xbf16, #tpu.memory_space<vmem>>, vector<1x144x64xbf16>,
    return
  }
  func.func @transform_0(%arg0: i32) -> (i32, i32, i32) {
    %c0_i32 = arith.constant 0 : i32
    %c0_i32_0 = arith.constant 0 : i32
    %c0_i32_1 = arith.constant 0 : i32
    return %arg0, %c0_i32, %c0_i32_0 : i32, i32, i32
  }
  func.func @transform_1(%arg0: i32) -> (i32, i32) {
    %c0_i32 = arith.constant 0 : i32
    %c0_i32_0 = arith.constant 0 : i32
    %c0_i32_1 = arith.constant 0 : i32
    return %c0_i32, %c0_i32_0 : i32, i32
  }
  func.func @transform_2(%arg0: i32) -> (i32, i32) {
    %c0_i32 = arith.constant 0 : i32
    %c0_i32_0 = arith.constant 0 : i32
    %c0_i32_1 = arith.constant 0 : i32
    return %c0_i32, %c0_i32_0 : i32, i32
  }
  func.func @transform_3(%arg0: i32) -> (i32, i32) {
    %c0_i32 = arith.constant 0 : i32
    %c0_i32_0 = arith.constant 0 : i32
    %c0_i32_1 = arith.constant 0 : i32
    return %c0_i32, %c0_i32_0 : i32, i32
  }
  func.func @transform_4(%arg0: i32) -> (i32, i32) {
    %c0_i32 = arith.constant 0 : i32
    %c0_i32_0 = arith.constant 0 : i32
    %c0_i32_1 = arith.constant 0 : i32
    return %c0_i32, %c0_i32_0 : i32, i32
  }
  func.func @transform_5(%arg0: i32) -> (i32, i32, i32) {
    %c0_i32 = arith.constant 0 : i32
    %c0_i32_0 = arith.constant 0 : i32
    %c0_i32_1 = arith.constant 0 : i32
    return %arg0, %c0_i32, %c0_i32_0 : i32, i32, i32
  }
}

</mosaic_0001>

<llo_original>
// kernel: net_forward.2
$region0: #{net_forward.2}
  #allocation0 [shape = 'u32[]', space=smem, size = 0x4, offset = 0x4, fixed_abs, tag = 'smem constant byte address 0x4 - core index']
  #allocation1 [shape = 'u32[144,128]{1,0:T(1,128)}', space=vmem, size = 0x12000, scoped, tag = 'internal scratch']
  %s0 = inlined_call_operand.vmem [shape: bf16[2,144,36], index: 0, kind: input, shape index: {}]
  %s1 = inlined_call_operand.vmem [shape: bf16[36,512], index: 1, kind: input, shape index: {}]
  %s2 = inlined_call_operand.vmem [shape: f32[1,512], index: 2, kind: input, shape index: {}]
  %s3 = inlined_call_operand.vmem [shape: bf16[512,256], index: 3, kind: input, shape index: {}]
  %s4 = inlined_call_operand.vmem [shape: f32[1,256], index: 4, kind: input, shape index: {}]
  %s5 = inlined_call_operand.vmem [shape: bf16[2,144,64], index: 5, kind: output, shape index: {}]
  %s6 = sld [smem:[#allocation0]]
  $region53: #{net_forward.2} parent=0
    _
  %s8 = ssub.s32 1, %s6
  %s9 = scalar_select 0, %s8, %s6
  loop: start=0, step=1, limit=4
  $region2: #{net_forward.2} parent=0 // loop_pre_header
    _
  $region3: #{net_forward.2} parent=0 // loop_header
    %s11 = sphi 0, %s15
    %p12 = scmp.ge.s32.totalorder %s11, 4
    %s21 = sphi 0, %s23
    %s24 = sphi 0, %s21
    %s25 = sphi 0, %s24
    %s41 = sphi 0, %s25
    %s45 = sphi 0, %s45
    %s47 = sphi 0, %s45
    %s48 = sphi 0, %s47
    %s62 = sphi 0, %s48
    %s66 = sphi 0, %s66
    %s68 = sphi 0, %s66
    %s69 = sphi 0, %s68
    %s83 = sphi 0, %s69
    %s87 = sphi 0, %s87
    %s89 = sphi 0, %s87
    %s90 = sphi 0, %s89
    %s104 = sphi 0, %s90
    %s108 = sphi 0, %s108
    %s110 = sphi 0, %s108
    %s111 = sphi 0, %s110
    %s125 = sphi 0, %s111
    %s131 = sphi 0, %s133
    %s134 = sphi 0, %s131
    %s135 = sphi 0, %s134
    %s151 = sphi 0, %s135
  $region4: #{net_forward.2} parent=0 // loop_header_branch
    %14 = sbr.rel (%p12) target = $region8
  $region5: #{net_forward.2} parent=0 // loop_body
    %s16 = ssub.s32 %s11, 1
    %s17 = ssub.s32 %s11, 2
    %s18 = sadd.s32 %s11, 1
    %s19 = ssub.s32 %s11, %s18
    %p20 = scmp.eq.s32.totalorder %s19, 0
    %s22 = sadd.s32 %s21, 1
    %s23 = scalar_select %p20, %s21, %s22
    %p26 = pneg %p20
    %p27 = scmp.eq.s32.totalorder %s11, 1
    %p28 = por %p26, %p27
    %p29 = scmp.ne.s32.totalorder %s21, %s24
    %p30 = scmp.eq.s32.totalorder %s11, 0
    %p31 = por %p29, %p30
    %p32 = scmp.ne.s32.totalorder %s21, %s24
    %p33 = scmp.eq.s32.totalorder %s16, 1
    %p34 = por %p32, %p33
    %p35 = scmp.ne.s32.totalorder %s24, %s25
    %p36 = scmp.eq.s32.totalorder %s16, 0
    %p37 = por %p35, %p36
    %p38 = scmp.ne.s32.totalorder %s24, %s25
    %p39 = scmp.eq.s32.totalorder %s17, 1
    %p40 = por %p38, %p39
    %p42 = scmp.ne.s32.totalorder %s25, %s41
    %p43 = scmp.eq.s32.totalorder %s17, 0
    %p44 = por %p42, %p43
    %s46 = sadd.s32 %s45, 1
    %p49 = scmp.eq.s32.totalorder %s11, 1
    %p50 = scmp.ne.s32.totalorder %s45, %s47
    %p51 = scmp.eq.s32.totalorder %s11, 0
    %p52 = por %p50, %p51
    %p53 = scmp.ne.s32.totalorder %s45, %s47
    %p54 = scmp.eq.s32.totalorder %s16, 1
    %p55 = por %p53, %p54
    %p56 = scmp.ne.s32.totalorder %s47, %s48
    %p57 = scmp.eq.s32.totalorder %s16, 0
    %p58 = por %p56, %p57
    %p59 = scmp.ne.s32.totalorder %s47, %s48
    %p60 = scmp.eq.s32.totalorder %s17, 1
    %p61 = por %p59, %p60
    %p63 = scmp.ne.s32.totalorder %s48, %s62
    %p64 = scmp.eq.s32.totalorder %s17, 0
    %p65 = por %p63, %p64
    %s67 = sadd.s32 %s66, 1
    %p70 = scmp.eq.s32.totalorder %s11, 1
    %p71 = scmp.ne.s32.totalorder %s66, %s68
    %p72 = scmp.eq.s32.totalorder %s11, 0
    %p73 = por %p71, %p72
    %p74 = scmp.ne.s32.totalorder %s66, %s68
    %p75 = scmp.eq.s32.totalorder %s16, 1
    %p76 = por %p74, %p75
    %p77 = scmp.ne.s32.totalorder %s68, %s69
    %p78 = scmp.eq.s32.totalorder %s16, 0
    %p79 = por %p77, %p78
    %p80 = scmp.ne.s32.totalorder %s68, %s69
    %p81 = scmp.eq.s32.totalorder %s17, 1
    %p82 = por %p80, %p81
    %p84 = scmp.ne.s32.totalorder %s69, %s83
    %p85 = scmp.eq.s32.totalorder %s17, 0
    %p86 = por %p84, %p85
    %s88 = sadd.s32 %s87, 1
    %p91 = scmp.eq.s32.totalorder %s11, 1
    %p92 = scmp.ne.s32.totalorder %s87, %s89
    %p93 = scmp.eq.s32.totalorder %s11, 0
    %p94 = por %p92, %p93
    %p95 = scmp.ne.s32.totalorder %s87, %s89
    %p96 = scmp.eq.s32.totalorder %s16, 1
    %p97 = por %p95, %p96
    %p98 = scmp.ne.s32.totalorder %s89, %s90
    %p99 = scmp.eq.s32.totalorder %s16, 0
    %p100 = por %p98, %p99
    %p101 = scmp.ne.s32.totalorder %s89, %s90
    %p102 = scmp.eq.s32.totalorder %s17, 1
    %p103 = por %p101, %p102
    %p105 = scmp.ne.s32.totalorder %s90, %s104
    %p106 = scmp.eq.s32.totalorder %s17, 0
    %p107 = por %p105, %p106
    %s109 = sadd.s32 %s108, 1
    %p112 = scmp.eq.s32.totalorder %s11, 1
    %p113 = scmp.ne.s32.totalorder %s108, %s110
    %p114 = scmp.eq.s32.totalorder %s11, 0
    %p115 = por %p113, %p114
    %p116 = scmp.ne.s32.totalorder %s108, %s110
    %p117 = scmp.eq.s32.totalorder %s16, 1
    %p118 = por %p116, %p117
    %p119 = scmp.ne.s32.totalorder %s110, %s111
    %p120 = scmp.eq.s32.totalorder %s16, 0
    %p121 = por %p119, %p120
    %p122 = scmp.ne.s32.totalorder %s110, %s111
    %p123 = scmp.eq.s32.totalorder %s17, 1
    %p124 = por %p122, %p123
    %p126 = scmp.ne.s32.totalorder %s111, %s125
    %p127 = scmp.eq.s32.totalorder %s17, 0
    %p128 = por %p126, %p127
    %s129 = ssub.s32 %s11, %s18
    %p130 = scmp.eq.s32.totalorder %s129, 0
    %s132 = sadd.s32 %s131, 1
    %s133 = scalar_select %p130, %s131, %s132
    %p136 = pneg %p130
    %p137 = scmp.eq.s32.totalorder %s11, 1
    %p138 = por %p136, %p137
    %p139 = scmp.ne.s32.totalorder %s131, %s134
    %p140 = scmp.eq.s32.totalorder %s11, 0
    %p141 = por %p139, %p140
    %p142 = scmp.ne.s32.totalorder %s131, %s134
    %p143 = scmp.eq.s32.totalorder %s16, 1
    %p144 = por %p142, %p143
    %p145 = scmp.ne.s32.totalorder %s134, %s135
    %p146 = scmp.eq.s32.totalorder %s16, 0
    %p147 = por %p145, %p146
    %p148 = scmp.ne.s32.totalorder %s134, %s135
    %p149 = scmp.eq.s32.totalorder %s17, 1
    %p150 = por %p148, %p149
    %p152 = scmp.ne.s32.totalorder %s135, %s151
    %p153 = scmp.eq.s32.totalorder %s17, 0
    %p154 = por %p152, %p153
    %p155 = scmp.le.s32.totalorder 1, %s11
    %p156 = scmp.lt.s32.totalorder %s11, 3
    %p157 = pnand %p155, %p156
    %p158 = pneg %p157
    // Predicated region
    $region9: #{net_forward.2} parent=5 // pred_check
      _
    $region10: #{net_forward.2} parent=5 // pred_check_branch
      %160 = sbr.rel (%p157) target = $region12
    $region11: #{net_forward.2} parent=5 // pred_region
      %s161 = ssub.s32 %s11, 1
      // Predicated region
      $region13: #{net_forward.2} parent=11 // pred_check
        %p162 = pneg %p58
      $region14: #{net_forward.2} parent=11 // pred_check_branch
        %164 = sbr.rel (%p162) target = $region16
      $region15: #{net_forward.2} parent=11 // pred_region
        _
      $region16: #{net_forward.2} parent=11 // pred_fallthru
        _
      // Predicated region
      $region17: #{net_forward.2} parent=11 // pred_check
        %p165 = pneg %p79
      $region18: #{net_forward.2} parent=11 // pred_check_branch
        %167 = sbr.rel (%p165) target = $region20
      $region19: #{net_forward.2} parent=11 // pred_region
        _
      $region20: #{net_forward.2} parent=11 // pred_fallthru
        _
      // Predicated region
      $region21: #{net_forward.2} parent=11 // pred_check
        %p168 = pneg %p100
      $region22: #{net_forward.2} parent=11 // pred_check_branch
        %170 = sbr.rel (%p168) target = $region24
      $region23: #{net_forward.2} parent=11 // pred_region
        _
      $region24: #{net_forward.2} parent=11 // pred_fallthru
        _
      // Predicated region
      $region25: #{net_forward.2} parent=11 // pred_check
        %p171 = pneg %p121
      $region26: #{net_forward.2} parent=11 // pred_check_branch
        %173 = sbr.rel (%p171) target = $region28
      $region27: #{net_forward.2} parent=11 // pred_region
        _
      $region28: #{net_forward.2} parent=11 // pred_fallthru
        _
    $region12: #{net_forward.2} parent=5 // pred_fallthru
      _
    %p174 = scmp.lt.s32.totalorder %s11, 2
    // Predicated region
    $region29: #{net_forward.2} parent=5 // pred_check
      %p175 = pneg %p174
    $region30: #{net_forward.2} parent=5 // pred_check_branch
      %177 = sbr.rel (%p175) target = $region32
    $region31: #{net_forward.2} parent=5 // pred_region
      // Predicated region
      $region33: #{net_forward.2} parent=31 // pred_check
        %p178 = pneg %p31
      $region34: #{net_forward.2} parent=31 // pred_check_branch
        %180 = sbr.rel (%p178) target = $region36
      $region35: #{net_forward.2} parent=31 // pred_region
        %p181 = scmp.lt.s32.totalorder %s11, 1
        %s182 = scalar_select %p181, %s11, 1
        %s183 = smul.addr %s182, 18
        %s184 = smul.addr %s183, 4
        %s185 = scalar_lea.vmem %s0, %s184
      $region36: #{net_forward.2} parent=31 // pred_fallthru
        _
    $region32: #{net_forward.2} parent=5 // pred_fallthru
      _
    %p186 = scmp.le.s32.totalorder 1, %s11
    %p187 = scmp.lt.s32.totalorder %s11, 3
    %p188 = pnand %p186, %p187
    %p189 = pneg %p188
    // Predicated region
    $region37: #{net_forward.2} parent=5 // pred_check
      _
    $region38: #{net_forward.2} parent=5 // pred_check_branch
      %191 = sbr.rel (%p188) target = $region40
    $region39: #{net_forward.2} parent=5 // pred_region
      %s192 = ssub.s32 %s11, 1
      %p193 = scmp.lt.s32.totalorder %s16, 1
      %s194 = scalar_select %p193, %s16, 1
      %s195 = smul.addr %s194, 18
      %s196 = smul.addr %s195, 4
      %s197 = scalar_lea.vmem %s0, %s196
      %p198 = pneg %p37
      %p199 = pneg %p34
      %p200 = pneg %p58
      %p201 = pneg %p55
      %p202 = pneg %p79
      %p203 = pneg %p76
      %p204 = pneg %p100
      %p205 = pneg %p97
      %p206 = pneg %p121
      %p207 = pneg %p118
      %p208 = pneg %p147
      %p209 = pneg %p144
      %p210 = scmp.lt.s32.totalorder %s16, 1
      %s211 = scalar_select %p210, %s16, 1
      %s212 = smul.addr %s211, 18
      %s213 = smul.addr %s212, 4
      %s214 = scalar_lea.vmem %s5, %s213
      %p215 = scmp.lt.s32.totalorder %s16, 1
      %s216 = scalar_select %p215, %s16, 1
      %s217 = smul.addr %s216, 18
      %s218 = smul.addr %s217, 4
      %s219 = scalar_lea.vmem %s0, %s218
      %p220 = scmp.lt.s32.totalorder %s16, 1
      %s221 = scalar_select %p220, %s16, 1
      %s222 = smul.addr %s221, 18
      %s223 = smul.addr %s222, 4
      %s224 = scalar_lea.vmem %s5, %s223
      %v226 = vld [vmem:[%s219] sm:$0xf]
      %v227 = vld [vmem:[%s219 + $0x4] sm:$0xf]
      %v228 = vld [vmem:[%s219 + $0x8] sm:$0xf]
      %v229 = vld [vmem:[%s219 + $0xc] sm:$0xf]
      %v230 = vld [vmem:[%s219 + $0x10] sm:$0xf]
      %v231 = vld [vmem:[%s219 + $0x14] sm:$0xf]
      %v232 = vld [vmem:[%s219 + $0x18] sm:$0xf]
      %v233 = vld [vmem:[%s219 + $0x1c] sm:$0xf]
      %v234 = vld [vmem:[%s219 + $0x20] sm:$0xf]
      %v235 = vld [vmem:[%s219 + $0x24] sm:$0xf]
      %v236 = vld [vmem:[%s219 + $0x28] sm:$0xf]
      %v237 = vld [vmem:[%s219 + $0x2c] sm:$0xf]
      %v238 = vld [vmem:[%s219 + $0x30] sm:$0xf]
      %v239 = vld [vmem:[%s219 + $0x34] sm:$0xf]
      %v240 = vld [vmem:[%s219 + $0x38] sm:$0xf]
      %v241 = vld [vmem:[%s219 + $0x3c] sm:$0xf]
      %v242 = vld [vmem:[%s219 + $0x40] sm:$0xf]
      %v243 = vld [vmem:[%s219 + $0x44] sm:$0xf]
      %v244 = vld [vmem:[%s1] sm:$0xff]
      %v245 = vld [vmem:[%s1 + $0x8] sm:$0xff]
      %v246 = vld [vmem:[%s1 + $0x10] sm:$0xff]
      %v247 = vld [vmem:[%s1 + $0x18] sm:$0xff]
      %v248 = vld [vmem:[%s1 + $0x20] sm:$0xff]
      %v249 = vld [vmem:[%s1 + $0x28] sm:$0xff]
      %v250 = vld [vmem:[%s1 + $0x30] sm:$0xff]
      %v251 = vld [vmem:[%s1 + $0x38] sm:$0xff]
      %v252 = vld [vmem:[%s1 + $0x40] sm:$0x33]
      %v253 = vld [vmem:[%s1 + $0x48] sm:$0x33]
      %v254 = vld [vmem:[%s2] sm:$0xf]
      %v256 = vlaneseq
      %v257 = vshrl.u32 %v256, 7
      %v258 = vsub.s32 0, %v257
      %v259 = vrot.slane %v254, %v258
      %v260 = vlaneseq
      %v261 = vshrl.u32 %v260, 7
      %v262 = vsub.s32 1, %v261
      %v263 = vrot.slane %v254, %v262
      %v264 = vlaneseq
      %v265 = vshrl.u32 %v264, 7
      %v266 = vsub.s32 2, %v265
      %v267 = vrot.slane %v254, %v266
      %v268 = vlaneseq
      %v269 = vshrl.u32 %v268, 7
      %v270 = vsub.s32 3, %v269
      %v271 = vrot.slane %v254, %v270
      %v294 = vunpack.c.l.b16 %v226
      %v295 = vunpack.c.l.b16 %v227
      %v296 = vunpack.c.l.b16 %v228
      %v297 = vunpack.c.l.b16 %v229
      %v298 = vunpack.c.l.b16 %v230
      %v299 = vunpack.c.l.b16 %v231
      %v300 = vunpack.c.l.b16 %v232
      %v301 = vunpack.c.l.b16 %v233
      %v302 = vunpack.c.l.b16 %v234
      %v303 = vunpack.c.l.b16 %v235
      %v304 = vunpack.c.l.b16 %v236
      %v305 = vunpack.c.l.b16 %v237
      %v306 = vunpack.c.l.b16 %v238
      %v307 = vunpack.c.l.b16 %v239
      %v308 = vunpack.c.l.b16 %v240
      %v309 = vunpack.c.l.b16 %v241
      %v310 = vunpack.c.l.b16 %v242
      %v311 = vunpack.c.l.b16 %v243
      %v312 = vpack.c.b16 %v295, %v294
      %v313 = vpack.c.b16 %v297, %v296
      %v314 = vpack.c.b16 %v299, %v298
      %v315 = vpack.c.b16 %v301, %v300
      %v316 = vpack.c.b16 %v303, %v302
      %v317 = vpack.c.b16 %v305, %v304
      %v318 = vpack.c.b16 %v307, %v306
      %v319 = vpack.c.b16 %v309, %v308
      %v320 = vpack.c.b16 %v311, %v310
      %v331 = vunpack.c.l.b16 %v244
      %v332 = vunpack.c.h.b16 %v244
      %v333 = vunpack.c.l.b16 %v245
      %v334 = vunpack.c.h.b16 %v245
      %v335 = vunpack.c.l.b16 %v246
      %v336 = vunpack.c.h.b16 %v246
      %v337 = vunpack.c.l.b16 %v247
      %v338 = vunpack.c.h.b16 %v247
      %v339 = vunpack.c.l.b16 %v248
      %v340 = vunpack.c.h.b16 %v248
      %v341 = vunpack.c.l.b16 %v249
      %v342 = vunpack.c.h.b16 %v249
      %v343 = vunpack.c.l.b16 %v250
      %v344 = vunpack.c.h.b16 %v250
      %v345 = vunpack.c.l.b16 %v251
      %v346 = vunpack.c.h.b16 %v251
      %v347 = vunpack.c.l.b16 %v252
      %v348 = vunpack.c.h.b16 %v252
      %v349 = vunpack.c.l.b16 %v253
      %v350 = vunpack.c.h.b16 %v253
      %v351 = vpack.c.b16 %v335, %v331
      %v352 = vpack.c.b16 %v336, %v332
      %v353 = vpack.c.b16 %v337, %v333
      %v354 = vpack.c.b16 %v338, %v334
      %v355 = vpack.c.b16 %v343, %v339
      %v356 = vpack.c.b16 %v344, %v340
      %v357 = vpack.c.b16 %v345, %v341
      %v358 = vpack.c.b16 %v346, %v342
      %v359 = vpack.c.b16 %v347, %v347
      %v360 = vpack.c.b16 %v348, %v348
      %v361 = vpack.c.b16 %v349, %v349
      %v362 = vpack.c.b16 %v350, %v350
      %vm371 = vcmask 293888
      %v373 = vsel %vm371, %v312, 0
      %v376 = vsel %vm371, %v313, 0
      %v379 = vsel %vm371, %v314, 0
      %v382 = vsel %vm371, %v315, 0
      %v385 = vsel %vm371, %v316, 0
      %v388 = vsel %vm371, %v317, 0
      %v391 = vsel %vm371, %v318, 0
      %v394 = vsel %vm371, %v319, 0
      %v397 = vsel %vm371, %v320, 0
      %vm399 = vcmask 1041408
      %v401 = vsel %vm399, %v359, 0
      %v404 = vsel %vm399, %v360, 0
      %v407 = vsel %vm399, %v361, 0
      %v410 = vsel %vm399, %v362, 0
      %412 = vmatprep.subr.bf16.mxu0 0
      %413 = vmatpush1.bf16.msra.mxu0 0
      %414 = vmatprep.subr.bf16.mxu0 0
      %415 = vmatpush1.bf16.msra.mxu0 0
      %416 = vmatprep.subr.bf16.mxu0 0
      %417 = vmatpush1.bf16.msra.mxu0 0
      %418 = vmatprep.subr.bf16.mxu0 0
      %419 = vmatpush1.bf16.msra.mxu0 0
      %420 = vmatprep.subr.bf16.mxu0 0
      %421 = vmatpush1.bf16.msra.mxu0 0
      %422 = vmatprep.subr.bf16.mxu0 %v404
      %423 = vmatpush1.bf16.msra.mxu0 %v401
      %424 = vmatprep.subr.bf16.mxu0 %v356
      %425 = vmatpush1.bf16.msra.mxu0 %v355
      %426 = vmatprep.subr.bf16.mxu0 %v352
      %427 = vmatpush1.bf16.msra.mxu0 %v351
      %428 = vmatprep.subr.bf16.mxu0 0
      %429 = vmatpush2.bf16.msra.mxu0 0
      %430 = vmatprep.subr.bf16.mxu0 0
      %431 = vmatpush2.bf16.msra.mxu0 0
      %432 = vmatprep.subr.bf16.mxu0 0
      %433 = vmatpush2.bf16.msra.mxu0 0
      %434 = vmatprep.subr.bf16.mxu0 0
      %435 = vmatpush2.bf16.msra.mxu0 0
      %436 = vmatprep.subr.bf16.mxu0 0
      %437 = vmatpush2.bf16.msra.mxu0 0
      %438 = vmatprep.subr.bf16.mxu0 0
      %439 = vmatpush2.bf16.msra.mxu0 0
      %440 = vmatprep.subr.bf16.mxu0 0
      %441 = vmatpush2.bf16.msra.mxu0 0
      %442 = vmatprep.subr.bf16.mxu0 0
      %443 = vmatpush2.bf16.msra.mxu0 0
      %444 = vmatprep.mubr.bf16.mxu0 0
      %445 = vmatmul.mubr.bf16.gmra.mxu0 %v373
      %v446 = vpop.f32.mrf.mxu0
      %v447 = vadd.f32 %v259, %v446
      %v448 = vpop.f32.mrf.mxu0
      %v449 = vadd.f32 %v263, %v448
      %v450 = vpop.f32.mrf.mxu0
      %v451 = vadd.f32 %v259, %v450
      %v452 = vpop.f32.mrf.mxu0
      %v453 = vadd.f32 %v263, %v452
      %454 = vmatprep.mubr.bf16.mxu0 0
      %455 = vmatmul.mubr.bf16.gmra.mxu0 %v376
      %v456 = vpop.f32.mrf.mxu0
      %v457 = vadd.f32 %v259, %v456
      %v458 = vpop.f32.mrf.mxu0
      %v459 = vadd.f32 %v263, %v458
      %v460 = vpop.f32.mrf.mxu0
      %v461 = vadd.f32 %v259, %v460
      %v462 = vpop.f32.mrf.mxu0
      %v463 = vadd.f32 %v263, %v462
      %464 = vmatprep.mubr.bf16.mxu0 0
      %465 = vmatmul.mubr.bf16.gmra.mxu0 %v379
      %v466 = vpop.f32.mrf.mxu0
      %v467 = vadd.f32 %v259, %v466
      %v468 = vpop.f32.mrf.mxu0
      %v469 = vadd.f32 %v263, %v468
      %v470 = vpop.f32.mrf.mxu0
      %v471 = vadd.f32 %v259, %v470
      %v472 = vpop.f32.mrf.mxu0
      %v473 = vadd.f32 %v263, %v472
      %474 = vmatprep.mubr.bf16.mxu0 0
      %475 = vmatmul.mubr.bf16.gmra.mxu0 %v382
      %v476 = vpop.f32.mrf.mxu0
      %v477 = vadd.f32 %v259, %v476
      %v478 = vpop.f32.mrf.mxu0
      %v479 = vadd.f32 %v263, %v478
      %v480 = vpop.f32.mrf.mxu0
      %v481 = vadd.f32 %v259, %v480
      %v482 = vpop.f32.mrf.mxu0
      %v483 = vadd.f32 %v263, %v482
      %484 = vmatprep.mubr.bf16.mxu0 0
      %485 = vmatmul.mubr.bf16.gmra.mxu0 %v385
      %v486 = vpop.f32.mrf.mxu0
      %v487 = vadd.f32 %v259, %v486
      %v488 = vpop.f32.mrf.mxu0
      %v489 = vadd.f32 %v263, %v488
      %v490 = vpop.f32.mrf.mxu0
      %v491 = vadd.f32 %v259, %v490
      %v492 = vpop.f32.mrf.mxu0
      %v493 = vadd.f32 %v263, %v492
      %494 = vmatprep.mubr.bf16.mxu0 0
      %495 = vmatmul.mubr.bf16.gmra.mxu0 %v388
      %v496 = vpop.f32.mrf.mxu0
      %v497 = vadd.f32 %v259, %v496
      %v498 = vpop.f32.mrf.mxu0
      %v499 = vadd.f32 %v263, %v498
      %v500 = vpop.f32.mrf.mxu0
      %v501 = vadd.f32 %v259, %v500
      %v502 = vpop.f32.mrf.mxu0
      %v503 = vadd.f32 %v263, %v502
      %504 = vmatprep.mubr.bf16.mxu0 0
      %505 = vmatmul.mubr.bf16.gmra.mxu0 %v391
      %v506 = vpop.f32.mrf.mxu0
      %v507 = vadd.f32 %v259, %v506
      %v508 = vpop.f32.mrf.mxu0
      %v509 = vadd.f32 %v263, %v508
      %v510 = vpop.f32.mrf.mxu0
      %v511 = vadd.f32 %v259, %v510
      %v512 = vpop.f32.mrf.mxu0
      %v513 = vadd.f32 %v263, %v512
      %514 = vmatprep.mubr.bf16.mxu0 0
      %515 = vmatmul.mubr.bf16.gmra.mxu0 %v394
      %v516 = vpop.f32.mrf.mxu0
      %v517 = vadd.f32 %v259, %v516
      %v518 = vpop.f32.mrf.mxu0
      %v519 = vadd.f32 %v263, %v518
      %v520 = vpop.f32.mrf.mxu0
      %v521 = vadd.f32 %v259, %v520
      %v522 = vpop.f32.mrf.mxu0
      %v523 = vadd.f32 %v263, %v522
      %524 = vmatprep.mubr.bf16.mxu0 0
      %525 = vmatmul.mubr.bf16.gmra.mxu0 %v397
      %v526 = vpop.f32.mrf.mxu0
      %v527 = vadd.f32 %v259, %v526
      %v528 = vpop.f32.mrf.mxu0
      %v529 = vadd.f32 %v263, %v528
      %v530 = vpop.f32.mrf.mxu0
      %v531 = vadd.f32 %v259, %v530
      %v532 = vpop.f32.mrf.mxu0
      %v533 = vadd.f32 %v263, %v532
      %534 = vdwg.mxu0
      %535 = vmatprep.subr.bf16.mxu0 0
      %536 = vmatpush1.bf16.msra.mxu0 0
      %537 = vmatprep.subr.bf16.mxu0 0
      %538 = vmatpush1.bf16.msra.mxu0 0
      %539 = vmatprep.subr.bf16.mxu0 0
      %540 = vmatpush1.bf16.msra.mxu0 0
      %541 = vmatprep.subr.bf16.mxu0 0
      %542 = vmatpush1.bf16.msra.mxu0 0
      %543 = vmatprep.subr.bf16.mxu0 0
      %544 = vmatpush1.bf16.msra.mxu0 0
      %545 = vmatprep.subr.bf16.mxu0 %v410
      %546 = vmatpush1.bf16.msra.mxu0 %v407
      %547 = vmatprep.subr.bf16.mxu0 %v358
      %548 = vmatpush1.bf16.msra.mxu0 %v357
      %549 = vmatprep.subr.bf16.mxu0 %v354
      %550 = vmatpush1.bf16.msra.mxu0 %v353
      %551 = vmatprep.subr.bf16.mxu0 0
      %552 = vmatpush2.bf16.msra.mxu0 0
      %553 = vmatprep.subr.bf16.mxu0 0
      %554 = vmatpush2.bf16.msra.mxu0 0
      %555 = vmatprep.subr.bf16.mxu0 0
      %556 = vmatpush2.bf16.msra.mxu0 0
      %557 = vmatprep.subr.bf16.mxu0 0
      %558 = vmatpush2.bf16.msra.mxu0 0
      %559 = vmatprep.subr.bf16.mxu0 0
      %560 = vmatpush2.bf16.msra.mxu0 0
      %561 = vmatprep.subr.bf16.mxu0 0
      %562 = vmatpush2.bf16.msra.mxu0 0
      %563 = vmatprep.subr.bf16.mxu0 0
      %564 = vmatpush2.bf16.msra.mxu0 0
      %565 = vmatprep.subr.bf16.mxu0 0
      %566 = vmatpush2.bf16.msra.mxu0 0
      %567 = vmatprep.mubr.bf16.mxu0 0
      %568 = vmatmul.mubr.bf16.gmra.mxu0 %v373
      %v569 = vpop.f32.mrf.mxu0
      %v570 = vadd.f32 %v267, %v569
      %v571 = vpop.f32.mrf.mxu0
      %v572 = vadd.f32 %v271, %v571
      %v573 = vpop.f32.mrf.mxu0
      %v574 = vadd.f32 %v267, %v573
      %v575 = vpop.f32.mrf.mxu0
      %v576 = vadd.f32 %v271, %v575
      %577 = vmatprep.mubr.bf16.mxu0 0
      %578 = vmatmul.mubr.bf16.gmra.mxu0 %v376
      %v579 = vpop.f32.mrf.mxu0
      %v580 = vadd.f32 %v267, %v579
      %v581 = vpop.f32.mrf.mxu0
      %v582 = vadd.f32 %v271, %v581
      %v583 = vpop.f32.mrf.mxu0
      %v584 = vadd.f32 %v267, %v583
      %v585 = vpop.f32.mrf.mxu0
      %v586 = vadd.f32 %v271, %v585
      %587 = vmatprep.mubr.bf16.mxu0 0
      %588 = vmatmul.mubr.bf16.gmra.mxu0 %v379
      %v589 = vpop.f32.mrf.mxu0
      %v590 = vadd.f32 %v267, %v589
      %v591 = vpop.f32.mrf.mxu0
      %v592 = vadd.f32 %v271, %v591
      %v593 = vpop.f32.mrf.mxu0
      %v594 = vadd.f32 %v267, %v593
      %v595 = vpop.f32.mrf.mxu0
      %v596 = vadd.f32 %v271, %v595
      %597 = vmatprep.mubr.bf16.mxu0 0
      %598 = vmatmul.mubr.bf16.gmra.mxu0 %v382
      %v599 = vpop.f32.mrf.mxu0
      %v600 = vadd.f32 %v267, %v599
      %v601 = vpop.f32.mrf.mxu0
      %v602 = vadd.f32 %v271, %v601
      %v603 = vpop.f32.mrf.mxu0
      %v604 = vadd.f32 %v267, %v603
      %v605 = vpop.f32.mrf.mxu0
      %v606 = vadd.f32 %v271, %v605
      %607 = vmatprep.mubr.bf16.mxu0 0
      %608 = vmatmul.mubr.bf16.gmra.mxu0 %v385
      %v609 = vpop.f32.mrf.mxu0
      %v610 = vadd.f32 %v267, %v609
      %v611 = vpop.f32.mrf.mxu0
      %v612 = vadd.f32 %v271, %v611
      %v613 = vpop.f32.mrf.mxu0
      %v614 = vadd.f32 %v267, %v613
      %v615 = vpop.f32.mrf.mxu0
      %v616 = vadd.f32 %v271, %v615
      %617 = vmatprep.mubr.bf16.mxu0 0
      %618 = vmatmul.mubr.bf16.gmra.mxu0 %v388
      %v619 = vpop.f32.mrf.mxu0
      %v620 = vadd.f32 %v267, %v619
      %v621 = vpop.f32.mrf.mxu0
      %v622 = vadd.f32 %v271, %v621
      %v623 = vpop.f32.mrf.mxu0
      %v624 = vadd.f32 %v267, %v623
      %v625 = vpop.f32.mrf.mxu0
      %v626 = vadd.f32 %v271, %v625
      %627 = vmatprep.mubr.bf16.mxu0 0
      %628 = vmatmul.mubr.bf16.gmra.mxu0 %v391
      %v629 = vpop.f32.mrf.mxu0
      %v630 = vadd.f32 %v267, %v629
      %v631 = vpop.f32.mrf.mxu0
      %v632 = vadd.f32 %v271, %v631
      %v633 = vpop.f32.mrf.mxu0
      %v634 = vadd.f32 %v267, %v633
      %v635 = vpop.f32.mrf.mxu0
      %v636 = vadd.f32 %v271, %v635
      %637 = vmatprep.mubr.bf16.mxu0 0
      %638 = vmatmul.mubr.bf16.gmra.mxu0 %v394
      %v639 = vpop.f32.mrf.mxu0
      %v640 = vadd.f32 %v267, %v639
      %v641 = vpop.f32.mrf.mxu0
      %v642 = vadd.f32 %v271, %v641
      %v643 = vpop.f32.mrf.mxu0
      %v644 = vadd.f32 %v267, %v643
      %v645 = vpop.f32.mrf.mxu0
      %v646 = vadd.f32 %v271, %v645
      %647 = vmatprep.mubr.bf16.mxu0 0
      %648 = vmatmul.mubr.bf16.gmra.mxu0 %v397
      %v649 = vpop.f32.mrf.mxu0
      %v650 = vadd.f32 %v267, %v649
      %v651 = vpop.f32.mrf.mxu0
      %v652 = vadd.f32 %v271, %v651
      %v653 = vpop.f32.mrf.mxu0
      %v654 = vadd.f32 %v267, %v653
      %v655 = vpop.f32.mrf.mxu0
      %v656 = vadd.f32 %v271, %v655
      %657 = vdwg.mxu0
      %v658 = vmax.f32 %v447, 0.0
      %v659 = vmax.f32 %v449, 0.0
      %v660 = vmax.f32 %v570, 0.0
      %v661 = vmax.f32 %v572, 0.0
      %v662 = vmax.f32 %v451, 0.0
      %v663 = vmax.f32 %v453, 0.0
      %v664 = vmax.f32 %v574, 0.0
      %v665 = vmax.f32 %v576, 0.0
      %v666 = vmax.f32 %v457, 0.0
      %v667 = vmax.f32 %v459, 0.0
      %v668 = vmax.f32 %v580, 0.0
      %v669 = vmax.f32 %v582, 0.0
      %v670 = vmax.f32 %v461, 0.0
      %v671 = vmax.f32 %v463, 0.0
      %v672 = vmax.f32 %v584, 0.0
      %v673 = vmax.f32 %v586, 0.0
      %v674 = vmax.f32 %v467, 0.0
      %v675 = vmax.f32 %v469, 0.0
      %v676 = vmax.f32 %v590, 0.0
      %v677 = vmax.f32 %v592, 0.0
      %v678 = vmax.f32 %v471, 0.0
      %v679 = vmax.f32 %v473, 0.0
      %v680 = vmax.f32 %v594, 0.0
      %v681 = vmax.f32 %v596, 0.0
      %v682 = vmax.f32 %v477, 0.0
      %v683 = vmax.f32 %v479, 0.0
      %v684 = vmax.f32 %v600, 0.0
      %v685 = vmax.f32 %v602, 0.0
      %v686 = vmax.f32 %v481, 0.0
      %v687 = vmax.f32 %v483, 0.0
      %v688 = vmax.f32 %v604, 0.0
      %v689 = vmax.f32 %v606, 0.0
      %v690 = vmax.f32 %v487, 0.0
      %v691 = vmax.f32 %v489, 0.0
      %v692 = vmax.f32 %v610, 0.0
      %v693 = vmax.f32 %v612, 0.0
      %v694 = vmax.f32 %v491, 0.0
      %v695 = vmax.f32 %v493, 0.0
      %v696 = vmax.f32 %v614, 0.0
      %v697 = vmax.f32 %v616, 0.0
      %v698 = vmax.f32 %v497, 0.0
      %v699 = vmax.f32 %v499, 0.0
      %v700 = vmax.f32 %v620, 0.0
      %v701 = vmax.f32 %v622, 0.0
      %v702 = vmax.f32 %v501, 0.0
      %v703 = vmax.f32 %v503, 0.0
      %v704 = vmax.f32 %v624, 0.0
      %v705 = vmax.f32 %v626, 0.0
      %v706 = vmax.f32 %v507, 0.0
      %v707 = vmax.f32 %v509, 0.0
      %v708 = vmax.f32 %v630, 0.0
      %v709 = vmax.f32 %v632, 0.0
      %v710 = vmax.f32 %v511, 0.0
      %v711 = vmax.f32 %v513, 0.0
      %v712 = vmax.f32 %v634, 0.0
      %v713 = vmax.f32 %v636, 0.0
      %v714 = vmax.f32 %v517, 0.0
      %v715 = vmax.f32 %v519, 0.0
      %v716 = vmax.f32 %v640, 0.0
      %v717 = vmax.f32 %v642, 0.0
      %v718 = vmax.f32 %v521, 0.0
      %v719 = vmax.f32 %v523, 0.0
      %v720 = vmax.f32 %v644, 0.0
      %v721 = vmax.f32 %v646, 0.0
      %v722 = vmax.f32 %v527, 0.0
      %v723 = vmax.f32 %v529, 0.0
      %v724 = vmax.f32 %v650, 0.0
      %v725 = vmax.f32 %v652, 0.0
      %v726 = vmax.f32 %v531, 0.0
      %v727 = vmax.f32 %v533, 0.0
      %v728 = vmax.f32 %v654, 0.0
      %v729 = vmax.f32 %v656, 0.0
      %v730 = vpack.c.bf16 %v662, %v658
      %v731 = vpack.c.bf16 %v663, %v659
      %v732 = vpack.c.bf16 %v664, %v660
      %v733 = vpack.c.bf16 %v665, %v661
      %v734 = vpack.c.bf16 %v670, %v666
      %v735 = vpack.c.bf16 %v671, %v667
      %v736 = vpack.c.bf16 %v672, %v668
      %v737 = vpack.c.bf16 %v673, %v669
      %v738 = vpack.c.bf16 %v678, %v674
      %v739 = vpack.c.bf16 %v679, %v675
      %v740 = vpack.c.bf16 %v680, %v676
      %v741 = vpack.c.bf16 %v681, %v677
      %v742 = vpack.c.bf16 %v686, %v682
      %v743 = vpack.c.bf16 %v687, %v683
      %v744 = vpack.c.bf16 %v688, %v684
      %v745 = vpack.c.bf16 %v689, %v685
      %v746 = vpack.c.bf16 %v694, %v690
      %v747 = vpack.c.bf16 %v695, %v691
      %v748 = vpack.c.bf16 %v696, %v692
      %v749 = vpack.c.bf16 %v697, %v693
      %v750 = vpack.c.bf16 %v702, %v698
      %v751 = vpack.c.bf16 %v703, %v699
      %v752 = vpack.c.bf16 %v704, %v700
      %v753 = vpack.c.bf16 %v705, %v701
      %v754 = vpack.c.bf16 %v710, %v706
      %v755 = vpack.c.bf16 %v711, %v707
      %v756 = vpack.c.bf16 %v712, %v708
      %v757 = vpack.c.bf16 %v713, %v709
      %v758 = vpack.c.bf16 %v718, %v714
      %v759 = vpack.c.bf16 %v719, %v715
      %v760 = vpack.c.bf16 %v720, %v716
      %v761 = vpack.c.bf16 %v721, %v717
      %v762 = vpack.c.bf16 %v726, %v722
      %v763 = vpack.c.bf16 %v727, %v723
      %v764 = vpack.c.bf16 %v728, %v724
      %v765 = vpack.c.bf16 %v729, %v725
      %v766 = vld [vmem:[%s3] sm:$0xff]
      %v767 = vld [vmem:[%s3 + $0x8] sm:$0xff]
      %v768 = vld [vmem:[%s3 + $0x10] sm:$0xff]
      %v769 = vld [vmem:[%s3 + $0x18] sm:$0xff]
      %v770 = vld [vmem:[%s3 + $0x20] sm:$0xff]
      %v771 = vld [vmem:[%s3 + $0x28] sm:$0xff]
      %v772 = vld [vmem:[%s3 + $0x30] sm:$0xff]
      %v773 = vld [vmem:[%s3 + $0x38] sm:$0xff]
      %v774 = vld [vmem:[%s3 + $0x40] sm:$0xff]
      %v775 = vld [vmem:[%s3 + $0x48] sm:$0xff]
      %v776 = vld [vmem:[%s3 + $0x50] sm:$0xff]
      %v777 = vld [vmem:[%s3 + $0x58] sm:$0xff]
      %v778 = vld [vmem:[%s3 + $0x60] sm:$0xff]
      %v779 = vld [vmem:[%s3 + $0x68] sm:$0xff]
      %v780 = vld [vmem:[%s3 + $0x70] sm:$0xff]
      %v781 = vld [vmem:[%s3 + $0x78] sm:$0xff]
      %v782 = vld [vmem:[%s3 + $0x80] sm:$0xff]
      %v783 = vld [vmem:[%s3 + $0x88] sm:$0xff]
      %v784 = vld [vmem:[%s3 + $0x90] sm:$0xff]
      %v785 = vld [vmem:[%s3 + $0x98] sm:$0xff]
      %v786 = vld [vmem:[%s3 + $0xa0] sm:$0xff]
      %v787 = vld [vmem:[%s3 + $0xa8] sm:$0xff]
      %v788 = vld [vmem:[%s3 + $0xb0] sm:$0xff]
      %v789 = vld [vmem:[%s3 + $0xb8] sm:$0xff]
      %v790 = vld [vmem:[%s3 + $0xc0] sm:$0xff]
      %v791 = vld [vmem:[%s3 + $0xc8] sm:$0xff]
      %v792 = vld [vmem:[%s3 + $0xd0] sm:$0xff]
      %v793 = vld [vmem:[%s3 + $0xd8] sm:$0xff]
      %v794 = vld [vmem:[%s3 + $0xe0] sm:$0xff]
      %v795 = vld [vmem:[%s3 + $0xe8] sm:$0xff]
      %v796 = vld [vmem:[%s3 + $0xf0] sm:$0xff]
      %v797 = vld [vmem:[%s3 + $0xf8] sm:$0xff]
      %v798 = vld [vmem:[%s3 + $0x100] sm:$0xff]
      %v799 = vld [vmem:[%s3 + $0x108] sm:$0xff]
      %v800 = vld [vmem:[%s3 + $0x110] sm:$0xff]
      %v801 = vld [vmem:[%s3 + $0x118] sm:$0xff]
      %v802 = vld [vmem:[%s3 + $0x120] sm:$0xff]
      %v803 = vld [vmem:[%s3 + $0x128] sm:$0xff]
      %v804 = vld [vmem:[%s3 + $0x130] sm:$0xff]
      %v805 = vld [vmem:[%s3 + $0x138] sm:$0xff]
      %v806 = vld [vmem:[%s3 + $0x140] sm:$0xff]
      %v807 = vld [vmem:[%s3 + $0x148] sm:$0xff]
      %v808 = vld [vmem:[%s3 + $0x150] sm:$0xff]
      %v809 = vld [vmem:[%s3 + $0x158] sm:$0xff]
      %v810 = vld [vmem:[%s3 + $0x160] sm:$0xff]
      %v811 = vld [vmem:[%s3 + $0x168] sm:$0xff]
      %v812 = vld [vmem:[%s3 + $0x170] sm:$0xff]
      %v813 = vld [vmem:[%s3 + $0x178] sm:$0xff]
      %v814 = vld [vmem:[%s3 + $0x180] sm:$0xff]
      %v815 = vld [vmem:[%s3 + $0x188] sm:$0xff]
      %v816 = vld [vmem:[%s3 + $0x190] sm:$0xff]
      %v817 = vld [vmem:[%s3 + $0x198] sm:$0xff]
      %v818 = vld [vmem:[%s3 + $0x1a0] sm:$0xff]
      %v819 = vld [vmem:[%s3 + $0x1a8] sm:$0xff]
      %v820 = vld [vmem:[%s3 + $0x1b0] sm:$0xff]
      %v821 = vld [vmem:[%s3 + $0x1b8] sm:$0xff]
      %v822 = vld [vmem:[%s3 + $0x1c0] sm:$0xff]
      %v823 = vld [vmem:[%s3 + $0x1c8] sm:$0xff]
      %v824 = vld [vmem:[%s3 + $0x1d0] sm:$0xff]
      %v825 = vld [vmem:[%s3 + $0x1d8] sm:$0xff]
      %v826 = vld [vmem:[%s3 + $0x1e0] sm:$0xff]
      %v827 = vld [vmem:[%s3 + $0x1e8] sm:$0xff]
      %v828 = vld [vmem:[%s3 + $0x1f0] sm:$0xff]
      %v829 = vld [vmem:[%s3 + $0x1f8] sm:$0xff]
      %v830 = vld [vmem:[%s4] sm:$0x3]
      %v832 = vlaneseq
      %v833 = vshrl.u32 %v832, 7
      %v834 = vsub.s32 0, %v833
      %v835 = vrot.slane %v830, %v834
      %v836 = vlaneseq
      %v837 = vshrl.u32 %v836, 7
      %v838 = vsub.s32 1, %v837
      %v839 = vrot.slane %v830, %v838
      %v906 = vunpack.c.l.b16 %v766
      %v907 = vunpack.c.h.b16 %v766
      %v908 = vunpack.c.l.b16 %v767
      %v909 = vunpack.c.h.b16 %v767
      %v910 = vunpack.c.l.b16 %v768
      %v911 = vunpack.c.h.b16 %v768
      %v912 = vunpack.c.l.b16 %v769
      %v913 = vunpack.c.h.b16 %v769
      %v914 = vunpack.c.l.b16 %v770
      %v915 = vunpack.c.h.b16 %v770
      %v916 = vunpack.c.l.b16 %v771
      %v917 = vunpack.c.h.b16 %v771
      %v918 = vunpack.c.l.b16 %v772
      %v919 = vunpack.c.h.b16 %v772
      %v920 = vunpack.c.l.b16 %v773
      %v921 = vunpack.c.h.b16 %v773
      %v922 = vunpack.c.l.b16 %v774
      %v923 = vunpack.c.h.b16 %v774
      %v924 = vunpack.c.l.b16 %v775
      %v925 = vunpack.c.h.b16 %v775
      %v926 = vunpack.c.l.b16 %v776
      %v927 = vunpack.c.h.b16 %v776
      %v928 = vunpack.c.l.b16 %v777
      %v929 = vunpack.c.h.b16 %v777
      %v930 = vunpack.c.l.b16 %v778
      %v931 = vunpack.c.h.b16 %v778
      %v932 = vunpack.c.l.b16 %v779
      %v933 = vunpack.c.h.b16 %v779
      %v934 = vunpack.c.l.b16 %v780
      %v935 = vunpack.c.h.b16 %v780
      %v936 = vunpack.c.l.b16 %v781
      %v937 = vunpack.c.h.b16 %v781
      %v938 = vunpack.c.l.b16 %v782
      %v939 = vunpack.c.h.b16 %v782
      %v940 = vunpack.c.l.b16 %v783
      %v941 = vunpack.c.h.b16 %v783
      %v942 = vunpack.c.l.b16 %v784
      %v943 = vunpack.c.h.b16 %v784
      %v944 = vunpack.c.l.b16 %v785
      %v945 = vunpack.c.h.b16 %v785
      %v946 = vunpack.c.l.b16 %v786
      %v947 = vunpack.c.h.b16 %v786
      %v948 = vunpack.c.l.b16 %v787
      %v949 = vunpack.c.h.b16 %v787
      %v950 = vunpack.c.l.b16 %v788
      %v951 = vunpack.c.h.b16 %v788
      %v952 = vunpack.c.l.b16 %v789
      %v953 = vunpack.c.h.b16 %v789
      %v954 = vunpack.c.l.b16 %v790
      %v955 = vunpack.c.h.b16 %v790
      %v956 = vunpack.c.l.b16 %v791
      %v957 = vunpack.c.h.b16 %v791
      %v958 = vunpack.c.l.b16 %v792
      %v959 = vunpack.c.h.b16 %v792
      %v960 = vunpack.c.l.b16 %v793
      %v961 = vunpack.c.h.b16 %v793
      %v962 = vunpack.c.l.b16 %v794
      %v963 = vunpack.c.h.b16 %v794
      %v964 = vunpack.c.l.b16 %v795
      %v965 = vunpack.c.h.b16 %v795
      %v966 = vunpack.c.l.b16 %v796
      %v967 = vunpack.c.h.b16 %v796
      %v968 = vunpack.c.l.b16 %v797
      %v969 = vunpack.c.h.b16 %v797
      %v970 = vunpack.c.l.b16 %v798
      %v971 = vunpack.c.h.b16 %v798
      %v972 = vunpack.c.l.b16 %v799
      %v973 = vunpack.c.h.b16 %v799
      %v974 = vunpack.c.l.b16 %v800
      %v975 = vunpack.c.h.b16 %v800
      %v976 = vunpack.c.l.b16 %v801
      %v977 = vunpack.c.h.b16 %v801
      %v978 = vunpack.c.l.b16 %v802
      %v979 = vunpack.c.h.b16 %v802
      %v980 = vunpack.c.l.b16 %v803
      %v981 = vunpack.c.h.b16 %v803
      %v982 = vunpack.c.l.b16 %v804
      %v983 = vunpack.c.h.b16 %v804
      %v984 = vunpack.c.l.b16 %v805
      %v985 = vunpack.c.h.b16 %v805
      %v986 = vunpack.c.l.b16 %v806
      %v987 = vunpack.c.h.b16 %v806
      %v988 = vunpack.c.l.b16 %v807
      %v989 = vunpack.c.h.b16 %v807
      %v990 = vunpack.c.l.b16 %v808
      %v991 = vunpack.c.h.b16 %v808
      %v992 = vunpack.c.l.b16 %v809
      %v993 = vunpack.c.h.b16 %v809
      %v994 = vunpack.c.l.b16 %v810
      %v995 = vunpack.c.h.b16 %v810
      %v996 = vunpack.c.l.b16 %v811
      %v997 = vunpack.c.h.b16 %v811
      %v998 = vunpack.c.l.b16 %v812
      %v999 = vunpack.c.h.b16 %v812
      %v1000 = vunpack.c.l.b16 %v813
      %v1001 = vunpack.c.h.b16 %v813
      %v1002 = vunpack.c.l.b16 %v814
      %v1003 = vunpack.c.h.b16 %v814
      %v1004 = vunpack.c.l.b16 %v815
      %v1005 = vunpack.c.h.b16 %v815
      %v1006 = vunpack.c.l.b16 %v816
      %v1007 = vunpack.c.h.b16 %v816
      %v1008 = vunpack.c.l.b16 %v817
      %v1009 = vunpack.c.h.b16 %v817
      %v1010 = vunpack.c.l.b16 %v818
      %v1011 = vunpack.c.h.b16 %v818
      %v1012 = vunpack.c.l.b16 %v819
      %v1013 = vunpack.c.h.b16 %v819
      %v1014 = vunpack.c.l.b16 %v820
      %v1015 = vunpack.c.h.b16 %v820
      %v1016 = vunpack.c.l.b16 %v821
      %v1017 = vunpack.c.h.b16 %v821
      %v1018 = vunpack.c.l.b16 %v822
      %v1019 = vunpack.c.h.b16 %v822
      %v1020 = vunpack.c.l.b16 %v823
      %v1021 = vunpack.c.h.b16 %v823
      %v1022 = vunpack.c.l.b16 %v824
      %v1023 = vunpack.c.h.b16 %v824
      %v1024 = vunpack.c.l.b16 %v825
      %v1025 = vunpack.c.h.b16 %v825
      %v1026 = vunpack.c.l.b16 %v826
      %v1027 = vunpack.c.h.b16 %v826
      %v1028 = vunpack.c.l.b16 %v827
      %v1029 = vunpack.c.h.b16 %v827
      %v1030 = vunpack.c.l.b16 %v828
      %v1031 = vunpack.c.h.b16 %v828
      %v1032 = vunpack.c.l.b16 %v829
      %v1033 = vunpack.c.h.b16 %v829
      %v1034 = vpack.c.b16 %v908, %v906
      %v1035 = vpack.c.b16 %v909, %v907
      %v1036 = vpack.c.b16 %v912, %v910
      %v1037 = vpack.c.b16 %v913, %v911
      %v1038 = vpack.c.b16 %v916, %v914
      %v1039 = vpack.c.b16 %v917, %v915
      %v1040 = vpack.c.b16 %v920, %v918
      %v1041 = vpack.c.b16 %v921, %v919
      %v1042 = vpack.c.b16 %v924, %v922
      %v1043 = vpack.c.b16 %v925, %v923
      %v1044 = vpack.c.b16 %v928, %v926
      %v1045 = vpack.c.b16 %v929, %v927
      %v1046 = vpack.c.b16 %v932, %v930
      %v1047 = vpack.c.b16 %v933, %v931
      %v1048 = vpack.c.b16 %v936, %v934
      %v1049 = vpack.c.b16 %v937, %v935
      %v1050 = vpack.c.b16 %v940, %v938
      %v1051 = vpack.c.b16 %v941, %v939
      %v1052 = vpack.c.b16 %v944, %v942
      %v1053 = vpack.c.b16 %v945, %v943
      %v1054 = vpack.c.b16 %v948, %v946
      %v1055 = vpack.c.b16 %v949, %v947
      %v1056 = vpack.c.b16 %v952, %v950
      %v1057 = vpack.c.b16 %v953, %v951
      %v1058 = vpack.c.b16 %v956, %v954
      %v1059 = vpack.c.b16 %v957, %v955
      %v1060 = vpack.c.b16 %v960, %v958
      %v1061 = vpack.c.b16 %v961, %v959
      %v1062 = vpack.c.b16 %v964, %v962
      %v1063 = vpack.c.b16 %v965, %v963
      %v1064 = vpack.c.b16 %v968, %v966
      %v1065 = vpack.c.b16 %v969, %v967
      %v1066 = vpack.c.b16 %v972, %v970
      %v1067 = vpack.c.b16 %v973, %v971
      %v1068 = vpack.c.b16 %v976, %v974
      %v1069 = vpack.c.b16 %v977, %v975
      %v1070 = vpack.c.b16 %v980, %v978
      %v1071 = vpack.c.b16 %v981, %v979
      %v1072 = vpack.c.b16 %v984, %v982
      %v1073 = vpack.c.b16 %v985, %v983
      %v1074 = vpack.c.b16 %v988, %v986
      %v1075 = vpack.c.b16 %v989, %v987
      %v1076 = vpack.c.b16 %v992, %v990
      %v1077 = vpack.c.b16 %v993, %v991
      %v1078 = vpack.c.b16 %v996, %v994
      %v1079 = vpack.c.b16 %v997, %v995
      %v1080 = vpack.c.b16 %v1000, %v998
      %v1081 = vpack.c.b16 %v1001, %v999
      %v1082 = vpack.c.b16 %v1004, %v1002
      %v1083 = vpack.c.b16 %v1005, %v1003
      %v1084 = vpack.c.b16 %v1008, %v1006
      %v1085 = vpack.c.b16 %v1009, %v1007
      %v1086 = vpack.c.b16 %v1012, %v1010
      %v1087 = vpack.c.b16 %v1013, %v1011
      %v1088 = vpack.c.b16 %v1016, %v1014
      %v1089 = vpack.c.b16 %v1017, %v1015
      %v1090 = vpack.c.b16 %v1020, %v1018
      %v1091 = vpack.c.b16 %v1021, %v1019
      %v1092 = vpack.c.b16 %v1024, %v1022
      %v1093 = vpack.c.b16 %v1025, %v1023
      %v1094 = vpack.c.b16 %v1028, %v1026
      %v1095 = vpack.c.b16 %v1029, %v1027
      %v1096 = vpack.c.b16 %v1032, %v1030
      %v1097 = vpack.c.b16 %v1033, %v1031
      %1162 = vmatprep.subr.bf16.mxu0 %v1049
      %1163 = vmatpush1.bf16.msra.mxu0 %v1048
      %1164 = vmatprep.subr.bf16.mxu0 %v1047
      %1165 = vmatpush1.bf16.msra.mxu0 %v1046
      %1166 = vmatprep.subr.bf16.mxu0 %v1045
      %1167 = vmatpush1.bf16.msra.mxu0 %v1044
      %1168 = vmatprep.subr.bf16.mxu0 %v1043
      %1169 = vmatpush1.bf16.msra.mxu0 %v1042
      %1170 = vmatprep.subr.bf16.mxu0 %v1041
      %1171 = vmatpush1.bf16.msra.mxu0 %v1040
      %1172 = vmatprep.subr.bf16.mxu0 %v1039
      %1173 = vmatpush1.bf16.msra.mxu0 %v1038
      %1174 = vmatprep.subr.bf16.mxu0 %v1037
      %1175 = vmatpush1.bf16.msra.mxu0 %v1036
      %1176 = vmatprep.subr.bf16.mxu0 %v1035
      %1177 = vmatpush1.bf16.msra.mxu0 %v1034
      %1178 = vmatprep.subr.bf16.mxu0 %v1065
      %1179 = vmatpush2.bf16.msra.mxu0 %v1064
      %1180 = vmatprep.subr.bf16.mxu0 %v1063
      %1181 = vmatpush2.bf16.msra.mxu0 %v1062
      %1182 = vmatprep.subr.bf16.mxu0 %v1061
      %1183 = vmatpush2.bf16.msra.mxu0 %v1060
      %1184 = vmatprep.subr.bf16.mxu0 %v1059
      %1185 = vmatpush2.bf16.msra.mxu0 %v1058
      %1186 = vmatprep.subr.bf16.mxu0 %v1057
      %1187 = vmatpush2.bf16.msra.mxu0 %v1056
      %1188 = vmatprep.subr.bf16.mxu0 %v1055
      %1189 = vmatpush2.bf16.msra.mxu0 %v1054
      %1190 = vmatprep.subr.bf16.mxu0 %v1053
      %1191 = vmatpush2.bf16.msra.mxu0 %v1052
      %1192 = vmatprep.subr.bf16.mxu0 %v1051
      %1193 = vmatpush2.bf16.msra.mxu0 %v1050
      %1194 = vmatprep.mubr.bf16.mxu0 %v731
      %1195 = vmatmul.mubr.bf16.gmra.mxu0 %v730
      %v1196 = vpop.f32.mrf.mxu0
      %v1197 = vadd.f32 %v835, %v1196
      %v1198 = vpop.f32.mrf.mxu0
      %v1199 = vadd.f32 %v839, %v1198
      %v1200 = vpop.f32.mrf.mxu0
      %v1201 = vadd.f32 %v835, %v1200
      %v1202 = vpop.f32.mrf.mxu0
      %v1203 = vadd.f32 %v839, %v1202
      %1204 = vmatprep.mubr.bf16.mxu0 %v735
      %1205 = vmatmul.mubr.bf16.gmra.mxu0 %v734
      %v1206 = vpop.f32.mrf.mxu0
      %v1207 = vadd.f32 %v835, %v1206
      %v1208 = vpop.f32.mrf.mxu0
      %v1209 = vadd.f32 %v839, %v1208
      %v1210 = vpop.f32.mrf.mxu0
      %v1211 = vadd.f32 %v835, %v1210
      %v1212 = vpop.f32.mrf.mxu0
      %v1213 = vadd.f32 %v839, %v1212
      %1214 = vmatprep.mubr.bf16.mxu0 %v739
      %1215 = vmatmul.mubr.bf16.gmra.mxu0 %v738
      %v1216 = vpop.f32.mrf.mxu0
      %v1217 = vadd.f32 %v835, %v1216
      %v1218 = vpop.f32.mrf.mxu0
      %v1219 = vadd.f32 %v839, %v1218
      %v1220 = vpop.f32.mrf.mxu0
      %v1221 = vadd.f32 %v835, %v1220
      %v1222 = vpop.f32.mrf.mxu0
      %v1223 = vadd.f32 %v839, %v1222
      %1224 = vmatprep.mubr.bf16.mxu0 %v743
      %1225 = vmatmul.mubr.bf16.gmra.mxu0 %v742
      %v1226 = vpop.f32.mrf.mxu0
      %v1227 = vadd.f32 %v835, %v1226
      %v1228 = vpop.f32.mrf.mxu0
      %v1229 = vadd.f32 %v839, %v1228
      %v1230 = vpop.f32.mrf.mxu0
      %v1231 = vadd.f32 %v835, %v1230
      %v1232 = vpop.f32.mrf.mxu0
      %v1233 = vadd.f32 %v839, %v1232
      %1234 = vmatprep.mubr.bf16.mxu0 %v747
      %1235 = vmatmul.mubr.bf16.gmra.mxu0 %v746
      %v1236 = vpop.f32.mrf.mxu0
      %v1237 = vadd.f32 %v835, %v1236
      %v1238 = vpop.f32.mrf.mxu0
      %v1239 = vadd.f32 %v839, %v1238
      %v1240 = vpop.f32.mrf.mxu0
      %v1241 = vadd.f32 %v835, %v1240
      %v1242 = vpop.f32.mrf.mxu0
      %v1243 = vadd.f32 %v839, %v1242
      %1244 = vmatprep.mubr.bf16.mxu0 %v751
      %1245 = vmatmul.mubr.bf16.gmra.mxu0 %v750
      %v1246 = vpop.f32.mrf.mxu0
      %v1247 = vadd.f32 %v835, %v1246
      %v1248 = vpop.f32.mrf.mxu0
      %v1249 = vadd.f32 %v839, %v1248
      %v1250 = vpop.f32.mrf.mxu0
      %v1251 = vadd.f32 %v835, %v1250
      %v1252 = vpop.f32.mrf.mxu0
      %v1253 = vadd.f32 %v839, %v1252
      %1254 = vmatprep.mubr.bf16.mxu0 %v755
      %1255 = vmatmul.mubr.bf16.gmra.mxu0 %v754
      %v1256 = vpop.f32.mrf.mxu0
      %v1257 = vadd.f32 %v835, %v1256
      %v1258 = vpop.f32.mrf.mxu0
      %v1259 = vadd.f32 %v839, %v1258
      %v1260 = vpop.f32.mrf.mxu0
      %v1261 = vadd.f32 %v835, %v1260
      %v1262 = vpop.f32.mrf.mxu0
      %v1263 = vadd.f32 %v839, %v1262
      %1264 = vmatprep.mubr.bf16.mxu0 %v759
      %1265 = vmatmul.mubr.bf16.gmra.mxu0 %v758
      %v1266 = vpop.f32.mrf.mxu0
      %v1267 = vadd.f32 %v835, %v1266
      %v1268 = vpop.f32.mrf.mxu0
      %v1269 = vadd.f32 %v839, %v1268
      %v1270 = vpop.f32.mrf.mxu0
      %v1271 = vadd.f32 %v835, %v1270
      %v1272 = vpop.f32.mrf.mxu0
      %v1273 = vadd.f32 %v839, %v1272
      %1274 = vmatprep.mubr.bf16.mxu0 %v763
      %1275 = vmatmul.mubr.bf16.gmra.mxu0 %v762
      %v1276 = vpop.f32.mrf.mxu0
      %v1277 = vadd.f32 %v835, %v1276
      %v1278 = vpop.f32.mrf.mxu0
      %v1279 = vadd.f32 %v839, %v1278
      %v1280 = vpop.f32.mrf.mxu0
      %v1281 = vadd.f32 %v835, %v1280
      %v1282 = vpop.f32.mrf.mxu0
      %v1283 = vadd.f32 %v839, %v1282
      %1284 = vdwg.mxu0
      %1285 = vmatprep.subr.bf16.mxu0 %v1081
      %1286 = vmatpush1.bf16.msra.mxu0 %v1080
      %1287 = vmatprep.subr.bf16.mxu0 %v1079
      %1288 = vmatpush1.bf16.msra.mxu0 %v1078
      %1289 = vmatprep.subr.bf16.mxu0 %v1077
      %1290 = vmatpush1.bf16.msra.mxu0 %v1076
      %1291 = vmatprep.subr.bf16.mxu0 %v1075
      %1292 = vmatpush1.bf16.msra.mxu0 %v1074
      %1293 = vmatprep.subr.bf16.mxu0 %v1073
      %1294 = vmatpush1.bf16.msra.mxu0 %v1072
      %1295 = vmatprep.subr.bf16.mxu0 %v1071
      %1296 = vmatpush1.bf16.msra.mxu0 %v1070
      %1297 = vmatprep.subr.bf16.mxu0 %v1069
      %1298 = vmatpush1.bf16.msra.mxu0 %v1068
      %1299 = vmatprep.subr.bf16.mxu0 %v1067
      %1300 = vmatpush1.bf16.msra.mxu0 %v1066
      %1301 = vmatprep.subr.bf16.mxu0 %v1097
      %1302 = vmatpush2.bf16.msra.mxu0 %v1096
      %1303 = vmatprep.subr.bf16.mxu0 %v1095
      %1304 = vmatpush2.bf16.msra.mxu0 %v1094
      %1305 = vmatprep.subr.bf16.mxu0 %v1093
      %1306 = vmatpush2.bf16.msra.mxu0 %v1092
      %1307 = vmatprep.subr.bf16.mxu0 %v1091
      %1308 = vmatpush2.bf16.msra.mxu0 %v1090
      %1309 = vmatprep.subr.bf16.mxu0 %v1089
      %1310 = vmatpush2.bf16.msra.mxu0 %v1088
      %1311 = vmatprep.subr.bf16.mxu0 %v1087
      %1312 = vmatpush2.bf16.msra.mxu0 %v1086
      %1313 = vmatprep.subr.bf16.mxu0 %v1085
      %1314 = vmatpush2.bf16.msra.mxu0 %v1084
      %1315 = vmatprep.subr.bf16.mxu0 %v1083
      %1316 = vmatpush2.bf16.msra.mxu0 %v1082
      %1317 = vmatprep.mubr.bf16.mxu0 %v733
      %1318 = vmatmul.mubr.bf16.gmra.mxu0 %v732
      %v1319 = vpop.f32.mrf.mxu0
      %v1320 = vadd.f32 %v1197, %v1319
      %v1321 = vpop.f32.mrf.mxu0
      %v1322 = vadd.f32 %v1199, %v1321
      %v1323 = vpop.f32.mrf.mxu0
      %v1324 = vadd.f32 %v1201, %v1323
      %v1325 = vpop.f32.mrf.mxu0
      %v1326 = vadd.f32 %v1203, %v1325
      %1327 = vmatprep.mubr.bf16.mxu0 %v737
      %1328 = vmatmul.mubr.bf16.gmra.mxu0 %v736
      %v1329 = vpop.f32.mrf.mxu0
      %v1330 = vadd.f32 %v1207, %v1329
      %v1331 = vpop.f32.mrf.mxu0
      %v1332 = vadd.f32 %v1209, %v1331
      %v1333 = vpop.f32.mrf.mxu0
      %v1334 = vadd.f32 %v1211, %v1333
      %v1335 = vpop.f32.mrf.mxu0
      %v1336 = vadd.f32 %v1213, %v1335
      %1337 = vmatprep.mubr.bf16.mxu0 %v741
      %1338 = vmatmul.mubr.bf16.gmra.mxu0 %v740
      %v1339 = vpop.f32.mrf.mxu0
      %v1340 = vadd.f32 %v1217, %v1339
      %v1341 = vpop.f32.mrf.mxu0
      %v1342 = vadd.f32 %v1219, %v1341
      %v1343 = vpop.f32.mrf.mxu0
      %v1344 = vadd.f32 %v1221, %v1343
      %v1345 = vpop.f32.mrf.mxu0
      %v1346 = vadd.f32 %v1223, %v1345
      %1347 = vmatprep.mubr.bf16.mxu0 %v745
      %1348 = vmatmul.mubr.bf16.gmra.mxu0 %v744
      %v1349 = vpop.f32.mrf.mxu0
      %v1350 = vadd.f32 %v1227, %v1349
      %v1351 = vpop.f32.mrf.mxu0
      %v1352 = vadd.f32 %v1229, %v1351
      %v1353 = vpop.f32.mrf.mxu0
      %v1354 = vadd.f32 %v1231, %v1353
      %v1355 = vpop.f32.mrf.mxu0
      %v1356 = vadd.f32 %v1233, %v1355
      %1357 = vmatprep.mubr.bf16.mxu0 %v749
      %1358 = vmatmul.mubr.bf16.gmra.mxu0 %v748
      %v1359 = vpop.f32.mrf.mxu0
      %v1360 = vadd.f32 %v1237, %v1359
      %v1361 = vpop.f32.mrf.mxu0
      %v1362 = vadd.f32 %v1239, %v1361
      %v1363 = vpop.f32.mrf.mxu0
      %v1364 = vadd.f32 %v1241, %v1363
      %v1365 = vpop.f32.mrf.mxu0
      %v1366 = vadd.f32 %v1243, %v1365
      %1367 = vmatprep.mubr.bf16.mxu0 %v753
      %1368 = vmatmul.mubr.bf16.gmra.mxu0 %v752
      %v1369 = vpop.f32.mrf.mxu0
      %v1370 = vadd.f32 %v1247, %v1369
      %v1371 = vpop.f32.mrf.mxu0
      %v1372 = vadd.f32 %v1249, %v1371
      %v1373 = vpop.f32.mrf.mxu0
      %v1374 = vadd.f32 %v1251, %v1373
      %v1375 = vpop.f32.mrf.mxu0
      %v1376 = vadd.f32 %v1253, %v1375
      %1377 = vmatprep.mubr.bf16.mxu0 %v757
      %1378 = vmatmul.mubr.bf16.gmra.mxu0 %v756
      %v1379 = vpop.f32.mrf.mxu0
      %v1380 = vadd.f32 %v1257, %v1379
      %v1381 = vpop.f32.mrf.mxu0
      %v1382 = vadd.f32 %v1259, %v1381
      %v1383 = vpop.f32.mrf.mxu0
      %v1384 = vadd.f32 %v1261, %v1383
      %v1385 = vpop.f32.mrf.mxu0
      %v1386 = vadd.f32 %v1263, %v1385
      %1387 = vmatprep.mubr.bf16.mxu0 %v761
      %1388 = vmatmul.mubr.bf16.gmra.mxu0 %v760
      %v1389 = vpop.f32.mrf.mxu0
      %v1390 = vadd.f32 %v1267, %v1389
      %v1391 = vpop.f32.mrf.mxu0
      %v1392 = vadd.f32 %v1269, %v1391
      %v1393 = vpop.f32.mrf.mxu0
      %v1394 = vadd.f32 %v1271, %v1393
      %v1395 = vpop.f32.mrf.mxu0
      %v1396 = vadd.f32 %v1273, %v1395
      %1397 = vmatprep.mubr.bf16.mxu0 %v765
      %1398 = vmatmul.mubr.bf16.gmra.mxu0 %v764
      %v1399 = vpop.f32.mrf.mxu0
      %v1400 = vadd.f32 %v1277, %v1399
      %v1401 = vpop.f32.mrf.mxu0
      %v1402 = vadd.f32 %v1279, %v1401
      %v1403 = vpop.f32.mrf.mxu0
      %v1404 = vadd.f32 %v1281, %v1403
      %v1405 = vpop.f32.mrf.mxu0
      %v1406 = vadd.f32 %v1283, %v1405
      %1407 = vdwg.mxu0
      %v1408 = vmax.f32 %v1320, 0.0
      %v1409 = vmax.f32 %v1322, 0.0
      %v1410 = vmax.f32 %v1324, 0.0
      %v1411 = vmax.f32 %v1326, 0.0
      %v1412 = vmax.f32 %v1330, 0.0
      %v1413 = vmax.f32 %v1332, 0.0
      %v1414 = vmax.f32 %v1334, 0.0
      %v1415 = vmax.f32 %v1336, 0.0
      %v1416 = vmax.f32 %v1340, 0.0
      %v1417 = vmax.f32 %v1342, 0.0
      %v1418 = vmax.f32 %v1344, 0.0
      %v1419 = vmax.f32 %v1346, 0.0
      %v1420 = vmax.f32 %v1350, 0.0
      %v1421 = vmax.f32 %v1352, 0.0
      %v1422 = vmax.f32 %v1354, 0.0
      %v1423 = vmax.f32 %v1356, 0.0
      %v1424 = vmax.f32 %v1360, 0.0
      %v1425 = vmax.f32 %v1362, 0.0
      %v1426 = vmax.f32 %v1364, 0.0
      %v1427 = vmax.f32 %v1366, 0.0
      %v1428 = vmax.f32 %v1370, 0.0
      %v1429 = vmax.f32 %v1372, 0.0
      %v1430 = vmax.f32 %v1374, 0.0
      %v1431 = vmax.f32 %v1376, 0.0
      %v1432 = vmax.f32 %v1380, 0.0
      %v1433 = vmax.f32 %v1382, 0.0
      %v1434 = vmax.f32 %v1384, 0.0
      %v1435 = vmax.f32 %v1386, 0.0
      %v1436 = vmax.f32 %v1390, 0.0
      %v1437 = vmax.f32 %v1392, 0.0
      %v1438 = vmax.f32 %v1394, 0.0
      %v1439 = vmax.f32 %v1396, 0.0
      %v1440 = vmax.f32 %v1400, 0.0
      %v1441 = vmax.f32 %v1402, 0.0
      %v1442 = vmax.f32 %v1404, 0.0
      %v1443 = vmax.f32 %v1406, 0.0
      %v1444 = vmax.f32 %v1408, %v1409
      %v1445 = vmax.f32 %v1410, %v1411
      %v1446 = vmax.f32 %v1412, %v1413
      %v1447 = vmax.f32 %v1414, %v1415
      %v1448 = vmax.f32 %v1416, %v1417
      %v1449 = vmax.f32 %v1418, %v1419
      %v1450 = vmax.f32 %v1420, %v1421
      %v1451 = vmax.f32 %v1422, %v1423
      %v1452 = vmax.f32 %v1424, %v1425
      %v1453 = vmax.f32 %v1426, %v1427
      %v1454 = vmax.f32 %v1428, %v1429
      %v1455 = vmax.f32 %v1430, %v1431
      %v1456 = vmax.f32 %v1432, %v1433
      %v1457 = vmax.f32 %v1434, %v1435
      %v1458 = vmax.f32 %v1436, %v1437
      %v1459 = vmax.f32 %v1438, %v1439
      %v1460 = vmax.f32 %v1440, %v1441
      %v1461 = vmax.f32 %v1442, %v1443
      %1480 = vrot.lane.b32.xlu0 %v1444, 64
      %v1481 = vpop.permute.xlu0 %1480
      %1482 = vrot.lane.b32.xlu0 %v1445, 64
      %v1483 = vpop.permute.xlu0 %1482
      %1484 = vrot.lane.b32.xlu0 %v1446, 64
      %v1485 = vpop.permute.xlu0 %1484
      %1486 = vrot.lane.b32.xlu0 %v1447, 64
      %v1487 = vpop.permute.xlu0 %1486
      %1488 = vrot.lane.b32.xlu0 %v1448, 64
      %v1489 = vpop.permute.xlu0 %1488
      %1490 = vrot.lane.b32.xlu0 %v1449, 64
      %v1491 = vpop.permute.xlu0 %1490
      %1492 = vrot.lane.b32.xlu0 %v1450, 64
      %v1493 = vpop.permute.xlu0 %1492
      %1494 = vrot.lane.b32.xlu0 %v1451, 64
      %v1495 = vpop.permute.xlu0 %1494
      %1496 = vrot.lane.b32.xlu0 %v1452, 64
      %v1497 = vpop.permute.xlu0 %1496
      %1498 = vrot.lane.b32.xlu0 %v1453, 64
      %v1499 = vpop.permute.xlu0 %1498
      %1500 = vrot.lane.b32.xlu0 %v1454, 64
      %v1501 = vpop.permute.xlu0 %1500
      %1502 = vrot.lane.b32.xlu0 %v1455, 64
      %v1503 = vpop.permute.xlu0 %1502
      %1504 = vrot.lane.b32.xlu0 %v1456, 64
      %v1505 = vpop.permute.xlu0 %1504
      %1506 = vrot.lane.b32.xlu0 %v1457, 64
      %v1507 = vpop.permute.xlu0 %1506
      %1508 = vrot.lane.b32.xlu0 %v1458, 64
      %v1509 = vpop.permute.xlu0 %1508
      %1510 = vrot.lane.b32.xlu0 %v1459, 64
      %v1511 = vpop.permute.xlu0 %1510
      %1512 = vrot.lane.b32.xlu0 %v1460, 64
      %v1513 = vpop.permute.xlu0 %1512
      %1514 = vrot.lane.b32.xlu0 %v1461, 64
      %v1515 = vpop.permute.xlu0 %1514
      %v1534 = vmax.f32 %v1444, %v1481
      %v1535 = vmax.f32 %v1445, %v1483
      %v1536 = vmax.f32 %v1446, %v1485
      %v1537 = vmax.f32 %v1447, %v1487
      %v1538 = vmax.f32 %v1448, %v1489
      %v1539 = vmax.f32 %v1449, %v1491
      %v1540 = vmax.f32 %v1450, %v1493
      %v1541 = vmax.f32 %v1451, %v1495
      %v1542 = vmax.f32 %v1452, %v1497
      %v1543 = vmax.f32 %v1453, %v1499
      %v1544 = vmax.f32 %v1454, %v1501
      %v1545 = vmax.f32 %v1455, %v1503
      %v1546 = vmax.f32 %v1456, %v1505
      %v1547 = vmax.f32 %v1457, %v1507
      %v1548 = vmax.f32 %v1458, %v1509
      %v1549 = vmax.f32 %v1459, %v1511
      %v1550 = vmax.f32 %v1460, %v1513
      %v1551 = vmax.f32 %v1461, %v1515
      %v1552 = vpack.c.bf16 %v1535, %v1534
      %v1553 = vpack.c.bf16 %v1537, %v1536
      %v1554 = vpack.c.bf16 %v1539, %v1538
      %v1555 = vpack.c.bf16 %v1541, %v1540
      %v1556 = vpack.c.bf16 %v1543, %v1542
      %v1557 = vpack.c.bf16 %v1545, %v1544
      %v1558 = vpack.c.bf16 %v1547, %v1546
      %v1559 = vpack.c.bf16 %v1549, %v1548
      %v1560 = vpack.c.bf16 %v1551, %v1550
      %v1570 = vunpack.c.l.b16 %v1552
      %v1571 = vunpack.c.h.b16 %v1552
      %v1572 = vunpack.c.l.b16 %v1553
      %v1573 = vunpack.c.h.b16 %v1553
      %v1574 = vunpack.c.l.b16 %v1554
      %v1575 = vunpack.c.h.b16 %v1554
      %v1576 = vunpack.c.l.b16 %v1555
      %v1577 = vunpack.c.h.b16 %v1555
      %v1578 = vunpack.c.l.b16 %v1556
      %v1579 = vunpack.c.h.b16 %v1556
      %v1580 = vunpack.c.l.b16 %v1557
      %v1581 = vunpack.c.h.b16 %v1557
      %v1582 = vunpack.c.l.b16 %v1558
      %v1583 = vunpack.c.h.b16 %v1558
      %v1584 = vunpack.c.l.b16 %v1559
      %v1585 = vunpack.c.h.b16 %v1559
      %v1586 = vunpack.c.l.b16 %v1560
      %v1587 = vunpack.c.h.b16 %v1560
      %v1588 = vpack.c.b16 %v1570, %v1570
      %v1589 = vpack.c.b16 %v1571, %v1571
      %v1590 = vpack.c.b16 %v1572, %v1572
      %v1591 = vpack.c.b16 %v1573, %v1573
      %v1592 = vpack.c.b16 %v1574, %v1574
      %v1593 = vpack.c.b16 %v1575, %v1575
      %v1594 = vpack.c.b16 %v1576, %v1576
      %v1595 = vpack.c.b16 %v1577, %v1577
      %v1596 = vpack.c.b16 %v1578, %v1578
      %v1597 = vpack.c.b16 %v1579, %v1579
      %v1598 = vpack.c.b16 %v1580, %v1580
      %v1599 = vpack.c.b16 %v1581, %v1581
      %v1600 = vpack.c.b16 %v1582, %v1582
      %v1601 = vpack.c.b16 %v1583, %v1583
      %v1602 = vpack.c.b16 %v1584, %v1584
      %v1603 = vpack.c.b16 %v1585, %v1585
      %v1604 = vpack.c.b16 %v1586, %v1586
      %v1605 = vpack.c.b16 %v1587, %v1587
      %vm1624 = vcmask 519168
      %1625 = vst.msk [vmem:[%s224] sm:$0xf] %vm1624, %v1588
      %1626 = vst.msk [vmem:[%s224 + $0x4] sm:$0xf] %vm1624, %v1589
      %1627 = vst.msk [vmem:[%s224 + $0x8] sm:$0xf] %vm1624, %v1590
      %1628 = vst.msk [vmem:[%s224 + $0xc] sm:$0xf] %vm1624, %v1591
      %1629 = vst.msk [vmem:[%s224 + $0x10] sm:$0xf] %vm1624, %v1592
      %1630 = vst.msk [vmem:[%s224 + $0x14] sm:$0xf] %vm1624, %v1593
      %1631 = vst.msk [vmem:[%s224 + $0x18] sm:$0xf] %vm1624, %v1594
      %1632 = vst.msk [vmem:[%s224 + $0x1c] sm:$0xf] %vm1624, %v1595
      %1633 = vst.msk [vmem:[%s224 + $0x20] sm:$0xf] %vm1624, %v1596
      %1634 = vst.msk [vmem:[%s224 + $0x24] sm:$0xf] %vm1624, %v1597
      %1635 = vst.msk [vmem:[%s224 + $0x28] sm:$0xf] %vm1624, %v1598
      %1636 = vst.msk [vmem:[%s224 + $0x2c] sm:$0xf] %vm1624, %v1599
      %1637 = vst.msk [vmem:[%s224 + $0x30] sm:$0xf] %vm1624, %v1600
      %1638 = vst.msk [vmem:[%s224 + $0x34] sm:$0xf] %vm1624, %v1601
      %1639 = vst.msk [vmem:[%s224 + $0x38] sm:$0xf] %vm1624, %v1602
      %1640 = vst.msk [vmem:[%s224 + $0x3c] sm:$0xf] %vm1624, %v1603
      %1641 = vst.msk [vmem:[%s224 + $0x40] sm:$0xf] %vm1624, %v1604
      %1642 = vst.msk [vmem:[%s224 + $0x44] sm:$0xf] %vm1624, %v1605
      %p1643 = scmp.lt.s32.totalorder %s16, 1
      %s1644 = scalar_select %p1643, %s16, 1
      %s1645 = smul.addr %s1644, 18
      %s1646 = smul.addr %s1645, 4
      %s1647 = scalar_lea.vmem %s5, %s1646
      // Predicated region
      $region41: #{net_forward.2} parent=39 // pred_check
        %p1648 = pneg %p144
      $region42: #{net_forward.2} parent=39 // pred_check_branch
        %1650 = sbr.rel (%p1648) target = $region44
      $region43: #{net_forward.2} parent=39 // pred_region
        _
      $region44: #{net_forward.2} parent=39 // pred_fallthru
        _
    $region40: #{net_forward.2} parent=5 // pred_fallthru
      _
    %p1651 = scmp.le.s32.totalorder 2, %s11
    // Predicated region
    $region45: #{net_forward.2} parent=5 // pred_check
      %p1652 = pneg %p1651
    $region46: #{net_forward.2} parent=5 // pred_check_branch
      %1654 = sbr.rel (%p1652) target = $region48
    $region47: #{net_forward.2} parent=5 // pred_region
      %s1655 = ssub.s32 %s11, 2
      // Predicated region
      $region49: #{net_forward.2} parent=47 // pred_check
        %p1656 = pneg %p150
      $region50: #{net_forward.2} parent=47 // pred_check_branch
        %1658 = sbr.rel (%p1656) target = $region52
      $region51: #{net_forward.2} parent=47 // pred_region
        %p1659 = scmp.lt.s32.totalorder %s17, 1
        %s1660 = scalar_select %p1659, %s17, 1
        %s1661 = smul.addr %s1660, 18
        %s1662 = smul.addr %s1661, 4
        %s1663 = scalar_lea.vmem %s5, %s1662
      $region52: #{net_forward.2} parent=47 // pred_fallthru
        _
    $region48: #{net_forward.2} parent=5 // pred_fallthru
      _
  $region6: #{net_forward.2} parent=0 // loop_footer
    %s15 = sadd.s32 1, %s11
  $region7: #{net_forward.2} parent=0 // loop_footer_branch
    %10 = sbr.rel target = $region3
  $region8: #{net_forward.2} parent=0 // loop_exit
    _

// kernel: net_forward.3
$region0: #{net_forward.3}
  #allocation0 [shape = 'u32[]', space=smem, size = 0x4, offset = 0x4, fixed_abs, tag = 'smem constant byte address 0x4 - core index']
  #allocation1 [shape = 'u32[144,128]{1,0:T(1,128)}', space=vmem, size = 0x12000, scoped, tag = 'internal scratch']
  %s0 = inlined_call_operand.vmem [shape: bf16[2,9216], index: 0, kind: input, shape index: {}]
  %s1 = inlined_call_operand.vmem [shape: bf16[9216,128], index: 1, kind: input, shape index: {}]
  %s2 = inlined_call_operand.vmem [shape: f32[1,128], index: 2, kind: input, shape index: {}]
  %s3 = inlined_call_operand.hbm [shape: f32[2,128], index: 3, kind: output, shape index: {}]
  %s4 = sld [smem:[#allocation0]]
  $region22: #{net_forward.3} parent=0
    _
  %s6 = ssub.s32 1, %s4
  %s7 = scalar_select 0, %s6, %s4
  $region1: #{net_forward.3} parent=0
    #allocation2 [shape = 'u8[1024]{0}', space=vmem, size = 0x400, scoped, tag = 'output window, operand 0, single buffered']
    #allocation3 [shape = 's32[1]{0}', space=sflag, size = 0x4, scoped, tag = 'scoped memory for net_forward.3']
    %8 = vsyncpa [#allocation3], 0
    // Predicated region
    $region2: #{net_forward.3} parent=1 // pred_check
      _
    $region3: #{net_forward.3} parent=1 // pred_check_branch
      %10 = sbr.rel (0) target = $region5
    $region4: #{net_forward.3} parent=1 // pred_region
      _
    $region5: #{net_forward.3} parent=1 // pred_fallthru
      _
    // Predicated region
    $region6: #{net_forward.3} parent=1 // pred_check
      _
    $region7: #{net_forward.3} parent=1 // pred_check_branch
      %12 = sbr.rel (0) target = $region9
    $region8: #{net_forward.3} parent=1 // pred_region
      _
    $region9: #{net_forward.3} parent=1 // pred_fallthru
      _
    // Predicated region
    $region10: #{net_forward.3} parent=1 // pred_check
      _
    $region11: #{net_forward.3} parent=1 // pred_check_branch
      %14 = sbr.rel (0) target = $region13
    $region12: #{net_forward.3} parent=1 // pred_region
      _
    $region13: #{net_forward.3} parent=1 // pred_fallthru
      _
    %v16 = vld [vmem:[%s0] sm:$0xff]
    %v17 = vld [vmem:[%s0 + $0x8] sm:$0xff]
    %v18 = vld [vmem:[%s0 + $0x10] sm:$0xff]
    %v19 = vld [vmem:[%s0 + $0x18] sm:$0xff]
    %v20 = vld [vmem:[%s0 + $0x20] sm:$0xff]
    %v21 = vld [vmem:[%s0 + $0x28] sm:$0xff]
    %v22 = vld [vmem:[%s0 + $0x30] sm:$0xff]
    %v23 = vld [vmem:[%s0 + $0x38] sm:$0xff]
    %v24 = vld [vmem:[%s0 + $0x40] sm:$0xff]
    %v25 = vld [vmem:[%s1] sm:$0xf]
    %v26 = vld [vmem:[%s1 + $0x4] sm:$0xf]
    %v27 = vld [vmem:[%s1 + $0x8] sm:$0xf]
    %v28 = vld [vmem:[%s1 + $0xc] sm:$0xf]
    %v29 = vld [vmem:[%s1 + $0x10] sm:$0xf]
    %v30 = vld [vmem:[%s1 + $0x14] sm:$0xf]
    %v31 = vld [vmem:[%s1 + $0x18] sm:$0xf]
    %v32 = vld [vmem:[%s1 + $0x1c] sm:$0xf]
    %v33 = vld [vmem:[%s1 + $0x20] sm:$0xf]
    %v34 = vld [vmem:[%s1 + $0x24] sm:$0xf]
    %v35 = vld [vmem:[%s1 + $0x28] sm:$0xf]
    %v36 = vld [vmem:[%s1 + $0x2c] sm:$0xf]
    %v37 = vld [vmem:[%s1 + $0x30] sm:$0xf]
    %v38 = vld [vmem:[%s1 + $0x34] sm:$0xf]
    %v39 = vld [vmem:[%s1 + $0x38] sm:$0xf]
    %v40 = vld [vmem:[%s1 + $0x3c] sm:$0xf]
    %v41 = vld [vmem:[%s1 + $0x40] sm:$0xf]
    %v42 = vld [vmem:[%s1 + $0x44] sm:$0xf]
    %v43 = vld [vmem:[%s1 + $0x48] sm:$0xf]
    %v44 = vld [vmem:[%s1 + $0x4c] sm:$0xf]
    %v45 = vld [vmem:[%s1 + $0x50] sm:$0xf]
    %v46 = vld [vmem:[%s1 + $0x54] sm:$0xf]
    %v47 = vld [vmem:[%s1 + $0x58] sm:$0xf]
    %v48 = vld [vmem:[%s1 + $0x5c] sm:$0xf]
    %v49 = vld [vmem:[%s1 + $0x60] sm:$0xf]
    %v50 = vld [vmem:[%s1 + $0x64] sm:$0xf]
    %v51 = vld [vmem:[%s1 + $0x68] sm:$0xf]
    %v52 = vld [vmem:[%s1 + $0x6c] sm:$0xf]
    %v53 = vld [vmem:[%s1 + $0x70] sm:$0xf]
    %v54 = vld [vmem:[%s1 + $0x74] sm:$0xf]
    %v55 = vld [vmem:[%s1 + $0x78] sm:$0xf]
    %v56 = vld [vmem:[%s1 + $0x7c] sm:$0xf]
    %v57 = vld [vmem:[%s1 + $0x80] sm:$0xf]
    %v58 = vld [vmem:[%s1 + $0x84] sm:$0xf]
    %v59 = vld [vmem:[%s1 + $0x88] sm:$0xf]
    %v60 = vld [vmem:[%s1 + $0x8c] sm:$0xf]
    %v61 = vld [vmem:[%s1 + $0x90] sm:$0xf]
    %v62 = vld [vmem:[%s1 + $0x94] sm:$0xf]
    %v63 = vld [vmem:[%s1 + $0x98] sm:$0xf]
    %v64 = vld [vmem:[%s1 + $0x9c] sm:$0xf]
    %v65 = vld [vmem:[%s1 + $0xa0] sm:$0xf]
    %v66 = vld [vmem:[%s1 + $0xa4] sm:$0xf]
    %v67 = vld [vmem:[%s1 + $0xa8] sm:$0xf]
    %v68 = vld [vmem:[%s1 + $0xac] sm:$0xf]
    %v69 = vld [vmem:[%s1 + $0xb0] sm:$0xf]
    %v70 = vld [vmem:[%s1 + $0xb4] sm:$0xf]
    %v71 = vld [vmem:[%s1 + $0xb8] sm:$0xf]
    %v72 = vld [vmem:[%s1 + $0xbc] sm:$0xf]
    %v73 = vld [vmem:[%s1 + $0xc0] sm:$0xf]
    %v74 = vld [vmem:[%s1 + $0xc4] sm:$0xf]
    %v75 = vld [vmem:[%s1 + $0xc8] sm:$0xf]
    %v76 = vld [vmem:[%s1 + $0xcc] sm:$0xf]
    %v77 = vld [vmem:[%s1 + $0xd0] sm:$0xf]
    %v78 = vld [vmem:[%s1 + $0xd4] sm:$0xf]
    %v79 = vld [vmem:[%s1 + $0xd8] sm:$0xf]
    %v80 = vld [vmem:[%s1 + $0xdc] sm:$0xf]
    %v81 = vld [vmem:[%s1 + $0xe0] sm:$0xf]
    %v82 = vld [vmem:[%s1 + $0xe4] sm:$0xf]
    %v83 = vld [vmem:[%s1 + $0xe8] sm:$0xf]
    %v84 = vld [vmem:[%s1 + $0xec] sm:$0xf]
    %v85 = vld [vmem:[%s1 + $0xf0] sm:$0xf]
    %v86 = vld [vmem:[%s1 + $0xf4] sm:$0xf]
    %v87 = vld [vmem:[%s1 + $0xf8] sm:$0xf]
    %v88 = vld [vmem:[%s1 + $0xfc] sm:$0xf]
    %v89 = vld [vmem:[%s1 + $0x100] sm:$0xf]
    %v90 = vld [vmem:[%s1 + $0x104] sm:$0xf]
    %v91 = vld [vmem:[%s1 + $0x108] sm:$0xf]
    %v92 = vld [vmem:[%s1 + $0x10c] sm:$0xf]
    %v93 = vld [vmem:[%s1 + $0x110] sm:$0xf]
    %v94 = vld [vmem:[%s1 + $0x114] sm:$0xf]
    %v95 = vld [vmem:[%s1 + $0x118] sm:$0xf]
    %v96 = vld [vmem:[%s1 + $0x11c] sm:$0xf]
    %v97 = vld [vmem:[%s1 + $0x120] sm:$0xf]
    %v98 = vld [vmem:[%s1 + $0x124] sm:$0xf]
    %v99 = vld [vmem:[%s1 + $0x128] sm:$0xf]
    %v100 = vld [vmem:[%s1 + $0x12c] sm:$0xf]
    %v101 = vld [vmem:[%s1 + $0x130] sm:$0xf]
    %v102 = vld [vmem:[%s1 + $0x134] sm:$0xf]
    %v103 = vld [vmem:[%s1 + $0x138] sm:$0xf]
    %v104 = vld [vmem:[%s1 + $0x13c] sm:$0xf]
    %v105 = vld [vmem:[%s1 + $0x140] sm:$0xf]
    %v106 = vld [vmem:[%s1 + $0x144] sm:$0xf]
    %v107 = vld [vmem:[%s1 + $0x148] sm:$0xf]
    %v108 = vld [vmem:[%s1 + $0x14c] sm:$0xf]
    %v109 = vld [vmem:[%s1 + $0x150] sm:$0xf]
    %v110 = vld [vmem:[%s1 + $0x154] sm:$0xf]
    %v111 = vld [vmem:[%s1 + $0x158] sm:$0xf]
    %v112 = vld [vmem:[%s1 + $0x15c] sm:$0xf]
    %v113 = vld [vmem:[%s1 + $0x160] sm:$0xf]
    %v114 = vld [vmem:[%s1 + $0x164] sm:$0xf]
    %v115 = vld [vmem:[%s1 + $0x168] sm:$0xf]
    %v116 = vld [vmem:[%s1 + $0x16c] sm:$0xf]
    %v117 = vld [vmem:[%s1 + $0x170] sm:$0xf]
    %v118 = vld [vmem:[%s1 + $0x174] sm:$0xf]
    %v119 = vld [vmem:[%s1 + $0x178] sm:$0xf]
    %v120 = vld [vmem:[%s1 + $0x17c] sm:$0xf]
    %v121 = vld [vmem:[%s1 + $0x180] sm:$0xf]
    %v122 = vld [vmem:[%s1 + $0x184] sm:$0xf]
    %v123 = vld [vmem:[%s1 + $0x188] sm:$0xf]
    %v124 = vld [vmem:[%s1 + $0x18c] sm:$0xf]
    %v125 = vld [vmem:[%s1 + $0x190] sm:$0xf]
    %v126 = vld [vmem:[%s1 + $0x194] sm:$0xf]
    %v127 = vld [vmem:[%s1 + $0x198] sm:$0xf]
    %v128 = vld [vmem:[%s1 + $0x19c] sm:$0xf]
    %v129 = vld [vmem:[%s1 + $0x1a0] sm:$0xf]
    %v130 = vld [vmem:[%s1 + $0x1a4] sm:$0xf]
    %v131 = vld [vmem:[%s1 + $0x1a8] sm:$0xf]
    %v132 = vld [vmem:[%s1 + $0x1ac] sm:$0xf]
    %v133 = vld [vmem:[%s1 + $0x1b0] sm:$0xf]
    %v134 = vld [vmem:[%s1 + $0x1b4] sm:$0xf]
    %v135 = vld [vmem:[%s1 + $0x1b8] sm:$0xf]
    %v136 = vld [vmem:[%s1 + $0x1bc] sm:$0xf]
    %v137 = vld [vmem:[%s1 + $0x1c0] sm:$0xf]
    %v138 = vld [vmem:[%s1 + $0x1c4] sm:$0xf]
    %v139 = vld [vmem:[%s1 + $0x1c8] sm:$0xf]
    %v140 = vld [vmem:[%s1 + $0x1cc] sm:$0xf]
    %v141 = vld [vmem:[%s1 + $0x1d0] sm:$0xf]
    %v142 = vld [vmem:[%s1 + $0x1d4] sm:$0xf]
    %v143 = vld [vmem:[%s1 + $0x1d8] sm:$0xf]
    %v144 = vld [vmem:[%s1 + $0x1dc] sm:$0xf]
    %v145 = vld [vmem:[%s1 + $0x1e0] sm:$0xf]
    %v146 = vld [vmem:[%s1 + $0x1e4] sm:$0xf]
    %v147 = vld [vmem:[%s1 + $0x1e8] sm:$0xf]
    %v148 = vld [vmem:[%s1 + $0x1ec] sm:$0xf]
    %v149 = vld [vmem:[%s1 + $0x1f0] sm:$0xf]
    %v150 = vld [vmem:[%s1 + $0x1f4] sm:$0xf]
    %v151 = vld [vmem:[%s1 + $0x1f8] sm:$0xf]
    %v152 = vld [vmem:[%s1 + $0x1fc] sm:$0xf]
    %v153 = vld [vmem:[%s1 + $0x200] sm:$0xf]
    %v154 = vld [vmem:[%s1 + $0x204] sm:$0xf]
    %v155 = vld [vmem:[%s1 + $0x208] sm:$0xf]
    %v156 = vld [vmem:[%s1 + $0x20c] sm:$0xf]
    %v157 = vld [vmem:[%s1 + $0x210] sm:$0xf]
    %v158 = vld [vmem:[%s1 + $0x214] sm:$0xf]
    %v159 = vld [vmem:[%s1 + $0x218] sm:$0xf]
    %v160 = vld [vmem:[%s1 + $0x21c] sm:$0xf]
    %v161 = vld [vmem:[%s1 + $0x220] sm:$0xf]
    %v162 = vld [vmem:[%s1 + $0x224] sm:$0xf]
    %v163 = vld [vmem:[%s1 + $0x228] sm:$0xf]
    %v164 = vld [vmem:[%s1 + $0x22c] sm:$0xf]
    %v165 = vld [vmem:[%s1 + $0x230] sm:$0xf]
    %v166 = vld [vmem:[%s1 + $0x234] sm:$0xf]
    %v167 = vld [vmem:[%s1 + $0x238] sm:$0xf]
    %v168 = vld [vmem:[%s1 + $0x23c] sm:$0xf]
    %v169 = vld [vmem:[%s1 + $0x240] sm:$0xf]
    %v170 = vld [vmem:[%s1 + $0x244] sm:$0xf]
    %v171 = vld [vmem:[%s1 + $0x248] sm:$0xf]
    %v172 = vld [vmem:[%s1 + $0x24c] sm:$0xf]
    %v173 = vld [vmem:[%s1 + $0x250] sm:$0xf]
    %v174 = vld [vmem:[%s1 + $0x254] sm:$0xf]
    %v175 = vld [vmem:[%s1 + $0x258] sm:$0xf]
    %v176 = vld [vmem:[%s1 + $0x25c] sm:$0xf]
    %v177 = vld [vmem:[%s1 + $0x260] sm:$0xf]
    %v178 = vld [vmem:[%s1 + $0x264] sm:$0xf]
    %v179 = vld [vmem:[%s1 + $0x268] sm:$0xf]
    %v180 = vld [vmem:[%s1 + $0x26c] sm:$0xf]
    %v181 = vld [vmem:[%s1 + $0x270] sm:$0xf]
    %v182 = vld [vmem:[%s1 + $0x274] sm:$0xf]
    %v183 = vld [vmem:[%s1 + $0x278] sm:$0xf]
    %v184 = vld [vmem:[%s1 + $0x27c] sm:$0xf]
    %v185 = vld [vmem:[%s1 + $0x280] sm:$0xf]
    %v186 = vld [vmem:[%s1 + $0x284] sm:$0xf]
    %v187 = vld [vmem:[%s1 + $0x288] sm:$0xf]
    %v188 = vld [vmem:[%s1 + $0x28c] sm:$0xf]
    %v189 = vld [vmem:[%s1 + $0x290] sm:$0xf]
    %v190 = vld [vmem:[%s1 + $0x294] sm:$0xf]
    %v191 = vld [vmem:[%s1 + $0x298] sm:$0xf]
    %v192 = vld [vmem:[%s1 + $0x29c] sm:$0xf]
    %v193 = vld [vmem:[%s1 + $0x2a0] sm:$0xf]
    %v194 = vld [vmem:[%s1 + $0x2a4] sm:$0xf]
    %v195 = vld [vmem:[%s1 + $0x2a8] sm:$0xf]
    %v196 = vld [vmem:[%s1 + $0x2ac] sm:$0xf]
    %v197 = vld [vmem:[%s1 + $0x2b0] sm:$0xf]
    %v198 = vld [vmem:[%s1 + $0x2b4] sm:$0xf]
    %v199 = vld [vmem:[%s1 + $0x2b8] sm:$0xf]
    %v200 = vld [vmem:[%s1 + $0x2bc] sm:$0xf]
    %v201 = vld [vmem:[%s1 + $0x2c0] sm:$0xf]
    %v202 = vld [vmem:[%s1 + $0x2c4] sm:$0xf]
    %v203 = vld [vmem:[%s1 + $0x2c8] sm:$0xf]
    %v204 = vld [vmem:[%s1 + $0x2cc] sm:$0xf]
    %v205 = vld [vmem:[%s1 + $0x2d0] sm:$0xf]
    %v206 = vld [vmem:[%s1 + $0x2d4] sm:$0xf]
    %v207 = vld [vmem:[%s1 + $0x2d8] sm:$0xf]
    %v208 = vld [vmem:[%s1 + $0x2dc] sm:$0xf]
    %v209 = vld [vmem:[%s1 + $0x2e0] sm:$0xf]
    %v210 = vld [vmem:[%s1 + $0x2e4] sm:$0xf]
    %v211 = vld [vmem:[%s1 + $0x2e8] sm:$0xf]
    %v212 = vld [vmem:[%s1 + $0x2ec] sm:$0xf]
    %v213 = vld [vmem:[%s1 + $0x2f0] sm:$0xf]
    %v214 = vld [vmem:[%s1 + $0x2f4] sm:$0xf]
    %v215 = vld [vmem:[%s1 + $0x2f8] sm:$0xf]
    %v216 = vld [vmem:[%s1 + $0x2fc] sm:$0xf]
    %v217 = vld [vmem:[%s1 + $0x300] sm:$0xf]
    %v218 = vld [vmem:[%s1 + $0x304] sm:$0xf]
    %v219 = vld [vmem:[%s1 + $0x308] sm:$0xf]
    %v220 = vld [vmem:[%s1 + $0x30c] sm:$0xf]
    %v221 = vld [vmem:[%s1 + $0x310] sm:$0xf]
    %v222 = vld [vmem:[%s1 + $0x314] sm:$0xf]
    %v223 = vld [vmem:[%s1 + $0x318] sm:$0xf]
    %v224 = vld [vmem:[%s1 + $0x31c] sm:$0xf]
    %v225 = vld [vmem:[%s1 + $0x320] sm:$0xf]
    %v226 = vld [vmem:[%s1 + $0x324] sm:$0xf]
    %v227 = vld [vmem:[%s1 + $0x328] sm:$0xf]
    %v228 = vld [vmem:[%s1 + $0x32c] sm:$0xf]
    %v229 = vld [vmem:[%s1 + $0x330] sm:$0xf]
    %v230 = vld [vmem:[%s1 + $0x334] sm:$0xf]
    %v231 = vld [vmem:[%s1 + $0x338] sm:$0xf]
    %v232 = vld [vmem:[%s1 + $0x33c] sm:$0xf]
    %v233 = vld [vmem:[%s1 + $0x340] sm:$0xf]
    %v234 = vld [vmem:[%s1 + $0x344] sm:$0xf]
    %v235 = vld [vmem:[%s1 + $0x348] sm:$0xf]
    %v236 = vld [vmem:[%s1 + $0x34c] sm:$0xf]
    %v237 = vld [vmem:[%s1 + $0x350] sm:$0xf]
    %v238 = vld [vmem:[%s1 + $0x354] sm:$0xf]
    %v239 = vld [vmem:[%s1 + $0x358] sm:$0xf]
    %v240 = vld [vmem:[%s1 + $0x35c] sm:$0xf]
    %v241 = vld [vmem:[%s1 + $0x360] sm:$0xf]
    %v242 = vld [vmem:[%s1 + $0x364] sm:$0xf]
    %v243 = vld [vmem:[%s1 + $0x368] sm:$0xf]
    %v244 = vld [vmem:[%s1 + $0x36c] sm:$0xf]
    %v245 = vld [vmem:[%s1 + $0x370] sm:$0xf]
    %v246 = vld [vmem:[%s1 + $0x374] sm:$0xf]
    %v247 = vld [vmem:[%s1 + $0x378] sm:$0xf]
    %v248 = vld [vmem:[%s1 + $0x37c] sm:$0xf]
    %v249 = vld [vmem:[%s1 + $0x380] sm:$0xf]
    %v250 = vld [vmem:[%s1 + $0x384] sm:$0xf]
    %v251 = vld [vmem:[%s1 + $0x388] sm:$0xf]
    %v252 = vld [vmem:[%s1 + $0x38c] sm:$0xf]
    %v253 = vld [vmem:[%s1 + $0x390] sm:$0xf]
    %v254 = vld [vmem:[%s1 + $0x394] sm:$0xf]
    %v255 = vld [vmem:[%s1 + $0x398] sm:$0xf]
    %v256 = vld [vmem:[%s1 + $0x39c] sm:$0xf]
    %v257 = vld [vmem:[%s1 + $0x3a0] sm:$0xf]
    %v258 = vld [vmem:[%s1 + $0x3a4] sm:$0xf]
    %v259 = vld [vmem:[%s1 + $0x3a8] sm:$0xf]
    %v260 = vld [vmem:[%s1 + $0x3ac] sm:$0xf]
    %v261 = vld [vmem:[%s1 + $0x3b0] sm:$0xf]
    %v262 = vld [vmem:[%s1 + $0x3b4] sm:$0xf]
    %v263 = vld [vmem:[%s1 + $0x3b8] sm:$0xf]
    %v264 = vld [vmem:[%s1 + $0x3bc] sm:$0xf]
    %v265 = vld [vmem:[%s1 + $0x3c0] sm:$0xf]
    %v266 = vld [vmem:[%s1 + $0x3c4] sm:$0xf]
    %v267 = vld [vmem:[%s1 + $0x3c8] sm:$0xf]
    %v268 = vld [vmem:[%s1 + $0x3cc] sm:$0xf]
    %v269 = vld [vmem:[%s1 + $0x3d0] sm:$0xf]
    %v270 = vld [vmem:[%s1 + $0x3d4] sm:$0xf]
    %v271 = vld [vmem:[%s1 + $0x3d8] sm:$0xf]
    %v272 = vld [vmem:[%s1 + $0x3dc] sm:$0xf]
    %v273 = vld [vmem:[%s1 + $0x3e0] sm:$0xf]
    %v274 = vld [vmem:[%s1 + $0x3e4] sm:$0xf]
    %v275 = vld [vmem:[%s1 + $0x3e8] sm:$0xf]
    %v276 = vld [vmem:[%s1 + $0x3ec] sm:$0xf]
    %v277 = vld [vmem:[%s1 + $0x3f0] sm:$0xf]
    %v278 = vld [vmem:[%s1 + $0x3f4] sm:$0xf]
    %v279 = vld [vmem:[%s1 + $0x3f8] sm:$0xf]
    %v280 = vld [vmem:[%s1 + $0x3fc] sm:$0xf]
    %v281 = vld [vmem:[%s1 + $0x400] sm:$0xf]
    %v282 = vld [vmem:[%s1 + $0x404] sm:$0xf]
    %v283 = vld [vmem:[%s1 + $0x408] sm:$0xf]
    %v284 = vld [vmem:[%s1 + $0x40c] sm:$0xf]
    %v285 = vld [vmem:[%s1 + $0x410] sm:$0xf]
    %v286 = vld [vmem:[%s1 + $0x414] sm:$0xf]
    %v287 = vld [vmem:[%s1 + $0x418] sm:$0xf]
    %v288 = vld [vmem:[%s1 + $0x41c] sm:$0xf]
    %v289 = vld [vmem:[%s1 + $0x420] sm:$0xf]
    %v290 = vld [vmem:[%s1 + $0x424] sm:$0xf]
    %v291 = vld [vmem:[%s1 + $0x428] sm:$0xf]
    %v292 = vld [vmem:[%s1 + $0x42c] sm:$0xf]
    %v293 = vld [vmem:[%s1 + $0x430] sm:$0xf]
    %v294 = vld [vmem:[%s1 + $0x434] sm:$0xf]
    %v295 = vld [vmem:[%s1 + $0x438] sm:$0xf]
    %v296 = vld [vmem:[%s1 + $0x43c] sm:$0xf]
    %v297 = vld [vmem:[%s1 + $0x440] sm:$0xf]
    %v298 = vld [vmem:[%s1 + $0x444] sm:$0xf]
    %v299 = vld [vmem:[%s1 + $0x448] sm:$0xf]
    %v300 = vld [vmem:[%s1 + $0x44c] sm:$0xf]
    %v301 = vld [vmem:[%s1 + $0x450] sm:$0xf]
    %v302 = vld [vmem:[%s1 + $0x454] sm:$0xf]
    %v303 = vld [vmem:[%s1 + $0x458] sm:$0xf]
    %v304 = vld [vmem:[%s1 + $0x45c] sm:$0xf]
    %v305 = vld [vmem:[%s1 + $0x460] sm:$0xf]
    %v306 = vld [vmem:[%s1 + $0x464] sm:$0xf]
    %v307 = vld [vmem:[%s1 + $0x468] sm:$0xf]
    %v308 = vld [vmem:[%s1 + $0x46c] sm:$0xf]
    %v309 = vld [vmem:[%s1 + $0x470] sm:$0xf]
    %v310 = vld [vmem:[%s1 + $0x474] sm:$0xf]
    %v311 = vld [vmem:[%s1 + $0x478] sm:$0xf]
    %v312 = vld [vmem:[%s1 + $0x47c] sm:$0xf]
    %v313 = vld [vmem:[%s1 + $0x480] sm:$0xf]
    %v314 = vld [vmem:[%s1 + $0x484] sm:$0xf]
    %v315 = vld [vmem:[%s1 + $0x488] sm:$0xf]
    %v316 = vld [vmem:[%s1 + $0x48c] sm:$0xf]
    %v317 = vld [vmem:[%s1 + $0x490] sm:$0xf]
    %v318 = vld [vmem:[%s1 + $0x494] sm:$0xf]
    %v319 = vld [vmem:[%s1 + $0x498] sm:$0xf]
    %v320 = vld [vmem:[%s1 + $0x49c] sm:$0xf]
    %v321 = vld [vmem:[%s1 + $0x4a0] sm:$0xf]
    %v322 = vld [vmem:[%s1 + $0x4a4] sm:$0xf]
    %v323 = vld [vmem:[%s1 + $0x4a8] sm:$0xf]
    %v324 = vld [vmem:[%s1 + $0x4ac] sm:$0xf]
    %v325 = vld [vmem:[%s1 + $0x4b0] sm:$0xf]
    %v326 = vld [vmem:[%s1 + $0x4b4] sm:$0xf]
    %v327 = vld [vmem:[%s1 + $0x4b8] sm:$0xf]
    %v328 = vld [vmem:[%s1 + $0x4bc] sm:$0xf]
    %v329 = vld [vmem:[%s1 + $0x4c0] sm:$0xf]
    %v330 = vld [vmem:[%s1 + $0x4c4] sm:$0xf]
    %v331 = vld [vmem:[%s1 + $0x4c8] sm:$0xf]
    %v332 = vld [vmem:[%s1 + $0x4cc] sm:$0xf]
    %v333 = vld [vmem:[%s1 + $0x4d0] sm:$0xf]
    %v334 = vld [vmem:[%s1 + $0x4d4] sm:$0xf]
    %v335 = vld [vmem:[%s1 + $0x4d8] sm:$0xf]
    %v336 = vld [vmem:[%s1 + $0x4dc] sm:$0xf]
    %v337 = vld [vmem:[%s1 + $0x4e0] sm:$0xf]
    %v338 = vld [vmem:[%s1 + $0x4e4] sm:$0xf]
    %v339 = vld [vmem:[%s1 + $0x4e8] sm:$0xf]
    %v340 = vld [vmem:[%s1 + $0x4ec] sm:$0xf]
    %v341 = vld [vmem:[%s1 + $0x4f0] sm:$0xf]
    %v342 = vld [vmem:[%s1 + $0x4f4] sm:$0xf]
    %v343 = vld [vmem:[%s1 + $0x4f8] sm:$0xf]
    %v344 = vld [vmem:[%s1 + $0x4fc] sm:$0xf]
    %v345 = vld [vmem:[%s1 + $0x500] sm:$0xf]
    %v346 = vld [vmem:[%s1 + $0x504] sm:$0xf]
    %v347 = vld [vmem:[%s1 + $0x508] sm:$0xf]
    %v348 = vld [vmem:[%s1 + $0x50c] sm:$0xf]
    %v349 = vld [vmem:[%s1 + $0x510] sm:$0xf]
    %v350 = vld [vmem:[%s1 + $0x514] sm:$0xf]
    %v351 = vld [vmem:[%s1 + $0x518] sm:$0xf]
    %v352 = vld [vmem:[%s1 + $0x51c] sm:$0xf]
    %v353 = vld [vmem:[%s1 + $0x520] sm:$0xf]
    %v354 = vld [vmem:[%s1 + $0x524] sm:$0xf]
    %v355 = vld [vmem:[%s1 + $0x528] sm:$0xf]
    %v356 = vld [vmem:[%s1 + $0x52c] sm:$0xf]
    %v357 = vld [vmem:[%s1 + $0x530] sm:$0xf]
    %v358 = vld [vmem:[%s1 + $0x534] sm:$0xf]
    %v359 = vld [vmem:[%s1 + $0x538] sm:$0xf]
    %v360 = vld [vmem:[%s1 + $0x53c] sm:$0xf]
    %v361 = vld [vmem:[%s1 + $0x540] sm:$0xf]
    %v362 = vld [vmem:[%s1 + $0x544] sm:$0xf]
    %v363 = vld [vmem:[%s1 + $0x548] sm:$0xf]
    %v364 = vld [vmem:[%s1 + $0x54c] sm:$0xf]
    %v365 = vld [vmem:[%s1 + $0x550] sm:$0xf]
    %v366 = vld [vmem:[%s1 + $0x554] sm:$0xf]
    %v367 = vld [vmem:[%s1 + $0x558] sm:$0xf]
    %v368 = vld [vmem:[%s1 + $0x55c] sm:$0xf]
    %v369 = vld [vmem:[%s1 + $0x560] sm:$0xf]
    %v370 = vld [vmem:[%s1 + $0x564] sm:$0xf]
    %v371 = vld [vmem:[%s1 + $0x568] sm:$0xf]
    %v372 = vld [vmem:[%s1 + $0x56c] sm:$0xf]
    %v373 = vld [vmem:[%s1 + $0x570] sm:$0xf]
    %v374 = vld [vmem:[%s1 + $0x574] sm:$0xf]
    %v375 = vld [vmem:[%s1 + $0x578] sm:$0xf]
    %v376 = vld [vmem:[%s1 + $0x57c] sm:$0xf]
    %v377 = vld [vmem:[%s1 + $0x580] sm:$0xf]
    %v378 = vld [vmem:[%s1 + $0x584] sm:$0xf]
    %v379 = vld [vmem:[%s1 + $0x588] sm:$0xf]
    %v380 = vld [vmem:[%s1 + $0x58c] sm:$0xf]
    %v381 = vld [vmem:[%s1 + $0x590] sm:$0xf]
    %v382 = vld [vmem:[%s1 + $0x594] sm:$0xf]
    %v383 = vld [vmem:[%s1 + $0x598] sm:$0xf]
    %v384 = vld [vmem:[%s1 + $0x59c] sm:$0xf]
    %v385 = vld [vmem:[%s1 + $0x5a0] sm:$0xf]
    %v386 = vld [vmem:[%s1 + $0x5a4] sm:$0xf]
    %v387 = vld [vmem:[%s1 + $0x5a8] sm:$0xf]
    %v388 = vld [vmem:[%s1 + $0x5ac] sm:$0xf]
    %v389 = vld [vmem:[%s1 + $0x5b0] sm:$0xf]
    %v390 = vld [vmem:[%s1 + $0x5b4] sm:$0xf]
    %v391 = vld [vmem:[%s1 + $0x5b8] sm:$0xf]
    %v392 = vld [vmem:[%s1 + $0x5bc] sm:$0xf]
    %v393 = vld [vmem:[%s1 + $0x5c0] sm:$0xf]
    %v394 = vld [vmem:[%s1 + $0x5c4] sm:$0xf]
    %v395 = vld [vmem:[%s1 + $0x5c8] sm:$0xf]
    %v396 = vld [vmem:[%s1 + $0x5cc] sm:$0xf]
    %v397 = vld [vmem:[%s1 + $0x5d0] sm:$0xf]
    %v398 = vld [vmem:[%s1 + $0x5d4] sm:$0xf]
    %v399 = vld [vmem:[%s1 + $0x5d8] sm:$0xf]
    %v400 = vld [vmem:[%s1 + $0x5dc] sm:$0xf]
    %v401 = vld [vmem:[%s1 + $0x5e0] sm:$0xf]
    %v402 = vld [vmem:[%s1 + $0x5e4] sm:$0xf]
    %v403 = vld [vmem:[%s1 + $0x5e8] sm:$0xf]
    %v404 = vld [vmem:[%s1 + $0x5ec] sm:$0xf]
    %v405 = vld [vmem:[%s1 + $0x5f0] sm:$0xf]
    %v406 = vld [vmem:[%s1 + $0x5f4] sm:$0xf]
    %v407 = vld [vmem:[%s1 + $0x5f8] sm:$0xf]
    %v408 = vld [vmem:[%s1 + $0x5fc] sm:$0xf]
    %v409 = vld [vmem:[%s1 + $0x600] sm:$0xf]
    %v410 = vld [vmem:[%s1 + $0x604] sm:$0xf]
    %v411 = vld [vmem:[%s1 + $0x608] sm:$0xf]
    %v412 = vld [vmem:[%s1 + $0x60c] sm:$0xf]
    %v413 = vld [vmem:[%s1 + $0x610] sm:$0xf]
    %v414 = vld [vmem:[%s1 + $0x614] sm:$0xf]
    %v415 = vld [vmem:[%s1 + $0x618] sm:$0xf]
    %v416 = vld [vmem:[%s1 + $0x61c] sm:$0xf]
    %v417 = vld [vmem:[%s1 + $0x620] sm:$0xf]
    %v418 = vld [vmem:[%s1 + $0x624] sm:$0xf]
    %v419 = vld [vmem:[%s1 + $0x628] sm:$0xf]
    %v420 = vld [vmem:[%s1 + $0x62c] sm:$0xf]
    %v421 = vld [vmem:[%s1 + $0x630] sm:$0xf]
    %v422 = vld [vmem:[%s1 + $0x634] sm:$0xf]
    %v423 = vld [vmem:[%s1 + $0x638] sm:$0xf]
    %v424 = vld [vmem:[%s1 + $0x63c] sm:$0xf]
    %v425 = vld [vmem:[%s1 + $0x640] sm:$0xf]
    %v426 = vld [vmem:[%s1 + $0x644] sm:$0xf]
    %v427 = vld [vmem:[%s1 + $0x648] sm:$0xf]
    %v428 = vld [vmem:[%s1 + $0x64c] sm:$0xf]
    %v429 = vld [vmem:[%s1 + $0x650] sm:$0xf]
    %v430 = vld [vmem:[%s1 + $0x654] sm:$0xf]
    %v431 = vld [vmem:[%s1 + $0x658] sm:$0xf]
    %v432 = vld [vmem:[%s1 + $0x65c] sm:$0xf]
    %v433 = vld [vmem:[%s1 + $0x660] sm:$0xf]
    %v434 = vld [vmem:[%s1 + $0x664] sm:$0xf]
    %v435 = vld [vmem:[%s1 + $0x668] sm:$0xf]
    %v436 = vld [vmem:[%s1 + $0x66c] sm:$0xf]
    %v437 = vld [vmem:[%s1 + $0x670] sm:$0xf]
    %v438 = vld [vmem:[%s1 + $0x674] sm:$0xf]
    %v439 = vld [vmem:[%s1 + $0x678] sm:$0xf]
    %v440 = vld [vmem:[%s1 + $0x67c] sm:$0xf]
    %v441 = vld [vmem:[%s1 + $0x680] sm:$0xf]
    %v442 = vld [vmem:[%s1 + $0x684] sm:$0xf]
    %v443 = vld [vmem:[%s1 + $0x688] sm:$0xf]
    %v444 = vld [vmem:[%s1 + $0x68c] sm:$0xf]
    %v445 = vld [vmem:[%s1 + $0x690] sm:$0xf]
    %v446 = vld [vmem:[%s1 + $0x694] sm:$0xf]
    %v447 = vld [vmem:[%s1 + $0x698] sm:$0xf]
    %v448 = vld [vmem:[%s1 + $0x69c] sm:$0xf]
    %v449 = vld [vmem:[%s1 + $0x6a0] sm:$0xf]
    %v450 = vld [vmem:[%s1 + $0x6a4] sm:$0xf]
    %v451 = vld [vmem:[%s1 + $0x6a8] sm:$0xf]
    %v452 = vld [vmem:[%s1 + $0x6ac] sm:$0xf]
    %v453 = vld [vmem:[%s1 + $0x6b0] sm:$0xf]
    %v454 = vld [vmem:[%s1 + $0x6b4] sm:$0xf]
    %v455 = vld [vmem:[%s1 + $0x6b8] sm:$0xf]
    %v456 = vld [vmem:[%s1 + $0x6bc] sm:$0xf]
    %v457 = vld [vmem:[%s1 + $0x6c0] sm:$0xf]
    %v458 = vld [vmem:[%s1 + $0x6c4] sm:$0xf]
    %v459 = vld [vmem:[%s1 + $0x6c8] sm:$0xf]
    %v460 = vld [vmem:[%s1 + $0x6cc] sm:$0xf]
    %v461 = vld [vmem:[%s1 + $0x6d0] sm:$0xf]
    %v462 = vld [vmem:[%s1 + $0x6d4] sm:$0xf]
    %v463 = vld [vmem:[%s1 + $0x6d8] sm:$0xf]
    %v464 = vld [vmem:[%s1 + $0x6dc] sm:$0xf]
    %v465 = vld [vmem:[%s1 + $0x6e0] sm:$0xf]
    %v466 = vld [vmem:[%s1 + $0x6e4] sm:$0xf]
    %v467 = vld [vmem:[%s1 + $0x6e8] sm:$0xf]
    %v468 = vld [vmem:[%s1 + $0x6ec] sm:$0xf]
    %v469 = vld [vmem:[%s1 + $0x6f0] sm:$0xf]
    %v470 = vld [vmem:[%s1 + $0x6f4] sm:$0xf]
    %v471 = vld [vmem:[%s1 + $0x6f8] sm:$0xf]
    %v472 = vld [vmem:[%s1 + $0x6fc] sm:$0xf]
    %v473 = vld [vmem:[%s1 + $0x700] sm:$0xf]
    %v474 = vld [vmem:[%s1 + $0x704] sm:$0xf]
    %v475 = vld [vmem:[%s1 + $0x708] sm:$0xf]
    %v476 = vld [vmem:[%s1 + $0x70c] sm:$0xf]
    %v477 = vld [vmem:[%s1 + $0x710] sm:$0xf]
    %v478 = vld [vmem:[%s1 + $0x714] sm:$0xf]
    %v479 = vld [vmem:[%s1 + $0x718] sm:$0xf]
    %v480 = vld [vmem:[%s1 + $0x71c] sm:$0xf]
    %v481 = vld [vmem:[%s1 + $0x720] sm:$0xf]
    %v482 = vld [vmem:[%s1 + $0x724] sm:$0xf]
    %v483 = vld [vmem:[%s1 + $0x728] sm:$0xf]
    %v484 = vld [vmem:[%s1 + $0x72c] sm:$0xf]
    %v485 = vld [vmem:[%s1 + $0x730] sm:$0xf]
    %v486 = vld [vmem:[%s1 + $0x734] sm:$0xf]
    %v487 = vld [vmem:[%s1 + $0x738] sm:$0xf]
    %v488 = vld [vmem:[%s1 + $0x73c] sm:$0xf]
    %v489 = vld [vmem:[%s1 + $0x740] sm:$0xf]
    %v490 = vld [vmem:[%s1 + $0x744] sm:$0xf]
    %v491 = vld [vmem:[%s1 + $0x748] sm:$0xf]
    %v492 = vld [vmem:[%s1 + $0x74c] sm:$0xf]
    %v493 = vld [vmem:[%s1 + $0x750] sm:$0xf]
    %v494 = vld [vmem:[%s1 + $0x754] sm:$0xf]
    %v495 = vld [vmem:[%s1 + $0x758] sm:$0xf]
    %v496 = vld [vmem:[%s1 + $0x75c] sm:$0xf]
    %v497 = vld [vmem:[%s1 + $0x760] sm:$0xf]
    %v498 = vld [vmem:[%s1 + $0x764] sm:$0xf]
    %v499 = vld [vmem:[%s1 + $0x768] sm:$0xf]
    %v500 = vld [vmem:[%s1 + $0x76c] sm:$0xf]
    %v501 = vld [vmem:[%s1 + $0x770] sm:$0xf]
    %v502 = vld [vmem:[%s1 + $0x774] sm:$0xf]
    %v503 = vld [vmem:[%s1 + $0x778] sm:$0xf]
    %v504 = vld [vmem:[%s1 + $0x77c] sm:$0xf]
    %v505 = vld [vmem:[%s1 + $0x780] sm:$0xf]
    %v506 = vld [vmem:[%s1 + $0x784] sm:$0xf]
    %v507 = vld [vmem:[%s1 + $0x788] sm:$0xf]
    %v508 = vld [vmem:[%s1 + $0x78c] sm:$0xf]
    %v509 = vld [vmem:[%s1 + $0x790] sm:$0xf]
    %v510 = vld [vmem:[%s1 + $0x794] sm:$0xf]
    %v511 = vld [vmem:[%s1 + $0x798] sm:$0xf]
    %v512 = vld [vmem:[%s1 + $0x79c] sm:$0xf]
    %v513 = vld [vmem:[%s1 + $0x7a0] sm:$0xf]
    %v514 = vld [vmem:[%s1 + $0x7a4] sm:$0xf]
    %v515 = vld [vmem:[%s1 + $0x7a8] sm:$0xf]
    %v516 = vld [vmem:[%s1 + $0x7ac] sm:$0xf]
    %v517 = vld [vmem:[%s1 + $0x7b0] sm:$0xf]
    %v518 = vld [vmem:[%s1 + $0x7b4] sm:$0xf]
    %v519 = vld [vmem:[%s1 + $0x7b8] sm:$0xf]
    %v520 = vld [vmem:[%s1 + $0x7bc] sm:$0xf]
    %v521 = vld [vmem:[%s1 + $0x7c0] sm:$0xf]
    %v522 = vld [vmem:[%s1 + $0x7c4] sm:$0xf]
    %v523 = vld [vmem:[%s1 + $0x7c8] sm:$0xf]
    %v524 = vld [vmem:[%s1 + $0x7cc] sm:$0xf]
    %v525 = vld [vmem:[%s1 + $0x7d0] sm:$0xf]
    %v526 = vld [vmem:[%s1 + $0x7d4] sm:$0xf]
    %v527 = vld [vmem:[%s1 + $0x7d8] sm:$0xf]
    %v528 = vld [vmem:[%s1 + $0x7dc] sm:$0xf]
    %v529 = vld [vmem:[%s1 + $0x7e0] sm:$0xf]
    %v530 = vld [vmem:[%s1 + $0x7e4] sm:$0xf]
    %v531 = vld [vmem:[%s1 + $0x7e8] sm:$0xf]
    %v532 = vld [vmem:[%s1 + $0x7ec] sm:$0xf]
    %v533 = vld [vmem:[%s1 + $0x7f0] sm:$0xf]
    %v534 = vld [vmem:[%s1 + $0x7f4] sm:$0xf]
    %v535 = vld [vmem:[%s1 + $0x7f8] sm:$0xf]
    %v536 = vld [vmem:[%s1 + $0x7fc] sm:$0xf]
    %v537 = vld [vmem:[%s1 + $0x800] sm:$0xf]
    %v538 = vld [vmem:[%s1 + $0x804] sm:$0xf]
    %v539 = vld [vmem:[%s1 + $0x808] sm:$0xf]
    %v540 = vld [vmem:[%s1 + $0x80c] sm:$0xf]
    %v541 = vld [vmem:[%s1 + $0x810] sm:$0xf]
    %v542 = vld [vmem:[%s1 + $0x814] sm:$0xf]
    %v543 = vld [vmem:[%s1 + $0x818] sm:$0xf]
    %v544 = vld [vmem:[%s1 + $0x81c] sm:$0xf]
    %v545 = vld [vmem:[%s1 + $0x820] sm:$0xf]
    %v546 = vld [vmem:[%s1 + $0x824] sm:$0xf]
    %v547 = vld [vmem:[%s1 + $0x828] sm:$0xf]
    %v548 = vld [vmem:[%s1 + $0x82c] sm:$0xf]
    %v549 = vld [vmem:[%s1 + $0x830] sm:$0xf]
    %v550 = vld [vmem:[%s1 + $0x834] sm:$0xf]
    %v551 = vld [vmem:[%s1 + $0x838] sm:$0xf]
    %v552 = vld [vmem:[%s1 + $0x83c] sm:$0xf]
    %v553 = vld [vmem:[%s1 + $0x840] sm:$0xf]
    %v554 = vld [vmem:[%s1 + $0x844] sm:$0xf]
    %v555 = vld [vmem:[%s1 + $0x848] sm:$0xf]
    %v556 = vld [vmem:[%s1 + $0x84c] sm:$0xf]
    %v557 = vld [vmem:[%s1 + $0x850] sm:$0xf]
    %v558 = vld [vmem:[%s1 + $0x854] sm:$0xf]
    %v559 = vld [vmem:[%s1 + $0x858] sm:$0xf]
    %v560 = vld [vmem:[%s1 + $0x85c] sm:$0xf]
    %v561 = vld [vmem:[%s1 + $0x860] sm:$0xf]
    %v562 = vld [vmem:[%s1 + $0x864] sm:$0xf]
    %v563 = vld [vmem:[%s1 + $0x868] sm:$0xf]
    %v564 = vld [vmem:[%s1 + $0x86c] sm:$0xf]
    %v565 = vld [vmem:[%s1 + $0x870] sm:$0xf]
    %v566 = vld [vmem:[%s1 + $0x874] sm:$0xf]
    %v567 = vld [vmem:[%s1 + $0x878] sm:$0xf]
    %v568 = vld [vmem:[%s1 + $0x87c] sm:$0xf]
    %v569 = vld [vmem:[%s1 + $0x880] sm:$0xf]
    %v570 = vld [vmem:[%s1 + $0x884] sm:$0xf]
    %v571 = vld [vmem:[%s1 + $0x888] sm:$0xf]
    %v572 = vld [vmem:[%s1 + $0x88c] sm:$0xf]
    %v573 = vld [vmem:[%s1 + $0x890] sm:$0xf]
    %v574 = vld [vmem:[%s1 + $0x894] sm:$0xf]
    %v575 = vld [vmem:[%s1 + $0x898] sm:$0xf]
    %v576 = vld [vmem:[%s1 + $0x89c] sm:$0xf]
    %v577 = vld [vmem:[%s1 + $0x8a0] sm:$0xf]
    %v578 = vld [vmem:[%s1 + $0x8a4] sm:$0xf]
    %v579 = vld [vmem:[%s1 + $0x8a8] sm:$0xf]
    %v580 = vld [vmem:[%s1 + $0x8ac] sm:$0xf]
    %v581 = vld [vmem:[%s1 + $0x8b0] sm:$0xf]
    %v582 = vld [vmem:[%s1 + $0x8b4] sm:$0xf]
    %v583 = vld [vmem:[%s1 + $0x8b8] sm:$0xf]
    %v584 = vld [vmem:[%s1 + $0x8bc] sm:$0xf]
    %v585 = vld [vmem:[%s1 + $0x8c0] sm:$0xf]
    %v586 = vld [vmem:[%s1 + $0x8c4] sm:$0xf]
    %v587 = vld [vmem:[%s1 + $0x8c8] sm:$0xf]
    %v588 = vld [vmem:[%s1 + $0x8cc] sm:$0xf]
    %v589 = vld [vmem:[%s1 + $0x8d0] sm:$0xf]
    %v590 = vld [vmem:[%s1 + $0x8d4] sm:$0xf]
    %v591 = vld [vmem:[%s1 + $0x8d8] sm:$0xf]
    %v592 = vld [vmem:[%s1 + $0x8dc] sm:$0xf]
    %v593 = vld [vmem:[%s1 + $0x8e0] sm:$0xf]
    %v594 = vld [vmem:[%s1 + $0x8e4] sm:$0xf]
    %v595 = vld [vmem:[%s1 + $0x8e8] sm:$0xf]
    %v596 = vld [vmem:[%s1 + $0x8ec] sm:$0xf]
    %v597 = vld [vmem:[%s1 + $0x8f0] sm:$0xf]
    %v598 = vld [vmem:[%s1 + $0x8f4] sm:$0xf]
    %v599 = vld [vmem:[%s1 + $0x8f8] sm:$0xf]
    %v600 = vld [vmem:[%s1 + $0x8fc] sm:$0xf]
    %v601 = vld [vmem:[%s1 + $0x900] sm:$0xf]
    %v602 = vld [vmem:[%s1 + $0x904] sm:$0xf]
    %v603 = vld [vmem:[%s1 + $0x908] sm:$0xf]
    %v604 = vld [vmem:[%s1 + $0x90c] sm:$0xf]
    %v605 = vld [vmem:[%s1 + $0x910] sm:$0xf]
    %v606 = vld [vmem:[%s1 + $0x914] sm:$0xf]
    %v607 = vld [vmem:[%s1 + $0x918] sm:$0xf]
    %v608 = vld [vmem:[%s1 + $0x91c] sm:$0xf]
    %v609 = vld [vmem:[%s1 + $0x920] sm:$0xf]
    %v610 = vld [vmem:[%s1 + $0x924] sm:$0xf]
    %v611 = vld [vmem:[%s1 + $0x928] sm:$0xf]
    %v612 = vld [vmem:[%s1 + $0x92c] sm:$0xf]
    %v613 = vld [vmem:[%s1 + $0x930] sm:$0xf]
    %v614 = vld [vmem:[%s1 + $0x934] sm:$0xf]
    %v615 = vld [vmem:[%s1 + $0x938] sm:$0xf]
    %v616 = vld [vmem:[%s1 + $0x93c] sm:$0xf]
    %v617 = vld [vmem:[%s1 + $0x940] sm:$0xf]
    %v618 = vld [vmem:[%s1 + $0x944] sm:$0xf]
    %v619 = vld [vmem:[%s1 + $0x948] sm:$0xf]
    %v620 = vld [vmem:[%s1 + $0x94c] sm:$0xf]
    %v621 = vld [vmem:[%s1 + $0x950] sm:$0xf]
    %v622 = vld [vmem:[%s1 + $0x954] sm:$0xf]
    %v623 = vld [vmem:[%s1 + $0x958] sm:$0xf]
    %v624 = vld [vmem:[%s1 + $0x95c] sm:$0xf]
    %v625 = vld [vmem:[%s1 + $0x960] sm:$0xf]
    %v626 = vld [vmem:[%s1 + $0x964] sm:$0xf]
    %v627 = vld [vmem:[%s1 + $0x968] sm:$0xf]
    %v628 = vld [vmem:[%s1 + $0x96c] sm:$0xf]
    %v629 = vld [vmem:[%s1 + $0x970] sm:$0xf]
    %v630 = vld [vmem:[%s1 + $0x974] sm:$0xf]
    %v631 = vld [vmem:[%s1 + $0x978] sm:$0xf]
    %v632 = vld [vmem:[%s1 + $0x97c] sm:$0xf]
    %v633 = vld [vmem:[%s1 + $0x980] sm:$0xf]
    %v634 = vld [vmem:[%s1 + $0x984] sm:$0xf]
    %v635 = vld [vmem:[%s1 + $0x988] sm:$0xf]
    %v636 = vld [vmem:[%s1 + $0x98c] sm:$0xf]
    %v637 = vld [vmem:[%s1 + $0x990] sm:$0xf]
    %v638 = vld [vmem:[%s1 + $0x994] sm:$0xf]
    %v639 = vld [vmem:[%s1 + $0x998] sm:$0xf]
    %v640 = vld [vmem:[%s1 + $0x99c] sm:$0xf]
    %v641 = vld [vmem:[%s1 + $0x9a0] sm:$0xf]
    %v642 = vld [vmem:[%s1 + $0x9a4] sm:$0xf]
    %v643 = vld [vmem:[%s1 + $0x9a8] sm:$0xf]
    %v644 = vld [vmem:[%s1 + $0x9ac] sm:$0xf]
    %v645 = vld [vmem:[%s1 + $0x9b0] sm:$0xf]
    %v646 = vld [vmem:[%s1 + $0x9b4] sm:$0xf]
    %v647 = vld [vmem:[%s1 + $0x9b8] sm:$0xf]
    %v648 = vld [vmem:[%s1 + $0x9bc] sm:$0xf]
    %v649 = vld [vmem:[%s1 + $0x9c0] sm:$0xf]
    %v650 = vld [vmem:[%s1 + $0x9c4] sm:$0xf]
    %v651 = vld [vmem:[%s1 + $0x9c8] sm:$0xf]
    %v652 = vld [vmem:[%s1 + $0x9cc] sm:$0xf]
    %v653 = vld [vmem:[%s1 + $0x9d0] sm:$0xf]
    %v654 = vld [vmem:[%s1 + $0x9d4] sm:$0xf]
    %v655 = vld [vmem:[%s1 + $0x9d8] sm:$0xf]
    %v656 = vld [vmem:[%s1 + $0x9dc] sm:$0xf]
    %v657 = vld [vmem:[%s1 + $0x9e0] sm:$0xf]
    %v658 = vld [vmem:[%s1 + $0x9e4] sm:$0xf]
    %v659 = vld [vmem:[%s1 + $0x9e8] sm:$0xf]
    %v660 = vld [vmem:[%s1 + $0x9ec] sm:$0xf]
    %v661 = vld [vmem:[%s1 + $0x9f0] sm:$0xf]
    %v662 = vld [vmem:[%s1 + $0x9f4] sm:$0xf]
    %v663 = vld [vmem:[%s1 + $0x9f8] sm:$0xf]
    %v664 = vld [vmem:[%s1 + $0x9fc] sm:$0xf]
    %v665 = vld [vmem:[%s1 + $0xa00] sm:$0xf]
    %v666 = vld [vmem:[%s1 + $0xa04] sm:$0xf]
    %v667 = vld [vmem:[%s1 + $0xa08] sm:$0xf]
    %v668 = vld [vmem:[%s1 + $0xa0c] sm:$0xf]
    %v669 = vld [vmem:[%s1 + $0xa10] sm:$0xf]
    %v670 = vld [vmem:[%s1 + $0xa14] sm:$0xf]
    %v671 = vld [vmem:[%s1 + $0xa18] sm:$0xf]
    %v672 = vld [vmem:[%s1 + $0xa1c] sm:$0xf]
    %v673 = vld [vmem:[%s1 + $0xa20] sm:$0xf]
    %v674 = vld [vmem:[%s1 + $0xa24] sm:$0xf]
    %v675 = vld [vmem:[%s1 + $0xa28] sm:$0xf]
    %v676 = vld [vmem:[%s1 + $0xa2c] sm:$0xf]
    %v677 = vld [vmem:[%s1 + $0xa30] sm:$0xf]
    %v678 = vld [vmem:[%s1 + $0xa34] sm:$0xf]
    %v679 = vld [vmem:[%s1 + $0xa38] sm:$0xf]
    %v680 = vld [vmem:[%s1 + $0xa3c] sm:$0xf]
    %v681 = vld [vmem:[%s1 + $0xa40] sm:$0xf]
    %v682 = vld [vmem:[%s1 + $0xa44] sm:$0xf]
    %v683 = vld [vmem:[%s1 + $0xa48] sm:$0xf]
    %v684 = vld [vmem:[%s1 + $0xa4c] sm:$0xf]
    %v685 = vld [vmem:[%s1 + $0xa50] sm:$0xf]
    %v686 = vld [vmem:[%s1 + $0xa54] sm:$0xf]
    %v687 = vld [vmem:[%s1 + $0xa58] sm:$0xf]
    %v688 = vld [vmem:[%s1 + $0xa5c] sm:$0xf]
    %v689 = vld [vmem:[%s1 + $0xa60] sm:$0xf]
    %v690 = vld [vmem:[%s1 + $0xa64] sm:$0xf]
    %v691 = vld [vmem:[%s1 + $0xa68] sm:$0xf]
    %v692 = vld [vmem:[%s1 + $0xa6c] sm:$0xf]
    %v693 = vld [vmem:[%s1 + $0xa70] sm:$0xf]
    %v694 = vld [vmem:[%s1 + $0xa74] sm:$0xf]
    %v695 = vld [vmem:[%s1 + $0xa78] sm:$0xf]
    %v696 = vld [vmem:[%s1 + $0xa7c] sm:$0xf]
    %v697 = vld [vmem:[%s1 + $0xa80] sm:$0xf]
    %v698 = vld [vmem:[%s1 + $0xa84] sm:$0xf]
    %v699 = vld [vmem:[%s1 + $0xa88] sm:$0xf]
    %v700 = vld [vmem:[%s1 + $0xa8c] sm:$0xf]
    %v701 = vld [vmem:[%s1 + $0xa90] sm:$0xf]
    %v702 = vld [vmem:[%s1 + $0xa94] sm:$0xf]
    %v703 = vld [vmem:[%s1 + $0xa98] sm:$0xf]
    %v704 = vld [vmem:[%s1 + $0xa9c] sm:$0xf]
    %v705 = vld [vmem:[%s1 + $0xaa0] sm:$0xf]
    %v706 = vld [vmem:[%s1 + $0xaa4] sm:$0xf]
    %v707 = vld [vmem:[%s1 + $0xaa8] sm:$0xf]
    %v708 = vld [vmem:[%s1 + $0xaac] sm:$0xf]
    %v709 = vld [vmem:[%s1 + $0xab0] sm:$0xf]
    %v710 = vld [vmem:[%s1 + $0xab4] sm:$0xf]
    %v711 = vld [vmem:[%s1 + $0xab8] sm:$0xf]
    %v712 = vld [vmem:[%s1 + $0xabc] sm:$0xf]
    %v713 = vld [vmem:[%s1 + $0xac0] sm:$0xf]
    %v714 = vld [vmem:[%s1 + $0xac4] sm:$0xf]
    %v715 = vld [vmem:[%s1 + $0xac8] sm:$0xf]
    %v716 = vld [vmem:[%s1 + $0xacc] sm:$0xf]
    %v717 = vld [vmem:[%s1 + $0xad0] sm:$0xf]
    %v718 = vld [vmem:[%s1 + $0xad4] sm:$0xf]
    %v719 = vld [vmem:[%s1 + $0xad8] sm:$0xf]
    %v720 = vld [vmem:[%s1 + $0xadc] sm:$0xf]
    %v721 = vld [vmem:[%s1 + $0xae0] sm:$0xf]
    %v722 = vld [vmem:[%s1 + $0xae4] sm:$0xf]
    %v723 = vld [vmem:[%s1 + $0xae8] sm:$0xf]
    %v724 = vld [vmem:[%s1 + $0xaec] sm:$0xf]
    %v725 = vld [vmem:[%s1 + $0xaf0] sm:$0xf]
    %v726 = vld [vmem:[%s1 + $0xaf4] sm:$0xf]
    %v727 = vld [vmem:[%s1 + $0xaf8] sm:$0xf]
    %v728 = vld [vmem:[%s1 + $0xafc] sm:$0xf]
    %v729 = vld [vmem:[%s1 + $0xb00] sm:$0xf]
    %v730 = vld [vmem:[%s1 + $0xb04] sm:$0xf]
    %v731 = vld [vmem:[%s1 + $0xb08] sm:$0xf]
    %v732 = vld [vmem:[%s1 + $0xb0c] sm:$0xf]
    %v733 = vld [vmem:[%s1 + $0xb10] sm:$0xf]
    %v734 = vld [vmem:[%s1 + $0xb14] sm:$0xf]
    %v735 = vld [vmem:[%s1 + $0xb18] sm:$0xf]
    %v736 = vld [vmem:[%s1 + $0xb1c] sm:$0xf]
    %v737 = vld [vmem:[%s1 + $0xb20] sm:$0xf]
    %v738 = vld [vmem:[%s1 + $0xb24] sm:$0xf]
    %v739 = vld [vmem:[%s1 + $0xb28] sm:$0xf]
    %v740 = vld [vmem:[%s1 + $0xb2c] sm:$0xf]
    %v741 = vld [vmem:[%s1 + $0xb30] sm:$0xf]
    %v742 = vld [vmem:[%s1 + $0xb34] sm:$0xf]
    %v743 = vld [vmem:[%s1 + $0xb38] sm:$0xf]
    %v744 = vld [vmem:[%s1 + $0xb3c] sm:$0xf]
    %v745 = vld [vmem:[%s1 + $0xb40] sm:$0xf]
    %v746 = vld [vmem:[%s1 + $0xb44] sm:$0xf]
    %v747 = vld [vmem:[%s1 + $0xb48] sm:$0xf]
    %v748 = vld [vmem:[%s1 + $0xb4c] sm:$0xf]
    %v749 = vld [vmem:[%s1 + $0xb50] sm:$0xf]
    %v750 = vld [vmem:[%s1 + $0xb54] sm:$0xf]
    %v751 = vld [vmem:[%s1 + $0xb58] sm:$0xf]
    %v752 = vld [vmem:[%s1 + $0xb5c] sm:$0xf]
    %v753 = vld [vmem:[%s1 + $0xb60] sm:$0xf]
    %v754 = vld [vmem:[%s1 + $0xb64] sm:$0xf]
    %v755 = vld [vmem:[%s1 + $0xb68] sm:$0xf]
    %v756 = vld [vmem:[%s1 + $0xb6c] sm:$0xf]
    %v757 = vld [vmem:[%s1 + $0xb70] sm:$0xf]
    %v758 = vld [vmem:[%s1 + $0xb74] sm:$0xf]
    %v759 = vld [vmem:[%s1 + $0xb78] sm:$0xf]
    %v760 = vld [vmem:[%s1 + $0xb7c] sm:$0xf]
    %v761 = vld [vmem:[%s1 + $0xb80] sm:$0xf]
    %v762 = vld [vmem:[%s1 + $0xb84] sm:$0xf]
    %v763 = vld [vmem:[%s1 + $0xb88] sm:$0xf]
    %v764 = vld [vmem:[%s1 + $0xb8c] sm:$0xf]
    %v765 = vld [vmem:[%s1 + $0xb90] sm:$0xf]
    %v766 = vld [vmem:[%s1 + $0xb94] sm:$0xf]
    %v767 = vld [vmem:[%s1 + $0xb98] sm:$0xf]
    %v768 = vld [vmem:[%s1 + $0xb9c] sm:$0xf]
    %v769 = vld [vmem:[%s1 + $0xba0] sm:$0xf]
    %v770 = vld [vmem:[%s1 + $0xba4] sm:$0xf]
    %v771 = vld [vmem:[%s1 + $0xba8] sm:$0xf]
    %v772 = vld [vmem:[%s1 + $0xbac] sm:$0xf]
    %v773 = vld [vmem:[%s1 + $0xbb0] sm:$0xf]
    %v774 = vld [vmem:[%s1 + $0xbb4] sm:$0xf]
    %v775 = vld [vmem:[%s1 + $0xbb8] sm:$0xf]
    %v776 = vld [vmem:[%s1 + $0xbbc] sm:$0xf]
    %v777 = vld [vmem:[%s1 + $0xbc0] sm:$0xf]
    %v778 = vld [vmem:[%s1 + $0xbc4] sm:$0xf]
    %v779 = vld [vmem:[%s1 + $0xbc8] sm:$0xf]
    %v780 = vld [vmem:[%s1 + $0xbcc] sm:$0xf]
    %v781 = vld [vmem:[%s1 + $0xbd0] sm:$0xf]
    %v782 = vld [vmem:[%s1 + $0xbd4] sm:$0xf]
    %v783 = vld [vmem:[%s1 + $0xbd8] sm:$0xf]
    %v784 = vld [vmem:[%s1 + $0xbdc] sm:$0xf]
    %v785 = vld [vmem:[%s1 + $0xbe0] sm:$0xf]
    %v786 = vld [vmem:[%s1 + $0xbe4] sm:$0xf]
    %v787 = vld [vmem:[%s1 + $0xbe8] sm:$0xf]
    %v788 = vld [vmem:[%s1 + $0xbec] sm:$0xf]
    %v789 = vld [vmem:[%s1 + $0xbf0] sm:$0xf]
    %v790 = vld [vmem:[%s1 + $0xbf4] sm:$0xf]
    %v791 = vld [vmem:[%s1 + $0xbf8] sm:$0xf]
    %v792 = vld [vmem:[%s1 + $0xbfc] sm:$0xf]
    %v793 = vld [vmem:[%s1 + $0xc00] sm:$0xf]
    %v794 = vld [vmem:[%s1 + $0xc04] sm:$0xf]
    %v795 = vld [vmem:[%s1 + $0xc08] sm:$0xf]
    %v796 = vld [vmem:[%s1 + $0xc0c] sm:$0xf]
    %v797 = vld [vmem:[%s1 + $0xc10] sm:$0xf]
    %v798 = vld [vmem:[%s1 + $0xc14] sm:$0xf]
    %v799 = vld [vmem:[%s1 + $0xc18] sm:$0xf]
    %v800 = vld [vmem:[%s1 + $0xc1c] sm:$0xf]
    %v801 = vld [vmem:[%s1 + $0xc20] sm:$0xf]
    %v802 = vld [vmem:[%s1 + $0xc24] sm:$0xf]
    %v803 = vld [vmem:[%s1 + $0xc28] sm:$0xf]
    %v804 = vld [vmem:[%s1 + $0xc2c] sm:$0xf]
    %v805 = vld [vmem:[%s1 + $0xc30] sm:$0xf]
    %v806 = vld [vmem:[%s1 + $0xc34] sm:$0xf]
    %v807 = vld [vmem:[%s1 + $0xc38] sm:$0xf]
    %v808 = vld [vmem:[%s1 + $0xc3c] sm:$0xf]
    %v809 = vld [vmem:[%s1 + $0xc40] sm:$0xf]
    %v810 = vld [vmem:[%s1 + $0xc44] sm:$0xf]
    %v811 = vld [vmem:[%s1 + $0xc48] sm:$0xf]
    %v812 = vld [vmem:[%s1 + $0xc4c] sm:$0xf]
    %v813 = vld [vmem:[%s1 + $0xc50] sm:$0xf]
    %v814 = vld [vmem:[%s1 + $0xc54] sm:$0xf]
    %v815 = vld [vmem:[%s1 + $0xc58] sm:$0xf]
    %v816 = vld [vmem:[%s1 + $0xc5c] sm:$0xf]
    %v817 = vld [vmem:[%s1 + $0xc60] sm:$0xf]
    %v818 = vld [vmem:[%s1 + $0xc64] sm:$0xf]
    %v819 = vld [vmem:[%s1 + $0xc68] sm:$0xf]
    %v820 = vld [vmem:[%s1 + $0xc6c] sm:$0xf]
    %v821 = vld [vmem:[%s1 + $0xc70] sm:$0xf]
    %v822 = vld [vmem:[%s1 + $0xc74] sm:$0xf]
    %v823 = vld [vmem:[%s1 + $0xc78] sm:$0xf]
    %v824 = vld [vmem:[%s1 + $0xc7c] sm:$0xf]
    %v825 = vld [vmem:[%s1 + $0xc80] sm:$0xf]
    %v826 = vld [vmem:[%s1 + $0xc84] sm:$0xf]
    %v827 = vld [vmem:[%s1 + $0xc88] sm:$0xf]
    %v828 = vld [vmem:[%s1 + $0xc8c] sm:$0xf]
    %v829 = vld [vmem:[%s1 + $0xc90] sm:$0xf]
    %v830 = vld [vmem:[%s1 + $0xc94] sm:$0xf]
    %v831 = vld [vmem:[%s1 + $0xc98] sm:$0xf]
    %v832 = vld [vmem:[%s1 + $0xc9c] sm:$0xf]
    %v833 = vld [vmem:[%s1 + $0xca0] sm:$0xf]
    %v834 = vld [vmem:[%s1 + $0xca4] sm:$0xf]
    %v835 = vld [vmem:[%s1 + $0xca8] sm:$0xf]
    %v836 = vld [vmem:[%s1 + $0xcac] sm:$0xf]
    %v837 = vld [vmem:[%s1 + $0xcb0] sm:$0xf]
    %v838 = vld [vmem:[%s1 + $0xcb4] sm:$0xf]
    %v839 = vld [vmem:[%s1 + $0xcb8] sm:$0xf]
    %v840 = vld [vmem:[%s1 + $0xcbc] sm:$0xf]
    %v841 = vld [vmem:[%s1 + $0xcc0] sm:$0xf]
    %v842 = vld [vmem:[%s1 + $0xcc4] sm:$0xf]
    %v843 = vld [vmem:[%s1 + $0xcc8] sm:$0xf]
    %v844 = vld [vmem:[%s1 + $0xccc] sm:$0xf]
    %v845 = vld [vmem:[%s1 + $0xcd0] sm:$0xf]
    %v846 = vld [vmem:[%s1 + $0xcd4] sm:$0xf]
    %v847 = vld [vmem:[%s1 + $0xcd8] sm:$0xf]
    %v848 = vld [vmem:[%s1 + $0xcdc] sm:$0xf]
    %v849 = vld [vmem:[%s1 + $0xce0] sm:$0xf]
    %v850 = vld [vmem:[%s1 + $0xce4] sm:$0xf]
    %v851 = vld [vmem:[%s1 + $0xce8] sm:$0xf]
    %v852 = vld [vmem:[%s1 + $0xcec] sm:$0xf]
    %v853 = vld [vmem:[%s1 + $0xcf0] sm:$0xf]
    %v854 = vld [vmem:[%s1 + $0xcf4] sm:$0xf]
    %v855 = vld [vmem:[%s1 + $0xcf8] sm:$0xf]
    %v856 = vld [vmem:[%s1 + $0xcfc] sm:$0xf]
    %v857 = vld [vmem:[%s1 + $0xd00] sm:$0xf]
    %v858 = vld [vmem:[%s1 + $0xd04] sm:$0xf]
    %v859 = vld [vmem:[%s1 + $0xd08] sm:$0xf]
    %v860 = vld [vmem:[%s1 + $0xd0c] sm:$0xf]
    %v861 = vld [vmem:[%s1 + $0xd10] sm:$0xf]
    %v862 = vld [vmem:[%s1 + $0xd14] sm:$0xf]
    %v863 = vld [vmem:[%s1 + $0xd18] sm:$0xf]
    %v864 = vld [vmem:[%s1 + $0xd1c] sm:$0xf]
    %v865 = vld [vmem:[%s1 + $0xd20] sm:$0xf]
    %v866 = vld [vmem:[%s1 + $0xd24] sm:$0xf]
    %v867 = vld [vmem:[%s1 + $0xd28] sm:$0xf]
    %v868 = vld [vmem:[%s1 + $0xd2c] sm:$0xf]
    %v869 = vld [vmem:[%s1 + $0xd30] sm:$0xf]
    %v870 = vld [vmem:[%s1 + $0xd34] sm:$0xf]
    %v871 = vld [vmem:[%s1 + $0xd38] sm:$0xf]
    %v872 = vld [vmem:[%s1 + $0xd3c] sm:$0xf]
    %v873 = vld [vmem:[%s1 + $0xd40] sm:$0xf]
    %v874 = vld [vmem:[%s1 + $0xd44] sm:$0xf]
    %v875 = vld [vmem:[%s1 + $0xd48] sm:$0xf]
    %v876 = vld [vmem:[%s1 + $0xd4c] sm:$0xf]
    %v877 = vld [vmem:[%s1 + $0xd50] sm:$0xf]
    %v878 = vld [vmem:[%s1 + $0xd54] sm:$0xf]
    %v879 = vld [vmem:[%s1 + $0xd58] sm:$0xf]
    %v880 = vld [vmem:[%s1 + $0xd5c] sm:$0xf]
    %v881 = vld [vmem:[%s1 + $0xd60] sm:$0xf]
    %v882 = vld [vmem:[%s1 + $0xd64] sm:$0xf]
    %v883 = vld [vmem:[%s1 + $0xd68] sm:$0xf]
    %v884 = vld [vmem:[%s1 + $0xd6c] sm:$0xf]
    %v885 = vld [vmem:[%s1 + $0xd70] sm:$0xf]
    %v886 = vld [vmem:[%s1 + $0xd74] sm:$0xf]
    %v887 = vld [vmem:[%s1 + $0xd78] sm:$0xf]
    %v888 = vld [vmem:[%s1 + $0xd7c] sm:$0xf]
    %v889 = vld [vmem:[%s1 + $0xd80] sm:$0xf]
    %v890 = vld [vmem:[%s1 + $0xd84] sm:$0xf]
    %v891 = vld [vmem:[%s1 + $0xd88] sm:$0xf]
    %v892 = vld [vmem:[%s1 + $0xd8c] sm:$0xf]
    %v893 = vld [vmem:[%s1 + $0xd90] sm:$0xf]
    %v894 = vld [vmem:[%s1 + $0xd94] sm:$0xf]
    %v895 = vld [vmem:[%s1 + $0xd98] sm:$0xf]
    %v896 = vld [vmem:[%s1 + $0xd9c] sm:$0xf]
    %v897 = vld [vmem:[%s1 + $0xda0] sm:$0xf]
    %v898 = vld [vmem:[%s1 + $0xda4] sm:$0xf]
    %v899 = vld [vmem:[%s1 + $0xda8] sm:$0xf]
    %v900 = vld [vmem:[%s1 + $0xdac] sm:$0xf]
    %v901 = vld [vmem:[%s1 + $0xdb0] sm:$0xf]
    %v902 = vld [vmem:[%s1 + $0xdb4] sm:$0xf]
    %v903 = vld [vmem:[%s1 + $0xdb8] sm:$0xf]
    %v904 = vld [vmem:[%s1 + $0xdbc] sm:$0xf]
    %v905 = vld [vmem:[%s1 + $0xdc0] sm:$0xf]
    %v906 = vld [vmem:[%s1 + $0xdc4] sm:$0xf]
    %v907 = vld [vmem:[%s1 + $0xdc8] sm:$0xf]
    %v908 = vld [vmem:[%s1 + $0xdcc] sm:$0xf]
    %v909 = vld [vmem:[%s1 + $0xdd0] sm:$0xf]
    %v910 = vld [vmem:[%s1 + $0xdd4] sm:$0xf]
    %v911 = vld [vmem:[%s1 + $0xdd8] sm:$0xf]
    %v912 = vld [vmem:[%s1 + $0xddc] sm:$0xf]
    %v913 = vld [vmem:[%s1 + $0xde0] sm:$0xf]
    %v914 = vld [vmem:[%s1 + $0xde4] sm:$0xf]
    %v915 = vld [vmem:[%s1 + $0xde8] sm:$0xf]
    %v916 = vld [vmem:[%s1 + $0xdec] sm:$0xf]
    %v917 = vld [vmem:[%s1 + $0xdf0] sm:$0xf]
    %v918 = vld [vmem:[%s1 + $0xdf4] sm:$0xf]
    %v919 = vld [vmem:[%s1 + $0xdf8] sm:$0xf]
    %v920 = vld [vmem:[%s1 + $0xdfc] sm:$0xf]
    %v921 = vld [vmem:[%s1 + $0xe00] sm:$0xf]
    %v922 = vld [vmem:[%s1 + $0xe04] sm:$0xf]
    %v923 = vld [vmem:[%s1 + $0xe08] sm:$0xf]
    %v924 = vld [vmem:[%s1 + $0xe0c] sm:$0xf]
    %v925 = vld [vmem:[%s1 + $0xe10] sm:$0xf]
    %v926 = vld [vmem:[%s1 + $0xe14] sm:$0xf]
    %v927 = vld [vmem:[%s1 + $0xe18] sm:$0xf]
    %v928 = vld [vmem:[%s1 + $0xe1c] sm:$0xf]
    %v929 = vld [vmem:[%s1 + $0xe20] sm:$0xf]
    %v930 = vld [vmem:[%s1 + $0xe24] sm:$0xf]
    %v931 = vld [vmem:[%s1 + $0xe28] sm:$0xf]
    %v932 = vld [vmem:[%s1 + $0xe2c] sm:$0xf]
    %v933 = vld [vmem:[%s1 + $0xe30] sm:$0xf]
    %v934 = vld [vmem:[%s1 + $0xe34] sm:$0xf]
    %v935 = vld [vmem:[%s1 + $0xe38] sm:$0xf]
    %v936 = vld [vmem:[%s1 + $0xe3c] sm:$0xf]
    %v937 = vld [vmem:[%s1 + $0xe40] sm:$0xf]
    %v938 = vld [vmem:[%s1 + $0xe44] sm:$0xf]
    %v939 = vld [vmem:[%s1 + $0xe48] sm:$0xf]
    %v940 = vld [vmem:[%s1 + $0xe4c] sm:$0xf]
    %v941 = vld [vmem:[%s1 + $0xe50] sm:$0xf]
    %v942 = vld [vmem:[%s1 + $0xe54] sm:$0xf]
    %v943 = vld [vmem:[%s1 + $0xe58] sm:$0xf]
    %v944 = vld [vmem:[%s1 + $0xe5c] sm:$0xf]
    %v945 = vld [vmem:[%s1 + $0xe60] sm:$0xf]
    %v946 = vld [vmem:[%s1 + $0xe64] sm:$0xf]
    %v947 = vld [vmem:[%s1 + $0xe68] sm:$0xf]
    %v948 = vld [vmem:[%s1 + $0xe6c] sm:$0xf]
    %v949 = vld [vmem:[%s1 + $0xe70] sm:$0xf]
    %v950 = vld [vmem:[%s1 + $0xe74] sm:$0xf]
    %v951 = vld [vmem:[%s1 + $0xe78] sm:$0xf]
    %v952 = vld [vmem:[%s1 + $0xe7c] sm:$0xf]
    %v953 = vld [vmem:[%s1 + $0xe80] sm:$0xf]
    %v954 = vld [vmem:[%s1 + $0xe84] sm:$0xf]
    %v955 = vld [vmem:[%s1 + $0xe88] sm:$0xf]
    %v956 = vld [vmem:[%s1 + $0xe8c] sm:$0xf]
    %v957 = vld [vmem:[%s1 + $0xe90] sm:$0xf]
    %v958 = vld [vmem:[%s1 + $0xe94] sm:$0xf]
    %v959 = vld [vmem:[%s1 + $0xe98] sm:$0xf]
    %v960 = vld [vmem:[%s1 + $0xe9c] sm:$0xf]
    %v961 = vld [vmem:[%s1 + $0xea0] sm:$0xf]
    %v962 = vld [vmem:[%s1 + $0xea4] sm:$0xf]
    %v963 = vld [vmem:[%s1 + $0xea8] sm:$0xf]
    %v964 = vld [vmem:[%s1 + $0xeac] sm:$0xf]
    %v965 = vld [vmem:[%s1 + $0xeb0] sm:$0xf]
    %v966 = vld [vmem:[%s1 + $0xeb4] sm:$0xf]
    %v967 = vld [vmem:[%s1 + $0xeb8] sm:$0xf]
    %v968 = vld [vmem:[%s1 + $0xebc] sm:$0xf]
    %v969 = vld [vmem:[%s1 + $0xec0] sm:$0xf]
    %v970 = vld [vmem:[%s1 + $0xec4] sm:$0xf]
    %v971 = vld [vmem:[%s1 + $0xec8] sm:$0xf]
    %v972 = vld [vmem:[%s1 + $0xecc] sm:$0xf]
    %v973 = vld [vmem:[%s1 + $0xed0] sm:$0xf]
    %v974 = vld [vmem:[%s1 + $0xed4] sm:$0xf]
    %v975 = vld [vmem:[%s1 + $0xed8] sm:$0xf]
    %v976 = vld [vmem:[%s1 + $0xedc] sm:$0xf]
    %v977 = vld [vmem:[%s1 + $0xee0] sm:$0xf]
    %v978 = vld [vmem:[%s1 + $0xee4] sm:$0xf]
    %v979 = vld [vmem:[%s1 + $0xee8] sm:$0xf]
    %v980 = vld [vmem:[%s1 + $0xeec] sm:$0xf]
    %v981 = vld [vmem:[%s1 + $0xef0] sm:$0xf]
    %v982 = vld [vmem:[%s1 + $0xef4] sm:$0xf]
    %v983 = vld [vmem:[%s1 + $0xef8] sm:$0xf]
    %v984 = vld [vmem:[%s1 + $0xefc] sm:$0xf]
    %v985 = vld [vmem:[%s1 + $0xf00] sm:$0xf]
    %v986 = vld [vmem:[%s1 + $0xf04] sm:$0xf]
    %v987 = vld [vmem:[%s1 + $0xf08] sm:$0xf]
    %v988 = vld [vmem:[%s1 + $0xf0c] sm:$0xf]
    %v989 = vld [vmem:[%s1 + $0xf10] sm:$0xf]
    %v990 = vld [vmem:[%s1 + $0xf14] sm:$0xf]
    %v991 = vld [vmem:[%s1 + $0xf18] sm:$0xf]
    %v992 = vld [vmem:[%s1 + $0xf1c] sm:$0xf]
    %v993 = vld [vmem:[%s1 + $0xf20] sm:$0xf]
    %v994 = vld [vmem:[%s1 + $0xf24] sm:$0xf]
    %v995 = vld [vmem:[%s1 + $0xf28] sm:$0xf]
    %v996 = vld [vmem:[%s1 + $0xf2c] sm:$0xf]
    %v997 = vld [vmem:[%s1 + $0xf30] sm:$0xf]
    %v998 = vld [vmem:[%s1 + $0xf34] sm:$0xf]
    %v999 = vld [vmem:[%s1 + $0xf38] sm:$0xf]
    %v1000 = vld [vmem:[%s1 + $0xf3c] sm:$0xf]
    %v1001 = vld [vmem:[%s1 + $0xf40] sm:$0xf]
    %v1002 = vld [vmem:[%s1 + $0xf44] sm:$0xf]
    %v1003 = vld [vmem:[%s1 + $0xf48] sm:$0xf]
    %v1004 = vld [vmem:[%s1 + $0xf4c] sm:$0xf]
    %v1005 = vld [vmem:[%s1 + $0xf50] sm:$0xf]
    %v1006 = vld [vmem:[%s1 + $0xf54] sm:$0xf]
    %v1007 = vld [vmem:[%s1 + $0xf58] sm:$0xf]
    %v1008 = vld [vmem:[%s1 + $0xf5c] sm:$0xf]
    %v1009 = vld [vmem:[%s1 + $0xf60] sm:$0xf]
    %v1010 = vld [vmem:[%s1 + $0xf64] sm:$0xf]
    %v1011 = vld [vmem:[%s1 + $0xf68] sm:$0xf]
    %v1012 = vld [vmem:[%s1 + $0xf6c] sm:$0xf]
    %v1013 = vld [vmem:[%s1 + $0xf70] sm:$0xf]
    %v1014 = vld [vmem:[%s1 + $0xf74] sm:$0xf]
    %v1015 = vld [vmem:[%s1 + $0xf78] sm:$0xf]
    %v1016 = vld [vmem:[%s1 + $0xf7c] sm:$0xf]
    %v1017 = vld [vmem:[%s1 + $0xf80] sm:$0xf]
    %v1018 = vld [vmem:[%s1 + $0xf84] sm:$0xf]
    %v1019 = vld [vmem:[%s1 + $0xf88] sm:$0xf]
    %v1020 = vld [vmem:[%s1 + $0xf8c] sm:$0xf]
    %v1021 = vld [vmem:[%s1 + $0xf90] sm:$0xf]
    %v1022 = vld [vmem:[%s1 + $0xf94] sm:$0xf]
    %v1023 = vld [vmem:[%s1 + $0xf98] sm:$0xf]
    %v1024 = vld [vmem:[%s1 + $0xf9c] sm:$0xf]
    %v1025 = vld [vmem:[%s1 + $0xfa0] sm:$0xf]
    %v1026 = vld [vmem:[%s1 + $0xfa4] sm:$0xf]
    %v1027 = vld [vmem:[%s1 + $0xfa8] sm:$0xf]
    %v1028 = vld [vmem:[%s1 + $0xfac] sm:$0xf]
    %v1029 = vld [vmem:[%s1 + $0xfb0] sm:$0xf]
    %v1030 = vld [vmem:[%s1 + $0xfb4] sm:$0xf]
    %v1031 = vld [vmem:[%s1 + $0xfb8] sm:$0xf]
    %v1032 = vld [vmem:[%s1 + $0xfbc] sm:$0xf]
    %v1033 = vld [vmem:[%s1 + $0xfc0] sm:$0xf]
    %v1034 = vld [vmem:[%s1 + $0xfc4] sm:$0xf]
    %v1035 = vld [vmem:[%s1 + $0xfc8] sm:$0xf]
    %v1036 = vld [vmem:[%s1 + $0xfcc] sm:$0xf]
    %v1037 = vld [vmem:[%s1 + $0xfd0] sm:$0xf]
    %v1038 = vld [vmem:[%s1 + $0xfd4] sm:$0xf]
    %v1039 = vld [vmem:[%s1 + $0xfd8] sm:$0xf]
    %v1040 = vld [vmem:[%s1 + $0xfdc] sm:$0xf]
    %v1041 = vld [vmem:[%s1 + $0xfe0] sm:$0xf]
    %v1042 = vld [vmem:[%s1 + $0xfe4] sm:$0xf]
    %v1043 = vld [vmem:[%s1 + $0xfe8] sm:$0xf]
    %v1044 = vld [vmem:[%s1 + $0xfec] sm:$0xf]
    %v1045 = vld [vmem:[%s1 + $0xff0] sm:$0xf]
    %v1046 = vld [vmem:[%s1 + $0xff4] sm:$0xf]
    %v1047 = vld [vmem:[%s1 + $0xff8] sm:$0xf]
    %v1048 = vld [vmem:[%s1 + $0xffc] sm:$0xf]
    %v1049 = vld [vmem:[%s1 + $0x1000] sm:$0xf]
    %v1050 = vld [vmem:[%s1 + $0x1004] sm:$0xf]
    %v1051 = vld [vmem:[%s1 + $0x1008] sm:$0xf]
    %v1052 = vld [vmem:[%s1 + $0x100c] sm:$0xf]
    %v1053 = vld [vmem:[%s1 + $0x1010] sm:$0xf]
    %v1054 = vld [vmem:[%s1 + $0x1014] sm:$0xf]
    %v1055 = vld [vmem:[%s1 + $0x1018] sm:$0xf]
    %v1056 = vld [vmem:[%s1 + $0x101c] sm:$0xf]
    %v1057 = vld [vmem:[%s1 + $0x1020] sm:$0xf]
    %v1058 = vld [vmem:[%s1 + $0x1024] sm:$0xf]
    %v1059 = vld [vmem:[%s1 + $0x1028] sm:$0xf]
    %v1060 = vld [vmem:[%s1 + $0x102c] sm:$0xf]
    %v1061 = vld [vmem:[%s1 + $0x1030] sm:$0xf]
    %v1062 = vld [vmem:[%s1 + $0x1034] sm:$0xf]
    %v1063 = vld [vmem:[%s1 + $0x1038] sm:$0xf]
    %v1064 = vld [vmem:[%s1 + $0x103c] sm:$0xf]
    %v1065 = vld [vmem:[%s1 + $0x1040] sm:$0xf]
    %v1066 = vld [vmem:[%s1 + $0x1044] sm:$0xf]
    %v1067 = vld [vmem:[%s1 + $0x1048] sm:$0xf]
    %v1068 = vld [vmem:[%s1 + $0x104c] sm:$0xf]
    %v1069 = vld [vmem:[%s1 + $0x1050] sm:$0xf]
    %v1070 = vld [vmem:[%s1 + $0x1054] sm:$0xf]
    %v1071 = vld [vmem:[%s1 + $0x1058] sm:$0xf]
    %v1072 = vld [vmem:[%s1 + $0x105c] sm:$0xf]
    %v1073 = vld [vmem:[%s1 + $0x1060] sm:$0xf]
    %v1074 = vld [vmem:[%s1 + $0x1064] sm:$0xf]
    %v1075 = vld [vmem:[%s1 + $0x1068] sm:$0xf]
    %v1076 = vld [vmem:[%s1 + $0x106c] sm:$0xf]
    %v1077 = vld [vmem:[%s1 + $0x1070] sm:$0xf]
    %v1078 = vld [vmem:[%s1 + $0x1074] sm:$0xf]
    %v1079 = vld [vmem:[%s1 + $0x1078] sm:$0xf]
    %v1080 = vld [vmem:[%s1 + $0x107c] sm:$0xf]
    %v1081 = vld [vmem:[%s1 + $0x1080] sm:$0xf]
    %v1082 = vld [vmem:[%s1 + $0x1084] sm:$0xf]
    %v1083 = vld [vmem:[%s1 + $0x1088] sm:$0xf]
    %v1084 = vld [vmem:[%s1 + $0x108c] sm:$0xf]
    %v1085 = vld [vmem:[%s1 + $0x1090] sm:$0xf]
    %v1086 = vld [vmem:[%s1 + $0x1094] sm:$0xf]
    %v1087 = vld [vmem:[%s1 + $0x1098] sm:$0xf]
    %v1088 = vld [vmem:[%s1 + $0x109c] sm:$0xf]
    %v1089 = vld [vmem:[%s1 + $0x10a0] sm:$0xf]
    %v1090 = vld [vmem:[%s1 + $0x10a4] sm:$0xf]
    %v1091 = vld [vmem:[%s1 + $0x10a8] sm:$0xf]
    %v1092 = vld [vmem:[%s1 + $0x10ac] sm:$0xf]
    %v1093 = vld [vmem:[%s1 + $0x10b0] sm:$0xf]
    %v1094 = vld [vmem:[%s1 + $0x10b4] sm:$0xf]
    %v1095 = vld [vmem:[%s1 + $0x10b8] sm:$0xf]
    %v1096 = vld [vmem:[%s1 + $0x10bc] sm:$0xf]
    %v1097 = vld [vmem:[%s1 + $0x10c0] sm:$0xf]
    %v1098 = vld [vmem:[%s1 + $0x10c4] sm:$0xf]
    %v1099 = vld [vmem:[%s1 + $0x10c8] sm:$0xf]
    %v1100 = vld [vmem:[%s1 + $0x10cc] sm:$0xf]
    %v1101 = vld [vmem:[%s1 + $0x10d0] sm:$0xf]
    %v1102 = vld [vmem:[%s1 + $0x10d4] sm:$0xf]
    %v1103 = vld [vmem:[%s1 + $0x10d8] sm:$0xf]
    %v1104 = vld [vmem:[%s1 + $0x10dc] sm:$0xf]
    %v1105 = vld [vmem:[%s1 + $0x10e0] sm:$0xf]
    %v1106 = vld [vmem:[%s1 + $0x10e4] sm:$0xf]
    %v1107 = vld [vmem:[%s1 + $0x10e8] sm:$0xf]
    %v1108 = vld [vmem:[%s1 + $0x10ec] sm:$0xf]
    %v1109 = vld [vmem:[%s1 + $0x10f0] sm:$0xf]
    %v1110 = vld [vmem:[%s1 + $0x10f4] sm:$0xf]
    %v1111 = vld [vmem:[%s1 + $0x10f8] sm:$0xf]
    %v1112 = vld [vmem:[%s1 + $0x10fc] sm:$0xf]
    %v1113 = vld [vmem:[%s1 + $0x1100] sm:$0xf]
    %v1114 = vld [vmem:[%s1 + $0x1104] sm:$0xf]
    %v1115 = vld [vmem:[%s1 + $0x1108] sm:$0xf]
    %v1116 = vld [vmem:[%s1 + $0x110c] sm:$0xf]
    %v1117 = vld [vmem:[%s1 + $0x1110] sm:$0xf]
    %v1118 = vld [vmem:[%s1 + $0x1114] sm:$0xf]
    %v1119 = vld [vmem:[%s1 + $0x1118] sm:$0xf]
    %v1120 = vld [vmem:[%s1 + $0x111c] sm:$0xf]
    %v1121 = vld [vmem:[%s1 + $0x1120] sm:$0xf]
    %v1122 = vld [vmem:[%s1 + $0x1124] sm:$0xf]
    %v1123 = vld [vmem:[%s1 + $0x1128] sm:$0xf]
    %v1124 = vld [vmem:[%s1 + $0x112c] sm:$0xf]
    %v1125 = vld [vmem:[%s1 + $0x1130] sm:$0xf]
    %v1126 = vld [vmem:[%s1 + $0x1134] sm:$0xf]
    %v1127 = vld [vmem:[%s1 + $0x1138] sm:$0xf]
    %v1128 = vld [vmem:[%s1 + $0x113c] sm:$0xf]
    %v1129 = vld [vmem:[%s1 + $0x1140] sm:$0xf]
    %v1130 = vld [vmem:[%s1 + $0x1144] sm:$0xf]
    %v1131 = vld [vmem:[%s1 + $0x1148] sm:$0xf]
    %v1132 = vld [vmem:[%s1 + $0x114c] sm:$0xf]
    %v1133 = vld [vmem:[%s1 + $0x1150] sm:$0xf]
    %v1134 = vld [vmem:[%s1 + $0x1154] sm:$0xf]
    %v1135 = vld [vmem:[%s1 + $0x1158] sm:$0xf]
    %v1136 = vld [vmem:[%s1 + $0x115c] sm:$0xf]
    %v1137 = vld [vmem:[%s1 + $0x1160] sm:$0xf]
    %v1138 = vld [vmem:[%s1 + $0x1164] sm:$0xf]
    %v1139 = vld [vmem:[%s1 + $0x1168] sm:$0xf]
    %v1140 = vld [vmem:[%s1 + $0x116c] sm:$0xf]
    %v1141 = vld [vmem:[%s1 + $0x1170] sm:$0xf]
    %v1142 = vld [vmem:[%s1 + $0x1174] sm:$0xf]
    %v1143 = vld [vmem:[%s1 + $0x1178] sm:$0xf]
    %v1144 = vld [vmem:[%s1 + $0x117c] sm:$0xf]
    %v1145 = vld [vmem:[%s1 + $0x1180] sm:$0xf]
    %v1146 = vld [vmem:[%s1 + $0x1184] sm:$0xf]
    %v1147 = vld [vmem:[%s1 + $0x1188] sm:$0xf]
    %v1148 = vld [vmem:[%s1 + $0x118c] sm:$0xf]
    %v1149 = vld [vmem:[%s1 + $0x1190] sm:$0xf]
    %v1150 = vld [vmem:[%s1 + $0x1194] sm:$0xf]
    %v1151 = vld [vmem:[%s1 + $0x1198] sm:$0xf]
    %v1152 = vld [vmem:[%s1 + $0x119c] sm:$0xf]
    %v1153 = vld [vmem:[%s1 + $0x11a0] sm:$0xf]
    %v1154 = vld [vmem:[%s1 + $0x11a4] sm:$0xf]
    %v1155 = vld [vmem:[%s1 + $0x11a8] sm:$0xf]
    %v1156 = vld [vmem:[%s1 + $0x11ac] sm:$0xf]
    %v1157 = vld [vmem:[%s1 + $0x11b0] sm:$0xf]
    %v1158 = vld [vmem:[%s1 + $0x11b4] sm:$0xf]
    %v1159 = vld [vmem:[%s1 + $0x11b8] sm:$0xf]
    %v1160 = vld [vmem:[%s1 + $0x11bc] sm:$0xf]
    %v1161 = vld [vmem:[%s1 + $0x11c0] sm:$0xf]
    %v1162 = vld [vmem:[%s1 + $0x11c4] sm:$0xf]
    %v1163 = vld [vmem:[%s1 + $0x11c8] sm:$0xf]
    %v1164 = vld [vmem:[%s1 + $0x11cc] sm:$0xf]
    %v1165 = vld [vmem:[%s1 + $0x11d0] sm:$0xf]
    %v1166 = vld [vmem:[%s1 + $0x11d4] sm:$0xf]
    %v1167 = vld [vmem:[%s1 + $0x11d8] sm:$0xf]
    %v1168 = vld [vmem:[%s1 + $0x11dc] sm:$0xf]
    %v1169 = vld [vmem:[%s1 + $0x11e0] sm:$0xf]
    %v1170 = vld [vmem:[%s1 + $0x11e4] sm:$0xf]
    %v1171 = vld [vmem:[%s1 + $0x11e8] sm:$0xf]
    %v1172 = vld [vmem:[%s1 + $0x11ec] sm:$0xf]
    %v1173 = vld [vmem:[%s1 + $0x11f0] sm:$0xf]
    %v1174 = vld [vmem:[%s1 + $0x11f4] sm:$0xf]
    %v1175 = vld [vmem:[%s1 + $0x11f8] sm:$0xf]
    %v1176 = vld [vmem:[%s1 + $0x11fc] sm:$0xf]
    %v1177 = vld [vmem:[%s2] sm:$0x1]
    %v1179 = vlaneseq
    %v1180 = vshrl.u32 %v1179, 7
    %v1181 = vsub.s32 0, %v1180
    %v1182 = vrot.slane %v1177, %v1181
    %v1193 = vcombine.high %v16, %v16
    %v1195 = vunpack.c.l.s4 1966171168
    %v1196 = vunpack.c.0.s8 %v1195
    %v1197 = vlaneseq
    %v1198 = vshrl.u32 %v1197, 7
    %v1199 = vsub.s32 %v1196, %v1198
    %v1200 = vrot.slane %v16, %v1199
    %v1202 = vunpack.c.l.s4 1966171168
    %v1203 = vunpack.c.0.s8 %v1202
    %v1204 = vlaneseq
    %v1205 = vshrl.u32 %v1204, 7
    %v1206 = vsub.s32 %v1203, %v1205
    %v1207 = vrot.slane %v1193, %v1206
    %v1208 = vcombine.high %v1200, %v1200
    %v1209 = vcombine.high %v1207, %v1207
    %v1211 = vunpack.c.l.s4 1966171168
    %v1212 = vunpack.c.0.s8 %v1211
    %v1213 = vlaneseq
    %v1214 = vshrl.u32 %v1213, 7
    %v1215 = vsub.s32 %v1212, %v1214
    %v1216 = vrot.slane %v1200, %v1215
    %v1218 = vunpack.c.l.s4 1966171168
    %v1219 = vunpack.c.0.s8 %v1218
    %v1220 = vlaneseq
    %v1221 = vshrl.u32 %v1220, 7
    %v1222 = vsub.s32 %v1219, %v1221
    %v1223 = vrot.slane %v1207, %v1222
    %v1225 = vunpack.c.l.s4 1966171168
    %v1226 = vunpack.c.0.s8 %v1225
    %v1227 = vlaneseq
    %v1228 = vshrl.u32 %v1227, 7
    %v1229 = vsub.s32 %v1226, %v1228
    %v1230 = vrot.slane %v1208, %v1229
    %v1232 = vunpack.c.l.s4 1966171168
    %v1233 = vunpack.c.0.s8 %v1232
    %v1234 = vlaneseq
    %v1235 = vshrl.u32 %v1234, 7
    %v1236 = vsub.s32 %v1233, %v1235
    %v1237 = vrot.slane %v1209, %v1236
    %v1238 = vcombine.high %v1216, %v1216
    %v1239 = vcombine.high %v1223, %v1223
    %v1240 = vcombine.high %v1230, %v1230
    %v1241 = vcombine.high %v1237, %v1237
    %v1242 = vcombine.high %v17, %v17
    %v1244 = vunpack.c.l.s4 1966171168
    %v1245 = vunpack.c.0.s8 %v1244
    %v1246 = vlaneseq
    %v1247 = vshrl.u32 %v1246, 7
    %v1248 = vsub.s32 %v1245, %v1247
    %v1249 = vrot.slane %v17, %v1248
    %v1251 = vunpack.c.l.s4 1966171168
    %v1252 = vunpack.c.0.s8 %v1251
    %v1253 = vlaneseq
    %v1254 = vshrl.u32 %v1253, 7
    %v1255 = vsub.s32 %v1252, %v1254
    %v1256 = vrot.slane %v1242, %v1255
    %v1257 = vcombine.high %v1249, %v1249
    %v1258 = vcombine.high %v1256, %v1256
    %v1260 = vunpack.c.l.s4 1966171168
    %v1261 = vunpack.c.0.s8 %v1260
    %v1262 = vlaneseq
    %v1263 = vshrl.u32 %v1262, 7
    %v1264 = vsub.s32 %v1261, %v1263
    %v1265 = vrot.slane %v1249, %v1264
    %v1267 = vunpack.c.l.s4 1966171168
    %v1268 = vunpack.c.0.s8 %v1267
    %v1269 = vlaneseq
    %v1270 = vshrl.u32 %v1269, 7
    %v1271 = vsub.s32 %v1268, %v1270
    %v1272 = vrot.slane %v1256, %v1271
    %v1274 = vunpack.c.l.s4 1966171168
    %v1275 = vunpack.c.0.s8 %v1274
    %v1276 = vlaneseq
    %v1277 = vshrl.u32 %v1276, 7
    %v1278 = vsub.s32 %v1275, %v1277
    %v1279 = vrot.slane %v1257, %v1278
    %v1281 = vunpack.c.l.s4 1966171168
    %v1282 = vunpack.c.0.s8 %v1281
    %v1283 = vlaneseq
    %v1284 = vshrl.u32 %v1283, 7
    %v1285 = vsub.s32 %v1282, %v1284
    %v1286 = vrot.slane %v1258, %v1285
    %v1287 = vcombine.high %v1265, %v1265
    %v1288 = vcombine.high %v1272, %v1272
    %v1289 = vcombine.high %v1279, %v1279
    %v1290 = vcombine.high %v1286, %v1286
    %v1291 = vcombine.high %v18, %v18
    %v1293 = vunpack.c.l.s4 1966171168
    %v1294 = vunpack.c.0.s8 %v1293
    %v1295 = vlaneseq
    %v1296 = vshrl.u32 %v1295, 7
    %v1297 = vsub.s32 %v1294, %v1296
    %v1298 = vrot.slane %v18, %v1297
    %v1300 = vunpack.c.l.s4 1966171168
    %v1301 = vunpack.c.0.s8 %v1300
    %v1302 = vlaneseq
    %v1303 = vshrl.u32 %v1302, 7
    %v1304 = vsub.s32 %v1301, %v1303
    %v1305 = vrot.slane %v1291, %v1304
    %v1306 = vcombine.high %v1298, %v1298
    %v1307 = vcombine.high %v1305, %v1305
    %v1309 = vunpack.c.l.s4 1966171168
    %v1310 = vunpack.c.0.s8 %v1309
    %v1311 = vlaneseq
    %v1312 = vshrl.u32 %v1311, 7
    %v1313 = vsub.s32 %v1310, %v1312
    %v1314 = vrot.slane %v1298, %v1313
    %v1316 = vunpack.c.l.s4 1966171168
    %v1317 = vunpack.c.0.s8 %v1316
    %v1318 = vlaneseq
    %v1319 = vshrl.u32 %v1318, 7
    %v1320 = vsub.s32 %v1317, %v1319
    %v1321 = vrot.slane %v1305, %v1320
    %v1323 = vunpack.c.l.s4 1966171168
    %v1324 = vunpack.c.0.s8 %v1323
    %v1325 = vlaneseq
    %v1326 = vshrl.u32 %v1325, 7
    %v1327 = vsub.s32 %v1324, %v1326
    %v1328 = vrot.slane %v1306, %v1327
    %v1330 = vunpack.c.l.s4 1966171168
    %v1331 = vunpack.c.0.s8 %v1330
    %v1332 = vlaneseq
    %v1333 = vshrl.u32 %v1332, 7
    %v1334 = vsub.s32 %v1331, %v1333
    %v1335 = vrot.slane %v1307, %v1334
    %v1336 = vcombine.high %v1314, %v1314
    %v1337 = vcombine.high %v1321, %v1321
    %v1338 = vcombine.high %v1328, %v1328
    %v1339 = vcombine.high %v1335, %v1335
    %v1340 = vcombine.high %v19, %v19
    %v1342 = vunpack.c.l.s4 1966171168
    %v1343 = vunpack.c.0.s8 %v1342
    %v1344 = vlaneseq
    %v1345 = vshrl.u32 %v1344, 7
    %v1346 = vsub.s32 %v1343, %v1345
    %v1347 = vrot.slane %v19, %v1346
    %v1349 = vunpack.c.l.s4 1966171168
    %v1350 = vunpack.c.0.s8 %v1349
    %v1351 = vlaneseq
    %v1352 = vshrl.u32 %v1351, 7
    %v1353 = vsub.s32 %v1350, %v1352
    %v1354 = vrot.slane %v1340, %v1353
    %v1355 = vcombine.high %v1347, %v1347
    %v1356 = vcombine.high %v1354, %v1354
    %v1358 = vunpack.c.l.s4 1966171168
    %v1359 = vunpack.c.0.s8 %v1358
    %v1360 = vlaneseq
    %v1361 = vshrl.u32 %v1360, 7
    %v1362 = vsub.s32 %v1359, %v1361
    %v1363 = vrot.slane %v1347, %v1362
    %v1365 = vunpack.c.l.s4 1966171168
    %v1366 = vunpack.c.0.s8 %v1365
    %v1367 = vlaneseq
    %v1368 = vshrl.u32 %v1367, 7
    %v1369 = vsub.s32 %v1366, %v1368
    %v1370 = vrot.slane %v1354, %v1369
    %v1372 = vunpack.c.l.s4 1966171168
    %v1373 = vunpack.c.0.s8 %v1372
    %v1374 = vlaneseq
    %v1375 = vshrl.u32 %v1374, 7
    %v1376 = vsub.s32 %v1373, %v1375
    %v1377 = vrot.slane %v1355, %v1376
    %v1379 = vunpack.c.l.s4 1966171168
    %v1380 = vunpack.c.0.s8 %v1379
    %v1381 = vlaneseq
    %v1382 = vshrl.u32 %v1381, 7
    %v1383 = vsub.s32 %v1380, %v1382
    %v1384 = vrot.slane %v1356, %v1383
    %v1385 = vcombine.high %v1363, %v1363
    %v1386 = vcombine.high %v1370, %v1370
    %v1387 = vcombine.high %v1377, %v1377
    %v1388 = vcombine.high %v1384, %v1384
    %v1389 = vcombine.high %v20, %v20
    %v1391 = vunpack.c.l.s4 1966171168
    %v1392 = vunpack.c.0.s8 %v1391
    %v1393 = vlaneseq
    %v1394 = vshrl.u32 %v1393, 7
    %v1395 = vsub.s32 %v1392, %v1394
    %v1396 = vrot.slane %v20, %v1395
    %v1398 = vunpack.c.l.s4 1966171168
    %v1399 = vunpack.c.0.s8 %v1398
    %v1400 = vlaneseq
    %v1401 = vshrl.u32 %v1400, 7
    %v1402 = vsub.s32 %v1399, %v1401
    %v1403 = vrot.slane %v1389, %v1402
    %v1404 = vcombine.high %v1396, %v1396
    %v1405 = vcombine.high %v1403, %v1403
    %v1407 = vunpack.c.l.s4 1966171168
    %v1408 = vunpack.c.0.s8 %v1407
    %v1409 = vlaneseq
    %v1410 = vshrl.u32 %v1409, 7
    %v1411 = vsub.s32 %v1408, %v1410
    %v1412 = vrot.slane %v1396, %v1411
    %v1414 = vunpack.c.l.s4 1966171168
    %v1415 = vunpack.c.0.s8 %v1414
    %v1416 = vlaneseq
    %v1417 = vshrl.u32 %v1416, 7
    %v1418 = vsub.s32 %v1415, %v1417
    %v1419 = vrot.slane %v1403, %v1418
    %v1421 = vunpack.c.l.s4 1966171168
    %v1422 = vunpack.c.0.s8 %v1421
    %v1423 = vlaneseq
    %v1424 = vshrl.u32 %v1423, 7
    %v1425 = vsub.s32 %v1422, %v1424
    %v1426 = vrot.slane %v1404, %v1425
    %v1428 = vunpack.c.l.s4 1966171168
    %v1429 = vunpack.c.0.s8 %v1428
    %v1430 = vlaneseq
    %v1431 = vshrl.u32 %v1430, 7
    %v1432 = vsub.s32 %v1429, %v1431
    %v1433 = vrot.slane %v1405, %v1432
    %v1434 = vcombine.high %v1412, %v1412
    %v1435 = vcombine.high %v1419, %v1419
    %v1436 = vcombine.high %v1426, %v1426
    %v1437 = vcombine.high %v1433, %v1433
    %v1438 = vcombine.high %v21, %v21
    %v1440 = vunpack.c.l.s4 1966171168
    %v1441 = vunpack.c.0.s8 %v1440
    %v1442 = vlaneseq
    %v1443 = vshrl.u32 %v1442, 7
    %v1444 = vsub.s32 %v1441, %v1443
    %v1445 = vrot.slane %v21, %v1444
    %v1447 = vunpack.c.l.s4 1966171168
    %v1448 = vunpack.c.0.s8 %v1447
    %v1449 = vlaneseq
    %v1450 = vshrl.u32 %v1449, 7
    %v1451 = vsub.s32 %v1448, %v1450
    %v1452 = vrot.slane %v1438, %v1451
    %v1453 = vcombine.high %v1445, %v1445
    %v1454 = vcombine.high %v1452, %v1452
    %v1456 = vunpack.c.l.s4 1966171168
    %v1457 = vunpack.c.0.s8 %v1456
    %v1458 = vlaneseq
    %v1459 = vshrl.u32 %v1458, 7
    %v1460 = vsub.s32 %v1457, %v1459
    %v1461 = vrot.slane %v1445, %v1460
    %v1463 = vunpack.c.l.s4 1966171168
    %v1464 = vunpack.c.0.s8 %v1463
    %v1465 = vlaneseq
    %v1466 = vshrl.u32 %v1465, 7
    %v1467 = vsub.s32 %v1464, %v1466
    %v1468 = vrot.slane %v1452, %v1467
    %v1470 = vunpack.c.l.s4 1966171168
    %v1471 = vunpack.c.0.s8 %v1470
    %v1472 = vlaneseq
    %v1473 = vshrl.u32 %v1472, 7
    %v1474 = vsub.s32 %v1471, %v1473
    %v1475 = vrot.slane %v1453, %v1474
    %v1477 = vunpack.c.l.s4 1966171168
    %v1478 = vunpack.c.0.s8 %v1477
    %v1479 = vlaneseq
    %v1480 = vshrl.u32 %v1479, 7
    %v1481 = vsub.s32 %v1478, %v1480
    %v1482 = vrot.slane %v1454, %v1481
    %v1483 = vcombine.high %v1461, %v1461
    %v1484 = vcombine.high %v1468, %v1468
    %v1485 = vcombine.high %v1475, %v1475
    %v1486 = vcombine.high %v1482, %v1482
    %v1487 = vcombine.high %v22, %v22
    %v1489 = vunpack.c.l.s4 1966171168
    %v1490 = vunpack.c.0.s8 %v1489
    %v1491 = vlaneseq
    %v1492 = vshrl.u32 %v1491, 7
    %v1493 = vsub.s32 %v1490, %v1492
    %v1494 = vrot.slane %v22, %v1493
    %v1496 = vunpack.c.l.s4 1966171168
    %v1497 = vunpack.c.0.s8 %v1496
    %v1498 = vlaneseq
    %v1499 = vshrl.u32 %v1498, 7
    %v1500 = vsub.s32 %v1497, %v1499
    %v1501 = vrot.slane %v1487, %v1500
    %v1502 = vcombine.high %v1494, %v1494
    %v1503 = vcombine.high %v1501, %v1501
    %v1505 = vunpack.c.l.s4 1966171168
    %v1506 = vunpack.c.0.s8 %v1505
    %v1507 = vlaneseq
    %v1508 = vshrl.u32 %v1507, 7
    %v1509 = vsub.s32 %v1506, %v1508
    %v1510 = vrot.slane %v1494, %v1509
    %v1512 = vunpack.c.l.s4 1966171168
    %v1513 = vunpack.c.0.s8 %v1512
    %v1514 = vlaneseq
    %v1515 = vshrl.u32 %v1514, 7
    %v1516 = vsub.s32 %v1513, %v1515
    %v1517 = vrot.slane %v1501, %v1516
    %v1519 = vunpack.c.l.s4 1966171168
    %v1520 = vunpack.c.0.s8 %v1519
    %v1521 = vlaneseq
    %v1522 = vshrl.u32 %v1521, 7
    %v1523 = vsub.s32 %v1520, %v1522
    %v1524 = vrot.slane %v1502, %v1523
    %v1526 = vunpack.c.l.s4 1966171168
    %v1527 = vunpack.c.0.s8 %v1526
    %v1528 = vlaneseq
    %v1529 = vshrl.u32 %v1528, 7
    %v1530 = vsub.s32 %v1527, %v1529
    %v1531 = vrot.slane %v1503, %v1530
    %v1532 = vcombine.high %v1510, %v1510
    %v1533 = vcombine.high %v1517, %v1517
    %v1534 = vcombine.high %v1524, %v1524
    %v1535 = vcombine.high %v1531, %v1531
    %v1536 = vcombine.high %v23, %v23
    %v1538 = vunpack.c.l.s4 1966171168
    %v1539 = vunpack.c.0.s8 %v1538
    %v1540 = vlaneseq
    %v1541 = vshrl.u32 %v1540, 7
    %v1542 = vsub.s32 %v1539, %v1541
    %v1543 = vrot.slane %v23, %v1542
    %v1545 = vunpack.c.l.s4 1966171168
    %v1546 = vunpack.c.0.s8 %v1545
    %v1547 = vlaneseq
    %v1548 = vshrl.u32 %v1547, 7
    %v1549 = vsub.s32 %v1546, %v1548
    %v1550 = vrot.slane %v1536, %v1549
    %v1551 = vcombine.high %v1543, %v1543
    %v1552 = vcombine.high %v1550, %v1550
    %v1554 = vunpack.c.l.s4 1966171168
    %v1555 = vunpack.c.0.s8 %v1554
    %v1556 = vlaneseq
    %v1557 = vshrl.u32 %v1556, 7
    %v1558 = vsub.s32 %v1555, %v1557
    %v1559 = vrot.slane %v1543, %v1558
    %v1561 = vunpack.c.l.s4 1966171168
    %v1562 = vunpack.c.0.s8 %v1561
    %v1563 = vlaneseq
    %v1564 = vshrl.u32 %v1563, 7
    %v1565 = vsub.s32 %v1562, %v1564
    %v1566 = vrot.slane %v1550, %v1565
    %v1568 = vunpack.c.l.s4 1966171168
    %v1569 = vunpack.c.0.s8 %v1568
    %v1570 = vlaneseq
    %v1571 = vshrl.u32 %v1570, 7
    %v1572 = vsub.s32 %v1569, %v1571
    %v1573 = vrot.slane %v1551, %v1572
    %v1575 = vunpack.c.l.s4 1966171168
    %v1576 = vunpack.c.0.s8 %v1575
    %v1577 = vlaneseq
    %v1578 = vshrl.u32 %v1577, 7
    %v1579 = vsub.s32 %v1576, %v1578
    %v1580 = vrot.slane %v1552, %v1579
    %v1581 = vcombine.high %v1559, %v1559
    %v1582 = vcombine.high %v1566, %v1566
    %v1583 = vcombine.high %v1573, %v1573
    %v1584 = vcombine.high %v1580, %v1580
    %v1585 = vcombine.high %v24, %v24
    %v1587 = vunpack.c.l.s4 1966171168
    %v1588 = vunpack.c.0.s8 %v1587
    %v1589 = vlaneseq
    %v1590 = vshrl.u32 %v1589, 7
    %v1591 = vsub.s32 %v1588, %v1590
    %v1592 = vrot.slane %v24, %v1591
    %v1594 = vunpack.c.l.s4 1966171168
    %v1595 = vunpack.c.0.s8 %v1594
    %v1596 = vlaneseq
    %v1597 = vshrl.u32 %v1596, 7
    %v1598 = vsub.s32 %v1595, %v1597
    %v1599 = vrot.slane %v1585, %v1598
    %v1600 = vcombine.high %v1592, %v1592
    %v1601 = vcombine.high %v1599, %v1599
    %v1603 = vunpack.c.l.s4 1966171168
    %v1604 = vunpack.c.0.s8 %v1603
    %v1605 = vlaneseq
    %v1606 = vshrl.u32 %v1605, 7
    %v1607 = vsub.s32 %v1604, %v1606
    %v1608 = vrot.slane %v1592, %v1607
    %v1610 = vunpack.c.l.s4 1966171168
    %v1611 = vunpack.c.0.s8 %v1610
    %v1612 = vlaneseq
    %v1613 = vshrl.u32 %v1612, 7
    %v1614 = vsub.s32 %v1611, %v1613
    %v1615 = vrot.slane %v1599, %v1614
    %v1617 = vunpack.c.l.s4 1966171168
    %v1618 = vunpack.c.0.s8 %v1617
    %v1619 = vlaneseq
    %v1620 = vshrl.u32 %v1619, 7
    %v1621 = vsub.s32 %v1618, %v1620
    %v1622 = vrot.slane %v1600, %v1621
    %v1624 = vunpack.c.l.s4 1966171168
    %v1625 = vunpack.c.0.s8 %v1624
    %v1626 = vlaneseq
    %v1627 = vshrl.u32 %v1626, 7
    %v1628 = vsub.s32 %v1625, %v1627
    %v1629 = vrot.slane %v1601, %v1628
    %v1630 = vcombine.high %v1608, %v1608
    %v1631 = vcombine.high %v1615, %v1615
    %v1632 = vcombine.high %v1622, %v1622
    %v1633 = vcombine.high %v1629, %v1629
    %v2858 = vunpack.c.l.b16 %v25
    %v2859 = vunpack.c.l.b16 %v26
    %v2860 = vunpack.c.l.b16 %v27
    %v2861 = vunpack.c.l.b16 %v28
    %v2862 = vunpack.c.l.b16 %v29
    %v2863 = vunpack.c.l.b16 %v30
    %v2864 = vunpack.c.l.b16 %v31
    %v2865 = vunpack.c.l.b16 %v32
    %v2866 = vunpack.c.l.b16 %v33
    %v2867 = vunpack.c.l.b16 %v34
    %v2868 = vunpack.c.l.b16 %v35
    %v2869 = vunpack.c.l.b16 %v36
    %v2870 = vunpack.c.l.b16 %v37
    %v2871 = vunpack.c.l.b16 %v38
    %v2872 = vunpack.c.l.b16 %v39
    %v2873 = vunpack.c.l.b16 %v40
    %v2874 = vunpack.c.l.b16 %v41
    %v2875 = vunpack.c.l.b16 %v42
    %v2876 = vunpack.c.l.b16 %v43
    %v2877 = vunpack.c.l.b16 %v44
    %v2878 = vunpack.c.l.b16 %v45
    %v2879 = vunpack.c.l.b16 %v46
    %v2880 = vunpack.c.l.b16 %v47
    %v2881 = vunpack.c.l.b16 %v48
    %v2882 = vunpack.c.l.b16 %v49
    %v2883 = vunpack.c.l.b16 %v50
    %v2884 = vunpack.c.l.b16 %v51
    %v2885 = vunpack.c.l.b16 %v52
    %v2886 = vunpack.c.l.b16 %v53
    %v2887 = vunpack.c.l.b16 %v54
    %v2888 = vunpack.c.l.b16 %v55
    %v2889 = vunpack.c.l.b16 %v56
    %v2890 = vunpack.c.l.b16 %v57
    %v2891 = vunpack.c.l.b16 %v58
    %v2892 = vunpack.c.l.b16 %v59
    %v2893 = vunpack.c.l.b16 %v60
    %v2894 = vunpack.c.l.b16 %v61
    %v2895 = vunpack.c.l.b16 %v62
    %v2896 = vunpack.c.l.b16 %v63
    %v2897 = vunpack.c.l.b16 %v64
    %v2898 = vunpack.c.l.b16 %v65
    %v2899 = vunpack.c.l.b16 %v66
    %v2900 = vunpack.c.l.b16 %v67
    %v2901 = vunpack.c.l.b16 %v68
    %v2902 = vunpack.c.l.b16 %v69
    %v2903 = vunpack.c.l.b16 %v70
    %v2904 = vunpack.c.l.b16 %v71
    %v2905 = vunpack.c.l.b16 %v72
    %v2906 = vunpack.c.l.b16 %v73
    %v2907 = vunpack.c.l.b16 %v74
    %v2908 = vunpack.c.l.b16 %v75
    %v2909 = vunpack.c.l.b16 %v76
    %v2910 = vunpack.c.l.b16 %v77
    %v2911 = vunpack.c.l.b16 %v78
    %v2912 = vunpack.c.l.b16 %v79
    %v2913 = vunpack.c.l.b16 %v80
    %v2914 = vunpack.c.l.b16 %v81
    %v2915 = vunpack.c.l.b16 %v82
    %v2916 = vunpack.c.l.b16 %v83
    %v2917 = vunpack.c.l.b16 %v84
    %v2918 = vunpack.c.l.b16 %v85
    %v2919 = vunpack.c.l.b16 %v86
    %v2920 = vunpack.c.l.b16 %v87
    %v2921 = vunpack.c.l.b16 %v88
    %v2922 = vunpack.c.l.b16 %v89
    %v2923 = vunpack.c.l.b16 %v90
    %v2924 = vunpack.c.l.b16 %v91
    %v2925 = vunpack.c.l.b16 %v92
    %v2926 = vunpack.c.l.b16 %v93
    %v2927 = vunpack.c.l.b16 %v94
    %v2928 = vunpack.c.l.b16 %v95
    %v2929 = vunpack.c.l.b16 %v96
    %v2930 = vunpack.c.l.b16 %v97
    %v2931 = vunpack.c.l.b16 %v98
    %v2932 = vunpack.c.l.b16 %v99
    %v2933 = vunpack.c.l.b16 %v100
    %v2934 = vunpack.c.l.b16 %v101
    %v2935 = vunpack.c.l.b16 %v102
    %v2936 = vunpack.c.l.b16 %v103
    %v2937 = vunpack.c.l.b16 %v104
    %v2938 = vunpack.c.l.b16 %v105
    %v2939 = vunpack.c.l.b16 %v106
    %v2940 = vunpack.c.l.b16 %v107
    %v2941 = vunpack.c.l.b16 %v108
    %v2942 = vunpack.c.l.b16 %v109
    %v2943 = vunpack.c.l.b16 %v110
    %v2944 = vunpack.c.l.b16 %v111
    %v2945 = vunpack.c.l.b16 %v112
    %v2946 = vunpack.c.l.b16 %v113
    %v2947 = vunpack.c.l.b16 %v114
    %v2948 = vunpack.c.l.b16 %v115
    %v2949 = vunpack.c.l.b16 %v116
    %v2950 = vunpack.c.l.b16 %v117
    %v2951 = vunpack.c.l.b16 %v118
    %v2952 = vunpack.c.l.b16 %v119
    %v2953 = vunpack.c.l.b16 %v120
    %v2954 = vunpack.c.l.b16 %v121
    %v2955 = vunpack.c.l.b16 %v122
    %v2956 = vunpack.c.l.b16 %v123
    %v2957 = vunpack.c.l.b16 %v124
    %v2958 = vunpack.c.l.b16 %v125
    %v2959 = vunpack.c.l.b16 %v126
    %v2960 = vunpack.c.l.b16 %v127
    %v2961 = vunpack.c.l.b16 %v128
    %v2962 = vunpack.c.l.b16 %v129
    %v2963 = vunpack.c.l.b16 %v130
    %v2964 = vunpack.c.l.b16 %v131
    %v2965 = vunpack.c.l.b16 %v132
    %v2966 = vunpack.c.l.b16 %v133
    %v2967 = vunpack.c.l.b16 %v134
    %v2968 = vunpack.c.l.b16 %v135
    %v2969 = vunpack.c.l.b16 %v136
    %v2970 = vunpack.c.l.b16 %v137
    %v2971 = vunpack.c.l.b16 %v138
    %v2972 = vunpack.c.l.b16 %v139
    %v2973 = vunpack.c.l.b16 %v140
    %v2974 = vunpack.c.l.b16 %v141
    %v2975 = vunpack.c.l.b16 %v142
    %v2976 = vunpack.c.l.b16 %v143
    %v2977 = vunpack.c.l.b16 %v144
    %v2978 = vunpack.c.l.b16 %v145
    %v2979 = vunpack.c.l.b16 %v146
    %v2980 = vunpack.c.l.b16 %v147
    %v2981 = vunpack.c.l.b16 %v148
    %v2982 = vunpack.c.l.b16 %v149
    %v2983 = vunpack.c.l.b16 %v150
    %v2984 = vunpack.c.l.b16 %v151
    %v2985 = vunpack.c.l.b16 %v152
    %v2986 = vunpack.c.l.b16 %v153
    %v2987 = vunpack.c.l.b16 %v154
    %v2988 = vunpack.c.l.b16 %v155
    %v2989 = vunpack.c.l.b16 %v156
    %v2990 = vunpack.c.l.b16 %v157
    %v2991 = vunpack.c.l.b16 %v158
    %v2992 = vunpack.c.l.b16 %v159
    %v2993 = vunpack.c.l.b16 %v160
    %v2994 = vunpack.c.l.b16 %v161
    %v2995 = vunpack.c.l.b16 %v162
    %v2996 = vunpack.c.l.b16 %v163
    %v2997 = vunpack.c.l.b16 %v164
    %v2998 = vunpack.c.l.b16 %v165
    %v2999 = vunpack.c.l.b16 %v166
    %v3000 = vunpack.c.l.b16 %v167
    %v3001 = vunpack.c.l.b16 %v168
    %v3002 = vunpack.c.l.b16 %v169
    %v3003 = vunpack.c.l.b16 %v170
    %v3004 = vunpack.c.l.b16 %v171
    %v3005 = vunpack.c.l.b16 %v172
    %v3006 = vunpack.c.l.b16 %v173
    %v3007 = vunpack.c.l.b16 %v174
    %v3008 = vunpack.c.l.b16 %v175
    %v3009 = vunpack.c.l.b16 %v176
    %v3010 = vunpack.c.l.b16 %v177
    %v3011 = vunpack.c.l.b16 %v178
    %v3012 = vunpack.c.l.b16 %v179
    %v3013 = vunpack.c.l.b16 %v180
    %v3014 = vunpack.c.l.b16 %v181
    %v3015 = vunpack.c.l.b16 %v182
    %v3016 = vunpack.c.l.b16 %v183
    %v3017 = vunpack.c.l.b16 %v184
    %v3018 = vunpack.c.l.b16 %v185
    %v3019 = vunpack.c.l.b16 %v186
    %v3020 = vunpack.c.l.b16 %v187
    %v3021 = vunpack.c.l.b16 %v188
    %v3022 = vunpack.c.l.b16 %v189
    %v3023 = vunpack.c.l.b16 %v190
    %v3024 = vunpack.c.l.b16 %v191
    %v3025 = vunpack.c.l.b16 %v192
    %v3026 = vunpack.c.l.b16 %v193
    %v3027 = vunpack.c.l.b16 %v194
    %v3028 = vunpack.c.l.b16 %v195
    %v3029 = vunpack.c.l.b16 %v196
    %v3030 = vunpack.c.l.b16 %v197
    %v3031 = vunpack.c.l.b16 %v198
    %v3032 = vunpack.c.l.b16 %v199
    %v3033 = vunpack.c.l.b16 %v200
    %v3034 = vunpack.c.l.b16 %v201
    %v3035 = vunpack.c.l.b16 %v202
    %v3036 = vunpack.c.l.b16 %v203
    %v3037 = vunpack.c.l.b16 %v204
    %v3038 = vunpack.c.l.b16 %v205
    %v3039 = vunpack.c.l.b16 %v206
    %v3040 = vunpack.c.l.b16 %v207
    %v3041 = vunpack.c.l.b16 %v208
    %v3042 = vunpack.c.l.b16 %v209
    %v3043 = vunpack.c.l.b16 %v210
    %v3044 = vunpack.c.l.b16 %v211
    %v3045 = vunpack.c.l.b16 %v212
    %v3046 = vunpack.c.l.b16 %v213
    %v3047 = vunpack.c.l.b16 %v214
    %v3048 = vunpack.c.l.b16 %v215
    %v3049 = vunpack.c.l.b16 %v216
    %v3050 = vunpack.c.l.b16 %v217
    %v3051 = vunpack.c.l.b16 %v218
    %v3052 = vunpack.c.l.b16 %v219
    %v3053 = vunpack.c.l.b16 %v220
    %v3054 = vunpack.c.l.b16 %v221
    %v3055 = vunpack.c.l.b16 %v222
    %v3056 = vunpack.c.l.b16 %v223
    %v3057 = vunpack.c.l.b16 %v224
    %v3058 = vunpack.c.l.b16 %v225
    %v3059 = vunpack.c.l.b16 %v226
    %v3060 = vunpack.c.l.b16 %v227
    %v3061 = vunpack.c.l.b16 %v228
    %v3062 = vunpack.c.l.b16 %v229
    %v3063 = vunpack.c.l.b16 %v230
    %v3064 = vunpack.c.l.b16 %v231
    %v3065 = vunpack.c.l.b16 %v232
    %v3066 = vunpack.c.l.b16 %v233
    %v3067 = vunpack.c.l.b16 %v234
    %v3068 = vunpack.c.l.b16 %v235
    %v3069 = vunpack.c.l.b16 %v236
    %v3070 = vunpack.c.l.b16 %v237
    %v3071 = vunpack.c.l.b16 %v238
    %v3072 = vunpack.c.l.b16 %v239
    %v3073 = vunpack.c.l.b16 %v240
    %v3074 = vunpack.c.l.b16 %v241
    %v3075 = vunpack.c.l.b16 %v242
    %v3076 = vunpack.c.l.b16 %v243
    %v3077 = vunpack.c.l.b16 %v244
    %v3078 = vunpack.c.l.b16 %v245
    %v3079 = vunpack.c.l.b16 %v246
    %v3080 = vunpack.c.l.b16 %v247
    %v3081 = vunpack.c.l.b16 %v248
    %v3082 = vunpack.c.l.b16 %v249
    %v3083 = vunpack.c.l.b16 %v250
    %v3084 = vunpack.c.l.b16 %v251
    %v3085 = vunpack.c.l.b16 %v252
    %v3086 = vunpack.c.l.b16 %v253
    %v3087 = vunpack.c.l.b16 %v254
    %v3088 = vunpack.c.l.b16 %v255
    %v3089 = vunpack.c.l.b16 %v256
    %v3090 = vunpack.c.l.b16 %v257
    %v3091 = vunpack.c.l.b16 %v258
    %v3092 = vunpack.c.l.b16 %v259
    %v3093 = vunpack.c.l.b16 %v260
    %v3094 = vunpack.c.l.b16 %v261
    %v3095 = vunpack.c.l.b16 %v262
    %v3096 = vunpack.c.l.b16 %v263
    %v3097 = vunpack.c.l.b16 %v264
    %v3098 = vunpack.c.l.b16 %v265
    %v3099 = vunpack.c.l.b16 %v266
    %v3100 = vunpack.c.l.b16 %v267
    %v3101 = vunpack.c.l.b16 %v268
    %v3102 = vunpack.c.l.b16 %v269
    %v3103 = vunpack.c.l.b16 %v270
    %v3104 = vunpack.c.l.b16 %v271
    %v3105 = vunpack.c.l.b16 %v272
    %v3106 = vunpack.c.l.b16 %v273
    %v3107 = vunpack.c.l.b16 %v274
    %v3108 = vunpack.c.l.b16 %v275
    %v3109 = vunpack.c.l.b16 %v276
    %v3110 = vunpack.c.l.b16 %v277
    %v3111 = vunpack.c.l.b16 %v278
    %v3112 = vunpack.c.l.b16 %v279
    %v3113 = vunpack.c.l.b16 %v280
    %v3114 = vunpack.c.l.b16 %v281
    %v3115 = vunpack.c.l.b16 %v282
    %v3116 = vunpack.c.l.b16 %v283
    %v3117 = vunpack.c.l.b16 %v284
    %v3118 = vunpack.c.l.b16 %v285
    %v3119 = vunpack.c.l.b16 %v286
    %v3120 = vunpack.c.l.b16 %v287
    %v3121 = vunpack.c.l.b16 %v288
    %v3122 = vunpack.c.l.b16 %v289
    %v3123 = vunpack.c.l.b16 %v290
    %v3124 = vunpack.c.l.b16 %v291
    %v3125 = vunpack.c.l.b16 %v292
    %v3126 = vunpack.c.l.b16 %v293
    %v3127 = vunpack.c.l.b16 %v294
    %v3128 = vunpack.c.l.b16 %v295
    %v3129 = vunpack.c.l.b16 %v296
    %v3130 = vunpack.c.l.b16 %v297
    %v3131 = vunpack.c.l.b16 %v298
    %v3132 = vunpack.c.l.b16 %v299
    %v3133 = vunpack.c.l.b16 %v300
    %v3134 = vunpack.c.l.b16 %v301
    %v3135 = vunpack.c.l.b16 %v302
    %v3136 = vunpack.c.l.b16 %v303
    %v3137 = vunpack.c.l.b16 %v304
    %v3138 = vunpack.c.l.b16 %v305
    %v3139 = vunpack.c.l.b16 %v306
    %v3140 = vunpack.c.l.b16 %v307
    %v3141 = vunpack.c.l.b16 %v308
    %v3142 = vunpack.c.l.b16 %v309
    %v3143 = vunpack.c.l.b16 %v310
    %v3144 = vunpack.c.l.b16 %v311
    %v3145 = vunpack.c.l.b16 %v312
    %v3146 = vunpack.c.l.b16 %v313
    %v3147 = vunpack.c.l.b16 %v314
    %v3148 = vunpack.c.l.b16 %v315
    %v3149 = vunpack.c.l.b16 %v316
    %v3150 = vunpack.c.l.b16 %v317
    %v3151 = vunpack.c.l.b16 %v318
    %v3152 = vunpack.c.l.b16 %v319
    %v3153 = vunpack.c.l.b16 %v320
    %v3154 = vunpack.c.l.b16 %v321
    %v3155 = vunpack.c.l.b16 %v322
    %v3156 = vunpack.c.l.b16 %v323
    %v3157 = vunpack.c.l.b16 %v324
    %v3158 = vunpack.c.l.b16 %v325
    %v3159 = vunpack.c.l.b16 %v326
    %v3160 = vunpack.c.l.b16 %v327
    %v3161 = vunpack.c.l.b16 %v328
    %v3162 = vunpack.c.l.b16 %v329
    %v3163 = vunpack.c.l.b16 %v330
    %v3164 = vunpack.c.l.b16 %v331
    %v3165 = vunpack.c.l.b16 %v332
    %v3166 = vunpack.c.l.b16 %v333
    %v3167 = vunpack.c.l.b16 %v334
    %v3168 = vunpack.c.l.b16 %v335
    %v3169 = vunpack.c.l.b16 %v336
    %v3170 = vunpack.c.l.b16 %v337
    %v3171 = vunpack.c.l.b16 %v338
    %v3172 = vunpack.c.l.b16 %v339
    %v3173 = vunpack.c.l.b16 %v340
    %v3174 = vunpack.c.l.b16 %v341
    %v3175 = vunpack.c.l.b16 %v342
    %v3176 = vunpack.c.l.b16 %v343
    %v3177 = vunpack.c.l.b16 %v344
    %v3178 = vunpack.c.l.b16 %v345
    %v3179 = vunpack.c.l.b16 %v346
    %v3180 = vunpack.c.l.b16 %v347
    %v3181 = vunpack.c.l.b16 %v348
    %v3182 = vunpack.c.l.b16 %v349
    %v3183 = vunpack.c.l.b16 %v350
    %v3184 = vunpack.c.l.b16 %v351
    %v3185 = vunpack.c.l.b16 %v352
    %v3186 = vunpack.c.l.b16 %v353
    %v3187 = vunpack.c.l.b16 %v354
    %v3188 = vunpack.c.l.b16 %v355
    %v3189 = vunpack.c.l.b16 %v356
    %v3190 = vunpack.c.l.b16 %v357
    %v3191 = vunpack.c.l.b16 %v358
    %v3192 = vunpack.c.l.b16 %v359
    %v3193 = vunpack.c.l.b16 %v360
    %v3194 = vunpack.c.l.b16 %v361
    %v3195 = vunpack.c.l.b16 %v362
    %v3196 = vunpack.c.l.b16 %v363
    %v3197 = vunpack.c.l.b16 %v364
    %v3198 = vunpack.c.l.b16 %v365
    %v3199 = vunpack.c.l.b16 %v366
    %v3200 = vunpack.c.l.b16 %v367
    %v3201 = vunpack.c.l.b16 %v368
    %v3202 = vunpack.c.l.b16 %v369
    %v3203 = vunpack.c.l.b16 %v370
    %v3204 = vunpack.c.l.b16 %v371
    %v3205 = vunpack.c.l.b16 %v372
    %v3206 = vunpack.c.l.b16 %v373
    %v3207 = vunpack.c.l.b16 %v374
    %v3208 = vunpack.c.l.b16 %v375
    %v3209 = vunpack.c.l.b16 %v376
    %v3210 = vunpack.c.l.b16 %v377
    %v3211 = vunpack.c.l.b16 %v378
    %v3212 = vunpack.c.l.b16 %v379
    %v3213 = vunpack.c.l.b16 %v380
    %v3214 = vunpack.c.l.b16 %v381
    %v3215 = vunpack.c.l.b16 %v382
    %v3216 = vunpack.c.l.b16 %v383
    %v3217 = vunpack.c.l.b16 %v384
    %v3218 = vunpack.c.l.b16 %v385
    %v3219 = vunpack.c.l.b16 %v386
    %v3220 = vunpack.c.l.b16 %v387
    %v3221 = vunpack.c.l.b16 %v388
    %v3222 = vunpack.c.l.b16 %v389
    %v3223 = vunpack.c.l.b16 %v390
    %v3224 = vunpack.c.l.b16 %v391
    %v3225 = vunpack.c.l.b16 %v392
    %v3226 = vunpack.c.l.b16 %v393
    %v3227 = vunpack.c.l.b16 %v394
    %v3228 = vunpack.c.l.b16 %v395
    %v3229 = vunpack.c.l.b16 %v396
    %v3230 = vunpack.c.l.b16 %v397
    %v3231 = vunpack.c.l.b16 %v398
    %v3232 = vunpack.c.l.b16 %v399
    %v3233 = vunpack.c.l.b16 %v400
    %v3234 = vunpack.c.l.b16 %v401
    %v3235 = vunpack.c.l.b16 %v402
    %v3236 = vunpack.c.l.b16 %v403
    %v3237 = vunpack.c.l.b16 %v404
    %v3238 = vunpack.c.l.b16 %v405
    %v3239 = vunpack.c.l.b16 %v406
    %v3240 = vunpack.c.l.b16 %v407
    %v3241 = vunpack.c.l.b16 %v408
    %v3242 = vunpack.c.l.b16 %v409
    %v3243 = vunpack.c.l.b16 %v410
    %v3244 = vunpack.c.l.b16 %v411
    %v3245 = vunpack.c.l.b16 %v412
    %v3246 = vunpack.c.l.b16 %v413
    %v3247 = vunpack.c.l.b16 %v414
    %v3248 = vunpack.c.l.b16 %v415
    %v3249 = vunpack.c.l.b16 %v416
    %v3250 = vunpack.c.l.b16 %v417
    %v3251 = vunpack.c.l.b16 %v418
    %v3252 = vunpack.c.l.b16 %v419
    %v3253 = vunpack.c.l.b16 %v420
    %v3254 = vunpack.c.l.b16 %v421
    %v3255 = vunpack.c.l.b16 %v422
    %v3256 = vunpack.c.l.b16 %v423
    %v3257 = vunpack.c.l.b16 %v424
    %v3258 = vunpack.c.l.b16 %v425
    %v3259 = vunpack.c.l.b16 %v426
    %v3260 = vunpack.c.l.b16 %v427
    %v3261 = vunpack.c.l.b16 %v428
    %v3262 = vunpack.c.l.b16 %v429
    %v3263 = vunpack.c.l.b16 %v430
    %v3264 = vunpack.c.l.b16 %v431
    %v3265 = vunpack.c.l.b16 %v432
    %v3266 = vunpack.c.l.b16 %v433
    %v3267 = vunpack.c.l.b16 %v434
    %v3268 = vunpack.c.l.b16 %v435
    %v3269 = vunpack.c.l.b16 %v436
    %v3270 = vunpack.c.l.b16 %v437
    %v3271 = vunpack.c.l.b16 %v438
    %v3272 = vunpack.c.l.b16 %v439
    %v3273 = vunpack.c.l.b16 %v440
    %v3274 = vunpack.c.l.b16 %v441
    %v3275 = vunpack.c.l.b16 %v442
    %v3276 = vunpack.c.l.b16 %v443
    %v3277 = vunpack.c.l.b16 %v444
    %v3278 = vunpack.c.l.b16 %v445
    %v3279 = vunpack.c.l.b16 %v446
    %v3280 = vunpack.c.l.b16 %v447
    %v3281 = vunpack.c.l.b16 %v448
    %v3282 = vunpack.c.l.b16 %v449
    %v3283 = vunpack.c.l.b16 %v450
    %v3284 = vunpack.c.l.b16 %v451
    %v3285 = vunpack.c.l.b16 %v452
    %v3286 = vunpack.c.l.b16 %v453
    %v3287 = vunpack.c.l.b16 %v454
    %v3288 = vunpack.c.l.b16 %v455
    %v3289 = vunpack.c.l.b16 %v456
    %v3290 = vunpack.c.l.b16 %v457
    %v3291 = vunpack.c.l.b16 %v458
    %v3292 = vunpack.c.l.b16 %v459
    %v3293 = vunpack.c.l.b16 %v460
    %v3294 = vunpack.c.l.b16 %v461
    %v3295 = vunpack.c.l.b16 %v462
    %v3296 = vunpack.c.l.b16 %v463
    %v3297 = vunpack.c.l.b16 %v464
    %v3298 = vunpack.c.l.b16 %v465
    %v3299 = vunpack.c.l.b16 %v466
    %v3300 = vunpack.c.l.b16 %v467
    %v3301 = vunpack.c.l.b16 %v468
    %v3302 = vunpack.c.l.b16 %v469
    %v3303 = vunpack.c.l.b16 %v470
    %v3304 = vunpack.c.l.b16 %v471
    %v3305 = vunpack.c.l.b16 %v472
    %v3306 = vunpack.c.l.b16 %v473
    %v3307 = vunpack.c.l.b16 %v474
    %v3308 = vunpack.c.l.b16 %v475
    %v3309 = vunpack.c.l.b16 %v476
    %v3310 = vunpack.c.l.b16 %v477
    %v3311 = vunpack.c.l.b16 %v478
    %v3312 = vunpack.c.l.b16 %v479
    %v3313 = vunpack.c.l.b16 %v480
    %v3314 = vunpack.c.l.b16 %v481
    %v3315 = vunpack.c.l.b16 %v482
    %v3316 = vunpack.c.l.b16 %v483
    %v3317 = vunpack.c.l.b16 %v484
    %v3318 = vunpack.c.l.b16 %v485
    %v3319 = vunpack.c.l.b16 %v486
    %v3320 = vunpack.c.l.b16 %v487
    %v3321 = vunpack.c.l.b16 %v488
    %v3322 = vunpack.c.l.b16 %v489
    %v3323 = vunpack.c.l.b16 %v490
    %v3324 = vunpack.c.l.b16 %v491
    %v3325 = vunpack.c.l.b16 %v492
    %v3326 = vunpack.c.l.b16 %v493
    %v3327 = vunpack.c.l.b16 %v494
    %v3328 = vunpack.c.l.b16 %v495
    %v3329 = vunpack.c.l.b16 %v496
    %v3330 = vunpack.c.l.b16 %v497
    %v3331 = vunpack.c.l.b16 %v498
    %v3332 = vunpack.c.l.b16 %v499
    %v3333 = vunpack.c.l.b16 %v500
    %v3334 = vunpack.c.l.b16 %v501
    %v3335 = vunpack.c.l.b16 %v502
    %v3336 = vunpack.c.l.b16 %v503
    %v3337 = vunpack.c.l.b16 %v504
    %v3338 = vunpack.c.l.b16 %v505
    %v3339 = vunpack.c.l.b16 %v506
    %v3340 = vunpack.c.l.b16 %v507
    %v3341 = vunpack.c.l.b16 %v508
    %v3342 = vunpack.c.l.b16 %v509
    %v3343 = vunpack.c.l.b16 %v510
    %v3344 = vunpack.c.l.b16 %v511
    %v3345 = vunpack.c.l.b16 %v512
    %v3346 = vunpack.c.l.b16 %v513
    %v3347 = vunpack.c.l.b16 %v514
    %v3348 = vunpack.c.l.b16 %v515
    %v3349 = vunpack.c.l.b16 %v516
    %v3350 = vunpack.c.l.b16 %v517
    %v3351 = vunpack.c.l.b16 %v518
    %v3352 = vunpack.c.l.b16 %v519
    %v3353 = vunpack.c.l.b16 %v520
    %v3354 = vunpack.c.l.b16 %v521
    %v3355 = vunpack.c.l.b16 %v522
    %v3356 = vunpack.c.l.b16 %v523
    %v3357 = vunpack.c.l.b16 %v524
    %v3358 = vunpack.c.l.b16 %v525
    %v3359 = vunpack.c.l.b16 %v526
    %v3360 = vunpack.c.l.b16 %v527
    %v3361 = vunpack.c.l.b16 %v528
    %v3362 = vunpack.c.l.b16 %v529
    %v3363 = vunpack.c.l.b16 %v530
    %v3364 = vunpack.c.l.b16 %v531
    %v3365 = vunpack.c.l.b16 %v532
    %v3366 = vunpack.c.l.b16 %v533
    %v3367 = vunpack.c.l.b16 %v534
    %v3368 = vunpack.c.l.b16 %v535
    %v3369 = vunpack.c.l.b16 %v536
    %v3370 = vunpack.c.l.b16 %v537
    %v3371 = vunpack.c.l.b16 %v538
    %v3372 = vunpack.c.l.b16 %v539
    %v3373 = vunpack.c.l.b16 %v540
    %v3374 = vunpack.c.l.b16 %v541
    %v3375 = vunpack.c.l.b16 %v542
    %v3376 = vunpack.c.l.b16 %v543
    %v3377 = vunpack.c.l.b16 %v544
    %v3378 = vunpack.c.l.b16 %v545
    %v3379 = vunpack.c.l.b16 %v546
    %v3380 = vunpack.c.l.b16 %v547
    %v3381 = vunpack.c.l.b16 %v548
    %v3382 = vunpack.c.l.b16 %v549
    %v3383 = vunpack.c.l.b16 %v550
    %v3384 = vunpack.c.l.b16 %v551
    %v3385 = vunpack.c.l.b16 %v552
    %v3386 = vunpack.c.l.b16 %v553
    %v3387 = vunpack.c.l.b16 %v554
    %v3388 = vunpack.c.l.b16 %v555
    %v3389 = vunpack.c.l.b16 %v556
    %v3390 = vunpack.c.l.b16 %v557
    %v3391 = vunpack.c.l.b16 %v558
    %v3392 = vunpack.c.l.b16 %v559
    %v3393 = vunpack.c.l.b16 %v560
    %v3394 = vunpack.c.l.b16 %v561
    %v3395 = vunpack.c.l.b16 %v562
    %v3396 = vunpack.c.l.b16 %v563
    %v3397 = vunpack.c.l.b16 %v564
    %v3398 = vunpack.c.l.b16 %v565
    %v3399 = vunpack.c.l.b16 %v566
    %v3400 = vunpack.c.l.b16 %v567
    %v3401 = vunpack.c.l.b16 %v568
    %v3402 = vunpack.c.l.b16 %v569
    %v3403 = vunpack.c.l.b16 %v570
    %v3404 = vunpack.c.l.b16 %v571
    %v3405 = vunpack.c.l.b16 %v572
    %v3406 = vunpack.c.l.b16 %v573
    %v3407 = vunpack.c.l.b16 %v574
    %v3408 = vunpack.c.l.b16 %v575
    %v3409 = vunpack.c.l.b16 %v576
    %v3410 = vunpack.c.l.b16 %v577
    %v3411 = vunpack.c.l.b16 %v578
    %v3412 = vunpack.c.l.b16 %v579
    %v3413 = vunpack.c.l.b16 %v580
    %v3414 = vunpack.c.l.b16 %v581
    %v3415 = vunpack.c.l.b16 %v582
    %v3416 = vunpack.c.l.b16 %v583
    %v3417 = vunpack.c.l.b16 %v584
    %v3418 = vunpack.c.l.b16 %v585
    %v3419 = vunpack.c.l.b16 %v586
    %v3420 = vunpack.c.l.b16 %v587
    %v3421 = vunpack.c.l.b16 %v588
    %v3422 = vunpack.c.l.b16 %v589
    %v3423 = vunpack.c.l.b16 %v590
    %v3424 = vunpack.c.l.b16 %v591
    %v3425 = vunpack.c.l.b16 %v592
    %v3426 = vunpack.c.l.b16 %v593
    %v3427 = vunpack.c.l.b16 %v594
    %v3428 = vunpack.c.l.b16 %v595
    %v3429 = vunpack.c.l.b16 %v596
    %v3430 = vunpack.c.l.b16 %v597
    %v3431 = vunpack.c.l.b16 %v598
    %v3432 = vunpack.c.l.b16 %v599
    %v3433 = vunpack.c.l.b16 %v600
    %v3434 = vunpack.c.l.b16 %v601
    %v3435 = vunpack.c.l.b16 %v602
    %v3436 = vunpack.c.l.b16 %v603
    %v3437 = vunpack.c.l.b16 %v604
    %v3438 = vunpack.c.l.b16 %v605
    %v3439 = vunpack.c.l.b16 %v606
    %v3440 = vunpack.c.l.b16 %v607
    %v3441 = vunpack.c.l.b16 %v608
    %v3442 = vunpack.c.l.b16 %v609
    %v3443 = vunpack.c.l.b16 %v610
    %v3444 = vunpack.c.l.b16 %v611
    %v3445 = vunpack.c.l.b16 %v612
    %v3446 = vunpack.c.l.b16 %v613
    %v3447 = vunpack.c.l.b16 %v614
    %v3448 = vunpack.c.l.b16 %v615
    %v3449 = vunpack.c.l.b16 %v616
    %v3450 = vunpack.c.l.b16 %v617
    %v3451 = vunpack.c.l.b16 %v618
    %v3452 = vunpack.c.l.b16 %v619
    %v3453 = vunpack.c.l.b16 %v620
    %v3454 = vunpack.c.l.b16 %v621
    %v3455 = vunpack.c.l.b16 %v622
    %v3456 = vunpack.c.l.b16 %v623
    %v3457 = vunpack.c.l.b16 %v624
    %v3458 = vunpack.c.l.b16 %v625
    %v3459 = vunpack.c.l.b16 %v626
    %v3460 = vunpack.c.l.b16 %v627
    %v3461 = vunpack.c.l.b16 %v628
    %v3462 = vunpack.c.l.b16 %v629
    %v3463 = vunpack.c.l.b16 %v630
    %v3464 = vunpack.c.l.b16 %v631
    %v3465 = vunpack.c.l.b16 %v632
    %v3466 = vunpack.c.l.b16 %v633
    %v3467 = vunpack.c.l.b16 %v634
    %v3468 = vunpack.c.l.b16 %v635
    %v3469 = vunpack.c.l.b16 %v636
    %v3470 = vunpack.c.l.b16 %v637
    %v3471 = vunpack.c.l.b16 %v638
    %v3472 = vunpack.c.l.b16 %v639
    %v3473 = vunpack.c.l.b16 %v640
    %v3474 = vunpack.c.l.b16 %v641
    %v3475 = vunpack.c.l.b16 %v642
    %v3476 = vunpack.c.l.b16 %v643
    %v3477 = vunpack.c.l.b16 %v644
    %v3478 = vunpack.c.l.b16 %v645
    %v3479 = vunpack.c.l.b16 %v646
    %v3480 = vunpack.c.l.b16 %v647
    %v3481 = vunpack.c.l.b16 %v648
    %v3482 = vunpack.c.l.b16 %v649
    %v3483 = vunpack.c.l.b16 %v650
    %v3484 = vunpack.c.l.b16 %v651
    %v3485 = vunpack.c.l.b16 %v652
    %v3486 = vunpack.c.l.b16 %v653
    %v3487 = vunpack.c.l.b16 %v654
    %v3488 = vunpack.c.l.b16 %v655
    %v3489 = vunpack.c.l.b16 %v656
    %v3490 = vunpack.c.l.b16 %v657
    %v3491 = vunpack.c.l.b16 %v658
    %v3492 = vunpack.c.l.b16 %v659
    %v3493 = vunpack.c.l.b16 %v660
    %v3494 = vunpack.c.l.b16 %v661
    %v3495 = vunpack.c.l.b16 %v662
    %v3496 = vunpack.c.l.b16 %v663
    %v3497 = vunpack.c.l.b16 %v664
    %v3498 = vunpack.c.l.b16 %v665
    %v3499 = vunpack.c.l.b16 %v666
    %v3500 = vunpack.c.l.b16 %v667
    %v3501 = vunpack.c.l.b16 %v668
    %v3502 = vunpack.c.l.b16 %v669
    %v3503 = vunpack.c.l.b16 %v670
    %v3504 = vunpack.c.l.b16 %v671
    %v3505 = vunpack.c.l.b16 %v672
    %v3506 = vunpack.c.l.b16 %v673
    %v3507 = vunpack.c.l.b16 %v674
    %v3508 = vunpack.c.l.b16 %v675
    %v3509 = vunpack.c.l.b16 %v676
    %v3510 = vunpack.c.l.b16 %v677
    %v3511 = vunpack.c.l.b16 %v678
    %v3512 = vunpack.c.l.b16 %v679
    %v3513 = vunpack.c.l.b16 %v680
    %v3514 = vunpack.c.l.b16 %v681
    %v3515 = vunpack.c.l.b16 %v682
    %v3516 = vunpack.c.l.b16 %v683
    %v3517 = vunpack.c.l.b16 %v684
    %v3518 = vunpack.c.l.b16 %v685
    %v3519 = vunpack.c.l.b16 %v686
    %v3520 = vunpack.c.l.b16 %v687
    %v3521 = vunpack.c.l.b16 %v688
    %v3522 = vunpack.c.l.b16 %v689
    %v3523 = vunpack.c.l.b16 %v690
    %v3524 = vunpack.c.l.b16 %v691
    %v3525 = vunpack.c.l.b16 %v692
    %v3526 = vunpack.c.l.b16 %v693
    %v3527 = vunpack.c.l.b16 %v694
    %v3528 = vunpack.c.l.b16 %v695
    %v3529 = vunpack.c.l.b16 %v696
    %v3530 = vunpack.c.l.b16 %v697
    %v3531 = vunpack.c.l.b16 %v698
    %v3532 = vunpack.c.l.b16 %v699
    %v3533 = vunpack.c.l.b16 %v700
    %v3534 = vunpack.c.l.b16 %v701
    %v3535 = vunpack.c.l.b16 %v702
    %v3536 = vunpack.c.l.b16 %v703
    %v3537 = vunpack.c.l.b16 %v704
    %v3538 = vunpack.c.l.b16 %v705
    %v3539 = vunpack.c.l.b16 %v706
    %v3540 = vunpack.c.l.b16 %v707
    %v3541 = vunpack.c.l.b16 %v708
    %v3542 = vunpack.c.l.b16 %v709
    %v3543 = vunpack.c.l.b16 %v710
    %v3544 = vunpack.c.l.b16 %v711
    %v3545 = vunpack.c.l.b16 %v712
    %v3546 = vunpack.c.l.b16 %v713
    %v3547 = vunpack.c.l.b16 %v714
    %v3548 = vunpack.c.l.b16 %v715
    %v3549 = vunpack.c.l.b16 %v716
    %v3550 = vunpack.c.l.b16 %v717
    %v3551 = vunpack.c.l.b16 %v718
    %v3552 = vunpack.c.l.b16 %v719
    %v3553 = vunpack.c.l.b16 %v720
    %v3554 = vunpack.c.l.b16 %v721
    %v3555 = vunpack.c.l.b16 %v722
    %v3556 = vunpack.c.l.b16 %v723
    %v3557 = vunpack.c.l.b16 %v724
    %v3558 = vunpack.c.l.b16 %v725
    %v3559 = vunpack.c.l.b16 %v726
    %v3560 = vunpack.c.l.b16 %v727
    %v3561 = vunpack.c.l.b16 %v728
    %v3562 = vunpack.c.l.b16 %v729
    %v3563 = vunpack.c.l.b16 %v730
    %v3564 = vunpack.c.l.b16 %v731
    %v3565 = vunpack.c.l.b16 %v732
    %v3566 = vunpack.c.l.b16 %v733
    %v3567 = vunpack.c.l.b16 %v734
    %v3568 = vunpack.c.l.b16 %v735
    %v3569 = vunpack.c.l.b16 %v736
    %v3570 = vunpack.c.l.b16 %v737
    %v3571 = vunpack.c.l.b16 %v738
    %v3572 = vunpack.c.l.b16 %v739
    %v3573 = vunpack.c.l.b16 %v740
    %v3574 = vunpack.c.l.b16 %v741
    %v3575 = vunpack.c.l.b16 %v742
    %v3576 = vunpack.c.l.b16 %v743
    %v3577 = vunpack.c.l.b16 %v744
    %v3578 = vunpack.c.l.b16 %v745
    %v3579 = vunpack.c.l.b16 %v746
    %v3580 = vunpack.c.l.b16 %v747
    %v3581 = vunpack.c.l.b16 %v748
    %v3582 = vunpack.c.l.b16 %v749
    %v3583 = vunpack.c.l.b16 %v750
    %v3584 = vunpack.c.l.b16 %v751
    %v3585 = vunpack.c.l.b16 %v752
    %v3586 = vunpack.c.l.b16 %v753
    %v3587 = vunpack.c.l.b16 %v754
    %v3588 = vunpack.c.l.b16 %v755
    %v3589 = vunpack.c.l.b16 %v756
    %v3590 = vunpack.c.l.b16 %v757
    %v3591 = vunpack.c.l.b16 %v758
    %v3592 = vunpack.c.l.b16 %v759
    %v3593 = vunpack.c.l.b16 %v760
    %v3594 = vunpack.c.l.b16 %v761
    %v3595 = vunpack.c.l.b16 %v762
    %v3596 = vunpack.c.l.b16 %v763
    %v3597 = vunpack.c.l.b16 %v764
    %v3598 = vunpack.c.l.b16 %v765
    %v3599 = vunpack.c.l.b16 %v766
    %v3600 = vunpack.c.l.b16 %v767
    %v3601 = vunpack.c.l.b16 %v768
    %v3602 = vunpack.c.l.b16 %v769
    %v3603 = vunpack.c.l.b16 %v770
    %v3604 = vunpack.c.l.b16 %v771
    %v3605 = vunpack.c.l.b16 %v772
    %v3606 = vunpack.c.l.b16 %v773
    %v3607 = vunpack.c.l.b16 %v774
    %v3608 = vunpack.c.l.b16 %v775
    %v3609 = vunpack.c.l.b16 %v776
    %v3610 = vunpack.c.l.b16 %v777
    %v3611 = vunpack.c.l.b16 %v778
    %v3612 = vunpack.c.l.b16 %v779
    %v3613 = vunpack.c.l.b16 %v780
    %v3614 = vunpack.c.l.b16 %v781
    %v3615 = vunpack.c.l.b16 %v782
    %v3616 = vunpack.c.l.b16 %v783
    %v3617 = vunpack.c.l.b16 %v784
    %v3618 = vunpack.c.l.b16 %v785
    %v3619 = vunpack.c.l.b16 %v786
    %v3620 = vunpack.c.l.b16 %v787
    %v3621 = vunpack.c.l.b16 %v788
    %v3622 = vunpack.c.l.b16 %v789
    %v3623 = vunpack.c.l.b16 %v790
    %v3624 = vunpack.c.l.b16 %v791
    %v3625 = vunpack.c.l.b16 %v792
    %v3626 = vunpack.c.l.b16 %v793
    %v3627 = vunpack.c.l.b16 %v794
    %v3628 = vunpack.c.l.b16 %v795
    %v3629 = vunpack.c.l.b16 %v796
    %v3630 = vunpack.c.l.b16 %v797
    %v3631 = vunpack.c.l.b16 %v798
    %v3632 = vunpack.c.l.b16 %v799
    %v3633 = vunpack.c.l.b16 %v800
    %v3634 = vunpack.c.l.b16 %v801
    %v3635 = vunpack.c.l.b16 %v802
    %v3636 = vunpack.c.l.b16 %v803
    %v3637 = vunpack.c.l.b16 %v804
    %v3638 = vunpack.c.l.b16 %v805
    %v3639 = vunpack.c.l.b16 %v806
    %v3640 = vunpack.c.l.b16 %v807
    %v3641 = vunpack.c.l.b16 %v808
    %v3642 = vunpack.c.l.b16 %v809
    %v3643 = vunpack.c.l.b16 %v810
    %v3644 = vunpack.c.l.b16 %v811
    %v3645 = vunpack.c.l.b16 %v812
    %v3646 = vunpack.c.l.b16 %v813
    %v3647 = vunpack.c.l.b16 %v814
    %v3648 = vunpack.c.l.b16 %v815
    %v3649 = vunpack.c.l.b16 %v816
    %v3650 = vunpack.c.l.b16 %v817
    %v3651 = vunpack.c.l.b16 %v818
    %v3652 = vunpack.c.l.b16 %v819
    %v3653 = vunpack.c.l.b16 %v820
    %v3654 = vunpack.c.l.b16 %v821
    %v3655 = vunpack.c.l.b16 %v822
    %v3656 = vunpack.c.l.b16 %v823
    %v3657 = vunpack.c.l.b16 %v824
    %v3658 = vunpack.c.l.b16 %v825
    %v3659 = vunpack.c.l.b16 %v826
    %v3660 = vunpack.c.l.b16 %v827
    %v3661 = vunpack.c.l.b16 %v828
    %v3662 = vunpack.c.l.b16 %v829
    %v3663 = vunpack.c.l.b16 %v830
    %v3664 = vunpack.c.l.b16 %v831
    %v3665 = vunpack.c.l.b16 %v832
    %v3666 = vunpack.c.l.b16 %v833
    %v3667 = vunpack.c.l.b16 %v834
    %v3668 = vunpack.c.l.b16 %v835
    %v3669 = vunpack.c.l.b16 %v836
    %v3670 = vunpack.c.l.b16 %v837
    %v3671 = vunpack.c.l.b16 %v838
    %v3672 = vunpack.c.l.b16 %v839
    %v3673 = vunpack.c.l.b16 %v840
    %v3674 = vunpack.c.l.b16 %v841
    %v3675 = vunpack.c.l.b16 %v842
    %v3676 = vunpack.c.l.b16 %v843
    %v3677 = vunpack.c.l.b16 %v844
    %v3678 = vunpack.c.l.b16 %v845
    %v3679 = vunpack.c.l.b16 %v846
    %v3680 = vunpack.c.l.b16 %v847
    %v3681 = vunpack.c.l.b16 %v848
    %v3682 = vunpack.c.l.b16 %v849
    %v3683 = vunpack.c.l.b16 %v850
    %v3684 = vunpack.c.l.b16 %v851
    %v3685 = vunpack.c.l.b16 %v852
    %v3686 = vunpack.c.l.b16 %v853
    %v3687 = vunpack.c.l.b16 %v854
    %v3688 = vunpack.c.l.b16 %v855
    %v3689 = vunpack.c.l.b16 %v856
    %v3690 = vunpack.c.l.b16 %v857
    %v3691 = vunpack.c.l.b16 %v858
    %v3692 = vunpack.c.l.b16 %v859
    %v3693 = vunpack.c.l.b16 %v860
    %v3694 = vunpack.c.l.b16 %v861
    %v3695 = vunpack.c.l.b16 %v862
    %v3696 = vunpack.c.l.b16 %v863
    %v3697 = vunpack.c.l.b16 %v864
    %v3698 = vunpack.c.l.b16 %v865
    %v3699 = vunpack.c.l.b16 %v866
    %v3700 = vunpack.c.l.b16 %v867
    %v3701 = vunpack.c.l.b16 %v868
    %v3702 = vunpack.c.l.b16 %v869
    %v3703 = vunpack.c.l.b16 %v870
    %v3704 = vunpack.c.l.b16 %v871
    %v3705 = vunpack.c.l.b16 %v872
    %v3706 = vunpack.c.l.b16 %v873
    %v3707 = vunpack.c.l.b16 %v874
    %v3708 = vunpack.c.l.b16 %v875
    %v3709 = vunpack.c.l.b16 %v876
    %v3710 = vunpack.c.l.b16 %v877
    %v3711 = vunpack.c.l.b16 %v878
    %v3712 = vunpack.c.l.b16 %v879
    %v3713 = vunpack.c.l.b16 %v880
    %v3714 = vunpack.c.l.b16 %v881
    %v3715 = vunpack.c.l.b16 %v882
    %v3716 = vunpack.c.l.b16 %v883
    %v3717 = vunpack.c.l.b16 %v884
    %v3718 = vunpack.c.l.b16 %v885
    %v3719 = vunpack.c.l.b16 %v886
    %v3720 = vunpack.c.l.b16 %v887
    %v3721 = vunpack.c.l.b16 %v888
    %v3722 = vunpack.c.l.b16 %v889
    %v3723 = vunpack.c.l.b16 %v890
    %v3724 = vunpack.c.l.b16 %v891
    %v3725 = vunpack.c.l.b16 %v892
    %v3726 = vunpack.c.l.b16 %v893
    %v3727 = vunpack.c.l.b16 %v894
    %v3728 = vunpack.c.l.b16 %v895
    %v3729 = vunpack.c.l.b16 %v896
    %v3730 = vunpack.c.l.b16 %v897
    %v3731 = vunpack.c.l.b16 %v898
    %v3732 = vunpack.c.l.b16 %v899
    %v3733 = vunpack.c.l.b16 %v900
    %v3734 = vunpack.c.l.b16 %v901
    %v3735 = vunpack.c.l.b16 %v902
    %v3736 = vunpack.c.l.b16 %v903
    %v3737 = vunpack.c.l.b16 %v904
    %v3738 = vunpack.c.l.b16 %v905
    %v3739 = vunpack.c.l.b16 %v906
    %v3740 = vunpack.c.l.b16 %v907
    %v3741 = vunpack.c.l.b16 %v908
    %v3742 = vunpack.c.l.b16 %v909
    %v3743 = vunpack.c.l.b16 %v910
    %v3744 = vunpack.c.l.b16 %v911
    %v3745 = vunpack.c.l.b16 %v912
    %v3746 = vunpack.c.l.b16 %v913
    %v3747 = vunpack.c.l.b16 %v914
    %v3748 = vunpack.c.l.b16 %v915
    %v3749 = vunpack.c.l.b16 %v916
    %v3750 = vunpack.c.l.b16 %v917
    %v3751 = vunpack.c.l.b16 %v918
    %v3752 = vunpack.c.l.b16 %v919
    %v3753 = vunpack.c.l.b16 %v920
    %v3754 = vunpack.c.l.b16 %v921
    %v3755 = vunpack.c.l.b16 %v922
    %v3756 = vunpack.c.l.b16 %v923
    %v3757 = vunpack.c.l.b16 %v924
    %v3758 = vunpack.c.l.b16 %v925
    %v3759 = vunpack.c.l.b16 %v926
    %v3760 = vunpack.c.l.b16 %v927
    %v3761 = vunpack.c.l.b16 %v928
    %v3762 = vunpack.c.l.b16 %v929
    %v3763 = vunpack.c.l.b16 %v930
    %v3764 = vunpack.c.l.b16 %v931
    %v3765 = vunpack.c.l.b16 %v932
    %v3766 = vunpack.c.l.b16 %v933
    %v3767 = vunpack.c.l.b16 %v934
    %v3768 = vunpack.c.l.b16 %v935
    %v3769 = vunpack.c.l.b16 %v936
    %v3770 = vunpack.c.l.b16 %v937
    %v3771 = vunpack.c.l.b16 %v938
    %v3772 = vunpack.c.l.b16 %v939
    %v3773 = vunpack.c.l.b16 %v940
    %v3774 = vunpack.c.l.b16 %v941
    %v3775 = vunpack.c.l.b16 %v942
    %v3776 = vunpack.c.l.b16 %v943
    %v3777 = vunpack.c.l.b16 %v944
    %v3778 = vunpack.c.l.b16 %v945
    %v3779 = vunpack.c.l.b16 %v946
    %v3780 = vunpack.c.l.b16 %v947
    %v3781 = vunpack.c.l.b16 %v948
    %v3782 = vunpack.c.l.b16 %v949
    %v3783 = vunpack.c.l.b16 %v950
    %v3784 = vunpack.c.l.b16 %v951
    %v3785 = vunpack.c.l.b16 %v952
    %v3786 = vunpack.c.l.b16 %v953
    %v3787 = vunpack.c.l.b16 %v954
    %v3788 = vunpack.c.l.b16 %v955
    %v3789 = vunpack.c.l.b16 %v956
    %v3790 = vunpack.c.l.b16 %v957
    %v3791 = vunpack.c.l.b16 %v958
    %v3792 = vunpack.c.l.b16 %v959
    %v3793 = vunpack.c.l.b16 %v960
    %v3794 = vunpack.c.l.b16 %v961
    %v3795 = vunpack.c.l.b16 %v962
    %v3796 = vunpack.c.l.b16 %v963
    %v3797 = vunpack.c.l.b16 %v964
    %v3798 = vunpack.c.l.b16 %v965
    %v3799 = vunpack.c.l.b16 %v966
    %v3800 = vunpack.c.l.b16 %v967
    %v3801 = vunpack.c.l.b16 %v968
    %v3802 = vunpack.c.l.b16 %v969
    %v3803 = vunpack.c.l.b16 %v970
    %v3804 = vunpack.c.l.b16 %v971
    %v3805 = vunpack.c.l.b16 %v972
    %v3806 = vunpack.c.l.b16 %v973
    %v3807 = vunpack.c.l.b16 %v974
    %v3808 = vunpack.c.l.b16 %v975
    %v3809 = vunpack.c.l.b16 %v976
    %v3810 = vunpack.c.l.b16 %v977
    %v3811 = vunpack.c.l.b16 %v978
    %v3812 = vunpack.c.l.b16 %v979
    %v3813 = vunpack.c.l.b16 %v980
    %v3814 = vunpack.c.l.b16 %v981
    %v3815 = vunpack.c.l.b16 %v982
    %v3816 = vunpack.c.l.b16 %v983
    %v3817 = vunpack.c.l.b16 %v984
    %v3818 = vunpack.c.l.b16 %v985
    %v3819 = vunpack.c.l.b16 %v986
    %v3820 = vunpack.c.l.b16 %v987
    %v3821 = vunpack.c.l.b16 %v988
    %v3822 = vunpack.c.l.b16 %v989
    %v3823 = vunpack.c.l.b16 %v990
    %v3824 = vunpack.c.l.b16 %v991
    %v3825 = vunpack.c.l.b16 %v992
    %v3826 = vunpack.c.l.b16 %v993
    %v3827 = vunpack.c.l.b16 %v994
    %v3828 = vunpack.c.l.b16 %v995
    %v3829 = vunpack.c.l.b16 %v996
    %v3830 = vunpack.c.l.b16 %v997
    %v3831 = vunpack.c.l.b16 %v998
    %v3832 = vunpack.c.l.b16 %v999
    %v3833 = vunpack.c.l.b16 %v1000
    %v3834 = vunpack.c.l.b16 %v1001
    %v3835 = vunpack.c.l.b16 %v1002
    %v3836 = vunpack.c.l.b16 %v1003
    %v3837 = vunpack.c.l.b16 %v1004
    %v3838 = vunpack.c.l.b16 %v1005
    %v3839 = vunpack.c.l.b16 %v1006
    %v3840 = vunpack.c.l.b16 %v1007
    %v3841 = vunpack.c.l.b16 %v1008
    %v3842 = vunpack.c.l.b16 %v1009
    %v3843 = vunpack.c.l.b16 %v1010
    %v3844 = vunpack.c.l.b16 %v1011
    %v3845 = vunpack.c.l.b16 %v1012
    %v3846 = vunpack.c.l.b16 %v1013
    %v3847 = vunpack.c.l.b16 %v1014
    %v3848 = vunpack.c.l.b16 %v1015
    %v3849 = vunpack.c.l.b16 %v1016
    %v3850 = vunpack.c.l.b16 %v1017
    %v3851 = vunpack.c.l.b16 %v1018
    %v3852 = vunpack.c.l.b16 %v1019
    %v3853 = vunpack.c.l.b16 %v1020
    %v3854 = vunpack.c.l.b16 %v1021
    %v3855 = vunpack.c.l.b16 %v1022
    %v3856 = vunpack.c.l.b16 %v1023
    %v3857 = vunpack.c.l.b16 %v1024
    %v3858 = vunpack.c.l.b16 %v1025
    %v3859 = vunpack.c.l.b16 %v1026
    %v3860 = vunpack.c.l.b16 %v1027
    %v3861 = vunpack.c.l.b16 %v1028
    %v3862 = vunpack.c.l.b16 %v1029
    %v3863 = vunpack.c.l.b16 %v1030
    %v3864 = vunpack.c.l.b16 %v1031
    %v3865 = vunpack.c.l.b16 %v1032
    %v3866 = vunpack.c.l.b16 %v1033
    %v3867 = vunpack.c.l.b16 %v1034
    %v3868 = vunpack.c.l.b16 %v1035
    %v3869 = vunpack.c.l.b16 %v1036
    %v3870 = vunpack.c.l.b16 %v1037
    %v3871 = vunpack.c.l.b16 %v1038
    %v3872 = vunpack.c.l.b16 %v1039
    %v3873 = vunpack.c.l.b16 %v1040
    %v3874 = vunpack.c.l.b16 %v1041
    %v3875 = vunpack.c.l.b16 %v1042
    %v3876 = vunpack.c.l.b16 %v1043
    %v3877 = vunpack.c.l.b16 %v1044
    %v3878 = vunpack.c.l.b16 %v1045
    %v3879 = vunpack.c.l.b16 %v1046
    %v3880 = vunpack.c.l.b16 %v1047
    %v3881 = vunpack.c.l.b16 %v1048
    %v3882 = vunpack.c.l.b16 %v1049
    %v3883 = vunpack.c.l.b16 %v1050
    %v3884 = vunpack.c.l.b16 %v1051
    %v3885 = vunpack.c.l.b16 %v1052
    %v3886 = vunpack.c.l.b16 %v1053
    %v3887 = vunpack.c.l.b16 %v1054
    %v3888 = vunpack.c.l.b16 %v1055
    %v3889 = vunpack.c.l.b16 %v1056
    %v3890 = vunpack.c.l.b16 %v1057
    %v3891 = vunpack.c.l.b16 %v1058
    %v3892 = vunpack.c.l.b16 %v1059
    %v3893 = vunpack.c.l.b16 %v1060
    %v3894 = vunpack.c.l.b16 %v1061
    %v3895 = vunpack.c.l.b16 %v1062
    %v3896 = vunpack.c.l.b16 %v1063
    %v3897 = vunpack.c.l.b16 %v1064
    %v3898 = vunpack.c.l.b16 %v1065
    %v3899 = vunpack.c.l.b16 %v1066
    %v3900 = vunpack.c.l.b16 %v1067
    %v3901 = vunpack.c.l.b16 %v1068
    %v3902 = vunpack.c.l.b16 %v1069
    %v3903 = vunpack.c.l.b16 %v1070
    %v3904 = vunpack.c.l.b16 %v1071
    %v3905 = vunpack.c.l.b16 %v1072
    %v3906 = vunpack.c.l.b16 %v1073
    %v3907 = vunpack.c.l.b16 %v1074
    %v3908 = vunpack.c.l.b16 %v1075
    %v3909 = vunpack.c.l.b16 %v1076
    %v3910 = vunpack.c.l.b16 %v1077
    %v3911 = vunpack.c.l.b16 %v1078
    %v3912 = vunpack.c.l.b16 %v1079
    %v3913 = vunpack.c.l.b16 %v1080
    %v3914 = vunpack.c.l.b16 %v1081
    %v3915 = vunpack.c.l.b16 %v1082
    %v3916 = vunpack.c.l.b16 %v1083
    %v3917 = vunpack.c.l.b16 %v1084
    %v3918 = vunpack.c.l.b16 %v1085
    %v3919 = vunpack.c.l.b16 %v1086
    %v3920 = vunpack.c.l.b16 %v1087
    %v3921 = vunpack.c.l.b16 %v1088
    %v3922 = vunpack.c.l.b16 %v1089
    %v3923 = vunpack.c.l.b16 %v1090
    %v3924 = vunpack.c.l.b16 %v1091
    %v3925 = vunpack.c.l.b16 %v1092
    %v3926 = vunpack.c.l.b16 %v1093
    %v3927 = vunpack.c.l.b16 %v1094
    %v3928 = vunpack.c.l.b16 %v1095
    %v3929 = vunpack.c.l.b16 %v1096
    %v3930 = vunpack.c.l.b16 %v1097
    %v3931 = vunpack.c.l.b16 %v1098
    %v3932 = vunpack.c.l.b16 %v1099
    %v3933 = vunpack.c.l.b16 %v1100
    %v3934 = vunpack.c.l.b16 %v1101
    %v3935 = vunpack.c.l.b16 %v1102
    %v3936 = vunpack.c.l.b16 %v1103
    %v3937 = vunpack.c.l.b16 %v1104
    %v3938 = vunpack.c.l.b16 %v1105
    %v3939 = vunpack.c.l.b16 %v1106
    %v3940 = vunpack.c.l.b16 %v1107
    %v3941 = vunpack.c.l.b16 %v1108
    %v3942 = vunpack.c.l.b16 %v1109
    %v3943 = vunpack.c.l.b16 %v1110
    %v3944 = vunpack.c.l.b16 %v1111
    %v3945 = vunpack.c.l.b16 %v1112
    %v3946 = vunpack.c.l.b16 %v1113
    %v3947 = vunpack.c.l.b16 %v1114
    %v3948 = vunpack.c.l.b16 %v1115
    %v3949 = vunpack.c.l.b16 %v1116
    %v3950 = vunpack.c.l.b16 %v1117
    %v3951 = vunpack.c.l.b16 %v1118
    %v3952 = vunpack.c.l.b16 %v1119
    %v3953 = vunpack.c.l.b16 %v1120
    %v3954 = vunpack.c.l.b16 %v1121
    %v3955 = vunpack.c.l.b16 %v1122
    %v3956 = vunpack.c.l.b16 %v1123
    %v3957 = vunpack.c.l.b16 %v1124
    %v3958 = vunpack.c.l.b16 %v1125
    %v3959 = vunpack.c.l.b16 %v1126
    %v3960 = vunpack.c.l.b16 %v1127
    %v3961 = vunpack.c.l.b16 %v1128
    %v3962 = vunpack.c.l.b16 %v1129
    %v3963 = vunpack.c.l.b16 %v1130
    %v3964 = vunpack.c.l.b16 %v1131
    %v3965 = vunpack.c.l.b16 %v1132
    %v3966 = vunpack.c.l.b16 %v1133
    %v3967 = vunpack.c.l.b16 %v1134
    %v3968 = vunpack.c.l.b16 %v1135
    %v3969 = vunpack.c.l.b16 %v1136
    %v3970 = vunpack.c.l.b16 %v1137
    %v3971 = vunpack.c.l.b16 %v1138
    %v3972 = vunpack.c.l.b16 %v1139
    %v3973 = vunpack.c.l.b16 %v1140
    %v3974 = vunpack.c.l.b16 %v1141
    %v3975 = vunpack.c.l.b16 %v1142
    %v3976 = vunpack.c.l.b16 %v1143
    %v3977 = vunpack.c.l.b16 %v1144
    %v3978 = vunpack.c.l.b16 %v1145
    %v3979 = vunpack.c.l.b16 %v1146
    %v3980 = vunpack.c.l.b16 %v1147
    %v3981 = vunpack.c.l.b16 %v1148
    %v3982 = vunpack.c.l.b16 %v1149
    %v3983 = vunpack.c.l.b16 %v1150
    %v3984 = vunpack.c.l.b16 %v1151
    %v3985 = vunpack.c.l.b16 %v1152
    %v3986 = vunpack.c.l.b16 %v1153
    %v3987 = vunpack.c.l.b16 %v1154
    %v3988 = vunpack.c.l.b16 %v1155
    %v3989 = vunpack.c.l.b16 %v1156
    %v3990 = vunpack.c.l.b16 %v1157
    %v3991 = vunpack.c.l.b16 %v1158
    %v3992 = vunpack.c.l.b16 %v1159
    %v3993 = vunpack.c.l.b16 %v1160
    %v3994 = vunpack.c.l.b16 %v1161
    %v3995 = vunpack.c.l.b16 %v1162
    %v3996 = vunpack.c.l.b16 %v1163
    %v3997 = vunpack.c.l.b16 %v1164
    %v3998 = vunpack.c.l.b16 %v1165
    %v3999 = vunpack.c.l.b16 %v1166
    %v4000 = vunpack.c.l.b16 %v1167
    %v4001 = vunpack.c.l.b16 %v1168
    %v4002 = vunpack.c.l.b16 %v1169
    %v4003 = vunpack.c.l.b16 %v1170
    %v4004 = vunpack.c.l.b16 %v1171
    %v4005 = vunpack.c.l.b16 %v1172
    %v4006 = vunpack.c.l.b16 %v1173
    %v4007 = vunpack.c.l.b16 %v1174
    %v4008 = vunpack.c.l.b16 %v1175
    %v4009 = vunpack.c.l.b16 %v1176
    %v4010 = vpack.c.b16 %v2859, %v2858
    %v4011 = vpack.c.b16 %v2861, %v2860
    %v4012 = vpack.c.b16 %v2863, %v2862
    %v4013 = vpack.c.b16 %v2865, %v2864
    %v4014 = vpack.c.b16 %v2867, %v2866
    %v4015 = vpack.c.b16 %v2869, %v2868
    %v4016 = vpack.c.b16 %v2871, %v2870
    %v4017 = vpack.c.b16 %v2873, %v2872
    %v4018 = vpack.c.b16 %v2875, %v2874
    %v4019 = vpack.c.b16 %v2877, %v2876
    %v4020 = vpack.c.b16 %v2879, %v2878
    %v4021 = vpack.c.b16 %v2881, %v2880
    %v4022 = vpack.c.b16 %v2883, %v2882
    %v4023 = vpack.c.b16 %v2885, %v2884
    %v4024 = vpack.c.b16 %v2887, %v2886
    %v4025 = vpack.c.b16 %v2889, %v2888
    %v4026 = vpack.c.b16 %v2891, %v2890
    %v4027 = vpack.c.b16 %v2893, %v2892
    %v4028 = vpack.c.b16 %v2895, %v2894
    %v4029 = vpack.c.b16 %v2897, %v2896
    %v4030 = vpack.c.b16 %v2899, %v2898
    %v4031 = vpack.c.b16 %v2901, %v2900
    %v4032 = vpack.c.b16 %v2903, %v2902
    %v4033 = vpack.c.b16 %v2905, %v2904
    %v4034 = vpack.c.b16 %v2907, %v2906
    %v4035 = vpack.c.b16 %v2909, %v2908
    %v4036 = vpack.c.b16 %v2911, %v2910
    %v4037 = vpack.c.b16 %v2913, %v2912
    %v4038 = vpack.c.b16 %v2915, %v2914
    %v4039 = vpack.c.b16 %v2917, %v2916
    %v4040 = vpack.c.b16 %v2919, %v2918
    %v4041 = vpack.c.b16 %v2921, %v2920
    %v4042 = vpack.c.b16 %v2923, %v2922
    %v4043 = vpack.c.b16 %v2925, %v2924
    %v4044 = vpack.c.b16 %v2927, %v2926
    %v4045 = vpack.c.b16 %v2929, %v2928
    %v4046 = vpack.c.b16 %v2931, %v2930
    %v4047 = vpack.c.b16 %v2933, %v2932
    %v4048 = vpack.c.b16 %v2935, %v2934
    %v4049 = vpack.c.b16 %v2937, %v2936
    %v4050 = vpack.c.b16 %v2939, %v2938
    %v4051 = vpack.c.b16 %v2941, %v2940
    %v4052 = vpack.c.b16 %v2943, %v2942
    %v4053 = vpack.c.b16 %v2945, %v2944
    %v4054 = vpack.c.b16 %v2947, %v2946
    %v4055 = vpack.c.b16 %v2949, %v2948
    %v4056 = vpack.c.b16 %v2951, %v2950
    %v4057 = vpack.c.b16 %v2953, %v2952
    %v4058 = vpack.c.b16 %v2955, %v2954
    %v4059 = vpack.c.b16 %v2957, %v2956
    %v4060 = vpack.c.b16 %v2959, %v2958
    %v4061 = vpack.c.b16 %v2961, %v2960
    %v4062 = vpack.c.b16 %v2963, %v2962
    %v4063 = vpack.c.b16 %v2965, %v2964
    %v4064 = vpack.c.b16 %v2967, %v2966
    %v4065 = vpack.c.b16 %v2969, %v2968
    %v4066 = vpack.c.b16 %v2971, %v2970
    %v4067 = vpack.c.b16 %v2973, %v2972
    %v4068 = vpack.c.b16 %v2975, %v2974
    %v4069 = vpack.c.b16 %v2977, %v2976
    %v4070 = vpack.c.b16 %v2979, %v2978
    %v4071 = vpack.c.b16 %v2981, %v2980
    %v4072 = vpack.c.b16 %v2983, %v2982
    %v4073 = vpack.c.b16 %v2985, %v2984
    %v4074 = vpack.c.b16 %v2987, %v2986
    %v4075 = vpack.c.b16 %v2989, %v2988
    %v4076 = vpack.c.b16 %v2991, %v2990
    %v4077 = vpack.c.b16 %v2993, %v2992
    %v4078 = vpack.c.b16 %v2995, %v2994
    %v4079 = vpack.c.b16 %v2997, %v2996
    %v4080 = vpack.c.b16 %v2999, %v2998
    %v4081 = vpack.c.b16 %v3001, %v3000
    %v4082 = vpack.c.b16 %v3003, %v3002
    %v4083 = vpack.c.b16 %v3005, %v3004
    %v4084 = vpack.c.b16 %v3007, %v3006
    %v4085 = vpack.c.b16 %v3009, %v3008
    %v4086 = vpack.c.b16 %v3011, %v3010
    %v4087 = vpack.c.b16 %v3013, %v3012
    %v4088 = vpack.c.b16 %v3015, %v3014
    %v4089 = vpack.c.b16 %v3017, %v3016
    %v4090 = vpack.c.b16 %v3019, %v3018
    %v4091 = vpack.c.b16 %v3021, %v3020
    %v4092 = vpack.c.b16 %v3023, %v3022
    %v4093 = vpack.c.b16 %v3025, %v3024
    %v4094 = vpack.c.b16 %v3027, %v3026
    %v4095 = vpack.c.b16 %v3029, %v3028
    %v4096 = vpack.c.b16 %v3031, %v3030
    %v4097 = vpack.c.b16 %v3033, %v3032
    %v4098 = vpack.c.b16 %v3035, %v3034
    %v4099 = vpack.c.b16 %v3037, %v3036
    %v4100 = vpack.c.b16 %v3039, %v3038
    %v4101 = vpack.c.b16 %v3041, %v3040
    %v4102 = vpack.c.b16 %v3043, %v3042
    %v4103 = vpack.c.b16 %v3045, %v3044
    %v4104 = vpack.c.b16 %v3047, %v3046
    %v4105 = vpack.c.b16 %v3049, %v3048
    %v4106 = vpack.c.b16 %v3051, %v3050
    %v4107 = vpack.c.b16 %v3053, %v3052
    %v4108 = vpack.c.b16 %v3055, %v3054
    %v4109 = vpack.c.b16 %v3057, %v3056
    %v4110 = vpack.c.b16 %v3059, %v3058
    %v4111 = vpack.c.b16 %v3061, %v3060
    %v4112 = vpack.c.b16 %v3063, %v3062
    %v4113 = vpack.c.b16 %v3065, %v3064
    %v4114 = vpack.c.b16 %v3067, %v3066
    %v4115 = vpack.c.b16 %v3069, %v3068
    %v4116 = vpack.c.b16 %v3071, %v3070
    %v4117 = vpack.c.b16 %v3073, %v3072
    %v4118 = vpack.c.b16 %v3075, %v3074
    %v4119 = vpack.c.b16 %v3077, %v3076
    %v4120 = vpack.c.b16 %v3079, %v3078
    %v4121 = vpack.c.b16 %v3081, %v3080
    %v4122 = vpack.c.b16 %v3083, %v3082
    %v4123 = vpack.c.b16 %v3085, %v3084
    %v4124 = vpack.c.b16 %v3087, %v3086
    %v4125 = vpack.c.b16 %v3089, %v3088
    %v4126 = vpack.c.b16 %v3091, %v3090
    %v4127 = vpack.c.b16 %v3093, %v3092
    %v4128 = vpack.c.b16 %v3095, %v3094
    %v4129 = vpack.c.b16 %v3097, %v3096
    %v4130 = vpack.c.b16 %v3099, %v3098
    %v4131 = vpack.c.b16 %v3101, %v3100
    %v4132 = vpack.c.b16 %v3103, %v3102
    %v4133 = vpack.c.b16 %v3105, %v3104
    %v4134 = vpack.c.b16 %v3107, %v3106
    %v4135 = vpack.c.b16 %v3109, %v3108
    %v4136 = vpack.c.b16 %v3111, %v3110
    %v4137 = vpack.c.b16 %v3113, %v3112
    %v4138 = vpack.c.b16 %v3115, %v3114
    %v4139 = vpack.c.b16 %v3117, %v3116
    %v4140 = vpack.c.b16 %v3119, %v3118
    %v4141 = vpack.c.b16 %v3121, %v3120
    %v4142 = vpack.c.b16 %v3123, %v3122
    %v4143 = vpack.c.b16 %v3125, %v3124
    %v4144 = vpack.c.b16 %v3127, %v3126
    %v4145 = vpack.c.b16 %v3129, %v3128
    %v4146 = vpack.c.b16 %v3131, %v3130
    %v4147 = vpack.c.b16 %v3133, %v3132
    %v4148 = vpack.c.b16 %v3135, %v3134
    %v4149 = vpack.c.b16 %v3137, %v3136
    %v4150 = vpack.c.b16 %v3139, %v3138
    %v4151 = vpack.c.b16 %v3141, %v3140
    %v4152 = vpack.c.b16 %v3143, %v3142
    %v4153 = vpack.c.b16 %v3145, %v3144
    %v4154 = vpack.c.b16 %v3147, %v3146
    %v4155 = vpack.c.b16 %v3149, %v3148
    %v4156 = vpack.c.b16 %v3151, %v3150
    %v4157 = vpack.c.b16 %v3153, %v3152
    %v4158 = vpack.c.b16 %v3155, %v3154
    %v4159 = vpack.c.b16 %v3157, %v3156
    %v4160 = vpack.c.b16 %v3159, %v3158
    %v4161 = vpack.c.b16 %v3161, %v3160
    %v4162 = vpack.c.b16 %v3163, %v3162
    %v4163 = vpack.c.b16 %v3165, %v3164
    %v4164 = vpack.c.b16 %v3167, %v3166
    %v4165 = vpack.c.b16 %v3169, %v3168
    %v4166 = vpack.c.b16 %v3171, %v3170
    %v4167 = vpack.c.b16 %v3173, %v3172
    %v4168 = vpack.c.b16 %v3175, %v3174
    %v4169 = vpack.c.b16 %v3177, %v3176
    %v4170 = vpack.c.b16 %v3179, %v3178
    %v4171 = vpack.c.b16 %v3181, %v3180
    %v4172 = vpack.c.b16 %v3183, %v3182
    %v4173 = vpack.c.b16 %v3185, %v3184
    %v4174 = vpack.c.b16 %v3187, %v3186
    %v4175 = vpack.c.b16 %v3189, %v3188
    %v4176 = vpack.c.b16 %v3191, %v3190
    %v4177 = vpack.c.b16 %v3193, %v3192
    %v4178 = vpack.c.b16 %v3195, %v3194
    %v4179 = vpack.c.b16 %v3197, %v3196
    %v4180 = vpack.c.b16 %v3199, %v3198
    %v4181 = vpack.c.b16 %v3201, %v3200
    %v4182 = vpack.c.b16 %v3203, %v3202
    %v4183 = vpack.c.b16 %v3205, %v3204
    %v4184 = vpack.c.b16 %v3207, %v3206
    %v4185 = vpack.c.b16 %v3209, %v3208
    %v4186 = vpack.c.b16 %v3211, %v3210
    %v4187 = vpack.c.b16 %v3213, %v3212
    %v4188 = vpack.c.b16 %v3215, %v3214
    %v4189 = vpack.c.b16 %v3217, %v3216
    %v4190 = vpack.c.b16 %v3219, %v3218
    %v4191 = vpack.c.b16 %v3221, %v3220
    %v4192 = vpack.c.b16 %v3223, %v3222
    %v4193 = vpack.c.b16 %v3225, %v3224
    %v4194 = vpack.c.b16 %v3227, %v3226
    %v4195 = vpack.c.b16 %v3229, %v3228
    %v4196 = vpack.c.b16 %v3231, %v3230
    %v4197 = vpack.c.b16 %v3233, %v3232
    %v4198 = vpack.c.b16 %v3235, %v3234
    %v4199 = vpack.c.b16 %v3237, %v3236
    %v4200 = vpack.c.b16 %v3239, %v3238
    %v4201 = vpack.c.b16 %v3241, %v3240
    %v4202 = vpack.c.b16 %v3243, %v3242
    %v4203 = vpack.c.b16 %v3245, %v3244
    %v4204 = vpack.c.b16 %v3247, %v3246
    %v4205 = vpack.c.b16 %v3249, %v3248
    %v4206 = vpack.c.b16 %v3251, %v3250
    %v4207 = vpack.c.b16 %v3253, %v3252
    %v4208 = vpack.c.b16 %v3255, %v3254
    %v4209 = vpack.c.b16 %v3257, %v3256
    %v4210 = vpack.c.b16 %v3259, %v3258
    %v4211 = vpack.c.b16 %v3261, %v3260
    %v4212 = vpack.c.b16 %v3263, %v3262
    %v4213 = vpack.c.b16 %v3265, %v3264
    %v4214 = vpack.c.b16 %v3267, %v3266
    %v4215 = vpack.c.b16 %v3269, %v3268
    %v4216 = vpack.c.b16 %v3271, %v3270
    %v4217 = vpack.c.b16 %v3273, %v3272
    %v4218 = vpack.c.b16 %v3275, %v3274
    %v4219 = vpack.c.b16 %v3277, %v3276
    %v4220 = vpack.c.b16 %v3279, %v3278
    %v4221 = vpack.c.b16 %v3281, %v3280
    %v4222 = vpack.c.b16 %v3283, %v3282
    %v4223 = vpack.c.b16 %v3285, %v3284
    %v4224 = vpack.c.b16 %v3287, %v3286
    %v4225 = vpack.c.b16 %v3289, %v3288
    %v4226 = vpack.c.b16 %v3291, %v3290
    %v4227 = vpack.c.b16 %v3293, %v3292
    %v4228 = vpack.c.b16 %v3295, %v3294
    %v4229 = vpack.c.b16 %v3297, %v3296
    %v4230 = vpack.c.b16 %v3299, %v3298
    %v4231 = vpack.c.b16 %v3301, %v3300
    %v4232 = vpack.c.b16 %v3303, %v3302
    %v4233 = vpack.c.b16 %v3305, %v3304
    %v4234 = vpack.c.b16 %v3307, %v3306
    %v4235 = vpack.c.b16 %v3309, %v3308
    %v4236 = vpack.c.b16 %v3311, %v3310
    %v4237 = vpack.c.b16 %v3313, %v3312
    %v4238 = vpack.c.b16 %v3315, %v3314
    %v4239 = vpack.c.b16 %v3317, %v3316
    %v4240 = vpack.c.b16 %v3319, %v3318
    %v4241 = vpack.c.b16 %v3321, %v3320
    %v4242 = vpack.c.b16 %v3323, %v3322
    %v4243 = vpack.c.b16 %v3325, %v3324
    %v4244 = vpack.c.b16 %v3327, %v3326
    %v4245 = vpack.c.b16 %v3329, %v3328
    %v4246 = vpack.c.b16 %v3331, %v3330
    %v4247 = vpack.c.b16 %v3333, %v3332
    %v4248 = vpack.c.b16 %v3335, %v3334
    %v4249 = vpack.c.b16 %v3337, %v3336
    %v4250 = vpack.c.b16 %v3339, %v3338
    %v4251 = vpack.c.b16 %v3341, %v3340
    %v4252 = vpack.c.b16 %v3343, %v3342
    %v4253 = vpack.c.b16 %v3345, %v3344
    %v4254 = vpack.c.b16 %v3347, %v3346
    %v4255 = vpack.c.b16 %v3349, %v3348
    %v4256 = vpack.c.b16 %v3351, %v3350
    %v4257 = vpack.c.b16 %v3353, %v3352
    %v4258 = vpack.c.b16 %v3355, %v3354
    %v4259 = vpack.c.b16 %v3357, %v3356
    %v4260 = vpack.c.b16 %v3359, %v3358
    %v4261 = vpack.c.b16 %v3361, %v3360
    %v4262 = vpack.c.b16 %v3363, %v3362
    %v4263 = vpack.c.b16 %v3365, %v3364
    %v4264 = vpack.c.b16 %v3367, %v3366
    %v4265 = vpack.c.b16 %v3369, %v3368
    %v4266 = vpack.c.b16 %v3371, %v3370
    %v4267 = vpack.c.b16 %v3373, %v3372
    %v4268 = vpack.c.b16 %v3375, %v3374
    %v4269 = vpack.c.b16 %v3377, %v3376
    %v4270 = vpack.c.b16 %v3379, %v3378
    %v4271 = vpack.c.b16 %v3381, %v3380
    %v4272 = vpack.c.b16 %v3383, %v3382
    %v4273 = vpack.c.b16 %v3385, %v3384
    %v4274 = vpack.c.b16 %v3387, %v3386
    %v4275 = vpack.c.b16 %v3389, %v3388
    %v4276 = vpack.c.b16 %v3391, %v3390
    %v4277 = vpack.c.b16 %v3393, %v3392
    %v4278 = vpack.c.b16 %v3395, %v3394
    %v4279 = vpack.c.b16 %v3397, %v3396
    %v4280 = vpack.c.b16 %v3399, %v3398
    %v4281 = vpack.c.b16 %v3401, %v3400
    %v4282 = vpack.c.b16 %v3403, %v3402
    %v4283 = vpack.c.b16 %v3405, %v3404
    %v4284 = vpack.c.b16 %v3407, %v3406
    %v4285 = vpack.c.b16 %v3409, %v3408
    %v4286 = vpack.c.b16 %v3411, %v3410
    %v4287 = vpack.c.b16 %v3413, %v3412
    %v4288 = vpack.c.b16 %v3415, %v3414
    %v4289 = vpack.c.b16 %v3417, %v3416
    %v4290 = vpack.c.b16 %v3419, %v3418
    %v4291 = vpack.c.b16 %v3421, %v3420
    %v4292 = vpack.c.b16 %v3423, %v3422
    %v4293 = vpack.c.b16 %v3425, %v3424
    %v4294 = vpack.c.b16 %v3427, %v3426
    %v4295 = vpack.c.b16 %v3429, %v3428
    %v4296 = vpack.c.b16 %v3431, %v3430
    %v4297 = vpack.c.b16 %v3433, %v3432
    %v4298 = vpack.c.b16 %v3435, %v3434
    %v4299 = vpack.c.b16 %v3437, %v3436
    %v4300 = vpack.c.b16 %v3439, %v3438
    %v4301 = vpack.c.b16 %v3441, %v3440
    %v4302 = vpack.c.b16 %v3443, %v3442
    %v4303 = vpack.c.b16 %v3445, %v3444
    %v4304 = vpack.c.b16 %v3447, %v3446
    %v4305 = vpack.c.b16 %v3449, %v3448
    %v4306 = vpack.c.b16 %v3451, %v3450
    %v4307 = vpack.c.b16 %v3453, %v3452
    %v4308 = vpack.c.b16 %v3455, %v3454
    %v4309 = vpack.c.b16 %v3457, %v3456
    %v4310 = vpack.c.b16 %v3459, %v3458
    %v4311 = vpack.c.b16 %v3461, %v3460
    %v4312 = vpack.c.b16 %v3463, %v3462
    %v4313 = vpack.c.b16 %v3465, %v3464
    %v4314 = vpack.c.b16 %v3467, %v3466
    %v4315 = vpack.c.b16 %v3469, %v3468
    %v4316 = vpack.c.b16 %v3471, %v3470
    %v4317 = vpack.c.b16 %v3473, %v3472
    %v4318 = vpack.c.b16 %v3475, %v3474
    %v4319 = vpack.c.b16 %v3477, %v3476
    %v4320 = vpack.c.b16 %v3479, %v3478
    %v4321 = vpack.c.b16 %v3481, %v3480
    %v4322 = vpack.c.b16 %v3483, %v3482
    %v4323 = vpack.c.b16 %v3485, %v3484
    %v4324 = vpack.c.b16 %v3487, %v3486
    %v4325 = vpack.c.b16 %v3489, %v3488
    %v4326 = vpack.c.b16 %v3491, %v3490
    %v4327 = vpack.c.b16 %v3493, %v3492
    %v4328 = vpack.c.b16 %v3495, %v3494
    %v4329 = vpack.c.b16 %v3497, %v3496
    %v4330 = vpack.c.b16 %v3499, %v3498
    %v4331 = vpack.c.b16 %v3501, %v3500
    %v4332 = vpack.c.b16 %v3503, %v3502
    %v4333 = vpack.c.b16 %v3505, %v3504
    %v4334 = vpack.c.b16 %v3507, %v3506
    %v4335 = vpack.c.b16 %v3509, %v3508
    %v4336 = vpack.c.b16 %v3511, %v3510
    %v4337 = vpack.c.b16 %v3513, %v3512
    %v4338 = vpack.c.b16 %v3515, %v3514
    %v4339 = vpack.c.b16 %v3517, %v3516
    %v4340 = vpack.c.b16 %v3519, %v3518
    %v4341 = vpack.c.b16 %v3521, %v3520
    %v4342 = vpack.c.b16 %v3523, %v3522
    %v4343 = vpack.c.b16 %v3525, %v3524
    %v4344 = vpack.c.b16 %v3527, %v3526
    %v4345 = vpack.c.b16 %v3529, %v3528
    %v4346 = vpack.c.b16 %v3531, %v3530
    %v4347 = vpack.c.b16 %v3533, %v3532
    %v4348 = vpack.c.b16 %v3535, %v3534
    %v4349 = vpack.c.b16 %v3537, %v3536
    %v4350 = vpack.c.b16 %v3539, %v3538
    %v4351 = vpack.c.b16 %v3541, %v3540
    %v4352 = vpack.c.b16 %v3543, %v3542
    %v4353 = vpack.c.b16 %v3545, %v3544
    %v4354 = vpack.c.b16 %v3547, %v3546
    %v4355 = vpack.c.b16 %v3549, %v3548
    %v4356 = vpack.c.b16 %v3551, %v3550
    %v4357 = vpack.c.b16 %v3553, %v3552
    %v4358 = vpack.c.b16 %v3555, %v3554
    %v4359 = vpack.c.b16 %v3557, %v3556
    %v4360 = vpack.c.b16 %v3559, %v3558
    %v4361 = vpack.c.b16 %v3561, %v3560
    %v4362 = vpack.c.b16 %v3563, %v3562
    %v4363 = vpack.c.b16 %v3565, %v3564
    %v4364 = vpack.c.b16 %v3567, %v3566
    %v4365 = vpack.c.b16 %v3569, %v3568
    %v4366 = vpack.c.b16 %v3571, %v3570
    %v4367 = vpack.c.b16 %v3573, %v3572
    %v4368 = vpack.c.b16 %v3575, %v3574
    %v4369 = vpack.c.b16 %v3577, %v3576
    %v4370 = vpack.c.b16 %v3579, %v3578
    %v4371 = vpack.c.b16 %v3581, %v3580
    %v4372 = vpack.c.b16 %v3583, %v3582
    %v4373 = vpack.c.b16 %v3585, %v3584
    %v4374 = vpack.c.b16 %v3587, %v3586
    %v4375 = vpack.c.b16 %v3589, %v3588
    %v4376 = vpack.c.b16 %v3591, %v3590
    %v4377 = vpack.c.b16 %v3593, %v3592
    %v4378 = vpack.c.b16 %v3595, %v3594
    %v4379 = vpack.c.b16 %v3597, %v3596
    %v4380 = vpack.c.b16 %v3599, %v3598
    %v4381 = vpack.c.b16 %v3601, %v3600
    %v4382 = vpack.c.b16 %v3603, %v3602
    %v4383 = vpack.c.b16 %v3605, %v3604
    %v4384 = vpack.c.b16 %v3607, %v3606
    %v4385 = vpack.c.b16 %v3609, %v3608
    %v4386 = vpack.c.b16 %v3611, %v3610
    %v4387 = vpack.c.b16 %v3613, %v3612
    %v4388 = vpack.c.b16 %v3615, %v3614
    %v4389 = vpack.c.b16 %v3617, %v3616
    %v4390 = vpack.c.b16 %v3619, %v3618
    %v4391 = vpack.c.b16 %v3621, %v3620
    %v4392 = vpack.c.b16 %v3623, %v3622
    %v4393 = vpack.c.b16 %v3625, %v3624
    %v4394 = vpack.c.b16 %v3627, %v3626
    %v4395 = vpack.c.b16 %v3629, %v3628
    %v4396 = vpack.c.b16 %v3631, %v3630
    %v4397 = vpack.c.b16 %v3633, %v3632
    %v4398 = vpack.c.b16 %v3635, %v3634
    %v4399 = vpack.c.b16 %v3637, %v3636
    %v4400 = vpack.c.b16 %v3639, %v3638
    %v4401 = vpack.c.b16 %v3641, %v3640
    %v4402 = vpack.c.b16 %v3643, %v3642
    %v4403 = vpack.c.b16 %v3645, %v3644
    %v4404 = vpack.c.b16 %v3647, %v3646
    %v4405 = vpack.c.b16 %v3649, %v3648
    %v4406 = vpack.c.b16 %v3651, %v3650
    %v4407 = vpack.c.b16 %v3653, %v3652
    %v4408 = vpack.c.b16 %v3655, %v3654
    %v4409 = vpack.c.b16 %v3657, %v3656
    %v4410 = vpack.c.b16 %v3659, %v3658
    %v4411 = vpack.c.b16 %v3661, %v3660
    %v4412 = vpack.c.b16 %v3663, %v3662
    %v4413 = vpack.c.b16 %v3665, %v3664
    %v4414 = vpack.c.b16 %v3667, %v3666
    %v4415 = vpack.c.b16 %v3669, %v3668
    %v4416 = vpack.c.b16 %v3671, %v3670
    %v4417 = vpack.c.b16 %v3673, %v3672
    %v4418 = vpack.c.b16 %v3675, %v3674
    %v4419 = vpack.c.b16 %v3677, %v3676
    %v4420 = vpack.c.b16 %v3679, %v3678
    %v4421 = vpack.c.b16 %v3681, %v3680
    %v4422 = vpack.c.b16 %v3683, %v3682
    %v4423 = vpack.c.b16 %v3685, %v3684
    %v4424 = vpack.c.b16 %v3687, %v3686
    %v4425 = vpack.c.b16 %v3689, %v3688
    %v4426 = vpack.c.b16 %v3691, %v3690
    %v4427 = vpack.c.b16 %v3693, %v3692
    %v4428 = vpack.c.b16 %v3695, %v3694
    %v4429 = vpack.c.b16 %v3697, %v3696
    %v4430 = vpack.c.b16 %v3699, %v3698
    %v4431 = vpack.c.b16 %v3701, %v3700
    %v4432 = vpack.c.b16 %v3703, %v3702
    %v4433 = vpack.c.b16 %v3705, %v3704
    %v4434 = vpack.c.b16 %v3707, %v3706
    %v4435 = vpack.c.b16 %v3709, %v3708
    %v4436 = vpack.c.b16 %v3711, %v3710
    %v4437 = vpack.c.b16 %v3713, %v3712
    %v4438 = vpack.c.b16 %v3715, %v3714
    %v4439 = vpack.c.b16 %v3717, %v3716
    %v4440 = vpack.c.b16 %v3719, %v3718
    %v4441 = vpack.c.b16 %v3721, %v3720
    %v4442 = vpack.c.b16 %v3723, %v3722
    %v4443 = vpack.c.b16 %v3725, %v3724
    %v4444 = vpack.c.b16 %v3727, %v3726
    %v4445 = vpack.c.b16 %v3729, %v3728
    %v4446 = vpack.c.b16 %v3731, %v3730
    %v4447 = vpack.c.b16 %v3733, %v3732
    %v4448 = vpack.c.b16 %v3735, %v3734
    %v4449 = vpack.c.b16 %v3737, %v3736
    %v4450 = vpack.c.b16 %v3739, %v3738
    %v4451 = vpack.c.b16 %v3741, %v3740
    %v4452 = vpack.c.b16 %v3743, %v3742
    %v4453 = vpack.c.b16 %v3745, %v3744
    %v4454 = vpack.c.b16 %v3747, %v3746
    %v4455 = vpack.c.b16 %v3749, %v3748
    %v4456 = vpack.c.b16 %v3751, %v3750
    %v4457 = vpack.c.b16 %v3753, %v3752
    %v4458 = vpack.c.b16 %v3755, %v3754
    %v4459 = vpack.c.b16 %v3757, %v3756
    %v4460 = vpack.c.b16 %v3759, %v3758
    %v4461 = vpack.c.b16 %v3761, %v3760
    %v4462 = vpack.c.b16 %v3763, %v3762
    %v4463 = vpack.c.b16 %v3765, %v3764
    %v4464 = vpack.c.b16 %v3767, %v3766
    %v4465 = vpack.c.b16 %v3769, %v3768
    %v4466 = vpack.c.b16 %v3771, %v3770
    %v4467 = vpack.c.b16 %v3773, %v3772
    %v4468 = vpack.c.b16 %v3775, %v3774
    %v4469 = vpack.c.b16 %v3777, %v3776
    %v4470 = vpack.c.b16 %v3779, %v3778
    %v4471 = vpack.c.b16 %v3781, %v3780
    %v4472 = vpack.c.b16 %v3783, %v3782
    %v4473 = vpack.c.b16 %v3785, %v3784
    %v4474 = vpack.c.b16 %v3787, %v3786
    %v4475 = vpack.c.b16 %v3789, %v3788
    %v4476 = vpack.c.b16 %v3791, %v3790
    %v4477 = vpack.c.b16 %v3793, %v3792
    %v4478 = vpack.c.b16 %v3795, %v3794
    %v4479 = vpack.c.b16 %v3797, %v3796
    %v4480 = vpack.c.b16 %v3799, %v3798
    %v4481 = vpack.c.b16 %v3801, %v3800
    %v4482 = vpack.c.b16 %v3803, %v3802
    %v4483 = vpack.c.b16 %v3805, %v3804
    %v4484 = vpack.c.b16 %v3807, %v3806
    %v4485 = vpack.c.b16 %v3809, %v3808
    %v4486 = vpack.c.b16 %v3811, %v3810
    %v4487 = vpack.c.b16 %v3813, %v3812
    %v4488 = vpack.c.b16 %v3815, %v3814
    %v4489 = vpack.c.b16 %v3817, %v3816
    %v4490 = vpack.c.b16 %v3819, %v3818
    %v4491 = vpack.c.b16 %v3821, %v3820
    %v4492 = vpack.c.b16 %v3823, %v3822
    %v4493 = vpack.c.b16 %v3825, %v3824
    %v4494 = vpack.c.b16 %v3827, %v3826
    %v4495 = vpack.c.b16 %v3829, %v3828
    %v4496 = vpack.c.b16 %v3831, %v3830
    %v4497 = vpack.c.b16 %v3833, %v3832
    %v4498 = vpack.c.b16 %v3835, %v3834
    %v4499 = vpack.c.b16 %v3837, %v3836
    %v4500 = vpack.c.b16 %v3839, %v3838
    %v4501 = vpack.c.b16 %v3841, %v3840
    %v4502 = vpack.c.b16 %v3843, %v3842
    %v4503 = vpack.c.b16 %v3845, %v3844
    %v4504 = vpack.c.b16 %v3847, %v3846
    %v4505 = vpack.c.b16 %v3849, %v3848
    %v4506 = vpack.c.b16 %v3851, %v3850
    %v4507 = vpack.c.b16 %v3853, %v3852
    %v4508 = vpack.c.b16 %v3855, %v3854
    %v4509 = vpack.c.b16 %v3857, %v3856
    %v4510 = vpack.c.b16 %v3859, %v3858
    %v4511 = vpack.c.b16 %v3861, %v3860
    %v4512 = vpack.c.b16 %v3863, %v3862
    %v4513 = vpack.c.b16 %v3865, %v3864
    %v4514 = vpack.c.b16 %v3867, %v3866
    %v4515 = vpack.c.b16 %v3869, %v3868
    %v4516 = vpack.c.b16 %v3871, %v3870
    %v4517 = vpack.c.b16 %v3873, %v3872
    %v4518 = vpack.c.b16 %v3875, %v3874
    %v4519 = vpack.c.b16 %v3877, %v3876
    %v4520 = vpack.c.b16 %v3879, %v3878
    %v4521 = vpack.c.b16 %v3881, %v3880
    %v4522 = vpack.c.b16 %v3883, %v3882
    %v4523 = vpack.c.b16 %v3885, %v3884
    %v4524 = vpack.c.b16 %v3887, %v3886
    %v4525 = vpack.c.b16 %v3889, %v3888
    %v4526 = vpack.c.b16 %v3891, %v3890
    %v4527 = vpack.c.b16 %v3893, %v3892
    %v4528 = vpack.c.b16 %v3895, %v3894
    %v4529 = vpack.c.b16 %v3897, %v3896
    %v4530 = vpack.c.b16 %v3899, %v3898
    %v4531 = vpack.c.b16 %v3901, %v3900
    %v4532 = vpack.c.b16 %v3903, %v3902
    %v4533 = vpack.c.b16 %v3905, %v3904
    %v4534 = vpack.c.b16 %v3907, %v3906
    %v4535 = vpack.c.b16 %v3909, %v3908
    %v4536 = vpack.c.b16 %v3911, %v3910
    %v4537 = vpack.c.b16 %v3913, %v3912
    %v4538 = vpack.c.b16 %v3915, %v3914
    %v4539 = vpack.c.b16 %v3917, %v3916
    %v4540 = vpack.c.b16 %v3919, %v3918
    %v4541 = vpack.c.b16 %v3921, %v3920
    %v4542 = vpack.c.b16 %v3923, %v3922
    %v4543 = vpack.c.b16 %v3925, %v3924
    %v4544 = vpack.c.b16 %v3927, %v3926
    %v4545 = vpack.c.b16 %v3929, %v3928
    %v4546 = vpack.c.b16 %v3931, %v3930
    %v4547 = vpack.c.b16 %v3933, %v3932
    %v4548 = vpack.c.b16 %v3935, %v3934
    %v4549 = vpack.c.b16 %v3937, %v3936
    %v4550 = vpack.c.b16 %v3939, %v3938
    %v4551 = vpack.c.b16 %v3941, %v3940
    %v4552 = vpack.c.b16 %v3943, %v3942
    %v4553 = vpack.c.b16 %v3945, %v3944
    %v4554 = vpack.c.b16 %v3947, %v3946
    %v4555 = vpack.c.b16 %v3949, %v3948
    %v4556 = vpack.c.b16 %v3951, %v3950
    %v4557 = vpack.c.b16 %v3953, %v3952
    %v4558 = vpack.c.b16 %v3955, %v3954
    %v4559 = vpack.c.b16 %v3957, %v3956
    %v4560 = vpack.c.b16 %v3959, %v3958
    %v4561 = vpack.c.b16 %v3961, %v3960
    %v4562 = vpack.c.b16 %v3963, %v3962
    %v4563 = vpack.c.b16 %v3965, %v3964
    %v4564 = vpack.c.b16 %v3967, %v3966
    %v4565 = vpack.c.b16 %v3969, %v3968
    %v4566 = vpack.c.b16 %v3971, %v3970
    %v4567 = vpack.c.b16 %v3973, %v3972
    %v4568 = vpack.c.b16 %v3975, %v3974
    %v4569 = vpack.c.b16 %v3977, %v3976
    %v4570 = vpack.c.b16 %v3979, %v3978
    %v4571 = vpack.c.b16 %v3981, %v3980
    %v4572 = vpack.c.b16 %v3983, %v3982
    %v4573 = vpack.c.b16 %v3985, %v3984
    %v4574 = vpack.c.b16 %v3987, %v3986
    %v4575 = vpack.c.b16 %v3989, %v3988
    %v4576 = vpack.c.b16 %v3991, %v3990
    %v4577 = vpack.c.b16 %v3993, %v3992
    %v4578 = vpack.c.b16 %v3995, %v3994
    %v4579 = vpack.c.b16 %v3997, %v3996
    %v4580 = vpack.c.b16 %v3999, %v3998
    %v4581 = vpack.c.b16 %v4001, %v4000
    %v4582 = vpack.c.b16 %v4003, %v4002
    %v4583 = vpack.c.b16 %v4005, %v4004
    %v4584 = vpack.c.b16 %v4007, %v4006
    %v4585 = vpack.c.b16 %v4009, %v4008
    %5162 = vmatprep.subr.bf16.mxu0 0
    %5163 = vmatpush1.bf16.msra.mxu0 %v4017
    %5164 = vmatprep.subr.bf16.mxu0 0
    %5165 = vmatpush1.bf16.msra.mxu0 %v4016
    %5166 = vmatprep.subr.bf16.mxu0 0
    %5167 = vmatpush1.bf16.msra.mxu0 %v4015
    %5168 = vmatprep.subr.bf16.mxu0 0
    %5169 = vmatpush1.bf16.msra.mxu0 %v4014
    %5170 = vmatprep.subr.bf16.mxu0 0
    %5171 = vmatpush1.bf16.msra.mxu0 %v4013
    %5172 = vmatprep.subr.bf16.mxu0 0
    %5173 = vmatpush1.bf16.msra.mxu0 %v4012
    %5174 = vmatprep.subr.bf16.mxu0 0
    %5175 = vmatpush1.bf16.msra.mxu0 %v4011
    %5176 = vmatprep.subr.bf16.mxu0 0
    %5177 = vmatpush1.bf16.msra.mxu0 %v4010
    %5178 = vmatprep.subr.bf16.mxu0 0
    %5179 = vmatpush2.bf16.msra.mxu0 %v4025
    %5180 = vmatprep.subr.bf16.mxu0 0
    %5181 = vmatpush2.bf16.msra.mxu0 %v4024
    %5182 = vmatprep.subr.bf16.mxu0 0
    %5183 = vmatpush2.bf16.msra.mxu0 %v4023
    %5184 = vmatprep.subr.bf16.mxu0 0
    %5185 = vmatpush2.bf16.msra.mxu0 %v4022
    %5186 = vmatprep.subr.bf16.mxu0 0
    %5187 = vmatpush2.bf16.msra.mxu0 %v4021
    %5188 = vmatprep.subr.bf16.mxu0 0
    %5189 = vmatpush2.bf16.msra.mxu0 %v4020
    %5190 = vmatprep.subr.bf16.mxu0 0
    %5191 = vmatpush2.bf16.msra.mxu0 %v4019
    %5192 = vmatprep.subr.bf16.mxu0 0
    %5193 = vmatpush2.bf16.msra.mxu0 %v4018
    %5194 = vmatprep.mubr.bf16.mxu0 %v1230
    %5195 = vmatmul.mubr.bf16.gmra.mxu0 %v1216
    %v5196 = vpop.f32.mrf.mxu0
    %v5197 = vadd.f32 %v1182, %v5196
    %v5198 = vpop.f32.mrf.mxu0
    %v5199 = vpop.f32.mrf.mxu0
    %v5200 = vpop.f32.mrf.mxu0
    %5201 = vdwg.mxu0
    %5202 = vmatprep.subr.bf16.mxu0 0
    %5203 = vmatpush1.bf16.msra.mxu0 %v4033
    %5204 = vmatprep.subr.bf16.mxu0 0
    %5205 = vmatpush1.bf16.msra.mxu0 %v4032
    %5206 = vmatprep.subr.bf16.mxu0 0
    %5207 = vmatpush1.bf16.msra.mxu0 %v4031
    %5208 = vmatprep.subr.bf16.mxu0 0
    %5209 = vmatpush1.bf16.msra.mxu0 %v4030
    %5210 = vmatprep.subr.bf16.mxu0 0
    %5211 = vmatpush1.bf16.msra.mxu0 %v4029
    %5212 = vmatprep.subr.bf16.mxu0 0
    %5213 = vmatpush1.bf16.msra.mxu0 %v4028
    %5214 = vmatprep.subr.bf16.mxu0 0
    %5215 = vmatpush1.bf16.msra.mxu0 %v4027
    %5216 = vmatprep.subr.bf16.mxu0 0
    %5217 = vmatpush1.bf16.msra.mxu0 %v4026
    %5218 = vmatprep.subr.bf16.mxu0 0
    %5219 = vmatpush2.bf16.msra.mxu0 %v4041
    %5220 = vmatprep.subr.bf16.mxu0 0
    %5221 = vmatpush2.bf16.msra.mxu0 %v4040
    %5222 = vmatprep.subr.bf16.mxu0 0
    %5223 = vmatpush2.bf16.msra.mxu0 %v4039
    %5224 = vmatprep.subr.bf16.mxu0 0
    %5225 = vmatpush2.bf16.msra.mxu0 %v4038
    %5226 = vmatprep.subr.bf16.mxu0 0
    %5227 = vmatpush2.bf16.msra.mxu0 %v4037
    %5228 = vmatprep.subr.bf16.mxu0 0
    %5229 = vmatpush2.bf16.msra.mxu0 %v4036
    %5230 = vmatprep.subr.bf16.mxu0 0
    %5231 = vmatpush2.bf16.msra.mxu0 %v4035
    %5232 = vmatprep.subr.bf16.mxu0 0
    %5233 = vmatpush2.bf16.msra.mxu0 %v4034
    %5234 = vmatprep.mubr.bf16.mxu0 %v1240
    %5235 = vmatmul.mubr.bf16.gmra.mxu0 %v1238
    %v5236 = vpop.f32.mrf.mxu0
    %v5237 = vadd.f32 %v5197, %v5236
    %v5238 = vpop.f32.mrf.mxu0
    %v5239 = vpop.f32.mrf.mxu0
    %v5240 = vpop.f32.mrf.mxu0
    %5241 = vdwg.mxu0
    %5242 = vmatprep.subr.bf16.mxu0 0
    %5243 = vmatpush1.bf16.msra.mxu0 %v4049
    %5244 = vmatprep.subr.bf16.mxu0 0
    %5245 = vmatpush1.bf16.msra.mxu0 %v4048
    %5246 = vmatprep.subr.bf16.mxu0 0
    %5247 = vmatpush1.bf16.msra.mxu0 %v4047
    %5248 = vmatprep.subr.bf16.mxu0 0
    %5249 = vmatpush1.bf16.msra.mxu0 %v4046
    %5250 = vmatprep.subr.bf16.mxu0 0
    %5251 = vmatpush1.bf16.msra.mxu0 %v4045
    %5252 = vmatprep.subr.bf16.mxu0 0
    %5253 = vmatpush1.bf16.msra.mxu0 %v4044
    %5254 = vmatprep.subr.bf16.mxu0 0
    %5255 = vmatpush1.bf16.msra.mxu0 %v4043
    %5256 = vmatprep.subr.bf16.mxu0 0
    %5257 = vmatpush1.bf16.msra.mxu0 %v4042
    %5258 = vmatprep.subr.bf16.mxu0 0
    %5259 = vmatpush2.bf16.msra.mxu0 %v4057
    %5260 = vmatprep.subr.bf16.mxu0 0
    %5261 = vmatpush2.bf16.msra.mxu0 %v4056
    %5262 = vmatprep.subr.bf16.mxu0 0
    %5263 = vmatpush2.bf16.msra.mxu0 %v4055
    %5264 = vmatprep.subr.bf16.mxu0 0
    %5265 = vmatpush2.bf16.msra.mxu0 %v4054
    %5266 = vmatprep.subr.bf16.mxu0 0
    %5267 = vmatpush2.bf16.msra.mxu0 %v4053
    %5268 = vmatprep.subr.bf16.mxu0 0
    %5269 = vmatpush2.bf16.msra.mxu0 %v4052
    %5270 = vmatprep.subr.bf16.mxu0 0
    %5271 = vmatpush2.bf16.msra.mxu0 %v4051
    %5272 = vmatprep.subr.bf16.mxu0 0
    %5273 = vmatpush2.bf16.msra.mxu0 %v4050
    %5274 = vmatprep.mubr.bf16.mxu0 %v1237
    %5275 = vmatmul.mubr.bf16.gmra.mxu0 %v1223
    %v5276 = vpop.f32.mrf.mxu0
    %v5277 = vadd.f32 %v5237, %v5276
    %v5278 = vpop.f32.mrf.mxu0
    %v5279 = vpop.f32.mrf.mxu0
    %v5280 = vpop.f32.mrf.mxu0
    %5281 = vdwg.mxu0
    %5282 = vmatprep.subr.bf16.mxu0 0
    %5283 = vmatpush1.bf16.msra.mxu0 %v4065
    %5284 = vmatprep.subr.bf16.mxu0 0
    %5285 = vmatpush1.bf16.msra.mxu0 %v4064
    %5286 = vmatprep.subr.bf16.mxu0 0
    %5287 = vmatpush1.bf16.msra.mxu0 %v4063
    %5288 = vmatprep.subr.bf16.mxu0 0
    %5289 = vmatpush1.bf16.msra.mxu0 %v4062
    %5290 = vmatprep.subr.bf16.mxu0 0
    %5291 = vmatpush1.bf16.msra.mxu0 %v4061
    %5292 = vmatprep.subr.bf16.mxu0 0
    %5293 = vmatpush1.bf16.msra.mxu0 %v4060
    %5294 = vmatprep.subr.bf16.mxu0 0
    %5295 = vmatpush1.bf16.msra.mxu0 %v4059
    %5296 = vmatprep.subr.bf16.mxu0 0
    %5297 = vmatpush1.bf16.msra.mxu0 %v4058
    %5298 = vmatprep.subr.bf16.mxu0 0
    %5299 = vmatpush2.bf16.msra.mxu0 %v4073
    %5300 = vmatprep.subr.bf16.mxu0 0
    %5301 = vmatpush2.bf16.msra.mxu0 %v4072
    %5302 = vmatprep.subr.bf16.mxu0 0
    %5303 = vmatpush2.bf16.msra.mxu0 %v4071
    %5304 = vmatprep.subr.bf16.mxu0 0
    %5305 = vmatpush2.bf16.msra.mxu0 %v4070
    %5306 = vmatprep.subr.bf16.mxu0 0
    %5307 = vmatpush2.bf16.msra.mxu0 %v4069
    %5308 = vmatprep.subr.bf16.mxu0 0
    %5309 = vmatpush2.bf16.msra.mxu0 %v4068
    %5310 = vmatprep.subr.bf16.mxu0 0
    %5311 = vmatpush2.bf16.msra.mxu0 %v4067
    %5312 = vmatprep.subr.bf16.mxu0 0
    %5313 = vmatpush2.bf16.msra.mxu0 %v4066
    %5314 = vmatprep.mubr.bf16.mxu0 %v1241
    %5315 = vmatmul.mubr.bf16.gmra.mxu0 %v1239
    %v5316 = vpop.f32.mrf.mxu0
    %v5317 = vadd.f32 %v5277, %v5316
    %v5318 = vpop.f32.mrf.mxu0
    %v5319 = vpop.f32.mrf.mxu0
    %v5320 = vpop.f32.mrf.mxu0
    %5321 = vdwg.mxu0
    %5322 = vmatprep.subr.bf16.mxu0 0
    %5323 = vmatpush1.bf16.msra.mxu0 %v4081
    %5324 = vmatprep.subr.bf16.mxu0 0
    %5325 = vmatpush1.bf16.msra.mxu0 %v4080
    %5326 = vmatprep.subr.bf16.mxu0 0
    %5327 = vmatpush1.bf16.msra.mxu0 %v4079
    %5328 = vmatprep.subr.bf16.mxu0 0
    %5329 = vmatpush1.bf16.msra.mxu0 %v4078
    %5330 = vmatprep.subr.bf16.mxu0 0
    %5331 = vmatpush1.bf16.msra.mxu0 %v4077
    %5332 = vmatprep.subr.bf16.mxu0 0
    %5333 = vmatpush1.bf16.msra.mxu0 %v4076
    %5334 = vmatprep.subr.bf16.mxu0 0
    %5335 = vmatpush1.bf16.msra.mxu0 %v4075
    %5336 = vmatprep.subr.bf16.mxu0 0
    %5337 = vmatpush1.bf16.msra.mxu0 %v4074
    %5338 = vmatprep.subr.bf16.mxu0 0
    %5339 = vmatpush2.bf16.msra.mxu0 %v4089
    %5340 = vmatprep.subr.bf16.mxu0 0
    %5341 = vmatpush2.bf16.msra.mxu0 %v4088
    %5342 = vmatprep.subr.bf16.mxu0 0
    %5343 = vmatpush2.bf16.msra.mxu0 %v4087
    %5344 = vmatprep.subr.bf16.mxu0 0
    %5345 = vmatpush2.bf16.msra.mxu0 %v4086
    %5346 = vmatprep.subr.bf16.mxu0 0
    %5347 = vmatpush2.bf16.msra.mxu0 %v4085
    %5348 = vmatprep.subr.bf16.mxu0 0
    %5349 = vmatpush2.bf16.msra.mxu0 %v4084
    %5350 = vmatprep.subr.bf16.mxu0 0
    %5351 = vmatpush2.bf16.msra.mxu0 %v4083
    %5352 = vmatprep.subr.bf16.mxu0 0
    %5353 = vmatpush2.bf16.msra.mxu0 %v4082
    %5354 = vmatprep.mubr.bf16.mxu0 %v1279
    %5355 = vmatmul.mubr.bf16.gmra.mxu0 %v1265
    %v5356 = vpop.f32.mrf.mxu0
    %v5357 = vadd.f32 %v5317, %v5356
    %v5358 = vpop.f32.mrf.mxu0
    %v5359 = vpop.f32.mrf.mxu0
    %v5360 = vpop.f32.mrf.mxu0
    %5361 = vdwg.mxu0
    %5362 = vmatprep.subr.bf16.mxu0 0
    %5363 = vmatpush1.bf16.msra.mxu0 %v4097
    %5364 = vmatprep.subr.bf16.mxu0 0
    %5365 = vmatpush1.bf16.msra.mxu0 %v4096
    %5366 = vmatprep.subr.bf16.mxu0 0
    %5367 = vmatpush1.bf16.msra.mxu0 %v4095
    %5368 = vmatprep.subr.bf16.mxu0 0
    %5369 = vmatpush1.bf16.msra.mxu0 %v4094
    %5370 = vmatprep.subr.bf16.mxu0 0
    %5371 = vmatpush1.bf16.msra.mxu0 %v4093
    %5372 = vmatprep.subr.bf16.mxu0 0
    %5373 = vmatpush1.bf16.msra.mxu0 %v4092
    %5374 = vmatprep.subr.bf16.mxu0 0
    %5375 = vmatpush1.bf16.msra.mxu0 %v4091
    %5376 = vmatprep.subr.bf16.mxu0 0
    %5377 = vmatpush1.bf16.msra.mxu0 %v4090
    %5378 = vmatprep.subr.bf16.mxu0 0
    %5379 = vmatpush2.bf16.msra.mxu0 %v4105
    %5380 = vmatprep.subr.bf16.mxu0 0
    %5381 = vmatpush2.bf16.msra.mxu0 %v4104
    %5382 = vmatprep.subr.bf16.mxu0 0
    %5383 = vmatpush2.bf16.msra.mxu0 %v4103
    %5384 = vmatprep.subr.bf16.mxu0 0
    %5385 = vmatpush2.bf16.msra.mxu0 %v4102
    %5386 = vmatprep.subr.bf16.mxu0 0
    %5387 = vmatpush2.bf16.msra.mxu0 %v4101
    %5388 = vmatprep.subr.bf16.mxu0 0
    %5389 = vmatpush2.bf16.msra.mxu0 %v4100
    %5390 = vmatprep.subr.bf16.mxu0 0
    %5391 = vmatpush2.bf16.msra.mxu0 %v4099
    %5392 = vmatprep.subr.bf16.mxu0 0
    %5393 = vmatpush2.bf16.msra.mxu0 %v4098
    %5394 = vmatprep.mubr.bf16.mxu0 %v1289
    %5395 = vmatmul.mubr.bf16.gmra.mxu0 %v1287
    %v5396 = vpop.f32.mrf.mxu0
    %v5397 = vadd.f32 %v5357, %v5396
    %v5398 = vpop.f32.mrf.mxu0
    %v5399 = vpop.f32.mrf.mxu0
    %v5400 = vpop.f32.mrf.mxu0
    %5401 = vdwg.mxu0
    %5402 = vmatprep.subr.bf16.mxu0 0
    %5403 = vmatpush1.bf16.msra.mxu0 %v4113
    %5404 = vmatprep.subr.bf16.mxu0 0
    %5405 = vmatpush1.bf16.msra.mxu0 %v4112
    %5406 = vmatprep.subr.bf16.mxu0 0
    %5407 = vmatpush1.bf16.msra.mxu0 %v4111
    %5408 = vmatprep.subr.bf16.mxu0 0
    %5409 = vmatpush1.bf16.msra.mxu0 %v4110
    %5410 = vmatprep.subr.bf16.mxu0 0
    %5411 = vmatpush1.bf16.msra.mxu0 %v4109
    %5412 = vmatprep.subr.bf16.mxu0 0
    %5413 = vmatpush1.bf16.msra.mxu0 %v4108
    %5414 = vmatprep.subr.bf16.mxu0 0
    %5415 = vmatpush1.bf16.msra.mxu0 %v4107
    %5416 = vmatprep.subr.bf16.mxu0 0
    %5417 = vmatpush1.bf16.msra.mxu0 %v4106
    %5418 = vmatprep.subr.bf16.mxu0 0
    %5419 = vmatpush2.bf16.msra.mxu0 %v4121
    %5420 = vmatprep.subr.bf16.mxu0 0
    %5421 = vmatpush2.bf16.msra.mxu0 %v4120
    %5422 = vmatprep.subr.bf16.mxu0 0
    %5423 = vmatpush2.bf16.msra.mxu0 %v4119
    %5424 = vmatprep.subr.bf16.mxu0 0
    %5425 = vmatpush2.bf16.msra.mxu0 %v4118
    %5426 = vmatprep.subr.bf16.mxu0 0
    %5427 = vmatpush2.bf16.msra.mxu0 %v4117
    %5428 = vmatprep.subr.bf16.mxu0 0
    %5429 = vmatpush2.bf16.msra.mxu0 %v4116
    %5430 = vmatprep.subr.bf16.mxu0 0
    %5431 = vmatpush2.bf16.msra.mxu0 %v4115
    %5432 = vmatprep.subr.bf16.mxu0 0
    %5433 = vmatpush2.bf16.msra.mxu0 %v4114
    %5434 = vmatprep.mubr.bf16.mxu0 %v1286
    %5435 = vmatmul.mubr.bf16.gmra.mxu0 %v1272
    %v5436 = vpop.f32.mrf.mxu0
    %v5437 = vadd.f32 %v5397, %v5436
    %v5438 = vpop.f32.mrf.mxu0
    %v5439 = vpop.f32.mrf.mxu0
    %v5440 = vpop.f32.mrf.mxu0
    %5441 = vdwg.mxu0
    %5442 = vmatprep.subr.bf16.mxu0 0
    %5443 = vmatpush1.bf16.msra.mxu0 %v4129
    %5444 = vmatprep.subr.bf16.mxu0 0
    %5445 = vmatpush1.bf16.msra.mxu0 %v4128
    %5446 = vmatprep.subr.bf16.mxu0 0
    %5447 = vmatpush1.bf16.msra.mxu0 %v4127
    %5448 = vmatprep.subr.bf16.mxu0 0
    %5449 = vmatpush1.bf16.msra.mxu0 %v4126
    %5450 = vmatprep.subr.bf16.mxu0 0
    %5451 = vmatpush1.bf16.msra.mxu0 %v4125
    %5452 = vmatprep.subr.bf16.mxu0 0
    %5453 = vmatpush1.bf16.msra.mxu0 %v4124
    %5454 = vmatprep.subr.bf16.mxu0 0
    %5455 = vmatpush1.bf16.msra.mxu0 %v4123
    %5456 = vmatprep.subr.bf16.mxu0 0
    %5457 = vmatpush1.bf16.msra.mxu0 %v4122
    %5458 = vmatprep.subr.bf16.mxu0 0
    %5459 = vmatpush2.bf16.msra.mxu0 %v4137
    %5460 = vmatprep.subr.bf16.mxu0 0
    %5461 = vmatpush2.bf16.msra.mxu0 %v4136
    %5462 = vmatprep.subr.bf16.mxu0 0
    %5463 = vmatpush2.bf16.msra.mxu0 %v4135
    %5464 = vmatprep.subr.bf16.mxu0 0
    %5465 = vmatpush2.bf16.msra.mxu0 %v4134
    %5466 = vmatprep.subr.bf16.mxu0 0
    %5467 = vmatpush2.bf16.msra.mxu0 %v4133
    %5468 = vmatprep.subr.bf16.mxu0 0
    %5469 = vmatpush2.bf16.msra.mxu0 %v4132
    %5470 = vmatprep.subr.bf16.mxu0 0
    %5471 = vmatpush2.bf16.msra.mxu0 %v4131
    %5472 = vmatprep.subr.bf16.mxu0 0
    %5473 = vmatpush2.bf16.msra.mxu0 %v4130
    %5474 = vmatprep.mubr.bf16.mxu0 %v1290
    %5475 = vmatmul.mubr.bf16.gmra.mxu0 %v1288
    %v5476 = vpop.f32.mrf.mxu0
    %v5477 = vadd.f32 %v5437, %v5476
    %v5478 = vpop.f32.mrf.mxu0
    %v5479 = vpop.f32.mrf.mxu0
    %v5480 = vpop.f32.mrf.mxu0
    %5481 = vdwg.mxu0
    %5482 = vmatprep.subr.bf16.mxu0 0
    %5483 = vmatpush1.bf16.msra.mxu0 %v4145
    %5484 = vmatprep.subr.bf16.mxu0 0
    %5485 = vmatpush1.bf16.msra.mxu0 %v4144
    %5486 = vmatprep.subr.bf16.mxu0 0
    %5487 = vmatpush1.bf16.msra.mxu0 %v4143
    %5488 = vmatprep.subr.bf16.mxu0 0
    %5489 = vmatpush1.bf16.msra.mxu0 %v4142
    %5490 = vmatprep.subr.bf16.mxu0 0
    %5491 = vmatpush1.bf16.msra.mxu0 %v4141
    %5492 = vmatprep.subr.bf16.mxu0 0
    %5493 = vmatpush1.bf16.msra.mxu0 %v4140
    %5494 = vmatprep.subr.bf16.mxu0 0
    %5495 = vmatpush1.bf16.msra.mxu0 %v4139
    %5496 = vmatprep.subr.bf16.mxu0 0
    %5497 = vmatpush1.bf16.msra.mxu0 %v4138
    %5498 = vmatprep.subr.bf16.mxu0 0
    %5499 = vmatpush2.bf16.msra.mxu0 %v4153
    %5500 = vmatprep.subr.bf16.mxu0 0
    %5501 = vmatpush2.bf16.msra.mxu0 %v4152
    %5502 = vmatprep.subr.bf16.mxu0 0
    %5503 = vmatpush2.bf16.msra.mxu0 %v4151
    %5504 = vmatprep.subr.bf16.mxu0 0
    %5505 = vmatpush2.bf16.msra.mxu0 %v4150
    %5506 = vmatprep.subr.bf16.mxu0 0
    %5507 = vmatpush2.bf16.msra.mxu0 %v4149
    %5508 = vmatprep.subr.bf16.mxu0 0
    %5509 = vmatpush2.bf16.msra.mxu0 %v4148
    %5510 = vmatprep.subr.bf16.mxu0 0
    %5511 = vmatpush2.bf16.msra.mxu0 %v4147
    %5512 = vmatprep.subr.bf16.mxu0 0
    %5513 = vmatpush2.bf16.msra.mxu0 %v4146
    %5514 = vmatprep.mubr.bf16.mxu0 %v1328
    %5515 = vmatmul.mubr.bf16.gmra.mxu0 %v1314
    %v5516 = vpop.f32.mrf.mxu0
    %v5517 = vadd.f32 %v5477, %v5516
    %v5518 = vpop.f32.mrf.mxu0
    %v5519 = vpop.f32.mrf.mxu0
    %v5520 = vpop.f32.mrf.mxu0
    %5521 = vdwg.mxu0
    %5522 = vmatprep.subr.bf16.mxu0 0
    %5523 = vmatpush1.bf16.msra.mxu0 %v4161
    %5524 = vmatprep.subr.bf16.mxu0 0
    %5525 = vmatpush1.bf16.msra.mxu0 %v4160
    %5526 = vmatprep.subr.bf16.mxu0 0
    %5527 = vmatpush1.bf16.msra.mxu0 %v4159
    %5528 = vmatprep.subr.bf16.mxu0 0
    %5529 = vmatpush1.bf16.msra.mxu0 %v4158
    %5530 = vmatprep.subr.bf16.mxu0 0
    %5531 = vmatpush1.bf16.msra.mxu0 %v4157
    %5532 = vmatprep.subr.bf16.mxu0 0
    %5533 = vmatpush1.bf16.msra.mxu0 %v4156
    %5534 = vmatprep.subr.bf16.mxu0 0
    %5535 = vmatpush1.bf16.msra.mxu0 %v4155
    %5536 = vmatprep.subr.bf16.mxu0 0
    %5537 = vmatpush1.bf16.msra.mxu0 %v4154
    %5538 = vmatprep.subr.bf16.mxu0 0
    %5539 = vmatpush2.bf16.msra.mxu0 %v4169
    %5540 = vmatprep.subr.bf16.mxu0 0
    %5541 = vmatpush2.bf16.msra.mxu0 %v4168
    %5542 = vmatprep.subr.bf16.mxu0 0
    %5543 = vmatpush2.bf16.msra.mxu0 %v4167
    %5544 = vmatprep.subr.bf16.mxu0 0
    %5545 = vmatpush2.bf16.msra.mxu0 %v4166
    %5546 = vmatprep.subr.bf16.mxu0 0
    %5547 = vmatpush2.bf16.msra.mxu0 %v4165
    %5548 = vmatprep.subr.bf16.mxu0 0
    %5549 = vmatpush2.bf16.msra.mxu0 %v4164
    %5550 = vmatprep.subr.bf16.mxu0 0
    %5551 = vmatpush2.bf16.msra.mxu0 %v4163
    %5552 = vmatprep.subr.bf16.mxu0 0
    %5553 = vmatpush2.bf16.msra.mxu0 %v4162
    %5554 = vmatprep.mubr.bf16.mxu0 %v1338
    %5555 = vmatmul.mubr.bf16.gmra.mxu0 %v1336
    %v5556 = vpop.f32.mrf.mxu0
    %v5557 = vadd.f32 %v5517, %v5556
    %v5558 = vpop.f32.mrf.mxu0
    %v5559 = vpop.f32.mrf.mxu0
    %v5560 = vpop.f32.mrf.mxu0
    %5561 = vdwg.mxu0
    %5562 = vmatprep.subr.bf16.mxu0 0
    %5563 = vmatpush1.bf16.msra.mxu0 %v4177
    %5564 = vmatprep.subr.bf16.mxu0 0
    %5565 = vmatpush1.bf16.msra.mxu0 %v4176
    %5566 = vmatprep.subr.bf16.mxu0 0
    %5567 = vmatpush1.bf16.msra.mxu0 %v4175
    %5568 = vmatprep.subr.bf16.mxu0 0
    %5569 = vmatpush1.bf16.msra.mxu0 %v4174
    %5570 = vmatprep.subr.bf16.mxu0 0
    %5571 = vmatpush1.bf16.msra.mxu0 %v4173
    %5572 = vmatprep.subr.bf16.mxu0 0
    %5573 = vmatpush1.bf16.msra.mxu0 %v4172
    %5574 = vmatprep.subr.bf16.mxu0 0
    %5575 = vmatpush1.bf16.msra.mxu0 %v4171
    %5576 = vmatprep.subr.bf16.mxu0 0
    %5577 = vmatpush1.bf16.msra.mxu0 %v4170
    %5578 = vmatprep.subr.bf16.mxu0 0
    %5579 = vmatpush2.bf16.msra.mxu0 %v4185
    %5580 = vmatprep.subr.bf16.mxu0 0
    %5581 = vmatpush2.bf16.msra.mxu0 %v4184
    %5582 = vmatprep.subr.bf16.mxu0 0
    %5583 = vmatpush2.bf16.msra.mxu0 %v4183
    %5584 = vmatprep.subr.bf16.mxu0 0
    %5585 = vmatpush2.bf16.msra.mxu0 %v4182
    %5586 = vmatprep.subr.bf16.mxu0 0
    %5587 = vmatpush2.bf16.msra.mxu0 %v4181
    %5588 = vmatprep.subr.bf16.mxu0 0
    %5589 = vmatpush2.bf16.msra.mxu0 %v4180
    %5590 = vmatprep.subr.bf16.mxu0 0
    %5591 = vmatpush2.bf16.msra.mxu0 %v4179
    %5592 = vmatprep.subr.bf16.mxu0 0
    %5593 = vmatpush2.bf16.msra.mxu0 %v4178
    %5594 = vmatprep.mubr.bf16.mxu0 %v1335
    %5595 = vmatmul.mubr.bf16.gmra.mxu0 %v1321
    %v5596 = vpop.f32.mrf.mxu0
    %v5597 = vadd.f32 %v5557, %v5596
    %v5598 = vpop.f32.mrf.mxu0
    %v5599 = vpop.f32.mrf.mxu0
    %v5600 = vpop.f32.mrf.mxu0
    %5601 = vdwg.mxu0
    %5602 = vmatprep.subr.bf16.mxu0 0
    %5603 = vmatpush1.bf16.msra.mxu0 %v4193
    %5604 = vmatprep.subr.bf16.mxu0 0
    %5605 = vmatpush1.bf16.msra.mxu0 %v4192
    %5606 = vmatprep.subr.bf16.mxu0 0
    %5607 = vmatpush1.bf16.msra.mxu0 %v4191
    %5608 = vmatprep.subr.bf16.mxu0 0
    %5609 = vmatpush1.bf16.msra.mxu0 %v4190
    %5610 = vmatprep.subr.bf16.mxu0 0
    %5611 = vmatpush1.bf16.msra.mxu0 %v4189
    %5612 = vmatprep.subr.bf16.mxu0 0
    %5613 = vmatpush1.bf16.msra.mxu0 %v4188
    %5614 = vmatprep.subr.bf16.mxu0 0
    %5615 = vmatpush1.bf16.msra.mxu0 %v4187
    %5616 = vmatprep.subr.bf16.mxu0 0
    %5617 = vmatpush1.bf16.msra.mxu0 %v4186
    %5618 = vmatprep.subr.bf16.mxu0 0
    %5619 = vmatpush2.bf16.msra.mxu0 %v4201
    %5620 = vmatprep.subr.bf16.mxu0 0
    %5621 = vmatpush2.bf16.msra.mxu0 %v4200
    %5622 = vmatprep.subr.bf16.mxu0 0
    %5623 = vmatpush2.bf16.msra.mxu0 %v4199
    %5624 = vmatprep.subr.bf16.mxu0 0
    %5625 = vmatpush2.bf16.msra.mxu0 %v4198
    %5626 = vmatprep.subr.bf16.mxu0 0
    %5627 = vmatpush2.bf16.msra.mxu0 %v4197
    %5628 = vmatprep.subr.bf16.mxu0 0
    %5629 = vmatpush2.bf16.msra.mxu0 %v4196
    %5630 = vmatprep.subr.bf16.mxu0 0
    %5631 = vmatpush2.bf16.msra.mxu0 %v4195
    %5632 = vmatprep.subr.bf16.mxu0 0
    %5633 = vmatpush2.bf16.msra.mxu0 %v4194
    %5634 = vmatprep.mubr.bf16.mxu0 %v1339
    %5635 = vmatmul.mubr.bf16.gmra.mxu0 %v1337
    %v5636 = vpop.f32.mrf.mxu0
    %v5637 = vadd.f32 %v5597, %v5636
    %v5638 = vpop.f32.mrf.mxu0
    %v5639 = vpop.f32.mrf.mxu0
    %v5640 = vpop.f32.mrf.mxu0
    %5641 = vdwg.mxu0
    %5642 = vmatprep.subr.bf16.mxu0 0
    %5643 = vmatpush1.bf16.msra.mxu0 %v4209
    %5644 = vmatprep.subr.bf16.mxu0 0
    %5645 = vmatpush1.bf16.msra.mxu0 %v4208
    %5646 = vmatprep.subr.bf16.mxu0 0
    %5647 = vmatpush1.bf16.msra.mxu0 %v4207
    %5648 = vmatprep.subr.bf16.mxu0 0
    %5649 = vmatpush1.bf16.msra.mxu0 %v4206
    %5650 = vmatprep.subr.bf16.mxu0 0
    %5651 = vmatpush1.bf16.msra.mxu0 %v4205
    %5652 = vmatprep.subr.bf16.mxu0 0
    %5653 = vmatpush1.bf16.msra.mxu0 %v4204
    %5654 = vmatprep.subr.bf16.mxu0 0
    %5655 = vmatpush1.bf16.msra.mxu0 %v4203
    %5656 = vmatprep.subr.bf16.mxu0 0
    %5657 = vmatpush1.bf16.msra.mxu0 %v4202
    %5658 = vmatprep.subr.bf16.mxu0 0
    %5659 = vmatpush2.bf16.msra.mxu0 %v4217
    %5660 = vmatprep.subr.bf16.mxu0 0
    %5661 = vmatpush2.bf16.msra.mxu0 %v4216
    %5662 = vmatprep.subr.bf16.mxu0 0
    %5663 = vmatpush2.bf16.msra.mxu0 %v4215
    %5664 = vmatprep.subr.bf16.mxu0 0
    %5665 = vmatpush2.bf16.msra.mxu0 %v4214
    %5666 = vmatprep.subr.bf16.mxu0 0
    %5667 = vmatpush2.bf16.msra.mxu0 %v4213
    %5668 = vmatprep.subr.bf16.mxu0 0
    %5669 = vmatpush2.bf16.msra.mxu0 %v4212
    %5670 = vmatprep.subr.bf16.mxu0 0
    %5671 = vmatpush2.bf16.msra.mxu0 %v4211
    %5672 = vmatprep.subr.bf16.mxu0 0
    %5673 = vmatpush2.bf16.msra.mxu0 %v4210
    %5674 = vmatprep.mubr.bf16.mxu0 %v1377
    %5675 = vmatmul.mubr.bf16.gmra.mxu0 %v1363
    %v5676 = vpop.f32.mrf.mxu0
    %v5677 = vadd.f32 %v5637, %v5676
    %v5678 = vpop.f32.mrf.mxu0
    %v5679 = vpop.f32.mrf.mxu0
    %v5680 = vpop.f32.mrf.mxu0
    %5681 = vdwg.mxu0
    %5682 = vmatprep.subr.bf16.mxu0 0
    %5683 = vmatpush1.bf16.msra.mxu0 %v4225
    %5684 = vmatprep.subr.bf16.mxu0 0
    %5685 = vmatpush1.bf16.msra.mxu0 %v4224
    %5686 = vmatprep.subr.bf16.mxu0 0
    %5687 = vmatpush1.bf16.msra.mxu0 %v4223
    %5688 = vmatprep.subr.bf16.mxu0 0
    %5689 = vmatpush1.bf16.msra.mxu0 %v4222
    %5690 = vmatprep.subr.bf16.mxu0 0
    %5691 = vmatpush1.bf16.msra.mxu0 %v4221
    %5692 = vmatprep.subr.bf16.mxu0 0
    %5693 = vmatpush1.bf16.msra.mxu0 %v4220
    %5694 = vmatprep.subr.bf16.mxu0 0
    %5695 = vmatpush1.bf16.msra.mxu0 %v4219
    %5696 = vmatprep.subr.bf16.mxu0 0
    %5697 = vmatpush1.bf16.msra.mxu0 %v4218
    %5698 = vmatprep.subr.bf16.mxu0 0
    %5699 = vmatpush2.bf16.msra.mxu0 %v4233
    %5700 = vmatprep.subr.bf16.mxu0 0
    %5701 = vmatpush2.bf16.msra.mxu0 %v4232
    %5702 = vmatprep.subr.bf16.mxu0 0
    %5703 = vmatpush2.bf16.msra.mxu0 %v4231
    %5704 = vmatprep.subr.bf16.mxu0 0
    %5705 = vmatpush2.bf16.msra.mxu0 %v4230
    %5706 = vmatprep.subr.bf16.mxu0 0
    %5707 = vmatpush2.bf16.msra.mxu0 %v4229
    %5708 = vmatprep.subr.bf16.mxu0 0
    %5709 = vmatpush2.bf16.msra.mxu0 %v4228
    %5710 = vmatprep.subr.bf16.mxu0 0
    %5711 = vmatpush2.bf16.msra.mxu0 %v4227
    %5712 = vmatprep.subr.bf16.mxu0 0
    %5713 = vmatpush2.bf16.msra.mxu0 %v4226
    %5714 = vmatprep.mubr.bf16.mxu0 %v1387
    %5715 = vmatmul.mubr.bf16.gmra.mxu0 %v1385
    %v5716 = vpop.f32.mrf.mxu0
    %v5717 = vadd.f32 %v5677, %v5716
    %v5718 = vpop.f32.mrf.mxu0
    %v5719 = vpop.f32.mrf.mxu0
    %v5720 = vpop.f32.mrf.mxu0
    %5721 = vdwg.mxu0
    %5722 = vmatprep.subr.bf16.mxu0 0
    %5723 = vmatpush1.bf16.msra.mxu0 %v4241
    %5724 = vmatprep.subr.bf16.mxu0 0
    %5725 = vmatpush1.bf16.msra.mxu0 %v4240
    %5726 = vmatprep.subr.bf16.mxu0 0
    %5727 = vmatpush1.bf16.msra.mxu0 %v4239
    %5728 = vmatprep.subr.bf16.mxu0 0
    %5729 = vmatpush1.bf16.msra.mxu0 %v4238
    %5730 = vmatprep.subr.bf16.mxu0 0
    %5731 = vmatpush1.bf16.msra.mxu0 %v4237
    %5732 = vmatprep.subr.bf16.mxu0 0
    %5733 = vmatpush1.bf16.msra.mxu0 %v4236
    %5734 = vmatprep.subr.bf16.mxu0 0
    %5735 = vmatpush1.bf16.msra.mxu0 %v4235
    %5736 = vmatprep.subr.bf16.mxu0 0
    %5737 = vmatpush1.bf16.msra.mxu0 %v4234
    %5738 = vmatprep.subr.bf16.mxu0 0
    %5739 = vmatpush2.bf16.msra.mxu0 %v4249
    %5740 = vmatprep.subr.bf16.mxu0 0
    %5741 = vmatpush2.bf16.msra.mxu0 %v4248
    %5742 = vmatprep.subr.bf16.mxu0 0
    %5743 = vmatpush2.bf16.msra.mxu0 %v4247
    %5744 = vmatprep.subr.bf16.mxu0 0
    %5745 = vmatpush2.bf16.msra.mxu0 %v4246
    %5746 = vmatprep.subr.bf16.mxu0 0
    %5747 = vmatpush2.bf16.msra.mxu0 %v4245
    %5748 = vmatprep.subr.bf16.mxu0 0
    %5749 = vmatpush2.bf16.msra.mxu0 %v4244
    %5750 = vmatprep.subr.bf16.mxu0 0
    %5751 = vmatpush2.bf16.msra.mxu0 %v4243
    %5752 = vmatprep.subr.bf16.mxu0 0
    %5753 = vmatpush2.bf16.msra.mxu0 %v4242
    %5754 = vmatprep.mubr.bf16.mxu0 %v1384
    %5755 = vmatmul.mubr.bf16.gmra.mxu0 %v1370
    %v5756 = vpop.f32.mrf.mxu0
    %v5757 = vadd.f32 %v5717, %v5756
    %v5758 = vpop.f32.mrf.mxu0
    %v5759 = vpop.f32.mrf.mxu0
    %v5760 = vpop.f32.mrf.mxu0
    %5761 = vdwg.mxu0
    %5762 = vmatprep.subr.bf16.mxu0 0
    %5763 = vmatpush1.bf16.msra.mxu0 %v4257
    %5764 = vmatprep.subr.bf16.mxu0 0
    %5765 = vmatpush1.bf16.msra.mxu0 %v4256
    %5766 = vmatprep.subr.bf16.mxu0 0
    %5767 = vmatpush1.bf16.msra.mxu0 %v4255
    %5768 = vmatprep.subr.bf16.mxu0 0
    %5769 = vmatpush1.bf16.msra.mxu0 %v4254
    %5770 = vmatprep.subr.bf16.mxu0 0
    %5771 = vmatpush1.bf16.msra.mxu0 %v4253
    %5772 = vmatprep.subr.bf16.mxu0 0
    %5773 = vmatpush1.bf16.msra.mxu0 %v4252
    %5774 = vmatprep.subr.bf16.mxu0 0
    %5775 = vmatpush1.bf16.msra.mxu0 %v4251
    %5776 = vmatprep.subr.bf16.mxu0 0
    %5777 = vmatpush1.bf16.msra.mxu0 %v4250
    %5778 = vmatprep.subr.bf16.mxu0 0
    %5779 = vmatpush2.bf16.msra.mxu0 %v4265
    %5780 = vmatprep.subr.bf16.mxu0 0
    %5781 = vmatpush2.bf16.msra.mxu0 %v4264
    %5782 = vmatprep.subr.bf16.mxu0 0
    %5783 = vmatpush2.bf16.msra.mxu0 %v4263
    %5784 = vmatprep.subr.bf16.mxu0 0
    %5785 = vmatpush2.bf16.msra.mxu0 %v4262
    %5786 = vmatprep.subr.bf16.mxu0 0
    %5787 = vmatpush2.bf16.msra.mxu0 %v4261
    %5788 = vmatprep.subr.bf16.mxu0 0
    %5789 = vmatpush2.bf16.msra.mxu0 %v4260
    %5790 = vmatprep.subr.bf16.mxu0 0
    %5791 = vmatpush2.bf16.msra.mxu0 %v4259
    %5792 = vmatprep.subr.bf16.mxu0 0
    %5793 = vmatpush2.bf16.msra.mxu0 %v4258
    %5794 = vmatprep.mubr.bf16.mxu0 %v1388
    %5795 = vmatmul.mubr.bf16.gmra.mxu0 %v1386
    %v5796 = vpop.f32.mrf.mxu0
    %v5797 = vadd.f32 %v5757, %v5796
    %v5798 = vpop.f32.mrf.mxu0
    %v5799 = vpop.f32.mrf.mxu0
    %v5800 = vpop.f32.mrf.mxu0
    %5801 = vdwg.mxu0
    %5802 = vmatprep.subr.bf16.mxu0 0
    %5803 = vmatpush1.bf16.msra.mxu0 %v4273
    %5804 = vmatprep.subr.bf16.mxu0 0
    %5805 = vmatpush1.bf16.msra.mxu0 %v4272
    %5806 = vmatprep.subr.bf16.mxu0 0
    %5807 = vmatpush1.bf16.msra.mxu0 %v4271
    %5808 = vmatprep.subr.bf16.mxu0 0
    %5809 = vmatpush1.bf16.msra.mxu0 %v4270
    %5810 = vmatprep.subr.bf16.mxu0 0
    %5811 = vmatpush1.bf16.msra.mxu0 %v4269
    %5812 = vmatprep.subr.bf16.mxu0 0
    %5813 = vmatpush1.bf16.msra.mxu0 %v4268
    %5814 = vmatprep.subr.bf16.mxu0 0
    %5815 = vmatpush1.bf16.msra.mxu0 %v4267
    %5816 = vmatprep.subr.bf16.mxu0 0
    %5817 = vmatpush1.bf16.msra.mxu0 %v4266
    %5818 = vmatprep.subr.bf16.mxu0 0
    %5819 = vmatpush2.bf16.msra.mxu0 %v4281
    %5820 = vmatprep.subr.bf16.mxu0 0
    %5821 = vmatpush2.bf16.msra.mxu0 %v4280
    %5822 = vmatprep.subr.bf16.mxu0 0
    %5823 = vmatpush2.bf16.msra.mxu0 %v4279
    %5824 = vmatprep.subr.bf16.mxu0 0
    %5825 = vmatpush2.bf16.msra.mxu0 %v4278
    %5826 = vmatprep.subr.bf16.mxu0 0
    %5827 = vmatpush2.bf16.msra.mxu0 %v4277
    %5828 = vmatprep.subr.bf16.mxu0 0
    %5829 = vmatpush2.bf16.msra.mxu0 %v4276
    %5830 = vmatprep.subr.bf16.mxu0 0
    %5831 = vmatpush2.bf16.msra.mxu0 %v4275
    %5832 = vmatprep.subr.bf16.mxu0 0
    %5833 = vmatpush2.bf16.msra.mxu0 %v4274
    %5834 = vmatprep.mubr.bf16.mxu0 %v1426
    %5835 = vmatmul.mubr.bf16.gmra.mxu0 %v1412
    %v5836 = vpop.f32.mrf.mxu0
    %v5837 = vadd.f32 %v5797, %v5836
    %v5838 = vpop.f32.mrf.mxu0
    %v5839 = vpop.f32.mrf.mxu0
    %v5840 = vpop.f32.mrf.mxu0
    %5841 = vdwg.mxu0
    %5842 = vmatprep.subr.bf16.mxu0 0
    %5843 = vmatpush1.bf16.msra.mxu0 %v4289
    %5844 = vmatprep.subr.bf16.mxu0 0
    %5845 = vmatpush1.bf16.msra.mxu0 %v4288
    %5846 = vmatprep.subr.bf16.mxu0 0
    %5847 = vmatpush1.bf16.msra.mxu0 %v4287
    %5848 = vmatprep.subr.bf16.mxu0 0
    %5849 = vmatpush1.bf16.msra.mxu0 %v4286
    %5850 = vmatprep.subr.bf16.mxu0 0
    %5851 = vmatpush1.bf16.msra.mxu0 %v4285
    %5852 = vmatprep.subr.bf16.mxu0 0
    %5853 = vmatpush1.bf16.msra.mxu0 %v4284
    %5854 = vmatprep.subr.bf16.mxu0 0
    %5855 = vmatpush1.bf16.msra.mxu0 %v4283
    %5856 = vmatprep.subr.bf16.mxu0 0
    %5857 = vmatpush1.bf16.msra.mxu0 %v4282
    %5858 = vmatprep.subr.bf16.mxu0 0
    %5859 = vmatpush2.bf16.msra.mxu0 %v4297
    %5860 = vmatprep.subr.bf16.mxu0 0
    %5861 = vmatpush2.bf16.msra.mxu0 %v4296
    %5862 = vmatprep.subr.bf16.mxu0 0
    %5863 = vmatpush2.bf16.msra.mxu0 %v4295
    %5864 = vmatprep.subr.bf16.mxu0 0
    %5865 = vmatpush2.bf16.msra.mxu0 %v4294
    %5866 = vmatprep.subr.bf16.mxu0 0
    %5867 = vmatpush2.bf16.msra.mxu0 %v4293
    %5868 = vmatprep.subr.bf16.mxu0 0
    %5869 = vmatpush2.bf16.msra.mxu0 %v4292
    %5870 = vmatprep.subr.bf16.mxu0 0
    %5871 = vmatpush2.bf16.msra.mxu0 %v4291
    %5872 = vmatprep.subr.bf16.mxu0 0
    %5873 = vmatpush2.bf16.msra.mxu0 %v4290
    %5874 = vmatprep.mubr.bf16.mxu0 %v1436
    %5875 = vmatmul.mubr.bf16.gmra.mxu0 %v1434
    %v5876 = vpop.f32.mrf.mxu0
    %v5877 = vadd.f32 %v5837, %v5876
    %v5878 = vpop.f32.mrf.mxu0
    %v5879 = vpop.f32.mrf.mxu0
    %v5880 = vpop.f32.mrf.mxu0
    %5881 = vdwg.mxu0
    %5882 = vmatprep.subr.bf16.mxu0 0
    %5883 = vmatpush1.bf16.msra.mxu0 %v4305
    %5884 = vmatprep.subr.bf16.mxu0 0
    %5885 = vmatpush1.bf16.msra.mxu0 %v4304
    %5886 = vmatprep.subr.bf16.mxu0 0
    %5887 = vmatpush1.bf16.msra.mxu0 %v4303
    %5888 = vmatprep.subr.bf16.mxu0 0
    %5889 = vmatpush1.bf16.msra.mxu0 %v4302
    %5890 = vmatprep.subr.bf16.mxu0 0
    %5891 = vmatpush1.bf16.msra.mxu0 %v4301
    %5892 = vmatprep.subr.bf16.mxu0 0
    %5893 = vmatpush1.bf16.msra.mxu0 %v4300
    %5894 = vmatprep.subr.bf16.mxu0 0
    %5895 = vmatpush1.bf16.msra.mxu0 %v4299
    %5896 = vmatprep.subr.bf16.mxu0 0
    %5897 = vmatpush1.bf16.msra.mxu0 %v4298
    %5898 = vmatprep.subr.bf16.mxu0 0
    %5899 = vmatpush2.bf16.msra.mxu0 %v4313
    %5900 = vmatprep.subr.bf16.mxu0 0
    %5901 = vmatpush2.bf16.msra.mxu0 %v4312
    %5902 = vmatprep.subr.bf16.mxu0 0
    %5903 = vmatpush2.bf16.msra.mxu0 %v4311
    %5904 = vmatprep.subr.bf16.mxu0 0
    %5905 = vmatpush2.bf16.msra.mxu0 %v4310
    %5906 = vmatprep.subr.bf16.mxu0 0
    %5907 = vmatpush2.bf16.msra.mxu0 %v4309
    %5908 = vmatprep.subr.bf16.mxu0 0
    %5909 = vmatpush2.bf16.msra.mxu0 %v4308
    %5910 = vmatprep.subr.bf16.mxu0 0
    %5911 = vmatpush2.bf16.msra.mxu0 %v4307
    %5912 = vmatprep.subr.bf16.mxu0 0
    %5913 = vmatpush2.bf16.msra.mxu0 %v4306
    %5914 = vmatprep.mubr.bf16.mxu0 %v1433
    %5915 = vmatmul.mubr.bf16.gmra.mxu0 %v1419
    %v5916 = vpop.f32.mrf.mxu0
    %v5917 = vadd.f32 %v5877, %v5916
    %v5918 = vpop.f32.mrf.mxu0
    %v5919 = vpop.f32.mrf.mxu0
    %v5920 = vpop.f32.mrf.mxu0
    %5921 = vdwg.mxu0
    %5922 = vmatprep.subr.bf16.mxu0 0
    %5923 = vmatpush1.bf16.msra.mxu0 %v4321
    %5924 = vmatprep.subr.bf16.mxu0 0
    %5925 = vmatpush1.bf16.msra.mxu0 %v4320
    %5926 = vmatprep.subr.bf16.mxu0 0
    %5927 = vmatpush1.bf16.msra.mxu0 %v4319
    %5928 = vmatprep.subr.bf16.mxu0 0
    %5929 = vmatpush1.bf16.msra.mxu0 %v4318
    %5930 = vmatprep.subr.bf16.mxu0 0
    %5931 = vmatpush1.bf16.msra.mxu0 %v4317
    %5932 = vmatprep.subr.bf16.mxu0 0
    %5933 = vmatpush1.bf16.msra.mxu0 %v4316
    %5934 = vmatprep.subr.bf16.mxu0 0
    %5935 = vmatpush1.bf16.msra.mxu0 %v4315
    %5936 = vmatprep.subr.bf16.mxu0 0
    %5937 = vmatpush1.bf16.msra.mxu0 %v4314
    %5938 = vmatprep.subr.bf16.mxu0 0
    %5939 = vmatpush2.bf16.msra.mxu0 %v4329
    %5940 = vmatprep.subr.bf16.mxu0 0
    %5941 = vmatpush2.bf16.msra.mxu0 %v4328
    %5942 = vmatprep.subr.bf16.mxu0 0
    %5943 = vmatpush2.bf16.msra.mxu0 %v4327
    %5944 = vmatprep.subr.bf16.mxu0 0
    %5945 = vmatpush2.bf16.msra.mxu0 %v4326
    %5946 = vmatprep.subr.bf16.mxu0 0
    %5947 = vmatpush2.bf16.msra.mxu0 %v4325
    %5948 = vmatprep.subr.bf16.mxu0 0
    %5949 = vmatpush2.bf16.msra.mxu0 %v4324
    %5950 = vmatprep.subr.bf16.mxu0 0
    %5951 = vmatpush2.bf16.msra.mxu0 %v4323
    %5952 = vmatprep.subr.bf16.mxu0 0
    %5953 = vmatpush2.bf16.msra.mxu0 %v4322
    %5954 = vmatprep.mubr.bf16.mxu0 %v1437
    %5955 = vmatmul.mubr.bf16.gmra.mxu0 %v1435
    %v5956 = vpop.f32.mrf.mxu0
    %v5957 = vadd.f32 %v5917, %v5956
    %v5958 = vpop.f32.mrf.mxu0
    %v5959 = vpop.f32.mrf.mxu0
    %v5960 = vpop.f32.mrf.mxu0
    %5961 = vdwg.mxu0
    %5962 = vmatprep.subr.bf16.mxu0 0
    %5963 = vmatpush1.bf16.msra.mxu0 %v4337
    %5964 = vmatprep.subr.bf16.mxu0 0
    %5965 = vmatpush1.bf16.msra.mxu0 %v4336
    %5966 = vmatprep.subr.bf16.mxu0 0
    %5967 = vmatpush1.bf16.msra.mxu0 %v4335
    %5968 = vmatprep.subr.bf16.mxu0 0
    %5969 = vmatpush1.bf16.msra.mxu0 %v4334
    %5970 = vmatprep.subr.bf16.mxu0 0
    %5971 = vmatpush1.bf16.msra.mxu0 %v4333
    %5972 = vmatprep.subr.bf16.mxu0 0
    %5973 = vmatpush1.bf16.msra.mxu0 %v4332
    %5974 = vmatprep.subr.bf16.mxu0 0
    %5975 = vmatpush1.bf16.msra.mxu0 %v4331
    %5976 = vmatprep.subr.bf16.mxu0 0
    %5977 = vmatpush1.bf16.msra.mxu0 %v4330
    %5978 = vmatprep.subr.bf16.mxu0 0
    %5979 = vmatpush2.bf16.msra.mxu0 %v4345
    %5980 = vmatprep.subr.bf16.mxu0 0
    %5981 = vmatpush2.bf16.msra.mxu0 %v4344
    %5982 = vmatprep.subr.bf16.mxu0 0
    %5983 = vmatpush2.bf16.msra.mxu0 %v4343
    %5984 = vmatprep.subr.bf16.mxu0 0
    %5985 = vmatpush2.bf16.msra.mxu0 %v4342
    %5986 = vmatprep.subr.bf16.mxu0 0
    %5987 = vmatpush2.bf16.msra.mxu0 %v4341
    %5988 = vmatprep.subr.bf16.mxu0 0
    %5989 = vmatpush2.bf16.msra.mxu0 %v4340
    %5990 = vmatprep.subr.bf16.mxu0 0
    %5991 = vmatpush2.bf16.msra.mxu0 %v4339
    %5992 = vmatprep.subr.bf16.mxu0 0
    %5993 = vmatpush2.bf16.msra.mxu0 %v4338
    %5994 = vmatprep.mubr.bf16.mxu0 %v1475
    %5995 = vmatmul.mubr.bf16.gmra.mxu0 %v1461
    %v5996 = vpop.f32.mrf.mxu0
    %v5997 = vadd.f32 %v5957, %v5996
    %v5998 = vpop.f32.mrf.mxu0
    %v5999 = vpop.f32.mrf.mxu0
    %v6000 = vpop.f32.mrf.mxu0
    %6001 = vdwg.mxu0
    %6002 = vmatprep.subr.bf16.mxu0 0
    %6003 = vmatpush1.bf16.msra.mxu0 %v4353
    %6004 = vmatprep.subr.bf16.mxu0 0
    %6005 = vmatpush1.bf16.msra.mxu0 %v4352
    %6006 = vmatprep.subr.bf16.mxu0 0
    %6007 = vmatpush1.bf16.msra.mxu0 %v4351
    %6008 = vmatprep.subr.bf16.mxu0 0
    %6009 = vmatpush1.bf16.msra.mxu0 %v4350
    %6010 = vmatprep.subr.bf16.mxu0 0
    %6011 = vmatpush1.bf16.msra.mxu0 %v4349
    %6012 = vmatprep.subr.bf16.mxu0 0
    %6013 = vmatpush1.bf16.msra.mxu0 %v4348
    %6014 = vmatprep.subr.bf16.mxu0 0
    %6015 = vmatpush1.bf16.msra.mxu0 %v4347
    %6016 = vmatprep.subr.bf16.mxu0 0
    %6017 = vmatpush1.bf16.msra.mxu0 %v4346
    %6018 = vmatprep.subr.bf16.mxu0 0
    %6019 = vmatpush2.bf16.msra.mxu0 %v4361
    %6020 = vmatprep.subr.bf16.mxu0 0
    %6021 = vmatpush2.bf16.msra.mxu0 %v4360
    %6022 = vmatprep.subr.bf16.mxu0 0
    %6023 = vmatpush2.bf16.msra.mxu0 %v4359
    %6024 = vmatprep.subr.bf16.mxu0 0
    %6025 = vmatpush2.bf16.msra.mxu0 %v4358
    %6026 = vmatprep.subr.bf16.mxu0 0
    %6027 = vmatpush2.bf16.msra.mxu0 %v4357
    %6028 = vmatprep.subr.bf16.mxu0 0
    %6029 = vmatpush2.bf16.msra.mxu0 %v4356
    %6030 = vmatprep.subr.bf16.mxu0 0
    %6031 = vmatpush2.bf16.msra.mxu0 %v4355
    %6032 = vmatprep.subr.bf16.mxu0 0
    %6033 = vmatpush2.bf16.msra.mxu0 %v4354
    %6034 = vmatprep.mubr.bf16.mxu0 %v1485
    %6035 = vmatmul.mubr.bf16.gmra.mxu0 %v1483
    %v6036 = vpop.f32.mrf.mxu0
    %v6037 = vadd.f32 %v5997, %v6036
    %v6038 = vpop.f32.mrf.mxu0
    %v6039 = vpop.f32.mrf.mxu0
    %v6040 = vpop.f32.mrf.mxu0
    %6041 = vdwg.mxu0
    %6042 = vmatprep.subr.bf16.mxu0 0
    %6043 = vmatpush1.bf16.msra.mxu0 %v4369
    %6044 = vmatprep.subr.bf16.mxu0 0
    %6045 = vmatpush1.bf16.msra.mxu0 %v4368
    %6046 = vmatprep.subr.bf16.mxu0 0
    %6047 = vmatpush1.bf16.msra.mxu0 %v4367
    %6048 = vmatprep.subr.bf16.mxu0 0
    %6049 = vmatpush1.bf16.msra.mxu0 %v4366
    %6050 = vmatprep.subr.bf16.mxu0 0
    %6051 = vmatpush1.bf16.msra.mxu0 %v4365
    %6052 = vmatprep.subr.bf16.mxu0 0
    %6053 = vmatpush1.bf16.msra.mxu0 %v4364
    %6054 = vmatprep.subr.bf16.mxu0 0
    %6055 = vmatpush1.bf16.msra.mxu0 %v4363
    %6056 = vmatprep.subr.bf16.mxu0 0
    %6057 = vmatpush1.bf16.msra.mxu0 %v4362
    %6058 = vmatprep.subr.bf16.mxu0 0
    %6059 = vmatpush2.bf16.msra.mxu0 %v4377
    %6060 = vmatprep.subr.bf16.mxu0 0
    %6061 = vmatpush2.bf16.msra.mxu0 %v4376
    %6062 = vmatprep.subr.bf16.mxu0 0
    %6063 = vmatpush2.bf16.msra.mxu0 %v4375
    %6064 = vmatprep.subr.bf16.mxu0 0
    %6065 = vmatpush2.bf16.msra.mxu0 %v4374
    %6066 = vmatprep.subr.bf16.mxu0 0
    %6067 = vmatpush2.bf16.msra.mxu0 %v4373
    %6068 = vmatprep.subr.bf16.mxu0 0
    %6069 = vmatpush2.bf16.msra.mxu0 %v4372
    %6070 = vmatprep.subr.bf16.mxu0 0
    %6071 = vmatpush2.bf16.msra.mxu0 %v4371
    %6072 = vmatprep.subr.bf16.mxu0 0
    %6073 = vmatpush2.bf16.msra.mxu0 %v4370
    %6074 = vmatprep.mubr.bf16.mxu0 %v1482
    %6075 = vmatmul.mubr.bf16.gmra.mxu0 %v1468
    %v6076 = vpop.f32.mrf.mxu0
    %v6077 = vadd.f32 %v6037, %v6076
    %v6078 = vpop.f32.mrf.mxu0
    %v6079 = vpop.f32.mrf.mxu0
    %v6080 = vpop.f32.mrf.mxu0
    %6081 = vdwg.mxu0
    %6082 = vmatprep.subr.bf16.mxu0 0
    %6083 = vmatpush1.bf16.msra.mxu0 %v4385
    %6084 = vmatprep.subr.bf16.mxu0 0
    %6085 = vmatpush1.bf16.msra.mxu0 %v4384
    %6086 = vmatprep.subr.bf16.mxu0 0
    %6087 = vmatpush1.bf16.msra.mxu0 %v4383
    %6088 = vmatprep.subr.bf16.mxu0 0
    %6089 = vmatpush1.bf16.msra.mxu0 %v4382
    %6090 = vmatprep.subr.bf16.mxu0 0
    %6091 = vmatpush1.bf16.msra.mxu0 %v4381
    %6092 = vmatprep.subr.bf16.mxu0 0
    %6093 = vmatpush1.bf16.msra.mxu0 %v4380
    %6094 = vmatprep.subr.bf16.mxu0 0
    %6095 = vmatpush1.bf16.msra.mxu0 %v4379
    %6096 = vmatprep.subr.bf16.mxu0 0
    %6097 = vmatpush1.bf16.msra.mxu0 %v4378
    %6098 = vmatprep.subr.bf16.mxu0 0
    %6099 = vmatpush2.bf16.msra.mxu0 %v4393
    %6100 = vmatprep.subr.bf16.mxu0 0
    %6101 = vmatpush2.bf16.msra.mxu0 %v4392
    %6102 = vmatprep.subr.bf16.mxu0 0
    %6103 = vmatpush2.bf16.msra.mxu0 %v4391
    %6104 = vmatprep.subr.bf16.mxu0 0
    %6105 = vmatpush2.bf16.msra.mxu0 %v4390
    %6106 = vmatprep.subr.bf16.mxu0 0
    %6107 = vmatpush2.bf16.msra.mxu0 %v4389
    %6108 = vmatprep.subr.bf16.mxu0 0
    %6109 = vmatpush2.bf16.msra.mxu0 %v4388
    %6110 = vmatprep.subr.bf16.mxu0 0
    %6111 = vmatpush2.bf16.msra.mxu0 %v4387
    %6112 = vmatprep.subr.bf16.mxu0 0
    %6113 = vmatpush2.bf16.msra.mxu0 %v4386
    %6114 = vmatprep.mubr.bf16.mxu0 %v1486
    %6115 = vmatmul.mubr.bf16.gmra.mxu0 %v1484
    %v6116 = vpop.f32.mrf.mxu0
    %v6117 = vadd.f32 %v6077, %v6116
    %v6118 = vpop.f32.mrf.mxu0
    %v6119 = vpop.f32.mrf.mxu0
    %v6120 = vpop.f32.mrf.mxu0
    %6121 = vdwg.mxu0
    %6122 = vmatprep.subr.bf16.mxu0 0
    %6123 = vmatpush1.bf16.msra.mxu0 %v4401
    %6124 = vmatprep.subr.bf16.mxu0 0
    %6125 = vmatpush1.bf16.msra.mxu0 %v4400
    %6126 = vmatprep.subr.bf16.mxu0 0
    %6127 = vmatpush1.bf16.msra.mxu0 %v4399
    %6128 = vmatprep.subr.bf16.mxu0 0
    %6129 = vmatpush1.bf16.msra.mxu0 %v4398
    %6130 = vmatprep.subr.bf16.mxu0 0
    %6131 = vmatpush1.bf16.msra.mxu0 %v4397
    %6132 = vmatprep.subr.bf16.mxu0 0
    %6133 = vmatpush1.bf16.msra.mxu0 %v4396
    %6134 = vmatprep.subr.bf16.mxu0 0
    %6135 = vmatpush1.bf16.msra.mxu0 %v4395
    %6136 = vmatprep.subr.bf16.mxu0 0
    %6137 = vmatpush1.bf16.msra.mxu0 %v4394
    %6138 = vmatprep.subr.bf16.mxu0 0
    %6139 = vmatpush2.bf16.msra.mxu0 %v4409
    %6140 = vmatprep.subr.bf16.mxu0 0
    %6141 = vmatpush2.bf16.msra.mxu0 %v4408
    %6142 = vmatprep.subr.bf16.mxu0 0
    %6143 = vmatpush2.bf16.msra.mxu0 %v4407
    %6144 = vmatprep.subr.bf16.mxu0 0
    %6145 = vmatpush2.bf16.msra.mxu0 %v4406
    %6146 = vmatprep.subr.bf16.mxu0 0
    %6147 = vmatpush2.bf16.msra.mxu0 %v4405
    %6148 = vmatprep.subr.bf16.mxu0 0
    %6149 = vmatpush2.bf16.msra.mxu0 %v4404
    %6150 = vmatprep.subr.bf16.mxu0 0
    %6151 = vmatpush2.bf16.msra.mxu0 %v4403
    %6152 = vmatprep.subr.bf16.mxu0 0
    %6153 = vmatpush2.bf16.msra.mxu0 %v4402
    %6154 = vmatprep.mubr.bf16.mxu0 %v1524
    %6155 = vmatmul.mubr.bf16.gmra.mxu0 %v1510
    %v6156 = vpop.f32.mrf.mxu0
    %v6157 = vadd.f32 %v6117, %v6156
    %v6158 = vpop.f32.mrf.mxu0
    %v6159 = vpop.f32.mrf.mxu0
    %v6160 = vpop.f32.mrf.mxu0
    %6161 = vdwg.mxu0
    %6162 = vmatprep.subr.bf16.mxu0 0
    %6163 = vmatpush1.bf16.msra.mxu0 %v4417
    %6164 = vmatprep.subr.bf16.mxu0 0
    %6165 = vmatpush1.bf16.msra.mxu0 %v4416
    %6166 = vmatprep.subr.bf16.mxu0 0
    %6167 = vmatpush1.bf16.msra.mxu0 %v4415
    %6168 = vmatprep.subr.bf16.mxu0 0
    %6169 = vmatpush1.bf16.msra.mxu0 %v4414
    %6170 = vmatprep.subr.bf16.mxu0 0
    %6171 = vmatpush1.bf16.msra.mxu0 %v4413
    %6172 = vmatprep.subr.bf16.mxu0 0
    %6173 = vmatpush1.bf16.msra.mxu0 %v4412
    %6174 = vmatprep.subr.bf16.mxu0 0
    %6175 = vmatpush1.bf16.msra.mxu0 %v4411
    %6176 = vmatprep.subr.bf16.mxu0 0
    %6177 = vmatpush1.bf16.msra.mxu0 %v4410
    %6178 = vmatprep.subr.bf16.mxu0 0
    %6179 = vmatpush2.bf16.msra.mxu0 %v4425
    %6180 = vmatprep.subr.bf16.mxu0 0
    %6181 = vmatpush2.bf16.msra.mxu0 %v4424
    %6182 = vmatprep.subr.bf16.mxu0 0
    %6183 = vmatpush2.bf16.msra.mxu0 %v4423
    %6184 = vmatprep.subr.bf16.mxu0 0
    %6185 = vmatpush2.bf16.msra.mxu0 %v4422
    %6186 = vmatprep.subr.bf16.mxu0 0
    %6187 = vmatpush2.bf16.msra.mxu0 %v4421
    %6188 = vmatprep.subr.bf16.mxu0 0
    %6189 = vmatpush2.bf16.msra.mxu0 %v4420
    %6190 = vmatprep.subr.bf16.mxu0 0
    %6191 = vmatpush2.bf16.msra.mxu0 %v4419
    %6192 = vmatprep.subr.bf16.mxu0 0
    %6193 = vmatpush2.bf16.msra.mxu0 %v4418
    %6194 = vmatprep.mubr.bf16.mxu0 %v1534
    %6195 = vmatmul.mubr.bf16.gmra.mxu0 %v1532
    %v6196 = vpop.f32.mrf.mxu0
    %v6197 = vadd.f32 %v6157, %v6196
    %v6198 = vpop.f32.mrf.mxu0
    %v6199 = vpop.f32.mrf.mxu0
    %v6200 = vpop.f32.mrf.mxu0
    %6201 = vdwg.mxu0
    %6202 = vmatprep.subr.bf16.mxu0 0
    %6203 = vmatpush1.bf16.msra.mxu0 %v4433
    %6204 = vmatprep.subr.bf16.mxu0 0
    %6205 = vmatpush1.bf16.msra.mxu0 %v4432
    %6206 = vmatprep.subr.bf16.mxu0 0
    %6207 = vmatpush1.bf16.msra.mxu0 %v4431
    %6208 = vmatprep.subr.bf16.mxu0 0
    %6209 = vmatpush1.bf16.msra.mxu0 %v4430
    %6210 = vmatprep.subr.bf16.mxu0 0
    %6211 = vmatpush1.bf16.msra.mxu0 %v4429
    %6212 = vmatprep.subr.bf16.mxu0 0
    %6213 = vmatpush1.bf16.msra.mxu0 %v4428
    %6214 = vmatprep.subr.bf16.mxu0 0
    %6215 = vmatpush1.bf16.msra.mxu0 %v4427
    %6216 = vmatprep.subr.bf16.mxu0 0
    %6217 = vmatpush1.bf16.msra.mxu0 %v4426
    %6218 = vmatprep.subr.bf16.mxu0 0
    %6219 = vmatpush2.bf16.msra.mxu0 %v4441
    %6220 = vmatprep.subr.bf16.mxu0 0
    %6221 = vmatpush2.bf16.msra.mxu0 %v4440
    %6222 = vmatprep.subr.bf16.mxu0 0
    %6223 = vmatpush2.bf16.msra.mxu0 %v4439
    %6224 = vmatprep.subr.bf16.mxu0 0
    %6225 = vmatpush2.bf16.msra.mxu0 %v4438
    %6226 = vmatprep.subr.bf16.mxu0 0
    %6227 = vmatpush2.bf16.msra.mxu0 %v4437
    %6228 = vmatprep.subr.bf16.mxu0 0
    %6229 = vmatpush2.bf16.msra.mxu0 %v4436
    %6230 = vmatprep.subr.bf16.mxu0 0
    %6231 = vmatpush2.bf16.msra.mxu0 %v4435
    %6232 = vmatprep.subr.bf16.mxu0 0
    %6233 = vmatpush2.bf16.msra.mxu0 %v4434
    %6234 = vmatprep.mubr.bf16.mxu0 %v1531
    %6235 = vmatmul.mubr.bf16.gmra.mxu0 %v1517
    %v6236 = vpop.f32.mrf.mxu0
    %v6237 = vadd.f32 %v6197, %v6236
    %v6238 = vpop.f32.mrf.mxu0
    %v6239 = vpop.f32.mrf.mxu0
    %v6240 = vpop.f32.mrf.mxu0
    %6241 = vdwg.mxu0
    %6242 = vmatprep.subr.bf16.mxu0 0
    %6243 = vmatpush1.bf16.msra.mxu0 %v4449
    %6244 = vmatprep.subr.bf16.mxu0 0
    %6245 = vmatpush1.bf16.msra.mxu0 %v4448
    %6246 = vmatprep.subr.bf16.mxu0 0
    %6247 = vmatpush1.bf16.msra.mxu0 %v4447
    %6248 = vmatprep.subr.bf16.mxu0 0
    %6249 = vmatpush1.bf16.msra.mxu0 %v4446
    %6250 = vmatprep.subr.bf16.mxu0 0
    %6251 = vmatpush1.bf16.msra.mxu0 %v4445
    %6252 = vmatprep.subr.bf16.mxu0 0
    %6253 = vmatpush1.bf16.msra.mxu0 %v4444
    %6254 = vmatprep.subr.bf16.mxu0 0
    %6255 = vmatpush1.bf16.msra.mxu0 %v4443
    %6256 = vmatprep.subr.bf16.mxu0 0
    %6257 = vmatpush1.bf16.msra.mxu0 %v4442
    %6258 = vmatprep.subr.bf16.mxu0 0
    %6259 = vmatpush2.bf16.msra.mxu0 %v4457
    %6260 = vmatprep.subr.bf16.mxu0 0
    %6261 = vmatpush2.bf16.msra.mxu0 %v4456
    %6262 = vmatprep.subr.bf16.mxu0 0
    %6263 = vmatpush2.bf16.msra.mxu0 %v4455
    %6264 = vmatprep.subr.bf16.mxu0 0
    %6265 = vmatpush2.bf16.msra.mxu0 %v4454
    %6266 = vmatprep.subr.bf16.mxu0 0
    %6267 = vmatpush2.bf16.msra.mxu0 %v4453
    %6268 = vmatprep.subr.bf16.mxu0 0
    %6269 = vmatpush2.bf16.msra.mxu0 %v4452
    %6270 = vmatprep.subr.bf16.mxu0 0
    %6271 = vmatpush2.bf16.msra.mxu0 %v4451
    %6272 = vmatprep.subr.bf16.mxu0 0
    %6273 = vmatpush2.bf16.msra.mxu0 %v4450
    %6274 = vmatprep.mubr.bf16.mxu0 %v1535
    %6275 = vmatmul.mubr.bf16.gmra.mxu0 %v1533
    %v6276 = vpop.f32.mrf.mxu0
    %v6277 = vadd.f32 %v6237, %v6276
    %v6278 = vpop.f32.mrf.mxu0
    %v6279 = vpop.f32.mrf.mxu0
    %v6280 = vpop.f32.mrf.mxu0
    %6281 = vdwg.mxu0
    %6282 = vmatprep.subr.bf16.mxu0 0
    %6283 = vmatpush1.bf16.msra.mxu0 %v4465
    %6284 = vmatprep.subr.bf16.mxu0 0
    %6285 = vmatpush1.bf16.msra.mxu0 %v4464
    %6286 = vmatprep.subr.bf16.mxu0 0
    %6287 = vmatpush1.bf16.msra.mxu0 %v4463
    %6288 = vmatprep.subr.bf16.mxu0 0
    %6289 = vmatpush1.bf16.msra.mxu0 %v4462
    %6290 = vmatprep.subr.bf16.mxu0 0
    %6291 = vmatpush1.bf16.msra.mxu0 %v4461
    %6292 = vmatprep.subr.bf16.mxu0 0
    %6293 = vmatpush1.bf16.msra.mxu0 %v4460
    %6294 = vmatprep.subr.bf16.mxu0 0
    %6295 = vmatpush1.bf16.msra.mxu0 %v4459
    %6296 = vmatprep.subr.bf16.mxu0 0
    %6297 = vmatpush1.bf16.msra.mxu0 %v4458
    %6298 = vmatprep.subr.bf16.mxu0 0
    %6299 = vmatpush2.bf16.msra.mxu0 %v4473
    %6300 = vmatprep.subr.bf16.mxu0 0
    %6301 = vmatpush2.bf16.msra.mxu0 %v4472
    %6302 = vmatprep.subr.bf16.mxu0 0
    %6303 = vmatpush2.bf16.msra.mxu0 %v4471
    %6304 = vmatprep.subr.bf16.mxu0 0
    %6305 = vmatpush2.bf16.msra.mxu0 %v4470
    %6306 = vmatprep.subr.bf16.mxu0 0
    %6307 = vmatpush2.bf16.msra.mxu0 %v4469
    %6308 = vmatprep.subr.bf16.mxu0 0
    %6309 = vmatpush2.bf16.msra.mxu0 %v4468
    %6310 = vmatprep.subr.bf16.mxu0 0
    %6311 = vmatpush2.bf16.msra.mxu0 %v4467
    %6312 = vmatprep.subr.bf16.mxu0 0
    %6313 = vmatpush2.bf16.msra.mxu0 %v4466
    %6314 = vmatprep.mubr.bf16.mxu0 %v1573
    %6315 = vmatmul.mubr.bf16.gmra.mxu0 %v1559
    %v6316 = vpop.f32.mrf.mxu0
    %v6317 = vadd.f32 %v6277, %v6316
    %v6318 = vpop.f32.mrf.mxu0
    %v6319 = vpop.f32.mrf.mxu0
    %v6320 = vpop.f32.mrf.mxu0
    %6321 = vdwg.mxu0
    %6322 = vmatprep.subr.bf16.mxu0 0
    %6323 = vmatpush1.bf16.msra.mxu0 %v4481
    %6324 = vmatprep.subr.bf16.mxu0 0
    %6325 = vmatpush1.bf16.msra.mxu0 %v4480
    %6326 = vmatprep.subr.bf16.mxu0 0
    %6327 = vmatpush1.bf16.msra.mxu0 %v4479
    %6328 = vmatprep.subr.bf16.mxu0 0
    %6329 = vmatpush1.bf16.msra.mxu0 %v4478
    %6330 = vmatprep.subr.bf16.mxu0 0
    %6331 = vmatpush1.bf16.msra.mxu0 %v4477
    %6332 = vmatprep.subr.bf16.mxu0 0
    %6333 = vmatpush1.bf16.msra.mxu0 %v4476
    %6334 = vmatprep.subr.bf16.mxu0 0
    %6335 = vmatpush1.bf16.msra.mxu0 %v4475
    %6336 = vmatprep.subr.bf16.mxu0 0
    %6337 = vmatpush1.bf16.msra.mxu0 %v4474
    %6338 = vmatprep.subr.bf16.mxu0 0
    %6339 = vmatpush2.bf16.msra.mxu0 %v4489
    %6340 = vmatprep.subr.bf16.mxu0 0
    %6341 = vmatpush2.bf16.msra.mxu0 %v4488
    %6342 = vmatprep.subr.bf16.mxu0 0
    %6343 = vmatpush2.bf16.msra.mxu0 %v4487
    %6344 = vmatprep.subr.bf16.mxu0 0
    %6345 = vmatpush2.bf16.msra.mxu0 %v4486
    %6346 = vmatprep.subr.bf16.mxu0 0
    %6347 = vmatpush2.bf16.msra.mxu0 %v4485
    %6348 = vmatprep.subr.bf16.mxu0 0
    %6349 = vmatpush2.bf16.msra.mxu0 %v4484
    %6350 = vmatprep.subr.bf16.mxu0 0
    %6351 = vmatpush2.bf16.msra.mxu0 %v4483
    %6352 = vmatprep.subr.bf16.mxu0 0
    %6353 = vmatpush2.bf16.msra.mxu0 %v4482
    %6354 = vmatprep.mubr.bf16.mxu0 %v1583
    %6355 = vmatmul.mubr.bf16.gmra.mxu0 %v1581
    %v6356 = vpop.f32.mrf.mxu0
    %v6357 = vadd.f32 %v6317, %v6356
    %v6358 = vpop.f32.mrf.mxu0
    %v6359 = vpop.f32.mrf.mxu0
    %v6360 = vpop.f32.mrf.mxu0
    %6361 = vdwg.mxu0
    %6362 = vmatprep.subr.bf16.mxu0 0
    %6363 = vmatpush1.bf16.msra.mxu0 %v4497
    %6364 = vmatprep.subr.bf16.mxu0 0
    %6365 = vmatpush1.bf16.msra.mxu0 %v4496
    %6366 = vmatprep.subr.bf16.mxu0 0
    %6367 = vmatpush1.bf16.msra.mxu0 %v4495
    %6368 = vmatprep.subr.bf16.mxu0 0
    %6369 = vmatpush1.bf16.msra.mxu0 %v4494
    %6370 = vmatprep.subr.bf16.mxu0 0
    %6371 = vmatpush1.bf16.msra.mxu0 %v4493
    %6372 = vmatprep.subr.bf16.mxu0 0
    %6373 = vmatpush1.bf16.msra.mxu0 %v4492
    %6374 = vmatprep.subr.bf16.mxu0 0
    %6375 = vmatpush1.bf16.msra.mxu0 %v4491
    %6376 = vmatprep.subr.bf16.mxu0 0
    %6377 = vmatpush1.bf16.msra.mxu0 %v4490
    %6378 = vmatprep.subr.bf16.mxu0 0
    %6379 = vmatpush2.bf16.msra.mxu0 %v4505
    %6380 = vmatprep.subr.bf16.mxu0 0
    %6381 = vmatpush2.bf16.msra.mxu0 %v4504
    %6382 = vmatprep.subr.bf16.mxu0 0
    %6383 = vmatpush2.bf16.msra.mxu0 %v4503
    %6384 = vmatprep.subr.bf16.mxu0 0
    %6385 = vmatpush2.bf16.msra.mxu0 %v4502
    %6386 = vmatprep.subr.bf16.mxu0 0
    %6387 = vmatpush2.bf16.msra.mxu0 %v4501
    %6388 = vmatprep.subr.bf16.mxu0 0
    %6389 = vmatpush2.bf16.msra.mxu0 %v4500
    %6390 = vmatprep.subr.bf16.mxu0 0
    %6391 = vmatpush2.bf16.msra.mxu0 %v4499
    %6392 = vmatprep.subr.bf16.mxu0 0
    %6393 = vmatpush2.bf16.msra.mxu0 %v4498
    %6394 = vmatprep.mubr.bf16.mxu0 %v1580
    %6395 = vmatmul.mubr.bf16.gmra.mxu0 %v1566
    %v6396 = vpop.f32.mrf.mxu0
    %v6397 = vadd.f32 %v6357, %v6396
    %v6398 = vpop.f32.mrf.mxu0
    %v6399 = vpop.f32.mrf.mxu0
    %v6400 = vpop.f32.mrf.mxu0
    %6401 = vdwg.mxu0
    %6402 = vmatprep.subr.bf16.mxu0 0
    %6403 = vmatpush1.bf16.msra.mxu0 %v4513
    %6404 = vmatprep.subr.bf16.mxu0 0
    %6405 = vmatpush1.bf16.msra.mxu0 %v4512
    %6406 = vmatprep.subr.bf16.mxu0 0
    %6407 = vmatpush1.bf16.msra.mxu0 %v4511
    %6408 = vmatprep.subr.bf16.mxu0 0
    %6409 = vmatpush1.bf16.msra.mxu0 %v4510
    %6410 = vmatprep.subr.bf16.mxu0 0
    %6411 = vmatpush1.bf16.msra.mxu0 %v4509
    %6412 = vmatprep.subr.bf16.mxu0 0
    %6413 = vmatpush1.bf16.msra.mxu0 %v4508
    %6414 = vmatprep.subr.bf16.mxu0 0
    %6415 = vmatpush1.bf16.msra.mxu0 %v4507
    %6416 = vmatprep.subr.bf16.mxu0 0
    %6417 = vmatpush1.bf16.msra.mxu0 %v4506
    %6418 = vmatprep.subr.bf16.mxu0 0
    %6419 = vmatpush2.bf16.msra.mxu0 %v4521
    %6420 = vmatprep.subr.bf16.mxu0 0
    %6421 = vmatpush2.bf16.msra.mxu0 %v4520
    %6422 = vmatprep.subr.bf16.mxu0 0
    %6423 = vmatpush2.bf16.msra.mxu0 %v4519
    %6424 = vmatprep.subr.bf16.mxu0 0
    %6425 = vmatpush2.bf16.msra.mxu0 %v4518
    %6426 = vmatprep.subr.bf16.mxu0 0
    %6427 = vmatpush2.bf16.msra.mxu0 %v4517
    %6428 = vmatprep.subr.bf16.mxu0 0
    %6429 = vmatpush2.bf16.msra.mxu0 %v4516
    %6430 = vmatprep.subr.bf16.mxu0 0
    %6431 = vmatpush2.bf16.msra.mxu0 %v4515
    %6432 = vmatprep.subr.bf16.mxu0 0
    %6433 = vmatpush2.bf16.msra.mxu0 %v4514
    %6434 = vmatprep.mubr.bf16.mxu0 %v1584
    %6435 = vmatmul.mubr.bf16.gmra.mxu0 %v1582
    %v6436 = vpop.f32.mrf.mxu0
    %v6437 = vadd.f32 %v6397, %v6436
    %v6438 = vpop.f32.mrf.mxu0
    %v6439 = vpop.f32.mrf.mxu0
    %v6440 = vpop.f32.mrf.mxu0
    %6441 = vdwg.mxu0
    %6442 = vmatprep.subr.bf16.mxu0 0
    %6443 = vmatpush1.bf16.msra.mxu0 %v4529
    %6444 = vmatprep.subr.bf16.mxu0 0
    %6445 = vmatpush1.bf16.msra.mxu0 %v4528
    %6446 = vmatprep.subr.bf16.mxu0 0
    %6447 = vmatpush1.bf16.msra.mxu0 %v4527
    %6448 = vmatprep.subr.bf16.mxu0 0
    %6449 = vmatpush1.bf16.msra.mxu0 %v4526
    %6450 = vmatprep.subr.bf16.mxu0 0
    %6451 = vmatpush1.bf16.msra.mxu0 %v4525
    %6452 = vmatprep.subr.bf16.mxu0 0
    %6453 = vmatpush1.bf16.msra.mxu0 %v4524
    %6454 = vmatprep.subr.bf16.mxu0 0
    %6455 = vmatpush1.bf16.msra.mxu0 %v4523
    %6456 = vmatprep.subr.bf16.mxu0 0
    %6457 = vmatpush1.bf16.msra.mxu0 %v4522
    %6458 = vmatprep.subr.bf16.mxu0 0
    %6459 = vmatpush2.bf16.msra.mxu0 %v4537
    %6460 = vmatprep.subr.bf16.mxu0 0
    %6461 = vmatpush2.bf16.msra.mxu0 %v4536
    %6462 = vmatprep.subr.bf16.mxu0 0
    %6463 = vmatpush2.bf16.msra.mxu0 %v4535
    %6464 = vmatprep.subr.bf16.mxu0 0
    %6465 = vmatpush2.bf16.msra.mxu0 %v4534
    %6466 = vmatprep.subr.bf16.mxu0 0
    %6467 = vmatpush2.bf16.msra.mxu0 %v4533
    %6468 = vmatprep.subr.bf16.mxu0 0
    %6469 = vmatpush2.bf16.msra.mxu0 %v4532
    %6470 = vmatprep.subr.bf16.mxu0 0
    %6471 = vmatpush2.bf16.msra.mxu0 %v4531
    %6472 = vmatprep.subr.bf16.mxu0 0
    %6473 = vmatpush2.bf16.msra.mxu0 %v4530
    %6474 = vmatprep.mubr.bf16.mxu0 %v1622
    %6475 = vmatmul.mubr.bf16.gmra.mxu0 %v1608
    %v6476 = vpop.f32.mrf.mxu0
    %v6477 = vadd.f32 %v6437, %v6476
    %v6478 = vpop.f32.mrf.mxu0
    %v6479 = vpop.f32.mrf.mxu0
    %v6480 = vpop.f32.mrf.mxu0
    %6481 = vdwg.mxu0
    %6482 = vmatprep.subr.bf16.mxu0 0
    %6483 = vmatpush1.bf16.msra.mxu0 %v4545
    %6484 = vmatprep.subr.bf16.mxu0 0
    %6485 = vmatpush1.bf16.msra.mxu0 %v4544
    %6486 = vmatprep.subr.bf16.mxu0 0
    %6487 = vmatpush1.bf16.msra.mxu0 %v4543
    %6488 = vmatprep.subr.bf16.mxu0 0
    %6489 = vmatpush1.bf16.msra.mxu0 %v4542
    %6490 = vmatprep.subr.bf16.mxu0 0
    %6491 = vmatpush1.bf16.msra.mxu0 %v4541
    %6492 = vmatprep.subr.bf16.mxu0 0
    %6493 = vmatpush1.bf16.msra.mxu0 %v4540
    %6494 = vmatprep.subr.bf16.mxu0 0
    %6495 = vmatpush1.bf16.msra.mxu0 %v4539
    %6496 = vmatprep.subr.bf16.mxu0 0
    %6497 = vmatpush1.bf16.msra.mxu0 %v4538
    %6498 = vmatprep.subr.bf16.mxu0 0
    %6499 = vmatpush2.bf16.msra.mxu0 %v4553
    %6500 = vmatprep.subr.bf16.mxu0 0
    %6501 = vmatpush2.bf16.msra.mxu0 %v4552
    %6502 = vmatprep.subr.bf16.mxu0 0
    %6503 = vmatpush2.bf16.msra.mxu0 %v4551
    %6504 = vmatprep.subr.bf16.mxu0 0
    %6505 = vmatpush2.bf16.msra.mxu0 %v4550
    %6506 = vmatprep.subr.bf16.mxu0 0
    %6507 = vmatpush2.bf16.msra.mxu0 %v4549
    %6508 = vmatprep.subr.bf16.mxu0 0
    %6509 = vmatpush2.bf16.msra.mxu0 %v4548
    %6510 = vmatprep.subr.bf16.mxu0 0
    %6511 = vmatpush2.bf16.msra.mxu0 %v4547
    %6512 = vmatprep.subr.bf16.mxu0 0
    %6513 = vmatpush2.bf16.msra.mxu0 %v4546
    %6514 = vmatprep.mubr.bf16.mxu0 %v1632
    %6515 = vmatmul.mubr.bf16.gmra.mxu0 %v1630
    %v6516 = vpop.f32.mrf.mxu0
    %v6517 = vadd.f32 %v6477, %v6516
    %v6518 = vpop.f32.mrf.mxu0
    %v6519 = vpop.f32.mrf.mxu0
    %v6520 = vpop.f32.mrf.mxu0
    %6521 = vdwg.mxu0
    %6522 = vmatprep.subr.bf16.mxu0 0
    %6523 = vmatpush1.bf16.msra.mxu0 %v4561
    %6524 = vmatprep.subr.bf16.mxu0 0
    %6525 = vmatpush1.bf16.msra.mxu0 %v4560
    %6526 = vmatprep.subr.bf16.mxu0 0
    %6527 = vmatpush1.bf16.msra.mxu0 %v4559
    %6528 = vmatprep.subr.bf16.mxu0 0
    %6529 = vmatpush1.bf16.msra.mxu0 %v4558
    %6530 = vmatprep.subr.bf16.mxu0 0
    %6531 = vmatpush1.bf16.msra.mxu0 %v4557
    %6532 = vmatprep.subr.bf16.mxu0 0
    %6533 = vmatpush1.bf16.msra.mxu0 %v4556
    %6534 = vmatprep.subr.bf16.mxu0 0
    %6535 = vmatpush1.bf16.msra.mxu0 %v4555
    %6536 = vmatprep.subr.bf16.mxu0 0
    %6537 = vmatpush1.bf16.msra.mxu0 %v4554
    %6538 = vmatprep.subr.bf16.mxu0 0
    %6539 = vmatpush2.bf16.msra.mxu0 %v4569
    %6540 = vmatprep.subr.bf16.mxu0 0
    %6541 = vmatpush2.bf16.msra.mxu0 %v4568
    %6542 = vmatprep.subr.bf16.mxu0 0
    %6543 = vmatpush2.bf16.msra.mxu0 %v4567
    %6544 = vmatprep.subr.bf16.mxu0 0
    %6545 = vmatpush2.bf16.msra.mxu0 %v4566
    %6546 = vmatprep.subr.bf16.mxu0 0
    %6547 = vmatpush2.bf16.msra.mxu0 %v4565
    %6548 = vmatprep.subr.bf16.mxu0 0
    %6549 = vmatpush2.bf16.msra.mxu0 %v4564
    %6550 = vmatprep.subr.bf16.mxu0 0
    %6551 = vmatpush2.bf16.msra.mxu0 %v4563
    %6552 = vmatprep.subr.bf16.mxu0 0
    %6553 = vmatpush2.bf16.msra.mxu0 %v4562
    %6554 = vmatprep.mubr.bf16.mxu0 %v1629
    %6555 = vmatmul.mubr.bf16.gmra.mxu0 %v1615
    %v6556 = vpop.f32.mrf.mxu0
    %v6557 = vadd.f32 %v6517, %v6556
    %v6558 = vpop.f32.mrf.mxu0
    %v6559 = vpop.f32.mrf.mxu0
    %v6560 = vpop.f32.mrf.mxu0
    %6561 = vdwg.mxu0
    %6562 = vmatprep.subr.bf16.mxu0 0
    %6563 = vmatpush1.bf16.msra.mxu0 %v4577
    %6564 = vmatprep.subr.bf16.mxu0 0
    %6565 = vmatpush1.bf16.msra.mxu0 %v4576
    %6566 = vmatprep.subr.bf16.mxu0 0
    %6567 = vmatpush1.bf16.msra.mxu0 %v4575
    %6568 = vmatprep.subr.bf16.mxu0 0
    %6569 = vmatpush1.bf16.msra.mxu0 %v4574
    %6570 = vmatprep.subr.bf16.mxu0 0
    %6571 = vmatpush1.bf16.msra.mxu0 %v4573
    %6572 = vmatprep.subr.bf16.mxu0 0
    %6573 = vmatpush1.bf16.msra.mxu0 %v4572
    %6574 = vmatprep.subr.bf16.mxu0 0
    %6575 = vmatpush1.bf16.msra.mxu0 %v4571
    %6576 = vmatprep.subr.bf16.mxu0 0
    %6577 = vmatpush1.bf16.msra.mxu0 %v4570
    %6578 = vmatprep.subr.bf16.mxu0 0
    %6579 = vmatpush2.bf16.msra.mxu0 %v4585
    %6580 = vmatprep.subr.bf16.mxu0 0
    %6581 = vmatpush2.bf16.msra.mxu0 %v4584
    %6582 = vmatprep.subr.bf16.mxu0 0
    %6583 = vmatpush2.bf16.msra.mxu0 %v4583
    %6584 = vmatprep.subr.bf16.mxu0 0
    %6585 = vmatpush2.bf16.msra.mxu0 %v4582
    %6586 = vmatprep.subr.bf16.mxu0 0
    %6587 = vmatpush2.bf16.msra.mxu0 %v4581
    %6588 = vmatprep.subr.bf16.mxu0 0
    %6589 = vmatpush2.bf16.msra.mxu0 %v4580
    %6590 = vmatprep.subr.bf16.mxu0 0
    %6591 = vmatpush2.bf16.msra.mxu0 %v4579
    %6592 = vmatprep.subr.bf16.mxu0 0
    %6593 = vmatpush2.bf16.msra.mxu0 %v4578
    %6594 = vmatprep.mubr.bf16.mxu0 %v1633
    %6595 = vmatmul.mubr.bf16.gmra.mxu0 %v1631
    %v6596 = vpop.f32.mrf.mxu0
    %v6597 = vadd.f32 %v6557, %v6596
    %v6598 = vpop.f32.mrf.mxu0
    %v6599 = vpop.f32.mrf.mxu0
    %v6600 = vpop.f32.mrf.mxu0
    %6601 = vdwg.mxu0
    %v6602 = vmax.f32 %v6597, 0.0
    %vm6603 = vcmask 1041408
    %v6604 = vsel %vm6603, %v6602, -inf
    %6605 = vmax.xlane.f32.xlu0 %v6604
    %v6606 = vpop.xlane.xlu0 %6605
    %v6607 = vsub.f32 %v6602, %v6606
    %v6608 = vmul.f32 %v6607, 1.442695
    %v6609 = vpow.pop %v6608
    %v6610 = vsel %vm6603, %v6609, 0.0
    %6611 = vadd.xlane.f32.xlu0 %v6610
    %v6612 = vpop.xlane.xlu0 %6611
    %v6613 = vlog2.pop %v6612
    %v6614 = vmul.f32 %v6613, 0.6931472
    %v6615 = vadd.f32 %v6614, %v6606
    %v6616 = vsub.f32 %v6602, %v6615
    %6617 = vst [vmem:[#allocation2] sm:$0x3] %v6616
    // Predicated region
    $region14: #{net_forward.3} parent=1 // pred_check
      _
    $region15: #{net_forward.3} parent=1 // pred_check_branch
      %6619 = sbr.rel (0) target = $region17
    $region16: #{net_forward.3} parent=1 // pred_region
      %s6621 = ssub.s32 32, 32
      %6622 = vsyncadd [#allocation3], %s6621
      %s6624 = sshll.u32 [#allocation2], 4
      %s6625 = int_to_ptr.vmem [resolvable:$true] %s6624
      %6627 = dma.vmem_to_hbm [thread:$0]  %s6625, 32, %s3, [#allocation3]
    $region17: #{net_forward.3} parent=1 // pred_fallthru
      _
    // Predicated region
    $region18: #{net_forward.3} parent=1 // pred_check
      _
    $region19: #{net_forward.3} parent=1 // pred_check_branch
      %6629 = sbr.rel (0) target = $region21
    $region20: #{net_forward.3} parent=1 // pred_region
      %6630 = dma.done [#allocation3], 32
    $region21: #{net_forward.3} parent=1 // pred_fallthru
      _
    %6631 = vsyncpa [#allocation3], 1

</llo_original>
